<compile_context>
chip_gen: v7x
topology: tpu7x:2x2x1
jax: 0.10.0
libtpu: 0.0.40
codegen_flags: <defaults>
</compile_context>

<pallas_src>
import functools

import jax
import jax.numpy as jnp
from jax.experimental import pallas as pl
from jax.experimental.pallas import tpu as pltpu


# ----------------------------------------------------------------------------
# Static network configuration (compile-time constants, NOT traced)
# ----------------------------------------------------------------------------
# (cin, cout, k, stride, pad) for the 6 Features stages; x1/x2/x3 = stages 3/4/5.
FEATURE_CFG = [
    (3, 16, 3, 1, 1),
    (16, 32, 3, 2, 1),
    (32, 64, 3, 2, 1),
    (64, 128, 3, 2, 1),     # x1
    (128, 256, 3, 2, 1),    # x2
    (256, 2048, 3, 2, 1),   # x3 -> 2048 channels (matches nn.Linear(2048, ...))
]
NUM_CLASSES = 10
BN_EPS = 1e-5
LANE = 128


def _round_up(x, m):
    return ((x + m - 1) // m) * m


# ----------------------------------------------------------------------------
# Pallas kernel 1: conv-as-matmul with folded-BN bias + ReLU epilogue
# ----------------------------------------------------------------------------
def _conv_mm_kernel(a_ref, w_ref, b_ref, o_ref, *, act):
    # bf16 operands, f32 accumulation on the MXU; epilogue in f32.
    y = jnp.dot(a_ref[...], w_ref[...], preferred_element_type=jnp.float32)
    y = y + b_ref[...]
    if act == "relu":
        y = jnp.maximum(y, 0.0)
    o_ref[...] = y.astype(o_ref.dtype)


def conv_matmul(a, w, bias, act="relu", out_dtype=jnp.bfloat16, tile_m=512):
    """a:(M,K) bf16, w:(K,N) bf16 (BN scale pre-folded), bias:(1,N) f32 -> (M,N).

    K and N are the *real* (unpadded) sizes; blocks use full-array dims for the
    small axes.  M is tiled with a "parallel" grid axis so v7x's two TensorCores
    can share the big early-stage matmuls and VMEM stays bounded.
    """
    M, K = a.shape
    Kw, N = w.shape
    assert K == Kw, (K, Kw)

    tm = M if (M <= tile_m or M % tile_m != 0) else tile_m
    grid = (M // tm,)

    return pl.pallas_call(
        functools.partial(_conv_mm_kernel, act=act),
        out_shape=jax.ShapeDtypeStruct((M, N), out_dtype),
        grid=grid,
        in_specs=[
            pl.BlockSpec((tm, K), lambda i: (i, 0)),     # A: M-tile
            pl.BlockSpec((K, N), lambda i: (0, 0)),      # W: whole (small) matrix
            pl.BlockSpec((1, N), lambda i: (0, 0)),      # folded-BN bias
        ],
        out_specs=pl.BlockSpec((tm, N), lambda i: (i, 0)),
        compiler_params=pltpu.CompilerParams(dimension_semantics=("parallel",)),
    )(a, w, bias)


# ----------------------------------------------------------------------------
# Pallas kernel 2: fused tail = last conv stage + global avg pool (1x1 spatial)
#                  + classifier Linear, accumulated over stage-6 channel tiles
# ----------------------------------------------------------------------------
def _tail_kernel(p_ref, w5_ref, b5_ref, wc_ref, bc_ref, o_ref, acc_ref):
    @pl.when(pl.program_id(0) == 0)
    def _():
        acc_ref[...] = jnp.zeros_like(acc_ref)

    # Stage-6 conv tile: (B, K5) @ (K5, tile_n) -> ReLU'ed (B, tile_n) in f32.
    h = jnp.dot(p_ref[...], w5_ref[...], preferred_element_type=jnp.float32)
    h = jnp.maximum(h + b5_ref[...], 0.0)
    # Classifier contribution of this channel tile; (B, tile_n) @ (tile_n, NC).
    acc_ref[...] += jnp.dot(h.astype(jnp.bfloat16), wc_ref[...],
                            preferred_element_type=jnp.float32)

    @pl.when(pl.program_id(0) == pl.num_programs(0) - 1)
    def _():
        o_ref[...] = (acc_ref[...] + bc_ref[...]).astype(o_ref.dtype)


def tail_fused(patches, w5, b5, wc, bc, tile_n=512):
    """patches:(B,K5) bf16, w5:(K5,2048) bf16, b5:(1,2048) f32,
    wc:(2048,NC_pad) bf16, bc:(1,NC_pad) f32 -> logits (B, NC_pad) f32.

    Grid tiles the 2048-wide stage-6 output channels (a reduction axis for the
    classifier output) -> "arbitrary".  tile_n=512 keeps 4 pipelined steps for
    the ~9.4 MB weight DMA while staying well under every generation's default
    scoped-VMEM limit (~5 MB live).
    """
    B, K5 = patches.shape
    _, N5 = w5.shape
    _, NC = wc.shape
    if N5 % tile_n != 0:
        tile_n = N5
    grid = (N5 // tile_n,)

    return pl.pallas_call(
        _tail_kernel,
        out_shape=jax.ShapeDtypeStruct((B, NC), jnp.float32),
        grid=grid,
        in_specs=[
            pl.BlockSpec((B, K5), lambda j: (0, 0)),        # stage-6 patches
            pl.BlockSpec((K5, tile_n), lambda j: (0, j)),   # stage-6 weight tile
            pl.BlockSpec((1, tile_n), lambda j: (0, j)),    # stage-6 bias tile
            pl.BlockSpec((tile_n, NC), lambda j: (j, 0)),   # classifier rows tile
            pl.BlockSpec((1, NC), lambda j: (0, 0)),        # classifier bias
        ],
        out_specs=pl.BlockSpec((B, NC), lambda j: (0, 0)),
        scratch_shapes=[pltpu.VMEM((B, NC), jnp.float32)],
        compiler_params=pltpu.CompilerParams(dimension_semantics=("arbitrary",)),
    )(patches, w5, b5, wc, bc)


# ----------------------------------------------------------------------------
# Conv = im2col (plain-JAX glue, static strides/pads) + fused Pallas matmul
# ----------------------------------------------------------------------------
def _im2col(x, kh, kw, stride, pad):
    N, H, W, C = x.shape
    xp = jnp.pad(x, ((0, 0), (pad, pad), (pad, pad), (0, 0)))
    Hp, Wp = H + 2 * pad, W + 2 * pad
    Ho = (Hp - kh) // stride + 1
    Wo = (Wp - kw) // stride + 1
    cols = []
    for i in range(kh):
        for j in range(kw):
            cols.append(xp[:, i:i + stride * Ho:stride, j:j + stride * Wo:stride, :])
    patches = jnp.concatenate(cols, axis=-1)              # (N, Ho, Wo, kh*kw*C)
    return patches.reshape(N * Ho * Wo, kh * kw * C), (N, Ho, Wo)


def conv_bn_relu(x, w2d, bias, k, stride, pad):
    """BasicConv (bias=False conv) + folded BatchNorm2d + ReLU, NHWC, bf16."""
    patches, (N, Ho, Wo) = _im2col(x, k, k, stride, pad)
    y = conv_matmul(patches, w2d, bias, act="relu", out_dtype=jnp.bfloat16)
    return y.reshape(N, Ho, Wo, -1)


# ----------------------------------------------------------------------------
# Parameter construction (deterministic, synthetic): real channel counts,
# pre-transposed, BN scale folded into the bf16 weights.
# ----------------------------------------------------------------------------
def init_params(key):
    params = {"features": []}
    for (cin, cout, k, stride, pad) in FEATURE_CFG:
        key, kw_, kg, kb = jax.random.split(key, 4)
        fan_in = cin * k * k
        w = jax.random.normal(kw_, (cout, cin, k, k), jnp.float32) / jnp.sqrt(
            jnp.float32(fan_in))
        gamma = 1.0 + 0.1 * jax.random.normal(kg, (cout,), jnp.float32)
        beta = 0.1 * jax.random.normal(kb, (cout,), jnp.float32)
        run_mean = jnp.zeros((cout,), jnp.float32)
        run_var = jnp.ones((cout,), jnp.float32)
        scale = gamma / jnp.sqrt(run_var + BN_EPS)
        bias = beta - run_mean * scale

        # (cout, cin, kh, kw) -> (kh, kw, cin, cout), matching im2col ordering;
        # fold BN scale per output channel BEFORE the bf16 cast.
        w2d = jnp.transpose(w, (2, 3, 1, 0)).reshape(k * k * cin, cout)
        w2d = (w2d * scale[None, :]).astype(jnp.bfloat16)
        params["features"].append((w2d, bias.reshape(1, cout)))

    key, kw_, kb = jax.random.split(key, 3)
    wl = jax.random.normal(kw_, (NUM_CLASSES, 2048), jnp.float32) / jnp.sqrt(2048.0)
    bl = 0.01 * jax.random.normal(kb, (NUM_CLASSES,), jnp.float32)
    nc_pad = _round_up(NUM_CLASSES, LANE)                 # lane-dense output slab
    wc = jnp.pad(wl.T, ((0, 0), (0, nc_pad - NUM_CLASSES))).astype(jnp.bfloat16)
    bc = jnp.pad(bl, (0, nc_pad - NUM_CLASSES)).reshape(1, nc_pad)
    params["classifier_initial"] = (wc, bc)
    return params


# ----------------------------------------------------------------------------
# Forward pass (Network_Wrapper.forward)
# ----------------------------------------------------------------------------
def forward(params, x_nchw):
    x = jnp.transpose(x_nchw, (0, 2, 3, 1)).astype(jnp.bfloat16)  # NCHW -> NHWC
    h = x
    for (w2d, bias), (cin, cout, k, stride, pad) in zip(
            params["features"][:5], FEATURE_CFG[:5]):
        h = conv_bn_relu(h, w2d, bias, k, stride, pad)
    # (x1, x2 = stage-3/4 outputs are unused by Network_Wrapper.forward)

    w5, b5 = params["features"][5]
    wc, bc = params["classifier_initial"]
    cin, cout, k, stride, pad = FEATURE_CFG[5]
    patches5, (N, Ho, Wo) = _im2col(h, k, k, stride, pad)

    if Ho * Wo == 1:
        # Fused tail: last conv + global avg pool (identity at 1x1) + classifier
        # in a single pallas_call; the (B, 2048) feature never leaves VMEM.
        logits = tail_fused(patches5, w5, b5, wc, bc)          # (B, 128)
    else:
        # TODO(synk): fuse the pool into the tail kernel for spatial > 1x1 too.
        x3 = conv_matmul(patches5, w5, b5, act="relu",
                         out_dtype=jnp.bfloat16).reshape(N, Ho, Wo, cout)
        pooled = jnp.mean(x3.astype(jnp.float32), axis=(1, 2)).astype(jnp.bfloat16)
        logits = conv_matmul(pooled, wc, bc, act=None, out_dtype=jnp.float32)

    return logits[:, :NUM_CLASSES]                             # (B, num_classes)


if __name__ == "__main__":
    key = jax.random.PRNGKey(0)
    kp, kx = jax.random.split(key)
    params = init_params(kp)
    x = jax.random.normal(kx, (2, 3, 32, 32), jnp.float32)     # NCHW, like PyTorch
    out = jax.block_until_ready(jax.jit(forward)(params, x))
    assert out.shape == (2, NUM_CLASSES) and out.dtype == jnp.float32
    print("KERNEL_OK")
</pallas_src>

<mosaic_0001>
module attributes {stable_mosaic.version = 11 : i64} {
  func.func @_conv_mm_kernel(%arg0: i32, %arg1: memref<512x27xbf16, #tpu.memory_space<vmem>>, %arg2: memref<27x16xbf16, #tpu.memory_space<vmem>>, %arg3: memref<1x16xf32, #tpu.memory_space<vmem>>, %arg4: memref<512x16xbf16, #tpu.memory_space<vmem>>) attributes {dimension_semantics = [#tpu.dimension_semantics<parallel>], iteration_bounds = array<i64: 4>, scalar_prefetch = 0 : i64, scratch_operands = 0 : i64, tpu.core_type = #tpu.core_type<tc>, window_params = [{transform_indices = @transform_0, window_bounds = array<i64: 512, 27>}, {pipeline_mode = #tpu.pipeline_mode<synchronous>, transform_indices = @transform_1, window_bounds = array<i64: 27, 16>}, {pipeline_mode = #tpu.pipeline_mode<synchronous>, transform_indices = @transform_2, window_bounds = array<i64: 1, 16>}, {transform_indices = @transform_3, window_bounds = array<i64: 512, 16>}]} {
    %c0 = arith.constant 0 : index
    %c0_0 = arith.constant 0 : index
    %0 = vector.load %arg1[%c0, %c0_0] : memref<512x27xbf16, #tpu.memory_space<vmem>>, vector<512x27xbf16>
    %c0_1 = arith.constant 0 : index
    %c0_2 = arith.constant 0 : index
    %1 = vector.load %arg2[%c0_1, %c0_2] : memref<27x16xbf16, #tpu.memory_space<vmem>>, vector<27x16xbf16>
    %cst = arith.constant dense<0.000000e+00> : vector<512x16xf32>
    %2 = tpu.matmul %0, %1, %cst {dimension_numbers = #tpu.dot_dimension_numbers<[1], [0], [0], [1], [0, 0, 1, 1], [], []>} : vector<512x27xbf16>, vector<27x16xbf16>, vector<512x16xf32> -> vector<512x16xf32>
    %c0_3 = arith.constant 0 : index
    %c0_4 = arith.constant 0 : index
    %3 = vector.load %arg3[%c0_3, %c0_4] : memref<1x16xf32, #tpu.memory_space<vmem>>, vector<1x16xf32>
    %4 = vector.broadcast %3 : vector<1x16xf32> to vector<512x16xf32>
    %5 = arith.addf %2, %4 : vector<512x16xf32>
    %cst_5 = arith.constant 0.000000e+00 : f32
    %6 = vector.broadcast %cst_5 : f32 to vector<512x16xf32>
    %7 = arith.maximumf %5, %6 : vector<512x16xf32>
    %8 = arith.truncf %7 : vector<512x16xf32> to vector<512x16xbf16>
    %c0_6 = arith.constant 0 : index
    %c0_7 = arith.constant 0 : index
    %9 = vector.load %arg4[%c0_6, %c0_7] : memref<512x16xbf16, #tpu.memory_space<vmem>>, vector<512x16xbf16>
    tpu.vector_store %arg4[%c0_6, %c0_7], %8 {strides = array<i32>} : memref<512x16xbf16, #tpu.memory_space<vmem>>, vector<512x16xbf16>,
    return
  }
  func.func @transform_0(%arg0: i32) -> (i32, i32) {
    %c0_i32 = arith.constant 0 : i32
    %c0_i32_0 = arith.constant 0 : i32
    return %arg0, %c0_i32 : i32, i32
  }
  func.func @transform_1(%arg0: i32) -> (i32, i32) {
    %c0_i32 = arith.constant 0 : i32
    %c0_i32_0 = arith.constant 0 : i32
    %c0_i32_1 = arith.constant 0 : i32
    return %c0_i32, %c0_i32_0 : i32, i32
  }
  func.func @transform_2(%arg0: i32) -> (i32, i32) {
    %c0_i32 = arith.constant 0 : i32
    %c0_i32_0 = arith.constant 0 : i32
    %c0_i32_1 = arith.constant 0 : i32
    return %c0_i32, %c0_i32_0 : i32, i32
  }
  func.func @transform_3(%arg0: i32) -> (i32, i32) {
    %c0_i32 = arith.constant 0 : i32
    %c0_i32_0 = arith.constant 0 : i32
    return %arg0, %c0_i32 : i32, i32
  }
}

module attributes {stable_mosaic.version = 11 : i64} {
  func.func @_conv_mm_kernel(%arg0: i32, %arg1: memref<512x144xbf16, #tpu.memory_space<vmem>>, %arg2: memref<144x32xbf16, #tpu.memory_space<vmem>>, %arg3: memref<1x32xf32, #tpu.memory_space<vmem>>, %arg4: memref<512x32xbf16, #tpu.memory_space<vmem>>) attributes {dimension_semantics = [#tpu.dimension_semantics<parallel>], iteration_bounds = array<i64: 1>, scalar_prefetch = 0 : i64, scratch_operands = 0 : i64, tpu.core_type = #tpu.core_type<tc>, window_params = [{transform_indices = @transform_0, window_bounds = array<i64: 512, 144>}, {pipeline_mode = #tpu.pipeline_mode<synchronous>, transform_indices = @transform_1, window_bounds = array<i64: 144, 32>}, {pipeline_mode = #tpu.pipeline_mode<synchronous>, transform_indices = @transform_2, window_bounds = array<i64: 1, 32>}, {transform_indices = @transform_3, window_bounds = array<i64: 512, 32>}]} {
    %c0 = arith.constant 0 : index
    %c0_0 = arith.constant 0 : index
    %0 = vector.load %arg1[%c0, %c0_0] : memref<512x144xbf16, #tpu.memory_space<vmem>>, vector<512x144xbf16>
    %c0_1 = arith.constant 0 : index
    %c0_2 = arith.constant 0 : index
    %1 = vector.load %arg2[%c0_1, %c0_2] : memref<144x32xbf16, #tpu.memory_space<vmem>>, vector<144x32xbf16>
    %cst = arith.constant dense<0.000000e+00> : vector<512x32xf32>
    %2 = tpu.matmul %0, %1, %cst {dimension_numbers = #tpu.dot_dimension_numbers<[1], [0], [0], [1], [0, 0, 1, 1], [], []>} : vector<512x144xbf16>, vector<144x32xbf16>, vector<512x32xf32> -> vector<512x32xf32>
    %c0_3 = arith.constant 0 : index
    %c0_4 = arith.constant 0 : index
    %3 = vector.load %arg3[%c0_3, %c0_4] : memref<1x32xf32, #tpu.memory_space<vmem>>, vector<1x32xf32>
    %4 = vector.broadcast %3 : vector<1x32xf32> to vector<512x32xf32>
    %5 = arith.addf %2, %4 : vector<512x32xf32>
    %cst_5 = arith.constant 0.000000e+00 : f32
    %6 = vector.broadcast %cst_5 : f32 to vector<512x32xf32>
    %7 = arith.maximumf %5, %6 : vector<512x32xf32>
    %8 = arith.truncf %7 : vector<512x32xf32> to vector<512x32xbf16>
    %c0_6 = arith.constant 0 : index
    %c0_7 = arith.constant 0 : index
    %9 = vector.load %arg4[%c0_6, %c0_7] : memref<512x32xbf16, #tpu.memory_space<vmem>>, vector<512x32xbf16>
    tpu.vector_store %arg4[%c0_6, %c0_7], %8 {strides = array<i32>} : memref<512x32xbf16, #tpu.memory_space<vmem>>, vector<512x32xbf16>,
    return
  }
  func.func @transform_0(%arg0: i32) -> (i32, i32) {
    %c0_i32 = arith.constant 0 : i32
    %c0_i32_0 = arith.constant 0 : i32
    return %arg0, %c0_i32 : i32, i32
  }
  func.func @transform_1(%arg0: i32) -> (i32, i32) {
    %c0_i32 = arith.constant 0 : i32
    %c0_i32_0 = arith.constant 0 : i32
    %c0_i32_1 = arith.constant 0 : i32
    return %c0_i32, %c0_i32_0 : i32, i32
  }
  func.func @transform_2(%arg0: i32) -> (i32, i32) {
    %c0_i32 = arith.constant 0 : i32
    %c0_i32_0 = arith.constant 0 : i32
    %c0_i32_1 = arith.constant 0 : i32
    return %c0_i32, %c0_i32_0 : i32, i32
  }
  func.func @transform_3(%arg0: i32) -> (i32, i32) {
    %c0_i32 = arith.constant 0 : i32
    %c0_i32_0 = arith.constant 0 : i32
    return %arg0, %c0_i32 : i32, i32
  }
}

module attributes {stable_mosaic.version = 11 : i64} {
  func.func @_conv_mm_kernel(%arg0: i32, %arg1: memref<128x288xbf16, #tpu.memory_space<vmem>>, %arg2: memref<288x64xbf16, #tpu.memory_space<vmem>>, %arg3: memref<1x64xf32, #tpu.memory_space<vmem>>, %arg4: memref<128x64xbf16, #tpu.memory_space<vmem>>) attributes {dimension_semantics = [#tpu.dimension_semantics<parallel>], iteration_bounds = array<i64: 1>, scalar_prefetch = 0 : i64, scratch_operands = 0 : i64, tpu.core_type = #tpu.core_type<tc>, window_params = [{transform_indices = @transform_0, window_bounds = array<i64: 128, 288>}, {pipeline_mode = #tpu.pipeline_mode<synchronous>, transform_indices = @transform_1, window_bounds = array<i64: 288, 64>}, {pipeline_mode = #tpu.pipeline_mode<synchronous>, transform_indices = @transform_2, window_bounds = array<i64: 1, 64>}, {transform_indices = @transform_3, window_bounds = array<i64: 128, 64>}]} {
    %c0 = arith.constant 0 : index
    %c0_0 = arith.constant 0 : index
    %0 = vector.load %arg1[%c0, %c0_0] : memref<128x288xbf16, #tpu.memory_space<vmem>>, vector<128x288xbf16>
    %c0_1 = arith.constant 0 : index
    %c0_2 = arith.constant 0 : index
    %1 = vector.load %arg2[%c0_1, %c0_2] : memref<288x64xbf16, #tpu.memory_space<vmem>>, vector<288x64xbf16>
    %cst = arith.constant dense<0.000000e+00> : vector<128x64xf32>
    %2 = tpu.matmul %0, %1, %cst {dimension_numbers = #tpu.dot_dimension_numbers<[1], [0], [0], [1], [0, 0, 1, 1], [], []>} : vector<128x288xbf16>, vector<288x64xbf16>, vector<128x64xf32> -> vector<128x64xf32>
    %c0_3 = arith.constant 0 : index
    %c0_4 = arith.constant 0 : index
    %3 = vector.load %arg3[%c0_3, %c0_4] : memref<1x64xf32, #tpu.memory_space<vmem>>, vector<1x64xf32>
    %4 = vector.broadcast %3 : vector<1x64xf32> to vector<128x64xf32>
    %5 = arith.addf %2, %4 : vector<128x64xf32>
    %cst_5 = arith.constant 0.000000e+00 : f32
    %6 = vector.broadcast %cst_5 : f32 to vector<128x64xf32>
    %7 = arith.maximumf %5, %6 : vector<128x64xf32>
    %8 = arith.truncf %7 : vector<128x64xf32> to vector<128x64xbf16>
    %c0_6 = arith.constant 0 : index
    %c0_7 = arith.constant 0 : index
    %9 = vector.load %arg4[%c0_6, %c0_7] : memref<128x64xbf16, #tpu.memory_space<vmem>>, vector<128x64xbf16>
    tpu.vector_store %arg4[%c0_6, %c0_7], %8 {strides = array<i32>} : memref<128x64xbf16, #tpu.memory_space<vmem>>, vector<128x64xbf16>,
    return
  }
  func.func @transform_0(%arg0: i32) -> (i32, i32) {
    %c0_i32 = arith.constant 0 : i32
    %c0_i32_0 = arith.constant 0 : i32
    return %arg0, %c0_i32 : i32, i32
  }
  func.func @transform_1(%arg0: i32) -> (i32, i32) {
    %c0_i32 = arith.constant 0 : i32
    %c0_i32_0 = arith.constant 0 : i32
    %c0_i32_1 = arith.constant 0 : i32
    return %c0_i32, %c0_i32_0 : i32, i32
  }
  func.func @transform_2(%arg0: i32) -> (i32, i32) {
    %c0_i32 = arith.constant 0 : i32
    %c0_i32_0 = arith.constant 0 : i32
    %c0_i32_1 = arith.constant 0 : i32
    return %c0_i32, %c0_i32_0 : i32, i32
  }
  func.func @transform_3(%arg0: i32) -> (i32, i32) {
    %c0_i32 = arith.constant 0 : i32
    %c0_i32_0 = arith.constant 0 : i32
    return %arg0, %c0_i32 : i32, i32
  }
}

module attributes {stable_mosaic.version = 11 : i64} {
  func.func @_conv_mm_kernel(%arg0: i32, %arg1: memref<32x576xbf16, #tpu.memory_space<vmem>>, %arg2: memref<576x128xbf16, #tpu.memory_space<vmem>>, %arg3: memref<1x128xf32, #tpu.memory_space<vmem>>, %arg4: memref<32x128xbf16, #tpu.memory_space<vmem>>) attributes {dimension_semantics = [#tpu.dimension_semantics<parallel>], iteration_bounds = array<i64: 1>, scalar_prefetch = 0 : i64, scratch_operands = 0 : i64, tpu.core_type = #tpu.core_type<tc>, window_params = [{transform_indices = @transform_0, window_bounds = array<i64: 32, 576>}, {pipeline_mode = #tpu.pipeline_mode<synchronous>, transform_indices = @transform_1, window_bounds = array<i64: 576, 128>}, {pipeline_mode = #tpu.pipeline_mode<synchronous>, transform_indices = @transform_2, window_bounds = array<i64: 1, 128>}, {transform_indices = @transform_3, window_bounds = array<i64: 32, 128>}]} {
    %c0 = arith.constant 0 : index
    %c0_0 = arith.constant 0 : index
    %0 = vector.load %arg1[%c0, %c0_0] : memref<32x576xbf16, #tpu.memory_space<vmem>>, vector<32x576xbf16>
    %c0_1 = arith.constant 0 : index
    %c0_2 = arith.constant 0 : index
    %1 = vector.load %arg2[%c0_1, %c0_2] : memref<576x128xbf16, #tpu.memory_space<vmem>>, vector<576x128xbf16>
    %cst = arith.constant dense<0.000000e+00> : vector<32x128xf32>
    %2 = tpu.matmul %0, %1, %cst {dimension_numbers = #tpu.dot_dimension_numbers<[1], [0], [0], [1], [0, 0, 1, 1], [], []>} : vector<32x576xbf16>, vector<576x128xbf16>, vector<32x128xf32> -> vector<32x128xf32>
    %c0_3 = arith.constant 0 : index
    %c0_4 = arith.constant 0 : index
    %3 = vector.load %arg3[%c0_3, %c0_4] : memref<1x128xf32, #tpu.memory_space<vmem>>, vector<1x128xf32>
    %4 = vector.broadcast %3 : vector<1x128xf32> to vector<32x128xf32>
    %5 = arith.addf %2, %4 : vector<32x128xf32>
    %cst_5 = arith.constant 0.000000e+00 : f32
    %6 = vector.broadcast %cst_5 : f32 to vector<32x128xf32>
    %7 = arith.maximumf %5, %6 : vector<32x128xf32>
    %8 = arith.truncf %7 : vector<32x128xf32> to vector<32x128xbf16>
    %c0_6 = arith.constant 0 : index
    %c0_7 = arith.constant 0 : index
    %9 = vector.load %arg4[%c0_6, %c0_7] : memref<32x128xbf16, #tpu.memory_space<vmem>>, vector<32x128xbf16>
    tpu.vector_store %arg4[%c0_6, %c0_7], %8 {strides = array<i32>} : memref<32x128xbf16, #tpu.memory_space<vmem>>, vector<32x128xbf16>,
    return
  }
  func.func @transform_0(%arg0: i32) -> (i32, i32) {
    %c0_i32 = arith.constant 0 : i32
    %c0_i32_0 = arith.constant 0 : i32
    return %arg0, %c0_i32 : i32, i32
  }
  func.func @transform_1(%arg0: i32) -> (i32, i32) {
    %c0_i32 = arith.constant 0 : i32
    %c0_i32_0 = arith.constant 0 : i32
    %c0_i32_1 = arith.constant 0 : i32
    return %c0_i32, %c0_i32_0 : i32, i32
  }
  func.func @transform_2(%arg0: i32) -> (i32, i32) {
    %c0_i32 = arith.constant 0 : i32
    %c0_i32_0 = arith.constant 0 : i32
    %c0_i32_1 = arith.constant 0 : i32
    return %c0_i32, %c0_i32_0 : i32, i32
  }
  func.func @transform_3(%arg0: i32) -> (i32, i32) {
    %c0_i32 = arith.constant 0 : i32
    %c0_i32_0 = arith.constant 0 : i32
    return %arg0, %c0_i32 : i32, i32
  }
}

module attributes {stable_mosaic.version = 11 : i64} {
  func.func @_conv_mm_kernel(%arg0: i32, %arg1: memref<8x1152xbf16, #tpu.memory_space<vmem>>, %arg2: memref<1152x256xbf16, #tpu.memory_space<vmem>>, %arg3: memref<1x256xf32, #tpu.memory_space<vmem>>, %arg4: memref<8x256xbf16, #tpu.memory_space<vmem>>) attributes {dimension_semantics = [#tpu.dimension_semantics<parallel>], iteration_bounds = array<i64: 1>, scalar_prefetch = 0 : i64, scratch_operands = 0 : i64, tpu.core_type = #tpu.core_type<tc>, window_params = [{transform_indices = @transform_0, window_bounds = array<i64: 8, 1152>}, {pipeline_mode = #tpu.pipeline_mode<synchronous>, transform_indices = @transform_1, window_bounds = array<i64: 1152, 256>}, {pipeline_mode = #tpu.pipeline_mode<synchronous>, transform_indices = @transform_2, window_bounds = array<i64: 1, 256>}, {transform_indices = @transform_3, window_bounds = array<i64: 8, 256>}]} {
    %c0 = arith.constant 0 : index
    %c0_0 = arith.constant 0 : index
    %0 = vector.load %arg1[%c0, %c0_0] : memref<8x1152xbf16, #tpu.memory_space<vmem>>, vector<8x1152xbf16>
    %c0_1 = arith.constant 0 : index
    %c0_2 = arith.constant 0 : index
    %1 = vector.load %arg2[%c0_1, %c0_2] : memref<1152x256xbf16, #tpu.memory_space<vmem>>, vector<1152x256xbf16>
    %cst = arith.constant dense<0.000000e+00> : vector<8x256xf32>
    %2 = tpu.matmul %0, %1, %cst {dimension_numbers = #tpu.dot_dimension_numbers<[1], [0], [0], [1], [0, 0, 1, 1], [], []>} : vector<8x1152xbf16>, vector<1152x256xbf16>, vector<8x256xf32> -> vector<8x256xf32>
    %c0_3 = arith.constant 0 : index
    %c0_4 = arith.constant 0 : index
    %3 = vector.load %arg3[%c0_3, %c0_4] : memref<1x256xf32, #tpu.memory_space<vmem>>, vector<1x256xf32>
    %4 = vector.broadcast %3 : vector<1x256xf32> to vector<8x256xf32>
    %5 = arith.addf %2, %4 : vector<8x256xf32>
    %cst_5 = arith.constant 0.000000e+00 : f32
    %6 = vector.broadcast %cst_5 : f32 to vector<8x256xf32>
    %7 = arith.maximumf %5, %6 : vector<8x256xf32>
    %8 = arith.truncf %7 : vector<8x256xf32> to vector<8x256xbf16>
    %c0_6 = arith.constant 0 : index
    %c0_7 = arith.constant 0 : index
    %9 = vector.load %arg4[%c0_6, %c0_7] : memref<8x256xbf16, #tpu.memory_space<vmem>>, vector<8x256xbf16>
    tpu.vector_store %arg4[%c0_6, %c0_7], %8 {strides = array<i32>} : memref<8x256xbf16, #tpu.memory_space<vmem>>, vector<8x256xbf16>,
    return
  }
  func.func @transform_0(%arg0: i32) -> (i32, i32) {
    %c0_i32 = arith.constant 0 : i32
    %c0_i32_0 = arith.constant 0 : i32
    return %arg0, %c0_i32 : i32, i32
  }
  func.func @transform_1(%arg0: i32) -> (i32, i32) {
    %c0_i32 = arith.constant 0 : i32
    %c0_i32_0 = arith.constant 0 : i32
    %c0_i32_1 = arith.constant 0 : i32
    return %c0_i32, %c0_i32_0 : i32, i32
  }
  func.func @transform_2(%arg0: i32) -> (i32, i32) {
    %c0_i32 = arith.constant 0 : i32
    %c0_i32_0 = arith.constant 0 : i32
    %c0_i32_1 = arith.constant 0 : i32
    return %c0_i32, %c0_i32_0 : i32, i32
  }
  func.func @transform_3(%arg0: i32) -> (i32, i32) {
    %c0_i32 = arith.constant 0 : i32
    %c0_i32_0 = arith.constant 0 : i32
    return %arg0, %c0_i32 : i32, i32
  }
}

module attributes {stable_mosaic.version = 11 : i64} {
  func.func @_tail_kernel(%arg0: i32, %arg1: memref<2x2304xbf16, #tpu.memory_space<vmem>>, %arg2: memref<2304x512xbf16, #tpu.memory_space<vmem>>, %arg3: memref<1x512xf32, #tpu.memory_space<vmem>>, %arg4: memref<512x128xbf16, #tpu.memory_space<vmem>>, %arg5: memref<1x128xf32, #tpu.memory_space<vmem>>, %arg6: memref<2x128xf32, #tpu.memory_space<vmem>>, %arg7: memref<2x128xf32, #tpu.memory_space<vmem>>) attributes {dimension_semantics = [#tpu.dimension_semantics<arbitrary>], iteration_bounds = array<i64: 4>, scalar_prefetch = 0 : i64, scratch_operands = 1 : i64, tpu.core_type = #tpu.core_type<tc>, window_params = [{pipeline_mode = #tpu.pipeline_mode<synchronous>, transform_indices = @transform_0, window_bounds = array<i64: 2, 2304>}, {transform_indices = @transform_1, window_bounds = array<i64: 2304, 512>}, {transform_indices = @transform_2, window_bounds = array<i64: 1, 512>}, {transform_indices = @transform_3, window_bounds = array<i64: 512, 128>}, {pipeline_mode = #tpu.pipeline_mode<synchronous>, transform_indices = @transform_4, window_bounds = array<i64: 1, 128>}, {pipeline_mode = #tpu.pipeline_mode<synchronous>, transform_indices = @transform_5, window_bounds = array<i64: 2, 128>}]} {
    %c0_i32 = arith.constant 0 : i32
    %0 = arith.cmpi eq, %arg0, %c0_i32 : i32
    %1 = arith.extui %0 : i1 to i32
    %c0_i32_0 = arith.constant 0 : i32
    %2 = arith.cmpi ne, %1, %c0_i32_0 : i32
    scf.if %2 {
      %cst_15 = arith.constant 0.000000e+00 : f32
      %20 = vector.broadcast %cst_15 : f32 to vector<2x128xf32>
      %c0_16 = arith.constant 0 : index
      %c0_17 = arith.constant 0 : index
      %21 = vector.load %arg7[%c0_16, %c0_17] : memref<2x128xf32, #tpu.memory_space<vmem>>, vector<2x128xf32>
      tpu.vector_store %arg7[%c0_16, %c0_17], %20 {strides = array<i32>} : memref<2x128xf32, #tpu.memory_space<vmem>>, vector<2x128xf32>,
    } else {
    }
    %c0 = arith.constant 0 : index
    %c0_1 = arith.constant 0 : index
    %3 = vector.load %arg1[%c0, %c0_1] : memref<2x2304xbf16, #tpu.memory_space<vmem>>, vector<2x2304xbf16>
    %c0_2 = arith.constant 0 : index
    %c0_3 = arith.constant 0 : index
    %4 = vector.load %arg2[%c0_2, %c0_3] : memref<2304x512xbf16, #tpu.memory_space<vmem>>, vector<2304x512xbf16>
    %cst = arith.constant dense<0.000000e+00> : vector<2x512xf32>
    %5 = tpu.matmul %3, %4, %cst {dimension_numbers = #tpu.dot_dimension_numbers<[1], [0], [0], [1], [0, 0, 1, 1], [], []>} : vector<2x2304xbf16>, vector<2304x512xbf16>, vector<2x512xf32> -> vector<2x512xf32>
    %c0_4 = arith.constant 0 : index
    %c0_5 = arith.constant 0 : index
    %6 = vector.load %arg3[%c0_4, %c0_5] : memref<1x512xf32, #tpu.memory_space<vmem>>, vector<1x512xf32>
    %7 = vector.broadcast %6 : vector<1x512xf32> to vector<2x512xf32>
    %8 = arith.addf %5, %7 : vector<2x512xf32>
    %cst_6 = arith.constant 0.000000e+00 : f32
    %9 = vector.broadcast %cst_6 : f32 to vector<2x512xf32>
    %10 = arith.maximumf %8, %9 : vector<2x512xf32>
    %c0_7 = arith.constant 0 : index
    %c0_8 = arith.constant 0 : index
    %11 = vector.load %arg7[%c0_7, %c0_8] : memref<2x128xf32, #tpu.memory_space<vmem>>, vector<2x128xf32>
    %12 = arith.truncf %10 : vector<2x512xf32> to vector<2x512xbf16>
    %c0_9 = arith.constant 0 : index
    %c0_10 = arith.constant 0 : index
    %13 = vector.load %arg4[%c0_9, %c0_10] : memref<512x128xbf16, #tpu.memory_space<vmem>>, vector<512x128xbf16>
    %cst_11 = arith.constant dense<0.000000e+00> : vector<2x128xf32>
    %14 = tpu.matmul %12, %13, %cst_11 {dimension_numbers = #tpu.dot_dimension_numbers<[1], [0], [0], [1], [0, 0, 1, 1], [], []>} : vector<2x512xbf16>, vector<512x128xbf16>, vector<2x128xf32> -> vector<2x128xf32>
    %15 = arith.addf %11, %14 : vector<2x128xf32>
    %c0_12 = arith.constant 0 : index
    %c0_13 = arith.constant 0 : index
    %16 = vector.load %arg7[%c0_12, %c0_13] : memref<2x128xf32, #tpu.memory_space<vmem>>, vector<2x128xf32>
    tpu.vector_store %arg7[%c0_12, %c0_13], %15 {strides = array<i32>} : memref<2x128xf32, #tpu.memory_space<vmem>>, vector<2x128xf32>,
    %c3_i32 = arith.constant 3 : i32
    %17 = arith.cmpi eq, %arg0, %c3_i32 : i32
    %18 = arith.extui %17 : i1 to i32
    %c0_i32_14 = arith.constant 0 : i32
    %19 = arith.cmpi ne, %18, %c0_i32_14 : i32
    scf.if %19 {
      %c0_15 = arith.constant 0 : index
      %c0_16 = arith.constant 0 : index
      %20 = vector.load %arg7[%c0_15, %c0_16] : memref<2x128xf32, #tpu.memory_space<vmem>>, vector<2x128xf32>
      %c0_17 = arith.constant 0 : index
      %c0_18 = arith.constant 0 : index
      %21 = vector.load %arg5[%c0_17, %c0_18] : memref<1x128xf32, #tpu.memory_space<vmem>>, vector<1x128xf32>
      %22 = vector.broadcast %21 : vector<1x128xf32> to vector<2x128xf32>
      %23 = arith.addf %20, %22 : vector<2x128xf32>
      %c0_19 = arith.constant 0 : index
      %c0_20 = arith.constant 0 : index
      %24 = vector.load %arg6[%c0_19, %c0_20] : memref<2x128xf32, #tpu.memory_space<vmem>>, vector<2x128xf32>
      tpu.vector_store %arg6[%c0_19, %c0_20], %23 {strides = array<i32>} : memref<2x128xf32, #tpu.memory_space<vmem>>, vector<2x128xf32>,
    } else {
    }
    return
  }
  func.func @transform_0(%arg0: i32) -> (i32, i32) {
    %c0_i32 = arith.constant 0 : i32
    %c0_i32_0 = arith.constant 0 : i32
    %c0_i32_1 = arith.constant 0 : i32
    return %c0_i32, %c0_i32_0 : i32, i32
  }
  func.func @transform_1(%arg0: i32) -> (i32, i32) {
    %c0_i32 = arith.constant 0 : i32
    %c0_i32_0 = arith.constant 0 : i32
    return %c0_i32, %arg0 : i32, i32
  }
  func.func @transform_2(%arg0: i32) -> (i32, i32) {
    %c0_i32 = arith.constant 0 : i32
    %c0_i32_0 = arith.constant 0 : i32
    return %c0_i32, %arg0 : i32, i32
  }
  func.func @transform_3(%arg0: i32) -> (i32, i32) {
    %c0_i32 = arith.constant 0 : i32
    %c0_i32_0 = arith.constant 0 : i32
    return %arg0, %c0_i32 : i32, i32
  }
  func.func @transform_4(%arg0: i32) -> (i32, i32) {
    %c0_i32 = arith.constant 0 : i32
    %c0_i32_0 = arith.constant 0 : i32
    %c0_i32_1 = arith.constant 0 : i32
    return %c0_i32, %c0_i32_0 : i32, i32
  }
  func.func @transform_5(%arg0: i32) -> (i32, i32) {
    %c0_i32 = arith.constant 0 : i32
    %c0_i32_0 = arith.constant 0 : i32
    %c0_i32_1 = arith.constant 0 : i32
    return %c0_i32, %c0_i32_0 : i32, i32
  }
}

</mosaic_0001>

<llo_original>
// kernel: forward.6
$region0: #{forward.6}
  #allocation0 [shape = 'u32[]', space=smem, size = 0x4, offset = 0x4, fixed_abs, tag = 'smem constant byte address 0x4 - core index']
  #allocation1 [shape = 'u32[144,128]{1,0:T(1,128)}', space=vmem, size = 0x12000, scoped, tag = 'internal scratch']
  %s0 = inlined_call_operand.vmem [shape: bf16[2048,27], index: 0, kind: input, shape index: {}]
  %s1 = inlined_call_operand.vmem [shape: bf16[27,16], index: 1, kind: input, shape index: {}]
  %s2 = inlined_call_operand.hbm [shape: f32[1,16], index: 2, kind: input, shape index: {}]
  %s3 = inlined_call_operand.vmem [shape: bf16[2048,16], index: 3, kind: output, shape index: {}]
  %s4 = sld [smem:[#allocation0]]
  $region49: #{forward.6} parent=0
    _
  %s6 = ssub.s32 1, %s4
  %s7 = scalar_select 0, %s6, %s4
  $region1: #{forward.6} parent=0
    #allocation2 [shape = 'u8[512]{0}', space=vmem, size = 0x400, scoped, tag = 'input window, operand 2, single buffered']
    #allocation3 [shape = 's32[2]{0}', space=sflag, size = 0x8, scoped, tag = 'scoped memory for forward.6']
    %8 = vsyncpa [#allocation3], 0
    loop: start=0, step=1, limit=6
    $region2: #{forward.6} parent=1 // loop_pre_header
      _
    $region3: #{forward.6} parent=1 // loop_header
      %s10 = sphi 0, %s14
      %p11 = scmp.ge.s32.totalorder %s10, 6
      %s20 = sphi 0, %s22
      %s23 = sphi 0, %s20
      %s24 = sphi 0, %s23
      %s40 = sphi 0, %s24
      %s44 = sphi 0, %s44
      %s46 = sphi 0, %s44
      %s47 = sphi 0, %s46
      %s61 = sphi 0, %s47
      %s65 = sphi 0, %s65
      %s67 = sphi 0, %s65
      %s68 = sphi 0, %s67
      %s82 = sphi 0, %s68
      %s88 = sphi 0, %s90
      %s91 = sphi 0, %s88
      %s92 = sphi 0, %s91
      %s108 = sphi 0, %s92
    $region4: #{forward.6} parent=1 // loop_header_branch
      %13 = sbr.rel (%p11) target = $region8
    $region5: #{forward.6} parent=1 // loop_body
      %s15 = ssub.s32 %s10, 1
      %s16 = ssub.s32 %s10, 2
      %s17 = sadd.s32 %s10, 1
      %s18 = ssub.s32 %s10, %s17
      %p19 = scmp.eq.s32.totalorder %s18, 0
      %s21 = sadd.s32 %s20, 1
      %s22 = scalar_select %p19, %s20, %s21
      %p25 = pneg %p19
      %p26 = scmp.eq.s32.totalorder %s10, 3
      %p27 = por %p25, %p26
      %p28 = scmp.ne.s32.totalorder %s20, %s23
      %p29 = scmp.eq.s32.totalorder %s10, 0
      %p30 = por %p28, %p29
      %p31 = scmp.ne.s32.totalorder %s20, %s23
      %p32 = scmp.eq.s32.totalorder %s15, 3
      %p33 = por %p31, %p32
      %p34 = scmp.ne.s32.totalorder %s23, %s24
      %p35 = scmp.eq.s32.totalorder %s15, 0
      %p36 = por %p34, %p35
      %p37 = scmp.ne.s32.totalorder %s23, %s24
      %p38 = scmp.eq.s32.totalorder %s16, 3
      %p39 = por %p37, %p38
      %p41 = scmp.ne.s32.totalorder %s24, %s40
      %p42 = scmp.eq.s32.totalorder %s16, 0
      %p43 = por %p41, %p42
      %s45 = sadd.s32 %s44, 1
      %p48 = scmp.eq.s32.totalorder %s10, 3
      %p49 = scmp.ne.s32.totalorder %s44, %s46
      %p50 = scmp.eq.s32.totalorder %s10, 0
      %p51 = por %p49, %p50
      %p52 = scmp.ne.s32.totalorder %s44, %s46
      %p53 = scmp.eq.s32.totalorder %s15, 3
      %p54 = por %p52, %p53
      %p55 = scmp.ne.s32.totalorder %s46, %s47
      %p56 = scmp.eq.s32.totalorder %s15, 0
      %p57 = por %p55, %p56
      %p58 = scmp.ne.s32.totalorder %s46, %s47
      %p59 = scmp.eq.s32.totalorder %s16, 3
      %p60 = por %p58, %p59
      %p62 = scmp.ne.s32.totalorder %s47, %s61
      %p63 = scmp.eq.s32.totalorder %s16, 0
      %p64 = por %p62, %p63
      %s66 = sadd.s32 %s65, 1
      %p69 = scmp.eq.s32.totalorder %s10, 3
      %p70 = scmp.ne.s32.totalorder %s65, %s67
      %p71 = scmp.eq.s32.totalorder %s10, 0
      %p72 = por %p70, %p71
      %p73 = scmp.ne.s32.totalorder %s65, %s67
      %p74 = scmp.eq.s32.totalorder %s15, 3
      %p75 = por %p73, %p74
      %p76 = scmp.ne.s32.totalorder %s67, %s68
      %p77 = scmp.eq.s32.totalorder %s15, 0
      %p78 = por %p76, %p77
      %p79 = scmp.ne.s32.totalorder %s67, %s68
      %p80 = scmp.eq.s32.totalorder %s16, 3
      %p81 = por %p79, %p80
      %p83 = scmp.ne.s32.totalorder %s68, %s82
      %p84 = scmp.eq.s32.totalorder %s16, 0
      %p85 = por %p83, %p84
      %s86 = ssub.s32 %s10, %s17
      %p87 = scmp.eq.s32.totalorder %s86, 0
      %s89 = sadd.s32 %s88, 1
      %s90 = scalar_select %p87, %s88, %s89
      %p93 = pneg %p87
      %p94 = scmp.eq.s32.totalorder %s10, 3
      %p95 = por %p93, %p94
      %p96 = scmp.ne.s32.totalorder %s88, %s91
      %p97 = scmp.eq.s32.totalorder %s10, 0
      %p98 = por %p96, %p97
      %p99 = scmp.ne.s32.totalorder %s88, %s91
      %p100 = scmp.eq.s32.totalorder %s15, 3
      %p101 = por %p99, %p100
      %p102 = scmp.ne.s32.totalorder %s91, %s92
      %p103 = scmp.eq.s32.totalorder %s15, 0
      %p104 = por %p102, %p103
      %p105 = scmp.ne.s32.totalorder %s91, %s92
      %p106 = scmp.eq.s32.totalorder %s16, 3
      %p107 = por %p105, %p106
      %p109 = scmp.ne.s32.totalorder %s92, %s108
      %p110 = scmp.eq.s32.totalorder %s16, 0
      %p111 = por %p109, %p110
      %p112 = scmp.le.s32.totalorder 1, %s10
      %p113 = scmp.lt.s32.totalorder %s10, 5
      %p114 = pnand %p112, %p113
      %p115 = pneg %p114
      // Predicated region
      $region9: #{forward.6} parent=5 // pred_check
        _
      $region10: #{forward.6} parent=5 // pred_check_branch
        %117 = sbr.rel (%p114) target = $region12
      $region11: #{forward.6} parent=5 // pred_region
        %s118 = ssub.s32 %s10, 1
        // Predicated region
        $region13: #{forward.6} parent=11 // pred_check
          %p119 = pneg %p57
        $region14: #{forward.6} parent=11 // pred_check_branch
          %121 = sbr.rel (%p119) target = $region16
        $region15: #{forward.6} parent=11 // pred_region
          _
        $region16: #{forward.6} parent=11 // pred_fallthru
          _
        // Predicated region
        $region17: #{forward.6} parent=11 // pred_check
          %p122 = pneg %p78
        $region18: #{forward.6} parent=11 // pred_check_branch
          %124 = sbr.rel (%p122) target = $region20
        $region19: #{forward.6} parent=11 // pred_region
          %s126 = ssub.s32 16, 16
          %127 = vsyncadd [#allocation3], %s126
          %s129 = sshll.u32 [#allocation2], 4
          %s130 = int_to_ptr.vmem [resolvable:$true] %s129
          %132 = dma.hbm_to_vmem [thread:$0]  %s2, 16, %s130, [#allocation3]
        $region20: #{forward.6} parent=11 // pred_fallthru
          _
      $region12: #{forward.6} parent=5 // pred_fallthru
        _
      %p133 = scmp.lt.s32.totalorder %s10, 4
      // Predicated region
      $region21: #{forward.6} parent=5 // pred_check
        %p134 = pneg %p133
      $region22: #{forward.6} parent=5 // pred_check_branch
        %136 = sbr.rel (%p134) target = $region24
      $region23: #{forward.6} parent=5 // pred_region
        // Predicated region
        $region25: #{forward.6} parent=23 // pred_check
          %p137 = pneg %p30
        $region26: #{forward.6} parent=23 // pred_check_branch
          %139 = sbr.rel (%p137) target = $region28
        $region27: #{forward.6} parent=23 // pred_region
          %s140 = smul.u32 64, %s10
          %p141 = scmp.lt.s32.totalorder %s140, 255
          %s142 = scalar_select %p141, %s140, 255
          %s143 = smul.addr %s142, 4
          %s144 = scalar_lea.vmem %s0, %s143
          %s145 = smul.u32 64, %s10
        $region28: #{forward.6} parent=23 // pred_fallthru
          _
      $region24: #{forward.6} parent=5 // pred_fallthru
        _
      %p146 = scmp.le.s32.totalorder 1, %s10
      %p147 = scmp.lt.s32.totalorder %s10, 5
      %p148 = pnand %p146, %p147
      %p149 = pneg %p148
      // Predicated region
      $region29: #{forward.6} parent=5 // pred_check
        _
      $region30: #{forward.6} parent=5 // pred_check_branch
        %151 = sbr.rel (%p148) target = $region32
      $region31: #{forward.6} parent=5 // pred_region
        %s152 = ssub.s32 %s10, 1
        // Predicated region
        $region33: #{forward.6} parent=31 // pred_check
          %p153 = pneg %p78
        $region34: #{forward.6} parent=31 // pred_check_branch
          %155 = sbr.rel (%p153) target = $region36
        $region35: #{forward.6} parent=31 // pred_region
          %156 = dma.done [#allocation3], 16
        $region36: #{forward.6} parent=31 // pred_fallthru
          _
        %s157 = smul.u32 64, %s15
        %p158 = scmp.lt.s32.totalorder %s157, 255
        %s159 = scalar_select %p158, %s157, 255
        %s160 = smul.addr %s159, 4
        %s161 = scalar_lea.vmem %s0, %s160
        %p162 = pneg %p36
        %p163 = pneg %p33
        %p164 = pneg %p57
        %p165 = pneg %p54
        %p166 = pneg %p78
        %p167 = pneg %p75
        %p168 = pneg %p104
        %p169 = pneg %p101
        %s170 = smul.u32 64, %s15
        %p171 = scmp.lt.s32.totalorder %s170, 255
        %s172 = scalar_select %p171, %s170, 255
        %s173 = smul.addr %s172, 4
        %s174 = scalar_lea.vmem %s3, %s173
        %s175 = smul.u32 64, %s15
        %p176 = scmp.lt.s32.totalorder %s175, 255
        %s177 = scalar_select %p176, %s175, 255
        %s178 = smul.addr %s177, 4
        %s179 = scalar_lea.vmem %s0, %s178
        %s180 = smul.u32 64, %s15
        %s181 = smul.u32 64, %s15
        %p182 = scmp.lt.s32.totalorder %s181, 255
        %s183 = scalar_select %p182, %s181, 255
        %s184 = smul.addr %s183, 4
        %s185 = scalar_lea.vmem %s3, %s184
        %s186 = smul.u32 64, %s15
        %v188 = vld [vmem:[%s179] sm:$0xf]
        %v189 = vld [vmem:[%s179 + $0x4] sm:$0xf]
        %v190 = vld [vmem:[%s179 + $0x8] sm:$0xf]
        %v191 = vld [vmem:[%s179 + $0xc] sm:$0xf]
        %v192 = vld [vmem:[%s179 + $0x10] sm:$0xf]
        %v193 = vld [vmem:[%s179 + $0x14] sm:$0xf]
        %v194 = vld [vmem:[%s179 + $0x18] sm:$0xf]
        %v195 = vld [vmem:[%s179 + $0x1c] sm:$0xf]
        %v196 = vld [vmem:[%s179 + $0x20] sm:$0xf]
        %v197 = vld [vmem:[%s179 + $0x24] sm:$0xf]
        %v198 = vld [vmem:[%s179 + $0x28] sm:$0xf]
        %v199 = vld [vmem:[%s179 + $0x2c] sm:$0xf]
        %v200 = vld [vmem:[%s179 + $0x30] sm:$0xf]
        %v201 = vld [vmem:[%s179 + $0x34] sm:$0xf]
        %v202 = vld [vmem:[%s179 + $0x38] sm:$0xf]
        %v203 = vld [vmem:[%s179 + $0x3c] sm:$0xf]
        %v204 = vld [vmem:[%s179 + $0x40] sm:$0xf]
        %v205 = vld [vmem:[%s179 + $0x44] sm:$0xf]
        %v206 = vld [vmem:[%s179 + $0x48] sm:$0xf]
        %v207 = vld [vmem:[%s179 + $0x4c] sm:$0xf]
        %v208 = vld [vmem:[%s179 + $0x50] sm:$0xf]
        %v209 = vld [vmem:[%s179 + $0x54] sm:$0xf]
        %v210 = vld [vmem:[%s179 + $0x58] sm:$0xf]
        %v211 = vld [vmem:[%s179 + $0x5c] sm:$0xf]
        %v212 = vld [vmem:[%s179 + $0x60] sm:$0xf]
        %v213 = vld [vmem:[%s179 + $0x64] sm:$0xf]
        %v214 = vld [vmem:[%s179 + $0x68] sm:$0xf]
        %v215 = vld [vmem:[%s179 + $0x6c] sm:$0xf]
        %v216 = vld [vmem:[%s179 + $0x70] sm:$0xf]
        %v217 = vld [vmem:[%s179 + $0x74] sm:$0xf]
        %v218 = vld [vmem:[%s179 + $0x78] sm:$0xf]
        %v219 = vld [vmem:[%s179 + $0x7c] sm:$0xf]
        %v220 = vld [vmem:[%s179 + $0x80] sm:$0xf]
        %v221 = vld [vmem:[%s179 + $0x84] sm:$0xf]
        %v222 = vld [vmem:[%s179 + $0x88] sm:$0xf]
        %v223 = vld [vmem:[%s179 + $0x8c] sm:$0xf]
        %v224 = vld [vmem:[%s179 + $0x90] sm:$0xf]
        %v225 = vld [vmem:[%s179 + $0x94] sm:$0xf]
        %v226 = vld [vmem:[%s179 + $0x98] sm:$0xf]
        %v227 = vld [vmem:[%s179 + $0x9c] sm:$0xf]
        %v228 = vld [vmem:[%s179 + $0xa0] sm:$0xf]
        %v229 = vld [vmem:[%s179 + $0xa4] sm:$0xf]
        %v230 = vld [vmem:[%s179 + $0xa8] sm:$0xf]
        %v231 = vld [vmem:[%s179 + $0xac] sm:$0xf]
        %v232 = vld [vmem:[%s179 + $0xb0] sm:$0xf]
        %v233 = vld [vmem:[%s179 + $0xb4] sm:$0xf]
        %v234 = vld [vmem:[%s179 + $0xb8] sm:$0xf]
        %v235 = vld [vmem:[%s179 + $0xbc] sm:$0xf]
        %v236 = vld [vmem:[%s179 + $0xc0] sm:$0xf]
        %v237 = vld [vmem:[%s179 + $0xc4] sm:$0xf]
        %v238 = vld [vmem:[%s179 + $0xc8] sm:$0xf]
        %v239 = vld [vmem:[%s179 + $0xcc] sm:$0xf]
        %v240 = vld [vmem:[%s179 + $0xd0] sm:$0xf]
        %v241 = vld [vmem:[%s179 + $0xd4] sm:$0xf]
        %v242 = vld [vmem:[%s179 + $0xd8] sm:$0xf]
        %v243 = vld [vmem:[%s179 + $0xdc] sm:$0xf]
        %v244 = vld [vmem:[%s179 + $0xe0] sm:$0xf]
        %v245 = vld [vmem:[%s179 + $0xe4] sm:$0xf]
        %v246 = vld [vmem:[%s179 + $0xe8] sm:$0xf]
        %v247 = vld [vmem:[%s179 + $0xec] sm:$0xf]
        %v248 = vld [vmem:[%s179 + $0xf0] sm:$0xf]
        %v249 = vld [vmem:[%s179 + $0xf4] sm:$0xf]
        %v250 = vld [vmem:[%s179 + $0xf8] sm:$0xf]
        %v251 = vld [vmem:[%s179 + $0xfc] sm:$0xf]
        %v252 = vld [vmem:[%s1] sm:$0xf]
        %v253 = vld [vmem:[%s1 + $0x4] sm:$0xf]
        %v254 = vld [vmem:[%s1 + $0x8] sm:$0xf]
        %v255 = vld [vmem:[%s1 + $0xc] sm:$0x3]
        %v256 = vld [vmem:[#allocation2] sm:$0x1]
        %v258 = vlaneseq
        %v259 = vshrl.u32 %v258, 7
        %v260 = vsub.s32 0, %v259
        %v261 = vrot.slane %v256, %v260
        %v327 = vunpack.c.l.b16 %v188
        %v328 = vunpack.c.l.b16 %v189
        %v329 = vunpack.c.l.b16 %v190
        %v330 = vunpack.c.l.b16 %v191
        %v331 = vunpack.c.l.b16 %v192
        %v332 = vunpack.c.l.b16 %v193
        %v333 = vunpack.c.l.b16 %v194
        %v334 = vunpack.c.l.b16 %v195
        %v335 = vunpack.c.l.b16 %v196
        %v336 = vunpack.c.l.b16 %v197
        %v337 = vunpack.c.l.b16 %v198
        %v338 = vunpack.c.l.b16 %v199
        %v339 = vunpack.c.l.b16 %v200
        %v340 = vunpack.c.l.b16 %v201
        %v341 = vunpack.c.l.b16 %v202
        %v342 = vunpack.c.l.b16 %v203
        %v343 = vunpack.c.l.b16 %v204
        %v344 = vunpack.c.l.b16 %v205
        %v345 = vunpack.c.l.b16 %v206
        %v346 = vunpack.c.l.b16 %v207
        %v347 = vunpack.c.l.b16 %v208
        %v348 = vunpack.c.l.b16 %v209
        %v349 = vunpack.c.l.b16 %v210
        %v350 = vunpack.c.l.b16 %v211
        %v351 = vunpack.c.l.b16 %v212
        %v352 = vunpack.c.l.b16 %v213
        %v353 = vunpack.c.l.b16 %v214
        %v354 = vunpack.c.l.b16 %v215
        %v355 = vunpack.c.l.b16 %v216
        %v356 = vunpack.c.l.b16 %v217
        %v357 = vunpack.c.l.b16 %v218
        %v358 = vunpack.c.l.b16 %v219
        %v359 = vunpack.c.l.b16 %v220
        %v360 = vunpack.c.l.b16 %v221
        %v361 = vunpack.c.l.b16 %v222
        %v362 = vunpack.c.l.b16 %v223
        %v363 = vunpack.c.l.b16 %v224
        %v364 = vunpack.c.l.b16 %v225
        %v365 = vunpack.c.l.b16 %v226
        %v366 = vunpack.c.l.b16 %v227
        %v367 = vunpack.c.l.b16 %v228
        %v368 = vunpack.c.l.b16 %v229
        %v369 = vunpack.c.l.b16 %v230
        %v370 = vunpack.c.l.b16 %v231
        %v371 = vunpack.c.l.b16 %v232
        %v372 = vunpack.c.l.b16 %v233
        %v373 = vunpack.c.l.b16 %v234
        %v374 = vunpack.c.l.b16 %v235
        %v375 = vunpack.c.l.b16 %v236
        %v376 = vunpack.c.l.b16 %v237
        %v377 = vunpack.c.l.b16 %v238
        %v378 = vunpack.c.l.b16 %v239
        %v379 = vunpack.c.l.b16 %v240
        %v380 = vunpack.c.l.b16 %v241
        %v381 = vunpack.c.l.b16 %v242
        %v382 = vunpack.c.l.b16 %v243
        %v383 = vunpack.c.l.b16 %v244
        %v384 = vunpack.c.l.b16 %v245
        %v385 = vunpack.c.l.b16 %v246
        %v386 = vunpack.c.l.b16 %v247
        %v387 = vunpack.c.l.b16 %v248
        %v388 = vunpack.c.l.b16 %v249
        %v389 = vunpack.c.l.b16 %v250
        %v390 = vunpack.c.l.b16 %v251
        %v391 = vpack.c.b16 %v328, %v327
        %v392 = vpack.c.b16 %v330, %v329
        %v393 = vpack.c.b16 %v332, %v331
        %v394 = vpack.c.b16 %v334, %v333
        %v395 = vpack.c.b16 %v336, %v335
        %v396 = vpack.c.b16 %v338, %v337
        %v397 = vpack.c.b16 %v340, %v339
        %v398 = vpack.c.b16 %v342, %v341
        %v399 = vpack.c.b16 %v344, %v343
        %v400 = vpack.c.b16 %v346, %v345
        %v401 = vpack.c.b16 %v348, %v347
        %v402 = vpack.c.b16 %v350, %v349
        %v403 = vpack.c.b16 %v352, %v351
        %v404 = vpack.c.b16 %v354, %v353
        %v405 = vpack.c.b16 %v356, %v355
        %v406 = vpack.c.b16 %v358, %v357
        %v407 = vpack.c.b16 %v360, %v359
        %v408 = vpack.c.b16 %v362, %v361
        %v409 = vpack.c.b16 %v364, %v363
        %v410 = vpack.c.b16 %v366, %v365
        %v411 = vpack.c.b16 %v368, %v367
        %v412 = vpack.c.b16 %v370, %v369
        %v413 = vpack.c.b16 %v372, %v371
        %v414 = vpack.c.b16 %v374, %v373
        %v415 = vpack.c.b16 %v376, %v375
        %v416 = vpack.c.b16 %v378, %v377
        %v417 = vpack.c.b16 %v380, %v379
        %v418 = vpack.c.b16 %v382, %v381
        %v419 = vpack.c.b16 %v384, %v383
        %v420 = vpack.c.b16 %v386, %v385
        %v421 = vpack.c.b16 %v388, %v387
        %v422 = vpack.c.b16 %v390, %v389
        %v427 = vunpack.c.l.b16 %v252
        %v428 = vunpack.c.l.b16 %v253
        %v429 = vunpack.c.l.b16 %v254
        %v430 = vunpack.c.l.b16 %v255
        %v431 = vpack.c.b16 %v428, %v427
        %v432 = vpack.c.b16 %v430, %v429
        %vm434 = vcmask 220160
        %v436 = vsel %vm434, %v391, 0
        %v439 = vsel %vm434, %v392, 0
        %v442 = vsel %vm434, %v393, 0
        %v445 = vsel %vm434, %v394, 0
        %v448 = vsel %vm434, %v395, 0
        %v451 = vsel %vm434, %v396, 0
        %v454 = vsel %vm434, %v397, 0
        %v457 = vsel %vm434, %v398, 0
        %v460 = vsel %vm434, %v399, 0
        %v463 = vsel %vm434, %v400, 0
        %v466 = vsel %vm434, %v401, 0
        %v469 = vsel %vm434, %v402, 0
        %v472 = vsel %vm434, %v403, 0
        %v475 = vsel %vm434, %v404, 0
        %v478 = vsel %vm434, %v405, 0
        %v481 = vsel %vm434, %v406, 0
        %v484 = vsel %vm434, %v407, 0
        %v487 = vsel %vm434, %v408, 0
        %v490 = vsel %vm434, %v409, 0
        %v493 = vsel %vm434, %v410, 0
        %v496 = vsel %vm434, %v411, 0
        %v499 = vsel %vm434, %v412, 0
        %v502 = vsel %vm434, %v413, 0
        %v505 = vsel %vm434, %v414, 0
        %v508 = vsel %vm434, %v415, 0
        %v511 = vsel %vm434, %v416, 0
        %v514 = vsel %vm434, %v417, 0
        %v517 = vsel %vm434, %v418, 0
        %v520 = vsel %vm434, %v419, 0
        %v523 = vsel %vm434, %v420, 0
        %v526 = vsel %vm434, %v421, 0
        %v529 = vsel %vm434, %v422, 0
        %vm531 = vcmask 1044480
        %vm532 = vcmask 1045504
        %v533 = vsel %vm531, 4294967295, 65535
        %v534 = vsel %vm532, %v533, 0
        %v536 = vand.u32 %v432, %v534
        %538 = vmatprep.subr.bf16.mxu0 0
        %539 = vmatpush1.bf16.msra.mxu0 %v431
        %540 = vmatprep.subr.bf16.mxu0 0
        %541 = vmatpush1.bf16.msra.mxu0 %v536
        %542 = vmatprep.subr.bf16.mxu0 0
        %543 = vmatpush1.bf16.msra.mxu0 0
        %544 = vmatprep.subr.bf16.mxu0 0
        %545 = vmatpush1.bf16.msra.mxu0 0
        %546 = vmatprep.subr.bf16.mxu0 0
        %547 = vmatpush1.bf16.msra.mxu0 0
        %548 = vmatprep.subr.bf16.mxu0 0
        %549 = vmatpush1.bf16.msra.mxu0 0
        %550 = vmatprep.subr.bf16.mxu0 0
        %551 = vmatpush1.bf16.msra.mxu0 0
        %552 = vmatprep.subr.bf16.mxu0 0
        %553 = vmatpush1.bf16.msra.mxu0 0
        %554 = vmatprep.subr.bf16.mxu0 0
        %555 = vmatpush1.bf16.msra.mxu0 0
        %556 = vmatprep.subr.bf16.mxu0 0
        %557 = vmatpush1.bf16.msra.mxu0 0
        %558 = vmatprep.subr.bf16.mxu0 0
        %559 = vmatpush1.bf16.msra.mxu0 0
        %560 = vmatprep.subr.bf16.mxu0 0
        %561 = vmatpush1.bf16.msra.mxu0 0
        %562 = vmatprep.subr.bf16.mxu0 0
        %563 = vmatpush1.bf16.msra.mxu0 0
        %564 = vmatprep.subr.bf16.mxu0 0
        %565 = vmatpush1.bf16.msra.mxu0 0
        %566 = vmatprep.subr.bf16.mxu0 0
        %567 = vmatpush1.bf16.msra.mxu0 0
        %568 = vmatprep.subr.bf16.mxu0 0
        %569 = vmatpush1.bf16.msra.mxu0 0
        %570 = vmatprep.mubr.bf16.mxu0 0
        %571 = vmatmul.mubr.bf16.gmra.mrb[0].mxu0 %v436
        %v572 = vpop.f32.mrb[0].mxu0
        %v573 = vadd.f32 %v261, %v572
        %v574 = vpop.f32.mrb[0].mxu0
        %v575 = vpop.f32.mrb[0].mxu0
        %v576 = vadd.f32 %v261, %v575
        %v577 = vpop.f32.mrb[0].mxu0
        %578 = vmatprep.mubr.bf16.mxu0 0
        %579 = vmatmul.mubr.bf16.gmra.mrb[0].mxu0 %v439
        %v580 = vpop.f32.mrb[0].mxu0
        %v581 = vadd.f32 %v261, %v580
        %v582 = vpop.f32.mrb[0].mxu0
        %v583 = vpop.f32.mrb[0].mxu0
        %v584 = vadd.f32 %v261, %v583
        %v585 = vpop.f32.mrb[0].mxu0
        %586 = vmatprep.mubr.bf16.mxu0 0
        %587 = vmatmul.mubr.bf16.gmra.mrb[0].mxu0 %v442
        %v588 = vpop.f32.mrb[0].mxu0
        %v589 = vadd.f32 %v261, %v588
        %v590 = vpop.f32.mrb[0].mxu0
        %v591 = vpop.f32.mrb[0].mxu0
        %v592 = vadd.f32 %v261, %v591
        %v593 = vpop.f32.mrb[0].mxu0
        %594 = vmatprep.mubr.bf16.mxu0 0
        %595 = vmatmul.mubr.bf16.gmra.mrb[0].mxu0 %v445
        %v596 = vpop.f32.mrb[0].mxu0
        %v597 = vadd.f32 %v261, %v596
        %v598 = vpop.f32.mrb[0].mxu0
        %v599 = vpop.f32.mrb[0].mxu0
        %v600 = vadd.f32 %v261, %v599
        %v601 = vpop.f32.mrb[0].mxu0
        %602 = vmatprep.mubr.bf16.mxu0 0
        %603 = vmatmul.mubr.bf16.gmra.mrb[0].mxu0 %v448
        %v604 = vpop.f32.mrb[0].mxu0
        %v605 = vadd.f32 %v261, %v604
        %v606 = vpop.f32.mrb[0].mxu0
        %v607 = vpop.f32.mrb[0].mxu0
        %v608 = vadd.f32 %v261, %v607
        %v609 = vpop.f32.mrb[0].mxu0
        %610 = vmatprep.mubr.bf16.mxu0 0
        %611 = vmatmul.mubr.bf16.gmra.mrb[0].mxu0 %v451
        %v612 = vpop.f32.mrb[0].mxu0
        %v613 = vadd.f32 %v261, %v612
        %v614 = vpop.f32.mrb[0].mxu0
        %v615 = vpop.f32.mrb[0].mxu0
        %v616 = vadd.f32 %v261, %v615
        %v617 = vpop.f32.mrb[0].mxu0
        %618 = vmatprep.mubr.bf16.mxu0 0
        %619 = vmatmul.mubr.bf16.gmra.mrb[0].mxu0 %v454
        %v620 = vpop.f32.mrb[0].mxu0
        %v621 = vadd.f32 %v261, %v620
        %v622 = vpop.f32.mrb[0].mxu0
        %v623 = vpop.f32.mrb[0].mxu0
        %v624 = vadd.f32 %v261, %v623
        %v625 = vpop.f32.mrb[0].mxu0
        %626 = vmatprep.mubr.bf16.mxu0 0
        %627 = vmatmul.mubr.bf16.gmra.mrb[0].mxu0 %v457
        %v628 = vpop.f32.mrb[0].mxu0
        %v629 = vadd.f32 %v261, %v628
        %v630 = vpop.f32.mrb[0].mxu0
        %v631 = vpop.f32.mrb[0].mxu0
        %v632 = vadd.f32 %v261, %v631
        %v633 = vpop.f32.mrb[0].mxu0
        %634 = vmatprep.mubr.bf16.mxu0 0
        %635 = vmatmul.mubr.bf16.gmra.mrb[0].mxu0 %v460
        %v636 = vpop.f32.mrb[0].mxu0
        %v637 = vadd.f32 %v261, %v636
        %v638 = vpop.f32.mrb[0].mxu0
        %v639 = vpop.f32.mrb[0].mxu0
        %v640 = vadd.f32 %v261, %v639
        %v641 = vpop.f32.mrb[0].mxu0
        %642 = vmatprep.mubr.bf16.mxu0 0
        %643 = vmatmul.mubr.bf16.gmra.mrb[0].mxu0 %v463
        %v644 = vpop.f32.mrb[0].mxu0
        %v645 = vadd.f32 %v261, %v644
        %v646 = vpop.f32.mrb[0].mxu0
        %v647 = vpop.f32.mrb[0].mxu0
        %v648 = vadd.f32 %v261, %v647
        %v649 = vpop.f32.mrb[0].mxu0
        %650 = vmatprep.mubr.bf16.mxu0 0
        %651 = vmatmul.mubr.bf16.gmra.mrb[0].mxu0 %v466
        %v652 = vpop.f32.mrb[0].mxu0
        %v653 = vadd.f32 %v261, %v652
        %v654 = vpop.f32.mrb[0].mxu0
        %v655 = vpop.f32.mrb[0].mxu0
        %v656 = vadd.f32 %v261, %v655
        %v657 = vpop.f32.mrb[0].mxu0
        %658 = vmatprep.mubr.bf16.mxu0 0
        %659 = vmatmul.mubr.bf16.gmra.mrb[0].mxu0 %v469
        %v660 = vpop.f32.mrb[0].mxu0
        %v661 = vadd.f32 %v261, %v660
        %v662 = vpop.f32.mrb[0].mxu0
        %v663 = vpop.f32.mrb[0].mxu0
        %v664 = vadd.f32 %v261, %v663
        %v665 = vpop.f32.mrb[0].mxu0
        %666 = vmatprep.mubr.bf16.mxu0 0
        %667 = vmatmul.mubr.bf16.gmra.mrb[0].mxu0 %v472
        %v668 = vpop.f32.mrb[0].mxu0
        %v669 = vadd.f32 %v261, %v668
        %v670 = vpop.f32.mrb[0].mxu0
        %v671 = vpop.f32.mrb[0].mxu0
        %v672 = vadd.f32 %v261, %v671
        %v673 = vpop.f32.mrb[0].mxu0
        %674 = vmatprep.mubr.bf16.mxu0 0
        %675 = vmatmul.mubr.bf16.gmra.mrb[0].mxu0 %v475
        %v676 = vpop.f32.mrb[0].mxu0
        %v677 = vadd.f32 %v261, %v676
        %v678 = vpop.f32.mrb[0].mxu0
        %v679 = vpop.f32.mrb[0].mxu0
        %v680 = vadd.f32 %v261, %v679
        %v681 = vpop.f32.mrb[0].mxu0
        %682 = vmatprep.mubr.bf16.mxu0 0
        %683 = vmatmul.mubr.bf16.gmra.mrb[0].mxu0 %v478
        %v684 = vpop.f32.mrb[0].mxu0
        %v685 = vadd.f32 %v261, %v684
        %v686 = vpop.f32.mrb[0].mxu0
        %v687 = vpop.f32.mrb[0].mxu0
        %v688 = vadd.f32 %v261, %v687
        %v689 = vpop.f32.mrb[0].mxu0
        %690 = vmatprep.mubr.bf16.mxu0 0
        %691 = vmatmul.mubr.bf16.gmra.mrb[0].mxu0 %v481
        %v692 = vpop.f32.mrb[0].mxu0
        %v693 = vadd.f32 %v261, %v692
        %v694 = vpop.f32.mrb[0].mxu0
        %v695 = vpop.f32.mrb[0].mxu0
        %v696 = vadd.f32 %v261, %v695
        %v697 = vpop.f32.mrb[0].mxu0
        %698 = vmatprep.mubr.bf16.mxu0 0
        %699 = vmatmul.mubr.bf16.gmra.mrb[0].mxu0 %v484
        %v700 = vpop.f32.mrb[0].mxu0
        %v701 = vadd.f32 %v261, %v700
        %v702 = vpop.f32.mrb[0].mxu0
        %v703 = vpop.f32.mrb[0].mxu0
        %v704 = vadd.f32 %v261, %v703
        %v705 = vpop.f32.mrb[0].mxu0
        %706 = vmatprep.mubr.bf16.mxu0 0
        %707 = vmatmul.mubr.bf16.gmra.mrb[0].mxu0 %v487
        %v708 = vpop.f32.mrb[0].mxu0
        %v709 = vadd.f32 %v261, %v708
        %v710 = vpop.f32.mrb[0].mxu0
        %v711 = vpop.f32.mrb[0].mxu0
        %v712 = vadd.f32 %v261, %v711
        %v713 = vpop.f32.mrb[0].mxu0
        %714 = vmatprep.mubr.bf16.mxu0 0
        %715 = vmatmul.mubr.bf16.gmra.mrb[0].mxu0 %v490
        %v716 = vpop.f32.mrb[0].mxu0
        %v717 = vadd.f32 %v261, %v716
        %v718 = vpop.f32.mrb[0].mxu0
        %v719 = vpop.f32.mrb[0].mxu0
        %v720 = vadd.f32 %v261, %v719
        %v721 = vpop.f32.mrb[0].mxu0
        %722 = vmatprep.mubr.bf16.mxu0 0
        %723 = vmatmul.mubr.bf16.gmra.mrb[0].mxu0 %v493
        %v724 = vpop.f32.mrb[0].mxu0
        %v725 = vadd.f32 %v261, %v724
        %v726 = vpop.f32.mrb[0].mxu0
        %v727 = vpop.f32.mrb[0].mxu0
        %v728 = vadd.f32 %v261, %v727
        %v729 = vpop.f32.mrb[0].mxu0
        %730 = vmatprep.mubr.bf16.mxu0 0
        %731 = vmatmul.mubr.bf16.gmra.mrb[0].mxu0 %v496
        %v732 = vpop.f32.mrb[0].mxu0
        %v733 = vadd.f32 %v261, %v732
        %v734 = vpop.f32.mrb[0].mxu0
        %v735 = vpop.f32.mrb[0].mxu0
        %v736 = vadd.f32 %v261, %v735
        %v737 = vpop.f32.mrb[0].mxu0
        %738 = vmatprep.mubr.bf16.mxu0 0
        %739 = vmatmul.mubr.bf16.gmra.mrb[0].mxu0 %v499
        %v740 = vpop.f32.mrb[0].mxu0
        %v741 = vadd.f32 %v261, %v740
        %v742 = vpop.f32.mrb[0].mxu0
        %v743 = vpop.f32.mrb[0].mxu0
        %v744 = vadd.f32 %v261, %v743
        %v745 = vpop.f32.mrb[0].mxu0
        %746 = vmatprep.mubr.bf16.mxu0 0
        %747 = vmatmul.mubr.bf16.gmra.mrb[0].mxu0 %v502
        %v748 = vpop.f32.mrb[0].mxu0
        %v749 = vadd.f32 %v261, %v748
        %v750 = vpop.f32.mrb[0].mxu0
        %v751 = vpop.f32.mrb[0].mxu0
        %v752 = vadd.f32 %v261, %v751
        %v753 = vpop.f32.mrb[0].mxu0
        %754 = vmatprep.mubr.bf16.mxu0 0
        %755 = vmatmul.mubr.bf16.gmra.mrb[0].mxu0 %v505
        %v756 = vpop.f32.mrb[0].mxu0
        %v757 = vadd.f32 %v261, %v756
        %v758 = vpop.f32.mrb[0].mxu0
        %v759 = vpop.f32.mrb[0].mxu0
        %v760 = vadd.f32 %v261, %v759
        %v761 = vpop.f32.mrb[0].mxu0
        %762 = vmatprep.mubr.bf16.mxu0 0
        %763 = vmatmul.mubr.bf16.gmra.mrb[0].mxu0 %v508
        %v764 = vpop.f32.mrb[0].mxu0
        %v765 = vadd.f32 %v261, %v764
        %v766 = vpop.f32.mrb[0].mxu0
        %v767 = vpop.f32.mrb[0].mxu0
        %v768 = vadd.f32 %v261, %v767
        %v769 = vpop.f32.mrb[0].mxu0
        %770 = vmatprep.mubr.bf16.mxu0 0
        %771 = vmatmul.mubr.bf16.gmra.mrb[0].mxu0 %v511
        %v772 = vpop.f32.mrb[0].mxu0
        %v773 = vadd.f32 %v261, %v772
        %v774 = vpop.f32.mrb[0].mxu0
        %v775 = vpop.f32.mrb[0].mxu0
        %v776 = vadd.f32 %v261, %v775
        %v777 = vpop.f32.mrb[0].mxu0
        %778 = vmatprep.mubr.bf16.mxu0 0
        %779 = vmatmul.mubr.bf16.gmra.mrb[0].mxu0 %v514
        %v780 = vpop.f32.mrb[0].mxu0
        %v781 = vadd.f32 %v261, %v780
        %v782 = vpop.f32.mrb[0].mxu0
        %v783 = vpop.f32.mrb[0].mxu0
        %v784 = vadd.f32 %v261, %v783
        %v785 = vpop.f32.mrb[0].mxu0
        %786 = vmatprep.mubr.bf16.mxu0 0
        %787 = vmatmul.mubr.bf16.gmra.mrb[0].mxu0 %v517
        %v788 = vpop.f32.mrb[0].mxu0
        %v789 = vadd.f32 %v261, %v788
        %v790 = vpop.f32.mrb[0].mxu0
        %v791 = vpop.f32.mrb[0].mxu0
        %v792 = vadd.f32 %v261, %v791
        %v793 = vpop.f32.mrb[0].mxu0
        %794 = vmatprep.mubr.bf16.mxu0 0
        %795 = vmatmul.mubr.bf16.gmra.mrb[0].mxu0 %v520
        %v796 = vpop.f32.mrb[0].mxu0
        %v797 = vadd.f32 %v261, %v796
        %v798 = vpop.f32.mrb[0].mxu0
        %v799 = vpop.f32.mrb[0].mxu0
        %v800 = vadd.f32 %v261, %v799
        %v801 = vpop.f32.mrb[0].mxu0
        %802 = vmatprep.mubr.bf16.mxu0 0
        %803 = vmatmul.mubr.bf16.gmra.mrb[0].mxu0 %v523
        %v804 = vpop.f32.mrb[0].mxu0
        %v805 = vadd.f32 %v261, %v804
        %v806 = vpop.f32.mrb[0].mxu0
        %v807 = vpop.f32.mrb[0].mxu0
        %v808 = vadd.f32 %v261, %v807
        %v809 = vpop.f32.mrb[0].mxu0
        %810 = vmatprep.mubr.bf16.mxu0 0
        %811 = vmatmul.mubr.bf16.gmra.mrb[0].mxu0 %v526
        %v812 = vpop.f32.mrb[0].mxu0
        %v813 = vadd.f32 %v261, %v812
        %v814 = vpop.f32.mrb[0].mxu0
        %v815 = vpop.f32.mrb[0].mxu0
        %v816 = vadd.f32 %v261, %v815
        %v817 = vpop.f32.mrb[0].mxu0
        %818 = vmatprep.mubr.bf16.mxu0 0
        %819 = vmatmul.mubr.bf16.gmra.mrb[0].mxu0 %v529
        %v820 = vpop.f32.mrb[0].mxu0
        %v821 = vadd.f32 %v261, %v820
        %v822 = vpop.f32.mrb[0].mxu0
        %v823 = vpop.f32.mrb[0].mxu0
        %v824 = vadd.f32 %v261, %v823
        %v825 = vpop.f32.mrb[0].mxu0
        %826 = vdwg.mxu0
        %v827 = vmax.f32 %v573, 0.0
        %v828 = vmax.f32 %v576, 0.0
        %v829 = vmax.f32 %v581, 0.0
        %v830 = vmax.f32 %v584, 0.0
        %v831 = vmax.f32 %v589, 0.0
        %v832 = vmax.f32 %v592, 0.0
        %v833 = vmax.f32 %v597, 0.0
        %v834 = vmax.f32 %v600, 0.0
        %v835 = vmax.f32 %v605, 0.0
        %v836 = vmax.f32 %v608, 0.0
        %v837 = vmax.f32 %v613, 0.0
        %v838 = vmax.f32 %v616, 0.0
        %v839 = vmax.f32 %v621, 0.0
        %v840 = vmax.f32 %v624, 0.0
        %v841 = vmax.f32 %v629, 0.0
        %v842 = vmax.f32 %v632, 0.0
        %v843 = vmax.f32 %v637, 0.0
        %v844 = vmax.f32 %v640, 0.0
        %v845 = vmax.f32 %v645, 0.0
        %v846 = vmax.f32 %v648, 0.0
        %v847 = vmax.f32 %v653, 0.0
        %v848 = vmax.f32 %v656, 0.0
        %v849 = vmax.f32 %v661, 0.0
        %v850 = vmax.f32 %v664, 0.0
        %v851 = vmax.f32 %v669, 0.0
        %v852 = vmax.f32 %v672, 0.0
        %v853 = vmax.f32 %v677, 0.0
        %v854 = vmax.f32 %v680, 0.0
        %v855 = vmax.f32 %v685, 0.0
        %v856 = vmax.f32 %v688, 0.0
        %v857 = vmax.f32 %v693, 0.0
        %v858 = vmax.f32 %v696, 0.0
        %v859 = vmax.f32 %v701, 0.0
        %v860 = vmax.f32 %v704, 0.0
        %v861 = vmax.f32 %v709, 0.0
        %v862 = vmax.f32 %v712, 0.0
        %v863 = vmax.f32 %v717, 0.0
        %v864 = vmax.f32 %v720, 0.0
        %v865 = vmax.f32 %v725, 0.0
        %v866 = vmax.f32 %v728, 0.0
        %v867 = vmax.f32 %v733, 0.0
        %v868 = vmax.f32 %v736, 0.0
        %v869 = vmax.f32 %v741, 0.0
        %v870 = vmax.f32 %v744, 0.0
        %v871 = vmax.f32 %v749, 0.0
        %v872 = vmax.f32 %v752, 0.0
        %v873 = vmax.f32 %v757, 0.0
        %v874 = vmax.f32 %v760, 0.0
        %v875 = vmax.f32 %v765, 0.0
        %v876 = vmax.f32 %v768, 0.0
        %v877 = vmax.f32 %v773, 0.0
        %v878 = vmax.f32 %v776, 0.0
        %v879 = vmax.f32 %v781, 0.0
        %v880 = vmax.f32 %v784, 0.0
        %v881 = vmax.f32 %v789, 0.0
        %v882 = vmax.f32 %v792, 0.0
        %v883 = vmax.f32 %v797, 0.0
        %v884 = vmax.f32 %v800, 0.0
        %v885 = vmax.f32 %v805, 0.0
        %v886 = vmax.f32 %v808, 0.0
        %v887 = vmax.f32 %v813, 0.0
        %v888 = vmax.f32 %v816, 0.0
        %v889 = vmax.f32 %v821, 0.0
        %v890 = vmax.f32 %v824, 0.0
        %v891 = vpack.c.bf16 %v828, %v827
        %v892 = vpack.c.bf16 %v830, %v829
        %v893 = vpack.c.bf16 %v832, %v831
        %v894 = vpack.c.bf16 %v834, %v833
        %v895 = vpack.c.bf16 %v836, %v835
        %v896 = vpack.c.bf16 %v838, %v837
        %v897 = vpack.c.bf16 %v840, %v839
        %v898 = vpack.c.bf16 %v842, %v841
        %v899 = vpack.c.bf16 %v844, %v843
        %v900 = vpack.c.bf16 %v846, %v845
        %v901 = vpack.c.bf16 %v848, %v847
        %v902 = vpack.c.bf16 %v850, %v849
        %v903 = vpack.c.bf16 %v852, %v851
        %v904 = vpack.c.bf16 %v854, %v853
        %v905 = vpack.c.bf16 %v856, %v855
        %v906 = vpack.c.bf16 %v858, %v857
        %v907 = vpack.c.bf16 %v860, %v859
        %v908 = vpack.c.bf16 %v862, %v861
        %v909 = vpack.c.bf16 %v864, %v863
        %v910 = vpack.c.bf16 %v866, %v865
        %v911 = vpack.c.bf16 %v868, %v867
        %v912 = vpack.c.bf16 %v870, %v869
        %v913 = vpack.c.bf16 %v872, %v871
        %v914 = vpack.c.bf16 %v874, %v873
        %v915 = vpack.c.bf16 %v876, %v875
        %v916 = vpack.c.bf16 %v878, %v877
        %v917 = vpack.c.bf16 %v880, %v879
        %v918 = vpack.c.bf16 %v882, %v881
        %v919 = vpack.c.bf16 %v884, %v883
        %v920 = vpack.c.bf16 %v886, %v885
        %v921 = vpack.c.bf16 %v888, %v887
        %v922 = vpack.c.bf16 %v890, %v889
        %v955 = vunpack.c.l.b16 %v891
        %v956 = vunpack.c.h.b16 %v891
        %v957 = vunpack.c.l.b16 %v892
        %v958 = vunpack.c.h.b16 %v892
        %v959 = vunpack.c.l.b16 %v893
        %v960 = vunpack.c.h.b16 %v893
        %v961 = vunpack.c.l.b16 %v894
        %v962 = vunpack.c.h.b16 %v894
        %v963 = vunpack.c.l.b16 %v895
        %v964 = vunpack.c.h.b16 %v895
        %v965 = vunpack.c.l.b16 %v896
        %v966 = vunpack.c.h.b16 %v896
        %v967 = vunpack.c.l.b16 %v897
        %v968 = vunpack.c.h.b16 %v897
        %v969 = vunpack.c.l.b16 %v898
        %v970 = vunpack.c.h.b16 %v898
        %v971 = vunpack.c.l.b16 %v899
        %v972 = vunpack.c.h.b16 %v899
        %v973 = vunpack.c.l.b16 %v900
        %v974 = vunpack.c.h.b16 %v900
        %v975 = vunpack.c.l.b16 %v901
        %v976 = vunpack.c.h.b16 %v901
        %v977 = vunpack.c.l.b16 %v902
        %v978 = vunpack.c.h.b16 %v902
        %v979 = vunpack.c.l.b16 %v903
        %v980 = vunpack.c.h.b16 %v903
        %v981 = vunpack.c.l.b16 %v904
        %v982 = vunpack.c.h.b16 %v904
        %v983 = vunpack.c.l.b16 %v905
        %v984 = vunpack.c.h.b16 %v905
        %v985 = vunpack.c.l.b16 %v906
        %v986 = vunpack.c.h.b16 %v906
        %v987 = vunpack.c.l.b16 %v907
        %v988 = vunpack.c.h.b16 %v907
        %v989 = vunpack.c.l.b16 %v908
        %v990 = vunpack.c.h.b16 %v908
        %v991 = vunpack.c.l.b16 %v909
        %v992 = vunpack.c.h.b16 %v909
        %v993 = vunpack.c.l.b16 %v910
        %v994 = vunpack.c.h.b16 %v910
        %v995 = vunpack.c.l.b16 %v911
        %v996 = vunpack.c.h.b16 %v911
        %v997 = vunpack.c.l.b16 %v912
        %v998 = vunpack.c.h.b16 %v912
        %v999 = vunpack.c.l.b16 %v913
        %v1000 = vunpack.c.h.b16 %v913
        %v1001 = vunpack.c.l.b16 %v914
        %v1002 = vunpack.c.h.b16 %v914
        %v1003 = vunpack.c.l.b16 %v915
        %v1004 = vunpack.c.h.b16 %v915
        %v1005 = vunpack.c.l.b16 %v916
        %v1006 = vunpack.c.h.b16 %v916
        %v1007 = vunpack.c.l.b16 %v917
        %v1008 = vunpack.c.h.b16 %v917
        %v1009 = vunpack.c.l.b16 %v918
        %v1010 = vunpack.c.h.b16 %v918
        %v1011 = vunpack.c.l.b16 %v919
        %v1012 = vunpack.c.h.b16 %v919
        %v1013 = vunpack.c.l.b16 %v920
        %v1014 = vunpack.c.h.b16 %v920
        %v1015 = vunpack.c.l.b16 %v921
        %v1016 = vunpack.c.h.b16 %v921
        %v1017 = vunpack.c.l.b16 %v922
        %v1018 = vunpack.c.h.b16 %v922
        %v1019 = vpack.c.b16 %v955, %v955
        %v1020 = vpack.c.b16 %v956, %v956
        %v1021 = vpack.c.b16 %v957, %v957
        %v1022 = vpack.c.b16 %v958, %v958
        %v1023 = vpack.c.b16 %v959, %v959
        %v1024 = vpack.c.b16 %v960, %v960
        %v1025 = vpack.c.b16 %v961, %v961
        %v1026 = vpack.c.b16 %v962, %v962
        %v1027 = vpack.c.b16 %v963, %v963
        %v1028 = vpack.c.b16 %v964, %v964
        %v1029 = vpack.c.b16 %v965, %v965
        %v1030 = vpack.c.b16 %v966, %v966
        %v1031 = vpack.c.b16 %v967, %v967
        %v1032 = vpack.c.b16 %v968, %v968
        %v1033 = vpack.c.b16 %v969, %v969
        %v1034 = vpack.c.b16 %v970, %v970
        %v1035 = vpack.c.b16 %v971, %v971
        %v1036 = vpack.c.b16 %v972, %v972
        %v1037 = vpack.c.b16 %v973, %v973
        %v1038 = vpack.c.b16 %v974, %v974
        %v1039 = vpack.c.b16 %v975, %v975
        %v1040 = vpack.c.b16 %v976, %v976
        %v1041 = vpack.c.b16 %v977, %v977
        %v1042 = vpack.c.b16 %v978, %v978
        %v1043 = vpack.c.b16 %v979, %v979
        %v1044 = vpack.c.b16 %v980, %v980
        %v1045 = vpack.c.b16 %v981, %v981
        %v1046 = vpack.c.b16 %v982, %v982
        %v1047 = vpack.c.b16 %v983, %v983
        %v1048 = vpack.c.b16 %v984, %v984
        %v1049 = vpack.c.b16 %v985, %v985
        %v1050 = vpack.c.b16 %v986, %v986
        %v1051 = vpack.c.b16 %v987, %v987
        %v1052 = vpack.c.b16 %v988, %v988
        %v1053 = vpack.c.b16 %v989, %v989
        %v1054 = vpack.c.b16 %v990, %v990
        %v1055 = vpack.c.b16 %v991, %v991
        %v1056 = vpack.c.b16 %v992, %v992
        %v1057 = vpack.c.b16 %v993, %v993
        %v1058 = vpack.c.b16 %v994, %v994
        %v1059 = vpack.c.b16 %v995, %v995
        %v1060 = vpack.c.b16 %v996, %v996
        %v1061 = vpack.c.b16 %v997, %v997
        %v1062 = vpack.c.b16 %v998, %v998
        %v1063 = vpack.c.b16 %v999, %v999
        %v1064 = vpack.c.b16 %v1000, %v1000
        %v1065 = vpack.c.b16 %v1001, %v1001
        %v1066 = vpack.c.b16 %v1002, %v1002
        %v1067 = vpack.c.b16 %v1003, %v1003
        %v1068 = vpack.c.b16 %v1004, %v1004
        %v1069 = vpack.c.b16 %v1005, %v1005
        %v1070 = vpack.c.b16 %v1006, %v1006
        %v1071 = vpack.c.b16 %v1007, %v1007
        %v1072 = vpack.c.b16 %v1008, %v1008
        %v1073 = vpack.c.b16 %v1009, %v1009
        %v1074 = vpack.c.b16 %v1010, %v1010
        %v1075 = vpack.c.b16 %v1011, %v1011
        %v1076 = vpack.c.b16 %v1012, %v1012
        %v1077 = vpack.c.b16 %v1013, %v1013
        %v1078 = vpack.c.b16 %v1014, %v1014
        %v1079 = vpack.c.b16 %v1015, %v1015
        %v1080 = vpack.c.b16 %v1016, %v1016
        %v1081 = vpack.c.b16 %v1017, %v1017
        %v1082 = vpack.c.b16 %v1018, %v1018
        %vm1147 = vcmask 125952
        %1148 = vst.msk [vmem:[%s185] sm:$0xf] %vm1147, %v1019
        %1149 = vst.msk [vmem:[%s185 + $0x4] sm:$0xf] %vm1147, %v1020
        %1150 = vst.msk [vmem:[%s185 + $0x8] sm:$0xf] %vm1147, %v1021
        %1151 = vst.msk [vmem:[%s185 + $0xc] sm:$0xf] %vm1147, %v1022
        %1152 = vst.msk [vmem:[%s185 + $0x10] sm:$0xf] %vm1147, %v1023
        %1153 = vst.msk [vmem:[%s185 + $0x14] sm:$0xf] %vm1147, %v1024
        %1154 = vst.msk [vmem:[%s185 + $0x18] sm:$0xf] %vm1147, %v1025
        %1155 = vst.msk [vmem:[%s185 + $0x1c] sm:$0xf] %vm1147, %v1026
        %1156 = vst.msk [vmem:[%s185 + $0x20] sm:$0xf] %vm1147, %v1027
        %1157 = vst.msk [vmem:[%s185 + $0x24] sm:$0xf] %vm1147, %v1028
        %1158 = vst.msk [vmem:[%s185 + $0x28] sm:$0xf] %vm1147, %v1029
        %1159 = vst.msk [vmem:[%s185 + $0x2c] sm:$0xf] %vm1147, %v1030
        %1160 = vst.msk [vmem:[%s185 + $0x30] sm:$0xf] %vm1147, %v1031
        %1161 = vst.msk [vmem:[%s185 + $0x34] sm:$0xf] %vm1147, %v1032
        %1162 = vst.msk [vmem:[%s185 + $0x38] sm:$0xf] %vm1147, %v1033
        %1163 = vst.msk [vmem:[%s185 + $0x3c] sm:$0xf] %vm1147, %v1034
        %1164 = vst.msk [vmem:[%s185 + $0x40] sm:$0xf] %vm1147, %v1035
        %1165 = vst.msk [vmem:[%s185 + $0x44] sm:$0xf] %vm1147, %v1036
        %1166 = vst.msk [vmem:[%s185 + $0x48] sm:$0xf] %vm1147, %v1037
        %1167 = vst.msk [vmem:[%s185 + $0x4c] sm:$0xf] %vm1147, %v1038
        %1168 = vst.msk [vmem:[%s185 + $0x50] sm:$0xf] %vm1147, %v1039
        %1169 = vst.msk [vmem:[%s185 + $0x54] sm:$0xf] %vm1147, %v1040
        %1170 = vst.msk [vmem:[%s185 + $0x58] sm:$0xf] %vm1147, %v1041
        %1171 = vst.msk [vmem:[%s185 + $0x5c] sm:$0xf] %vm1147, %v1042
        %1172 = vst.msk [vmem:[%s185 + $0x60] sm:$0xf] %vm1147, %v1043
        %1173 = vst.msk [vmem:[%s185 + $0x64] sm:$0xf] %vm1147, %v1044
        %1174 = vst.msk [vmem:[%s185 + $0x68] sm:$0xf] %vm1147, %v1045
        %1175 = vst.msk [vmem:[%s185 + $0x6c] sm:$0xf] %vm1147, %v1046
        %1176 = vst.msk [vmem:[%s185 + $0x70] sm:$0xf] %vm1147, %v1047
        %1177 = vst.msk [vmem:[%s185 + $0x74] sm:$0xf] %vm1147, %v1048
        %1178 = vst.msk [vmem:[%s185 + $0x78] sm:$0xf] %vm1147, %v1049
        %1179 = vst.msk [vmem:[%s185 + $0x7c] sm:$0xf] %vm1147, %v1050
        %1180 = vst.msk [vmem:[%s185 + $0x80] sm:$0xf] %vm1147, %v1051
        %1181 = vst.msk [vmem:[%s185 + $0x84] sm:$0xf] %vm1147, %v1052
        %1182 = vst.msk [vmem:[%s185 + $0x88] sm:$0xf] %vm1147, %v1053
        %1183 = vst.msk [vmem:[%s185 + $0x8c] sm:$0xf] %vm1147, %v1054
        %1184 = vst.msk [vmem:[%s185 + $0x90] sm:$0xf] %vm1147, %v1055
        %1185 = vst.msk [vmem:[%s185 + $0x94] sm:$0xf] %vm1147, %v1056
        %1186 = vst.msk [vmem:[%s185 + $0x98] sm:$0xf] %vm1147, %v1057
        %1187 = vst.msk [vmem:[%s185 + $0x9c] sm:$0xf] %vm1147, %v1058
        %1188 = vst.msk [vmem:[%s185 + $0xa0] sm:$0xf] %vm1147, %v1059
        %1189 = vst.msk [vmem:[%s185 + $0xa4] sm:$0xf] %vm1147, %v1060
        %1190 = vst.msk [vmem:[%s185 + $0xa8] sm:$0xf] %vm1147, %v1061
        %1191 = vst.msk [vmem:[%s185 + $0xac] sm:$0xf] %vm1147, %v1062
        %1192 = vst.msk [vmem:[%s185 + $0xb0] sm:$0xf] %vm1147, %v1063
        %1193 = vst.msk [vmem:[%s185 + $0xb4] sm:$0xf] %vm1147, %v1064
        %1194 = vst.msk [vmem:[%s185 + $0xb8] sm:$0xf] %vm1147, %v1065
        %1195 = vst.msk [vmem:[%s185 + $0xbc] sm:$0xf] %vm1147, %v1066
        %1196 = vst.msk [vmem:[%s185 + $0xc0] sm:$0xf] %vm1147, %v1067
        %1197 = vst.msk [vmem:[%s185 + $0xc4] sm:$0xf] %vm1147, %v1068
        %1198 = vst.msk [vmem:[%s185 + $0xc8] sm:$0xf] %vm1147, %v1069
        %1199 = vst.msk [vmem:[%s185 + $0xcc] sm:$0xf] %vm1147, %v1070
        %1200 = vst.msk [vmem:[%s185 + $0xd0] sm:$0xf] %vm1147, %v1071
        %1201 = vst.msk [vmem:[%s185 + $0xd4] sm:$0xf] %vm1147, %v1072
        %1202 = vst.msk [vmem:[%s185 + $0xd8] sm:$0xf] %vm1147, %v1073
        %1203 = vst.msk [vmem:[%s185 + $0xdc] sm:$0xf] %vm1147, %v1074
        %1204 = vst.msk [vmem:[%s185 + $0xe0] sm:$0xf] %vm1147, %v1075
        %1205 = vst.msk [vmem:[%s185 + $0xe4] sm:$0xf] %vm1147, %v1076
        %1206 = vst.msk [vmem:[%s185 + $0xe8] sm:$0xf] %vm1147, %v1077
        %1207 = vst.msk [vmem:[%s185 + $0xec] sm:$0xf] %vm1147, %v1078
        %1208 = vst.msk [vmem:[%s185 + $0xf0] sm:$0xf] %vm1147, %v1079
        %1209 = vst.msk [vmem:[%s185 + $0xf4] sm:$0xf] %vm1147, %v1080
        %1210 = vst.msk [vmem:[%s185 + $0xf8] sm:$0xf] %vm1147, %v1081
        %1211 = vst.msk [vmem:[%s185 + $0xfc] sm:$0xf] %vm1147, %v1082
        %s1212 = smul.u32 64, %s15
        %p1213 = scmp.lt.s32.totalorder %s1212, 255
        %s1214 = scalar_select %p1213, %s1212, 255
        %s1215 = smul.addr %s1214, 4
        %s1216 = scalar_lea.vmem %s3, %s1215
        // Predicated region
        $region37: #{forward.6} parent=31 // pred_check
          %p1217 = pneg %p101
        $region38: #{forward.6} parent=31 // pred_check_branch
          %1219 = sbr.rel (%p1217) target = $region40
        $region39: #{forward.6} parent=31 // pred_region
          %s1220 = smul.u32 64, %s15
        $region40: #{forward.6} parent=31 // pred_fallthru
          _
      $region32: #{forward.6} parent=5 // pred_fallthru
        _
      %p1221 = scmp.le.s32.totalorder 2, %s10
      // Predicated region
      $region41: #{forward.6} parent=5 // pred_check
        %p1222 = pneg %p1221
      $region42: #{forward.6} parent=5 // pred_check_branch
        %1224 = sbr.rel (%p1222) target = $region44
      $region43: #{forward.6} parent=5 // pred_region
        %s1225 = ssub.s32 %s10, 2
        // Predicated region
        $region45: #{forward.6} parent=43 // pred_check
          %p1226 = pneg %p107
        $region46: #{forward.6} parent=43 // pred_check_branch
          %1228 = sbr.rel (%p1226) target = $region48
        $region47: #{forward.6} parent=43 // pred_region
          %s1229 = smul.u32 64, %s16
          %p1230 = scmp.lt.s32.totalorder %s1229, 255
          %s1231 = scalar_select %p1230, %s1229, 255
          %s1232 = smul.addr %s1231, 4
          %s1233 = scalar_lea.vmem %s3, %s1232
        $region48: #{forward.6} parent=43 // pred_fallthru
          _
      $region44: #{forward.6} parent=5 // pred_fallthru
        _
    $region6: #{forward.6} parent=1 // loop_footer
      %s14 = sadd.s32 1, %s10
    $region7: #{forward.6} parent=1 // loop_footer_branch
      %9 = sbr.rel target = $region3
    $region8: #{forward.6} parent=1 // loop_exit
      _
    %1234 = vsyncpa [#allocation3], 1
    %s1235 = scalar_lea.sflag [#allocation3], 1
    %1236 = vsyncpa %s1235, 1

// kernel: forward.7
$region0: #{forward.7}
  #allocation0 [shape = 'u32[]', space=smem, size = 0x4, offset = 0x4, fixed_abs, tag = 'smem constant byte address 0x4 - core index']
  #allocation1 [shape = 'u32[144,128]{1,0:T(1,128)}', space=vmem, size = 0x12000, scoped, tag = 'internal scratch']
  %s0 = inlined_call_operand.vmem [shape: bf16[512,144], index: 0, kind: input, shape index: {}]
  %s1 = inlined_call_operand.vmem [shape: bf16[144,32], index: 1, kind: input, shape index: {}]
  %s2 = inlined_call_operand.hbm [shape: f32[1,32], index: 2, kind: input, shape index: {}]
  %s3 = inlined_call_operand.vmem [shape: bf16[512,32], index: 3, kind: output, shape index: {}]
  %s4 = sld [smem:[#allocation0]]
  $region26: #{forward.7} parent=0
    _
  %s6 = ssub.s32 1, %s4
  %s7 = scalar_select 0, %s6, %s4
  $region1: #{forward.7} parent=0
    #allocation2 [shape = 'u8[512]{0}', space=vmem, size = 0x400, scoped, tag = 'input window, operand 2, single buffered']
    #allocation3 [shape = 's32[1]{0}', space=sflag, size = 0x4, scoped, tag = 'scoped memory for forward.7']
    %8 = vsyncpa [#allocation3], 0
    // Predicated region
    $region2: #{forward.7} parent=1 // pred_check
      _
    $region3: #{forward.7} parent=1 // pred_check_branch
      %10 = sbr.rel (0) target = $region5
    $region4: #{forward.7} parent=1 // pred_region
      _
    $region5: #{forward.7} parent=1 // pred_fallthru
      _
    // Predicated region
    $region6: #{forward.7} parent=1 // pred_check
      _
    $region7: #{forward.7} parent=1 // pred_check_branch
      %12 = sbr.rel (0) target = $region9
    $region8: #{forward.7} parent=1 // pred_region
      _
    $region9: #{forward.7} parent=1 // pred_fallthru
      _
    // Predicated region
    $region10: #{forward.7} parent=1 // pred_check
      _
    $region11: #{forward.7} parent=1 // pred_check_branch
      %14 = sbr.rel (0) target = $region13
    $region12: #{forward.7} parent=1 // pred_region
      %s16 = ssub.s32 16, 16
      %17 = vsyncadd [#allocation3], %s16
      %s19 = sshll.u32 [#allocation2], 4
      %s20 = int_to_ptr.vmem [resolvable:$true] %s19
      %22 = dma.hbm_to_vmem [thread:$0]  %s2, 16, %s20, [#allocation3]
    $region13: #{forward.7} parent=1 // pred_fallthru
      _
    // Predicated region
    $region14: #{forward.7} parent=1 // pred_check
      _
    $region15: #{forward.7} parent=1 // pred_check_branch
      %24 = sbr.rel (0) target = $region17
    $region16: #{forward.7} parent=1 // pred_region
      %25 = dma.done [#allocation3], 16
    $region17: #{forward.7} parent=1 // pred_fallthru
      _
    %v27 = vld [vmem:[%s0] sm:$0xff]
    %v28 = vld [vmem:[%s0 + $0x8] sm:$0xff]
    %v29 = vld [vmem:[%s0 + $0x10] sm:$0xff]
    %v30 = vld [vmem:[%s0 + $0x18] sm:$0xff]
    %v31 = vld [vmem:[%s0 + $0x20] sm:$0xff]
    %v32 = vld [vmem:[%s0 + $0x28] sm:$0xff]
    %v33 = vld [vmem:[%s0 + $0x30] sm:$0xff]
    %v34 = vld [vmem:[%s0 + $0x38] sm:$0xff]
    %v35 = vld [vmem:[%s0 + $0x40] sm:$0xff]
    %v36 = vld [vmem:[%s0 + $0x48] sm:$0xff]
    %v37 = vld [vmem:[%s0 + $0x50] sm:$0xff]
    %v38 = vld [vmem:[%s0 + $0x58] sm:$0xff]
    %v39 = vld [vmem:[%s0 + $0x60] sm:$0xff]
    %v40 = vld [vmem:[%s0 + $0x68] sm:$0xff]
    %v41 = vld [vmem:[%s0 + $0x70] sm:$0xff]
    %v42 = vld [vmem:[%s0 + $0x78] sm:$0xff]
    %v43 = vld [vmem:[%s0 + $0x80] sm:$0xff]
    %v44 = vld [vmem:[%s0 + $0x88] sm:$0xff]
    %v45 = vld [vmem:[%s0 + $0x90] sm:$0xff]
    %v46 = vld [vmem:[%s0 + $0x98] sm:$0xff]
    %v47 = vld [vmem:[%s0 + $0xa0] sm:$0xff]
    %v48 = vld [vmem:[%s0 + $0xa8] sm:$0xff]
    %v49 = vld [vmem:[%s0 + $0xb0] sm:$0xff]
    %v50 = vld [vmem:[%s0 + $0xb8] sm:$0xff]
    %v51 = vld [vmem:[%s0 + $0xc0] sm:$0xff]
    %v52 = vld [vmem:[%s0 + $0xc8] sm:$0xff]
    %v53 = vld [vmem:[%s0 + $0xd0] sm:$0xff]
    %v54 = vld [vmem:[%s0 + $0xd8] sm:$0xff]
    %v55 = vld [vmem:[%s0 + $0xe0] sm:$0xff]
    %v56 = vld [vmem:[%s0 + $0xe8] sm:$0xff]
    %v57 = vld [vmem:[%s0 + $0xf0] sm:$0xff]
    %v58 = vld [vmem:[%s0 + $0xf8] sm:$0xff]
    %v59 = vld [vmem:[%s0 + $0x100] sm:$0xff]
    %v60 = vld [vmem:[%s0 + $0x108] sm:$0xff]
    %v61 = vld [vmem:[%s0 + $0x110] sm:$0xff]
    %v62 = vld [vmem:[%s0 + $0x118] sm:$0xff]
    %v63 = vld [vmem:[%s0 + $0x120] sm:$0xff]
    %v64 = vld [vmem:[%s0 + $0x128] sm:$0xff]
    %v65 = vld [vmem:[%s0 + $0x130] sm:$0xff]
    %v66 = vld [vmem:[%s0 + $0x138] sm:$0xff]
    %v67 = vld [vmem:[%s0 + $0x140] sm:$0xff]
    %v68 = vld [vmem:[%s0 + $0x148] sm:$0xff]
    %v69 = vld [vmem:[%s0 + $0x150] sm:$0xff]
    %v70 = vld [vmem:[%s0 + $0x158] sm:$0xff]
    %v71 = vld [vmem:[%s0 + $0x160] sm:$0xff]
    %v72 = vld [vmem:[%s0 + $0x168] sm:$0xff]
    %v73 = vld [vmem:[%s0 + $0x170] sm:$0xff]
    %v74 = vld [vmem:[%s0 + $0x178] sm:$0xff]
    %v75 = vld [vmem:[%s0 + $0x180] sm:$0xff]
    %v76 = vld [vmem:[%s0 + $0x188] sm:$0xff]
    %v77 = vld [vmem:[%s0 + $0x190] sm:$0xff]
    %v78 = vld [vmem:[%s0 + $0x198] sm:$0xff]
    %v79 = vld [vmem:[%s0 + $0x1a0] sm:$0xff]
    %v80 = vld [vmem:[%s0 + $0x1a8] sm:$0xff]
    %v81 = vld [vmem:[%s0 + $0x1b0] sm:$0xff]
    %v82 = vld [vmem:[%s0 + $0x1b8] sm:$0xff]
    %v83 = vld [vmem:[%s0 + $0x1c0] sm:$0xff]
    %v84 = vld [vmem:[%s0 + $0x1c8] sm:$0xff]
    %v85 = vld [vmem:[%s0 + $0x1d0] sm:$0xff]
    %v86 = vld [vmem:[%s0 + $0x1d8] sm:$0xff]
    %v87 = vld [vmem:[%s0 + $0x1e0] sm:$0xff]
    %v88 = vld [vmem:[%s0 + $0x1e8] sm:$0xff]
    %v89 = vld [vmem:[%s0 + $0x1f0] sm:$0xff]
    %v90 = vld [vmem:[%s0 + $0x1f8] sm:$0xff]
    %v91 = vld [vmem:[%s1] sm:$0xf]
    %v92 = vld [vmem:[%s1 + $0x4] sm:$0xf]
    %v93 = vld [vmem:[%s1 + $0x8] sm:$0xf]
    %v94 = vld [vmem:[%s1 + $0xc] sm:$0xf]
    %v95 = vld [vmem:[%s1 + $0x10] sm:$0xf]
    %v96 = vld [vmem:[%s1 + $0x14] sm:$0xf]
    %v97 = vld [vmem:[%s1 + $0x18] sm:$0xf]
    %v98 = vld [vmem:[%s1 + $0x1c] sm:$0xf]
    %v99 = vld [vmem:[%s1 + $0x20] sm:$0xf]
    %v100 = vld [vmem:[%s1 + $0x24] sm:$0xf]
    %v101 = vld [vmem:[%s1 + $0x28] sm:$0xf]
    %v102 = vld [vmem:[%s1 + $0x2c] sm:$0xf]
    %v103 = vld [vmem:[%s1 + $0x30] sm:$0xf]
    %v104 = vld [vmem:[%s1 + $0x34] sm:$0xf]
    %v105 = vld [vmem:[%s1 + $0x38] sm:$0xf]
    %v106 = vld [vmem:[%s1 + $0x3c] sm:$0xf]
    %v107 = vld [vmem:[%s1 + $0x40] sm:$0xf]
    %v108 = vld [vmem:[%s1 + $0x44] sm:$0xf]
    %v109 = vld [vmem:[#allocation2] sm:$0x1]
    %v111 = vlaneseq
    %v112 = vshrl.u32 %v111, 7
    %v113 = vsub.s32 0, %v112
    %v114 = vrot.slane %v109, %v113
    %v180 = vunpack.c.l.b16 %v27
    %v181 = vunpack.c.h.b16 %v27
    %v182 = vunpack.c.l.b16 %v28
    %v183 = vunpack.c.h.b16 %v28
    %v184 = vunpack.c.l.b16 %v29
    %v185 = vunpack.c.h.b16 %v29
    %v186 = vunpack.c.l.b16 %v30
    %v187 = vunpack.c.h.b16 %v30
    %v188 = vunpack.c.l.b16 %v31
    %v189 = vunpack.c.h.b16 %v31
    %v190 = vunpack.c.l.b16 %v32
    %v191 = vunpack.c.h.b16 %v32
    %v192 = vunpack.c.l.b16 %v33
    %v193 = vunpack.c.h.b16 %v33
    %v194 = vunpack.c.l.b16 %v34
    %v195 = vunpack.c.h.b16 %v34
    %v196 = vunpack.c.l.b16 %v35
    %v197 = vunpack.c.h.b16 %v35
    %v198 = vunpack.c.l.b16 %v36
    %v199 = vunpack.c.h.b16 %v36
    %v200 = vunpack.c.l.b16 %v37
    %v201 = vunpack.c.h.b16 %v37
    %v202 = vunpack.c.l.b16 %v38
    %v203 = vunpack.c.h.b16 %v38
    %v204 = vunpack.c.l.b16 %v39
    %v205 = vunpack.c.h.b16 %v39
    %v206 = vunpack.c.l.b16 %v40
    %v207 = vunpack.c.h.b16 %v40
    %v208 = vunpack.c.l.b16 %v41
    %v209 = vunpack.c.h.b16 %v41
    %v210 = vunpack.c.l.b16 %v42
    %v211 = vunpack.c.h.b16 %v42
    %v212 = vunpack.c.l.b16 %v43
    %v213 = vunpack.c.h.b16 %v43
    %v214 = vunpack.c.l.b16 %v44
    %v215 = vunpack.c.h.b16 %v44
    %v216 = vunpack.c.l.b16 %v45
    %v217 = vunpack.c.h.b16 %v45
    %v218 = vunpack.c.l.b16 %v46
    %v219 = vunpack.c.h.b16 %v46
    %v220 = vunpack.c.l.b16 %v47
    %v221 = vunpack.c.h.b16 %v47
    %v222 = vunpack.c.l.b16 %v48
    %v223 = vunpack.c.h.b16 %v48
    %v224 = vunpack.c.l.b16 %v49
    %v225 = vunpack.c.h.b16 %v49
    %v226 = vunpack.c.l.b16 %v50
    %v227 = vunpack.c.h.b16 %v50
    %v228 = vunpack.c.l.b16 %v51
    %v229 = vunpack.c.h.b16 %v51
    %v230 = vunpack.c.l.b16 %v52
    %v231 = vunpack.c.h.b16 %v52
    %v232 = vunpack.c.l.b16 %v53
    %v233 = vunpack.c.h.b16 %v53
    %v234 = vunpack.c.l.b16 %v54
    %v235 = vunpack.c.h.b16 %v54
    %v236 = vunpack.c.l.b16 %v55
    %v237 = vunpack.c.h.b16 %v55
    %v238 = vunpack.c.l.b16 %v56
    %v239 = vunpack.c.h.b16 %v56
    %v240 = vunpack.c.l.b16 %v57
    %v241 = vunpack.c.h.b16 %v57
    %v242 = vunpack.c.l.b16 %v58
    %v243 = vunpack.c.h.b16 %v58
    %v244 = vunpack.c.l.b16 %v59
    %v245 = vunpack.c.h.b16 %v59
    %v246 = vunpack.c.l.b16 %v60
    %v247 = vunpack.c.h.b16 %v60
    %v248 = vunpack.c.l.b16 %v61
    %v249 = vunpack.c.h.b16 %v61
    %v250 = vunpack.c.l.b16 %v62
    %v251 = vunpack.c.h.b16 %v62
    %v252 = vunpack.c.l.b16 %v63
    %v253 = vunpack.c.h.b16 %v63
    %v254 = vunpack.c.l.b16 %v64
    %v255 = vunpack.c.h.b16 %v64
    %v256 = vunpack.c.l.b16 %v65
    %v257 = vunpack.c.h.b16 %v65
    %v258 = vunpack.c.l.b16 %v66
    %v259 = vunpack.c.h.b16 %v66
    %v260 = vunpack.c.l.b16 %v67
    %v261 = vunpack.c.h.b16 %v67
    %v262 = vunpack.c.l.b16 %v68
    %v263 = vunpack.c.h.b16 %v68
    %v264 = vunpack.c.l.b16 %v69
    %v265 = vunpack.c.h.b16 %v69
    %v266 = vunpack.c.l.b16 %v70
    %v267 = vunpack.c.h.b16 %v70
    %v268 = vunpack.c.l.b16 %v71
    %v269 = vunpack.c.h.b16 %v71
    %v270 = vunpack.c.l.b16 %v72
    %v271 = vunpack.c.h.b16 %v72
    %v272 = vunpack.c.l.b16 %v73
    %v273 = vunpack.c.h.b16 %v73
    %v274 = vunpack.c.l.b16 %v74
    %v275 = vunpack.c.h.b16 %v74
    %v276 = vunpack.c.l.b16 %v75
    %v277 = vunpack.c.h.b16 %v75
    %v278 = vunpack.c.l.b16 %v76
    %v279 = vunpack.c.h.b16 %v76
    %v280 = vunpack.c.l.b16 %v77
    %v281 = vunpack.c.h.b16 %v77
    %v282 = vunpack.c.l.b16 %v78
    %v283 = vunpack.c.h.b16 %v78
    %v284 = vunpack.c.l.b16 %v79
    %v285 = vunpack.c.h.b16 %v79
    %v286 = vunpack.c.l.b16 %v80
    %v287 = vunpack.c.h.b16 %v80
    %v288 = vunpack.c.l.b16 %v81
    %v289 = vunpack.c.h.b16 %v81
    %v290 = vunpack.c.l.b16 %v82
    %v291 = vunpack.c.h.b16 %v82
    %v292 = vunpack.c.l.b16 %v83
    %v293 = vunpack.c.h.b16 %v83
    %v294 = vunpack.c.l.b16 %v84
    %v295 = vunpack.c.h.b16 %v84
    %v296 = vunpack.c.l.b16 %v85
    %v297 = vunpack.c.h.b16 %v85
    %v298 = vunpack.c.l.b16 %v86
    %v299 = vunpack.c.h.b16 %v86
    %v300 = vunpack.c.l.b16 %v87
    %v301 = vunpack.c.h.b16 %v87
    %v302 = vunpack.c.l.b16 %v88
    %v303 = vunpack.c.h.b16 %v88
    %v304 = vunpack.c.l.b16 %v89
    %v305 = vunpack.c.h.b16 %v89
    %v306 = vunpack.c.l.b16 %v90
    %v307 = vunpack.c.h.b16 %v90
    %v308 = vpack.c.b16 %v182, %v180
    %v309 = vpack.c.b16 %v183, %v181
    %v310 = vpack.c.b16 %v186, %v184
    %v311 = vpack.c.b16 %v187, %v185
    %v312 = vpack.c.b16 %v190, %v188
    %v313 = vpack.c.b16 %v191, %v189
    %v314 = vpack.c.b16 %v194, %v192
    %v315 = vpack.c.b16 %v195, %v193
    %v316 = vpack.c.b16 %v198, %v196
    %v317 = vpack.c.b16 %v199, %v197
    %v318 = vpack.c.b16 %v202, %v200
    %v319 = vpack.c.b16 %v203, %v201
    %v320 = vpack.c.b16 %v206, %v204
    %v321 = vpack.c.b16 %v207, %v205
    %v322 = vpack.c.b16 %v210, %v208
    %v323 = vpack.c.b16 %v211, %v209
    %v324 = vpack.c.b16 %v214, %v212
    %v325 = vpack.c.b16 %v215, %v213
    %v326 = vpack.c.b16 %v218, %v216
    %v327 = vpack.c.b16 %v219, %v217
    %v328 = vpack.c.b16 %v222, %v220
    %v329 = vpack.c.b16 %v223, %v221
    %v330 = vpack.c.b16 %v226, %v224
    %v331 = vpack.c.b16 %v227, %v225
    %v332 = vpack.c.b16 %v230, %v228
    %v333 = vpack.c.b16 %v231, %v229
    %v334 = vpack.c.b16 %v234, %v232
    %v335 = vpack.c.b16 %v235, %v233
    %v336 = vpack.c.b16 %v238, %v236
    %v337 = vpack.c.b16 %v239, %v237
    %v338 = vpack.c.b16 %v242, %v240
    %v339 = vpack.c.b16 %v243, %v241
    %v340 = vpack.c.b16 %v246, %v244
    %v341 = vpack.c.b16 %v247, %v245
    %v342 = vpack.c.b16 %v250, %v248
    %v343 = vpack.c.b16 %v251, %v249
    %v344 = vpack.c.b16 %v254, %v252
    %v345 = vpack.c.b16 %v255, %v253
    %v346 = vpack.c.b16 %v258, %v256
    %v347 = vpack.c.b16 %v259, %v257
    %v348 = vpack.c.b16 %v262, %v260
    %v349 = vpack.c.b16 %v263, %v261
    %v350 = vpack.c.b16 %v266, %v264
    %v351 = vpack.c.b16 %v267, %v265
    %v352 = vpack.c.b16 %v270, %v268
    %v353 = vpack.c.b16 %v271, %v269
    %v354 = vpack.c.b16 %v274, %v272
    %v355 = vpack.c.b16 %v275, %v273
    %v356 = vpack.c.b16 %v278, %v276
    %v357 = vpack.c.b16 %v279, %v277
    %v358 = vpack.c.b16 %v282, %v280
    %v359 = vpack.c.b16 %v283, %v281
    %v360 = vpack.c.b16 %v286, %v284
    %v361 = vpack.c.b16 %v287, %v285
    %v362 = vpack.c.b16 %v290, %v288
    %v363 = vpack.c.b16 %v291, %v289
    %v364 = vpack.c.b16 %v294, %v292
    %v365 = vpack.c.b16 %v295, %v293
    %v366 = vpack.c.b16 %v298, %v296
    %v367 = vpack.c.b16 %v299, %v297
    %v368 = vpack.c.b16 %v302, %v300
    %v369 = vpack.c.b16 %v303, %v301
    %v370 = vpack.c.b16 %v306, %v304
    %v371 = vpack.c.b16 %v307, %v305
    %v422 = vunpack.c.l.b16 %v91
    %v423 = vunpack.c.l.b16 %v92
    %v424 = vunpack.c.l.b16 %v93
    %v425 = vunpack.c.l.b16 %v94
    %v426 = vunpack.c.l.b16 %v95
    %v427 = vunpack.c.l.b16 %v96
    %v428 = vunpack.c.l.b16 %v97
    %v429 = vunpack.c.l.b16 %v98
    %v430 = vunpack.c.l.b16 %v99
    %v431 = vunpack.c.l.b16 %v100
    %v432 = vunpack.c.l.b16 %v101
    %v433 = vunpack.c.l.b16 %v102
    %v434 = vunpack.c.l.b16 %v103
    %v435 = vunpack.c.l.b16 %v104
    %v436 = vunpack.c.l.b16 %v105
    %v437 = vunpack.c.l.b16 %v106
    %v438 = vunpack.c.l.b16 %v107
    %v439 = vunpack.c.l.b16 %v108
    %v440 = vpack.c.b16 %v423, %v422
    %v441 = vpack.c.b16 %v425, %v424
    %v442 = vpack.c.b16 %v427, %v426
    %v443 = vpack.c.b16 %v429, %v428
    %v444 = vpack.c.b16 %v431, %v430
    %v445 = vpack.c.b16 %v433, %v432
    %v446 = vpack.c.b16 %v435, %v434
    %v447 = vpack.c.b16 %v437, %v436
    %v448 = vpack.c.b16 %v439, %v438
    %vm458 = vcmask 130048
    %v460 = vsel %vm458, %v309, 0
    %v463 = vsel %vm458, %v311, 0
    %v466 = vsel %vm458, %v313, 0
    %v469 = vsel %vm458, %v315, 0
    %v472 = vsel %vm458, %v317, 0
    %v475 = vsel %vm458, %v319, 0
    %v478 = vsel %vm458, %v321, 0
    %v481 = vsel %vm458, %v323, 0
    %v484 = vsel %vm458, %v325, 0
    %v487 = vsel %vm458, %v327, 0
    %v490 = vsel %vm458, %v329, 0
    %v493 = vsel %vm458, %v331, 0
    %v496 = vsel %vm458, %v333, 0
    %v499 = vsel %vm458, %v335, 0
    %v502 = vsel %vm458, %v337, 0
    %v505 = vsel %vm458, %v339, 0
    %v508 = vsel %vm458, %v341, 0
    %v511 = vsel %vm458, %v343, 0
    %v514 = vsel %vm458, %v345, 0
    %v517 = vsel %vm458, %v347, 0
    %v520 = vsel %vm458, %v349, 0
    %v523 = vsel %vm458, %v351, 0
    %v526 = vsel %vm458, %v353, 0
    %v529 = vsel %vm458, %v355, 0
    %v532 = vsel %vm458, %v357, 0
    %v535 = vsel %vm458, %v359, 0
    %v538 = vsel %vm458, %v361, 0
    %v541 = vsel %vm458, %v363, 0
    %v544 = vsel %vm458, %v365, 0
    %v547 = vsel %vm458, %v367, 0
    %v550 = vsel %vm458, %v369, 0
    %v553 = vsel %vm458, %v371, 0
    %555 = vmatprep.subr.bf16.mxu0 0
    %556 = vmatpush1.bf16.msra.mxu0 %v440
    %557 = vmatprep.subr.bf16.mxu0 0
    %558 = vmatpush1.bf16.msra.mxu0 %v441
    %559 = vmatprep.subr.bf16.mxu0 0
    %560 = vmatpush1.bf16.msra.mxu0 %v442
    %561 = vmatprep.subr.bf16.mxu0 0
    %562 = vmatpush1.bf16.msra.mxu0 %v443
    %563 = vmatprep.subr.bf16.mxu0 0
    %564 = vmatpush1.bf16.msra.mxu0 %v444
    %565 = vmatprep.subr.bf16.mxu0 0
    %566 = vmatpush1.bf16.msra.mxu0 %v445
    %567 = vmatprep.subr.bf16.mxu0 0
    %568 = vmatpush1.bf16.msra.mxu0 %v446
    %569 = vmatprep.subr.bf16.mxu0 0
    %570 = vmatpush1.bf16.msra.mxu0 %v447
    %571 = vmatprep.subr.bf16.mxu0 0
    %572 = vmatpush1.bf16.msra.mxu0 %v448
    %573 = vmatprep.subr.bf16.mxu0 0
    %574 = vmatpush1.bf16.msra.mxu0 0
    %575 = vmatprep.subr.bf16.mxu0 0
    %576 = vmatpush1.bf16.msra.mxu0 0
    %577 = vmatprep.subr.bf16.mxu0 0
    %578 = vmatpush1.bf16.msra.mxu0 0
    %579 = vmatprep.subr.bf16.mxu0 0
    %580 = vmatpush1.bf16.msra.mxu0 0
    %581 = vmatprep.subr.bf16.mxu0 0
    %582 = vmatpush1.bf16.msra.mxu0 0
    %583 = vmatprep.subr.bf16.mxu0 0
    %584 = vmatpush1.bf16.msra.mxu0 0
    %585 = vmatprep.subr.bf16.mxu0 0
    %586 = vmatpush1.bf16.msra.mxu0 0
    %587 = vmatprep.mubr.bf16.mxu0 %v460
    %588 = vmatmul.mubr.bf16.gmra.mrb[0].mxu0 %v308
    %v589 = vpop.f32.mrb[0].mxu0
    %v590 = vadd.f32 %v114, %v589
    %v591 = vpop.f32.mrb[0].mxu0
    %v592 = vpop.f32.mrb[0].mxu0
    %v593 = vadd.f32 %v114, %v592
    %v594 = vpop.f32.mrb[0].mxu0
    %595 = vmatprep.mubr.bf16.mxu0 %v463
    %596 = vmatmul.mubr.bf16.gmra.mrb[0].mxu0 %v310
    %v597 = vpop.f32.mrb[0].mxu0
    %v598 = vadd.f32 %v114, %v597
    %v599 = vpop.f32.mrb[0].mxu0
    %v600 = vpop.f32.mrb[0].mxu0
    %v601 = vadd.f32 %v114, %v600
    %v602 = vpop.f32.mrb[0].mxu0
    %603 = vmatprep.mubr.bf16.mxu0 %v466
    %604 = vmatmul.mubr.bf16.gmra.mrb[0].mxu0 %v312
    %v605 = vpop.f32.mrb[0].mxu0
    %v606 = vadd.f32 %v114, %v605
    %v607 = vpop.f32.mrb[0].mxu0
    %v608 = vpop.f32.mrb[0].mxu0
    %v609 = vadd.f32 %v114, %v608
    %v610 = vpop.f32.mrb[0].mxu0
    %611 = vmatprep.mubr.bf16.mxu0 %v469
    %612 = vmatmul.mubr.bf16.gmra.mrb[0].mxu0 %v314
    %v613 = vpop.f32.mrb[0].mxu0
    %v614 = vadd.f32 %v114, %v613
    %v615 = vpop.f32.mrb[0].mxu0
    %v616 = vpop.f32.mrb[0].mxu0
    %v617 = vadd.f32 %v114, %v616
    %v618 = vpop.f32.mrb[0].mxu0
    %619 = vmatprep.mubr.bf16.mxu0 %v472
    %620 = vmatmul.mubr.bf16.gmra.mrb[0].mxu0 %v316
    %v621 = vpop.f32.mrb[0].mxu0
    %v622 = vadd.f32 %v114, %v621
    %v623 = vpop.f32.mrb[0].mxu0
    %v624 = vpop.f32.mrb[0].mxu0
    %v625 = vadd.f32 %v114, %v624
    %v626 = vpop.f32.mrb[0].mxu0
    %627 = vmatprep.mubr.bf16.mxu0 %v475
    %628 = vmatmul.mubr.bf16.gmra.mrb[0].mxu0 %v318
    %v629 = vpop.f32.mrb[0].mxu0
    %v630 = vadd.f32 %v114, %v629
    %v631 = vpop.f32.mrb[0].mxu0
    %v632 = vpop.f32.mrb[0].mxu0
    %v633 = vadd.f32 %v114, %v632
    %v634 = vpop.f32.mrb[0].mxu0
    %635 = vmatprep.mubr.bf16.mxu0 %v478
    %636 = vmatmul.mubr.bf16.gmra.mrb[0].mxu0 %v320
    %v637 = vpop.f32.mrb[0].mxu0
    %v638 = vadd.f32 %v114, %v637
    %v639 = vpop.f32.mrb[0].mxu0
    %v640 = vpop.f32.mrb[0].mxu0
    %v641 = vadd.f32 %v114, %v640
    %v642 = vpop.f32.mrb[0].mxu0
    %643 = vmatprep.mubr.bf16.mxu0 %v481
    %644 = vmatmul.mubr.bf16.gmra.mrb[0].mxu0 %v322
    %v645 = vpop.f32.mrb[0].mxu0
    %v646 = vadd.f32 %v114, %v645
    %v647 = vpop.f32.mrb[0].mxu0
    %v648 = vpop.f32.mrb[0].mxu0
    %v649 = vadd.f32 %v114, %v648
    %v650 = vpop.f32.mrb[0].mxu0
    %651 = vmatprep.mubr.bf16.mxu0 %v484
    %652 = vmatmul.mubr.bf16.gmra.mrb[0].mxu0 %v324
    %v653 = vpop.f32.mrb[0].mxu0
    %v654 = vadd.f32 %v114, %v653
    %v655 = vpop.f32.mrb[0].mxu0
    %v656 = vpop.f32.mrb[0].mxu0
    %v657 = vadd.f32 %v114, %v656
    %v658 = vpop.f32.mrb[0].mxu0
    %659 = vmatprep.mubr.bf16.mxu0 %v487
    %660 = vmatmul.mubr.bf16.gmra.mrb[0].mxu0 %v326
    %v661 = vpop.f32.mrb[0].mxu0
    %v662 = vadd.f32 %v114, %v661
    %v663 = vpop.f32.mrb[0].mxu0
    %v664 = vpop.f32.mrb[0].mxu0
    %v665 = vadd.f32 %v114, %v664
    %v666 = vpop.f32.mrb[0].mxu0
    %667 = vmatprep.mubr.bf16.mxu0 %v490
    %668 = vmatmul.mubr.bf16.gmra.mrb[0].mxu0 %v328
    %v669 = vpop.f32.mrb[0].mxu0
    %v670 = vadd.f32 %v114, %v669
    %v671 = vpop.f32.mrb[0].mxu0
    %v672 = vpop.f32.mrb[0].mxu0
    %v673 = vadd.f32 %v114, %v672
    %v674 = vpop.f32.mrb[0].mxu0
    %675 = vmatprep.mubr.bf16.mxu0 %v493
    %676 = vmatmul.mubr.bf16.gmra.mrb[0].mxu0 %v330
    %v677 = vpop.f32.mrb[0].mxu0
    %v678 = vadd.f32 %v114, %v677
    %v679 = vpop.f32.mrb[0].mxu0
    %v680 = vpop.f32.mrb[0].mxu0
    %v681 = vadd.f32 %v114, %v680
    %v682 = vpop.f32.mrb[0].mxu0
    %683 = vmatprep.mubr.bf16.mxu0 %v496
    %684 = vmatmul.mubr.bf16.gmra.mrb[0].mxu0 %v332
    %v685 = vpop.f32.mrb[0].mxu0
    %v686 = vadd.f32 %v114, %v685
    %v687 = vpop.f32.mrb[0].mxu0
    %v688 = vpop.f32.mrb[0].mxu0
    %v689 = vadd.f32 %v114, %v688
    %v690 = vpop.f32.mrb[0].mxu0
    %691 = vmatprep.mubr.bf16.mxu0 %v499
    %692 = vmatmul.mubr.bf16.gmra.mrb[0].mxu0 %v334
    %v693 = vpop.f32.mrb[0].mxu0
    %v694 = vadd.f32 %v114, %v693
    %v695 = vpop.f32.mrb[0].mxu0
    %v696 = vpop.f32.mrb[0].mxu0
    %v697 = vadd.f32 %v114, %v696
    %v698 = vpop.f32.mrb[0].mxu0
    %699 = vmatprep.mubr.bf16.mxu0 %v502
    %700 = vmatmul.mubr.bf16.gmra.mrb[0].mxu0 %v336
    %v701 = vpop.f32.mrb[0].mxu0
    %v702 = vadd.f32 %v114, %v701
    %v703 = vpop.f32.mrb[0].mxu0
    %v704 = vpop.f32.mrb[0].mxu0
    %v705 = vadd.f32 %v114, %v704
    %v706 = vpop.f32.mrb[0].mxu0
    %707 = vmatprep.mubr.bf16.mxu0 %v505
    %708 = vmatmul.mubr.bf16.gmra.mrb[0].mxu0 %v338
    %v709 = vpop.f32.mrb[0].mxu0
    %v710 = vadd.f32 %v114, %v709
    %v711 = vpop.f32.mrb[0].mxu0
    %v712 = vpop.f32.mrb[0].mxu0
    %v713 = vadd.f32 %v114, %v712
    %v714 = vpop.f32.mrb[0].mxu0
    %715 = vmatprep.mubr.bf16.mxu0 %v508
    %716 = vmatmul.mubr.bf16.gmra.mrb[0].mxu0 %v340
    %v717 = vpop.f32.mrb[0].mxu0
    %v718 = vadd.f32 %v114, %v717
    %v719 = vpop.f32.mrb[0].mxu0
    %v720 = vpop.f32.mrb[0].mxu0
    %v721 = vadd.f32 %v114, %v720
    %v722 = vpop.f32.mrb[0].mxu0
    %723 = vmatprep.mubr.bf16.mxu0 %v511
    %724 = vmatmul.mubr.bf16.gmra.mrb[0].mxu0 %v342
    %v725 = vpop.f32.mrb[0].mxu0
    %v726 = vadd.f32 %v114, %v725
    %v727 = vpop.f32.mrb[0].mxu0
    %v728 = vpop.f32.mrb[0].mxu0
    %v729 = vadd.f32 %v114, %v728
    %v730 = vpop.f32.mrb[0].mxu0
    %731 = vmatprep.mubr.bf16.mxu0 %v514
    %732 = vmatmul.mubr.bf16.gmra.mrb[0].mxu0 %v344
    %v733 = vpop.f32.mrb[0].mxu0
    %v734 = vadd.f32 %v114, %v733
    %v735 = vpop.f32.mrb[0].mxu0
    %v736 = vpop.f32.mrb[0].mxu0
    %v737 = vadd.f32 %v114, %v736
    %v738 = vpop.f32.mrb[0].mxu0
    %739 = vmatprep.mubr.bf16.mxu0 %v517
    %740 = vmatmul.mubr.bf16.gmra.mrb[0].mxu0 %v346
    %v741 = vpop.f32.mrb[0].mxu0
    %v742 = vadd.f32 %v114, %v741
    %v743 = vpop.f32.mrb[0].mxu0
    %v744 = vpop.f32.mrb[0].mxu0
    %v745 = vadd.f32 %v114, %v744
    %v746 = vpop.f32.mrb[0].mxu0
    %747 = vmatprep.mubr.bf16.mxu0 %v520
    %748 = vmatmul.mubr.bf16.gmra.mrb[0].mxu0 %v348
    %v749 = vpop.f32.mrb[0].mxu0
    %v750 = vadd.f32 %v114, %v749
    %v751 = vpop.f32.mrb[0].mxu0
    %v752 = vpop.f32.mrb[0].mxu0
    %v753 = vadd.f32 %v114, %v752
    %v754 = vpop.f32.mrb[0].mxu0
    %755 = vmatprep.mubr.bf16.mxu0 %v523
    %756 = vmatmul.mubr.bf16.gmra.mrb[0].mxu0 %v350
    %v757 = vpop.f32.mrb[0].mxu0
    %v758 = vadd.f32 %v114, %v757
    %v759 = vpop.f32.mrb[0].mxu0
    %v760 = vpop.f32.mrb[0].mxu0
    %v761 = vadd.f32 %v114, %v760
    %v762 = vpop.f32.mrb[0].mxu0
    %763 = vmatprep.mubr.bf16.mxu0 %v526
    %764 = vmatmul.mubr.bf16.gmra.mrb[0].mxu0 %v352
    %v765 = vpop.f32.mrb[0].mxu0
    %v766 = vadd.f32 %v114, %v765
    %v767 = vpop.f32.mrb[0].mxu0
    %v768 = vpop.f32.mrb[0].mxu0
    %v769 = vadd.f32 %v114, %v768
    %v770 = vpop.f32.mrb[0].mxu0
    %771 = vmatprep.mubr.bf16.mxu0 %v529
    %772 = vmatmul.mubr.bf16.gmra.mrb[0].mxu0 %v354
    %v773 = vpop.f32.mrb[0].mxu0
    %v774 = vadd.f32 %v114, %v773
    %v775 = vpop.f32.mrb[0].mxu0
    %v776 = vpop.f32.mrb[0].mxu0
    %v777 = vadd.f32 %v114, %v776
    %v778 = vpop.f32.mrb[0].mxu0
    %779 = vmatprep.mubr.bf16.mxu0 %v532
    %780 = vmatmul.mubr.bf16.gmra.mrb[0].mxu0 %v356
    %v781 = vpop.f32.mrb[0].mxu0
    %v782 = vadd.f32 %v114, %v781
    %v783 = vpop.f32.mrb[0].mxu0
    %v784 = vpop.f32.mrb[0].mxu0
    %v785 = vadd.f32 %v114, %v784
    %v786 = vpop.f32.mrb[0].mxu0
    %787 = vmatprep.mubr.bf16.mxu0 %v535
    %788 = vmatmul.mubr.bf16.gmra.mrb[0].mxu0 %v358
    %v789 = vpop.f32.mrb[0].mxu0
    %v790 = vadd.f32 %v114, %v789
    %v791 = vpop.f32.mrb[0].mxu0
    %v792 = vpop.f32.mrb[0].mxu0
    %v793 = vadd.f32 %v114, %v792
    %v794 = vpop.f32.mrb[0].mxu0
    %795 = vmatprep.mubr.bf16.mxu0 %v538
    %796 = vmatmul.mubr.bf16.gmra.mrb[0].mxu0 %v360
    %v797 = vpop.f32.mrb[0].mxu0
    %v798 = vadd.f32 %v114, %v797
    %v799 = vpop.f32.mrb[0].mxu0
    %v800 = vpop.f32.mrb[0].mxu0
    %v801 = vadd.f32 %v114, %v800
    %v802 = vpop.f32.mrb[0].mxu0
    %803 = vmatprep.mubr.bf16.mxu0 %v541
    %804 = vmatmul.mubr.bf16.gmra.mrb[0].mxu0 %v362
    %v805 = vpop.f32.mrb[0].mxu0
    %v806 = vadd.f32 %v114, %v805
    %v807 = vpop.f32.mrb[0].mxu0
    %v808 = vpop.f32.mrb[0].mxu0
    %v809 = vadd.f32 %v114, %v808
    %v810 = vpop.f32.mrb[0].mxu0
    %811 = vmatprep.mubr.bf16.mxu0 %v544
    %812 = vmatmul.mubr.bf16.gmra.mrb[0].mxu0 %v364
    %v813 = vpop.f32.mrb[0].mxu0
    %v814 = vadd.f32 %v114, %v813
    %v815 = vpop.f32.mrb[0].mxu0
    %v816 = vpop.f32.mrb[0].mxu0
    %v817 = vadd.f32 %v114, %v816
    %v818 = vpop.f32.mrb[0].mxu0
    %819 = vmatprep.mubr.bf16.mxu0 %v547
    %820 = vmatmul.mubr.bf16.gmra.mrb[0].mxu0 %v366
    %v821 = vpop.f32.mrb[0].mxu0
    %v822 = vadd.f32 %v114, %v821
    %v823 = vpop.f32.mrb[0].mxu0
    %v824 = vpop.f32.mrb[0].mxu0
    %v825 = vadd.f32 %v114, %v824
    %v826 = vpop.f32.mrb[0].mxu0
    %827 = vmatprep.mubr.bf16.mxu0 %v550
    %828 = vmatmul.mubr.bf16.gmra.mrb[0].mxu0 %v368
    %v829 = vpop.f32.mrb[0].mxu0
    %v830 = vadd.f32 %v114, %v829
    %v831 = vpop.f32.mrb[0].mxu0
    %v832 = vpop.f32.mrb[0].mxu0
    %v833 = vadd.f32 %v114, %v832
    %v834 = vpop.f32.mrb[0].mxu0
    %835 = vmatprep.mubr.bf16.mxu0 %v553
    %836 = vmatmul.mubr.bf16.gmra.mrb[0].mxu0 %v370
    %v837 = vpop.f32.mrb[0].mxu0
    %v838 = vadd.f32 %v114, %v837
    %v839 = vpop.f32.mrb[0].mxu0
    %v840 = vpop.f32.mrb[0].mxu0
    %v841 = vadd.f32 %v114, %v840
    %v842 = vpop.f32.mrb[0].mxu0
    %843 = vdwg.mxu0
    %v844 = vmax.f32 %v590, 0.0
    %v845 = vmax.f32 %v593, 0.0
    %v846 = vmax.f32 %v598, 0.0
    %v847 = vmax.f32 %v601, 0.0
    %v848 = vmax.f32 %v606, 0.0
    %v849 = vmax.f32 %v609, 0.0
    %v850 = vmax.f32 %v614, 0.0
    %v851 = vmax.f32 %v617, 0.0
    %v852 = vmax.f32 %v622, 0.0
    %v853 = vmax.f32 %v625, 0.0
    %v854 = vmax.f32 %v630, 0.0
    %v855 = vmax.f32 %v633, 0.0
    %v856 = vmax.f32 %v638, 0.0
    %v857 = vmax.f32 %v641, 0.0
    %v858 = vmax.f32 %v646, 0.0
    %v859 = vmax.f32 %v649, 0.0
    %v860 = vmax.f32 %v654, 0.0
    %v861 = vmax.f32 %v657, 0.0
    %v862 = vmax.f32 %v662, 0.0
    %v863 = vmax.f32 %v665, 0.0
    %v864 = vmax.f32 %v670, 0.0
    %v865 = vmax.f32 %v673, 0.0
    %v866 = vmax.f32 %v678, 0.0
    %v867 = vmax.f32 %v681, 0.0
    %v868 = vmax.f32 %v686, 0.0
    %v869 = vmax.f32 %v689, 0.0
    %v870 = vmax.f32 %v694, 0.0
    %v871 = vmax.f32 %v697, 0.0
    %v872 = vmax.f32 %v702, 0.0
    %v873 = vmax.f32 %v705, 0.0
    %v874 = vmax.f32 %v710, 0.0
    %v875 = vmax.f32 %v713, 0.0
    %v876 = vmax.f32 %v718, 0.0
    %v877 = vmax.f32 %v721, 0.0
    %v878 = vmax.f32 %v726, 0.0
    %v879 = vmax.f32 %v729, 0.0
    %v880 = vmax.f32 %v734, 0.0
    %v881 = vmax.f32 %v737, 0.0
    %v882 = vmax.f32 %v742, 0.0
    %v883 = vmax.f32 %v745, 0.0
    %v884 = vmax.f32 %v750, 0.0
    %v885 = vmax.f32 %v753, 0.0
    %v886 = vmax.f32 %v758, 0.0
    %v887 = vmax.f32 %v761, 0.0
    %v888 = vmax.f32 %v766, 0.0
    %v889 = vmax.f32 %v769, 0.0
    %v890 = vmax.f32 %v774, 0.0
    %v891 = vmax.f32 %v777, 0.0
    %v892 = vmax.f32 %v782, 0.0
    %v893 = vmax.f32 %v785, 0.0
    %v894 = vmax.f32 %v790, 0.0
    %v895 = vmax.f32 %v793, 0.0
    %v896 = vmax.f32 %v798, 0.0
    %v897 = vmax.f32 %v801, 0.0
    %v898 = vmax.f32 %v806, 0.0
    %v899 = vmax.f32 %v809, 0.0
    %v900 = vmax.f32 %v814, 0.0
    %v901 = vmax.f32 %v817, 0.0
    %v902 = vmax.f32 %v822, 0.0
    %v903 = vmax.f32 %v825, 0.0
    %v904 = vmax.f32 %v830, 0.0
    %v905 = vmax.f32 %v833, 0.0
    %v906 = vmax.f32 %v838, 0.0
    %v907 = vmax.f32 %v841, 0.0
    %v908 = vpack.c.bf16 %v845, %v844
    %v909 = vpack.c.bf16 %v847, %v846
    %v910 = vpack.c.bf16 %v849, %v848
    %v911 = vpack.c.bf16 %v851, %v850
    %v912 = vpack.c.bf16 %v853, %v852
    %v913 = vpack.c.bf16 %v855, %v854
    %v914 = vpack.c.bf16 %v857, %v856
    %v915 = vpack.c.bf16 %v859, %v858
    %v916 = vpack.c.bf16 %v861, %v860
    %v917 = vpack.c.bf16 %v863, %v862
    %v918 = vpack.c.bf16 %v865, %v864
    %v919 = vpack.c.bf16 %v867, %v866
    %v920 = vpack.c.bf16 %v869, %v868
    %v921 = vpack.c.bf16 %v871, %v870
    %v922 = vpack.c.bf16 %v873, %v872
    %v923 = vpack.c.bf16 %v875, %v874
    %v924 = vpack.c.bf16 %v877, %v876
    %v925 = vpack.c.bf16 %v879, %v878
    %v926 = vpack.c.bf16 %v881, %v880
    %v927 = vpack.c.bf16 %v883, %v882
    %v928 = vpack.c.bf16 %v885, %v884
    %v929 = vpack.c.bf16 %v887, %v886
    %v930 = vpack.c.bf16 %v889, %v888
    %v931 = vpack.c.bf16 %v891, %v890
    %v932 = vpack.c.bf16 %v893, %v892
    %v933 = vpack.c.bf16 %v895, %v894
    %v934 = vpack.c.bf16 %v897, %v896
    %v935 = vpack.c.bf16 %v899, %v898
    %v936 = vpack.c.bf16 %v901, %v900
    %v937 = vpack.c.bf16 %v903, %v902
    %v938 = vpack.c.bf16 %v905, %v904
    %v939 = vpack.c.bf16 %v907, %v906
    %v972 = vunpack.c.l.b16 %v908
    %v973 = vunpack.c.h.b16 %v908
    %v974 = vunpack.c.l.b16 %v909
    %v975 = vunpack.c.h.b16 %v909
    %v976 = vunpack.c.l.b16 %v910
    %v977 = vunpack.c.h.b16 %v910
    %v978 = vunpack.c.l.b16 %v911
    %v979 = vunpack.c.h.b16 %v911
    %v980 = vunpack.c.l.b16 %v912
    %v981 = vunpack.c.h.b16 %v912
    %v982 = vunpack.c.l.b16 %v913
    %v983 = vunpack.c.h.b16 %v913
    %v984 = vunpack.c.l.b16 %v914
    %v985 = vunpack.c.h.b16 %v914
    %v986 = vunpack.c.l.b16 %v915
    %v987 = vunpack.c.h.b16 %v915
    %v988 = vunpack.c.l.b16 %v916
    %v989 = vunpack.c.h.b16 %v916
    %v990 = vunpack.c.l.b16 %v917
    %v991 = vunpack.c.h.b16 %v917
    %v992 = vunpack.c.l.b16 %v918
    %v993 = vunpack.c.h.b16 %v918
    %v994 = vunpack.c.l.b16 %v919
    %v995 = vunpack.c.h.b16 %v919
    %v996 = vunpack.c.l.b16 %v920
    %v997 = vunpack.c.h.b16 %v920
    %v998 = vunpack.c.l.b16 %v921
    %v999 = vunpack.c.h.b16 %v921
    %v1000 = vunpack.c.l.b16 %v922
    %v1001 = vunpack.c.h.b16 %v922
    %v1002 = vunpack.c.l.b16 %v923
    %v1003 = vunpack.c.h.b16 %v923
    %v1004 = vunpack.c.l.b16 %v924
    %v1005 = vunpack.c.h.b16 %v924
    %v1006 = vunpack.c.l.b16 %v925
    %v1007 = vunpack.c.h.b16 %v925
    %v1008 = vunpack.c.l.b16 %v926
    %v1009 = vunpack.c.h.b16 %v926
    %v1010 = vunpack.c.l.b16 %v927
    %v1011 = vunpack.c.h.b16 %v927
    %v1012 = vunpack.c.l.b16 %v928
    %v1013 = vunpack.c.h.b16 %v928
    %v1014 = vunpack.c.l.b16 %v929
    %v1015 = vunpack.c.h.b16 %v929
    %v1016 = vunpack.c.l.b16 %v930
    %v1017 = vunpack.c.h.b16 %v930
    %v1018 = vunpack.c.l.b16 %v931
    %v1019 = vunpack.c.h.b16 %v931
    %v1020 = vunpack.c.l.b16 %v932
    %v1021 = vunpack.c.h.b16 %v932
    %v1022 = vunpack.c.l.b16 %v933
    %v1023 = vunpack.c.h.b16 %v933
    %v1024 = vunpack.c.l.b16 %v934
    %v1025 = vunpack.c.h.b16 %v934
    %v1026 = vunpack.c.l.b16 %v935
    %v1027 = vunpack.c.h.b16 %v935
    %v1028 = vunpack.c.l.b16 %v936
    %v1029 = vunpack.c.h.b16 %v936
    %v1030 = vunpack.c.l.b16 %v937
    %v1031 = vunpack.c.h.b16 %v937
    %v1032 = vunpack.c.l.b16 %v938
    %v1033 = vunpack.c.h.b16 %v938
    %v1034 = vunpack.c.l.b16 %v939
    %v1035 = vunpack.c.h.b16 %v939
    %v1036 = vpack.c.b16 %v972, %v972
    %v1037 = vpack.c.b16 %v973, %v973
    %v1038 = vpack.c.b16 %v974, %v974
    %v1039 = vpack.c.b16 %v975, %v975
    %v1040 = vpack.c.b16 %v976, %v976
    %v1041 = vpack.c.b16 %v977, %v977
    %v1042 = vpack.c.b16 %v978, %v978
    %v1043 = vpack.c.b16 %v979, %v979
    %v1044 = vpack.c.b16 %v980, %v980
    %v1045 = vpack.c.b16 %v981, %v981
    %v1046 = vpack.c.b16 %v982, %v982
    %v1047 = vpack.c.b16 %v983, %v983
    %v1048 = vpack.c.b16 %v984, %v984
    %v1049 = vpack.c.b16 %v985, %v985
    %v1050 = vpack.c.b16 %v986, %v986
    %v1051 = vpack.c.b16 %v987, %v987
    %v1052 = vpack.c.b16 %v988, %v988
    %v1053 = vpack.c.b16 %v989, %v989
    %v1054 = vpack.c.b16 %v990, %v990
    %v1055 = vpack.c.b16 %v991, %v991
    %v1056 = vpack.c.b16 %v992, %v992
    %v1057 = vpack.c.b16 %v993, %v993
    %v1058 = vpack.c.b16 %v994, %v994
    %v1059 = vpack.c.b16 %v995, %v995
    %v1060 = vpack.c.b16 %v996, %v996
    %v1061 = vpack.c.b16 %v997, %v997
    %v1062 = vpack.c.b16 %v998, %v998
    %v1063 = vpack.c.b16 %v999, %v999
    %v1064 = vpack.c.b16 %v1000, %v1000
    %v1065 = vpack.c.b16 %v1001, %v1001
    %v1066 = vpack.c.b16 %v1002, %v1002
    %v1067 = vpack.c.b16 %v1003, %v1003
    %v1068 = vpack.c.b16 %v1004, %v1004
    %v1069 = vpack.c.b16 %v1005, %v1005
    %v1070 = vpack.c.b16 %v1006, %v1006
    %v1071 = vpack.c.b16 %v1007, %v1007
    %v1072 = vpack.c.b16 %v1008, %v1008
    %v1073 = vpack.c.b16 %v1009, %v1009
    %v1074 = vpack.c.b16 %v1010, %v1010
    %v1075 = vpack.c.b16 %v1011, %v1011
    %v1076 = vpack.c.b16 %v1012, %v1012
    %v1077 = vpack.c.b16 %v1013, %v1013
    %v1078 = vpack.c.b16 %v1014, %v1014
    %v1079 = vpack.c.b16 %v1015, %v1015
    %v1080 = vpack.c.b16 %v1016, %v1016
    %v1081 = vpack.c.b16 %v1017, %v1017
    %v1082 = vpack.c.b16 %v1018, %v1018
    %v1083 = vpack.c.b16 %v1019, %v1019
    %v1084 = vpack.c.b16 %v1020, %v1020
    %v1085 = vpack.c.b16 %v1021, %v1021
    %v1086 = vpack.c.b16 %v1022, %v1022
    %v1087 = vpack.c.b16 %v1023, %v1023
    %v1088 = vpack.c.b16 %v1024, %v1024
    %v1089 = vpack.c.b16 %v1025, %v1025
    %v1090 = vpack.c.b16 %v1026, %v1026
    %v1091 = vpack.c.b16 %v1027, %v1027
    %v1092 = vpack.c.b16 %v1028, %v1028
    %v1093 = vpack.c.b16 %v1029, %v1029
    %v1094 = vpack.c.b16 %v1030, %v1030
    %v1095 = vpack.c.b16 %v1031, %v1031
    %v1096 = vpack.c.b16 %v1032, %v1032
    %v1097 = vpack.c.b16 %v1033, %v1033
    %v1098 = vpack.c.b16 %v1034, %v1034
    %v1099 = vpack.c.b16 %v1035, %v1035
    %vm1164 = vcmask 257024
    %1165 = vst.msk [vmem:[%s3] sm:$0xf] %vm1164, %v1036
    %1166 = vst.msk [vmem:[%s3 + $0x4] sm:$0xf] %vm1164, %v1037
    %1167 = vst.msk [vmem:[%s3 + $0x8] sm:$0xf] %vm1164, %v1038
    %1168 = vst.msk [vmem:[%s3 + $0xc] sm:$0xf] %vm1164, %v1039
    %1169 = vst.msk [vmem:[%s3 + $0x10] sm:$0xf] %vm1164, %v1040
    %1170 = vst.msk [vmem:[%s3 + $0x14] sm:$0xf] %vm1164, %v1041
    %1171 = vst.msk [vmem:[%s3 + $0x18] sm:$0xf] %vm1164, %v1042
    %1172 = vst.msk [vmem:[%s3 + $0x1c] sm:$0xf] %vm1164, %v1043
    %1173 = vst.msk [vmem:[%s3 + $0x20] sm:$0xf] %vm1164, %v1044
    %1174 = vst.msk [vmem:[%s3 + $0x24] sm:$0xf] %vm1164, %v1045
    %1175 = vst.msk [vmem:[%s3 + $0x28] sm:$0xf] %vm1164, %v1046
    %1176 = vst.msk [vmem:[%s3 + $0x2c] sm:$0xf] %vm1164, %v1047
    %1177 = vst.msk [vmem:[%s3 + $0x30] sm:$0xf] %vm1164, %v1048
    %1178 = vst.msk [vmem:[%s3 + $0x34] sm:$0xf] %vm1164, %v1049
    %1179 = vst.msk [vmem:[%s3 + $0x38] sm:$0xf] %vm1164, %v1050
    %1180 = vst.msk [vmem:[%s3 + $0x3c] sm:$0xf] %vm1164, %v1051
    %1181 = vst.msk [vmem:[%s3 + $0x40] sm:$0xf] %vm1164, %v1052
    %1182 = vst.msk [vmem:[%s3 + $0x44] sm:$0xf] %vm1164, %v1053
    %1183 = vst.msk [vmem:[%s3 + $0x48] sm:$0xf] %vm1164, %v1054
    %1184 = vst.msk [vmem:[%s3 + $0x4c] sm:$0xf] %vm1164, %v1055
    %1185 = vst.msk [vmem:[%s3 + $0x50] sm:$0xf] %vm1164, %v1056
    %1186 = vst.msk [vmem:[%s3 + $0x54] sm:$0xf] %vm1164, %v1057
    %1187 = vst.msk [vmem:[%s3 + $0x58] sm:$0xf] %vm1164, %v1058
    %1188 = vst.msk [vmem:[%s3 + $0x5c] sm:$0xf] %vm1164, %v1059
    %1189 = vst.msk [vmem:[%s3 + $0x60] sm:$0xf] %vm1164, %v1060
    %1190 = vst.msk [vmem:[%s3 + $0x64] sm:$0xf] %vm1164, %v1061
    %1191 = vst.msk [vmem:[%s3 + $0x68] sm:$0xf] %vm1164, %v1062
    %1192 = vst.msk [vmem:[%s3 + $0x6c] sm:$0xf] %vm1164, %v1063
    %1193 = vst.msk [vmem:[%s3 + $0x70] sm:$0xf] %vm1164, %v1064
    %1194 = vst.msk [vmem:[%s3 + $0x74] sm:$0xf] %vm1164, %v1065
    %1195 = vst.msk [vmem:[%s3 + $0x78] sm:$0xf] %vm1164, %v1066
    %1196 = vst.msk [vmem:[%s3 + $0x7c] sm:$0xf] %vm1164, %v1067
    %1197 = vst.msk [vmem:[%s3 + $0x80] sm:$0xf] %vm1164, %v1068
    %1198 = vst.msk [vmem:[%s3 + $0x84] sm:$0xf] %vm1164, %v1069
    %1199 = vst.msk [vmem:[%s3 + $0x88] sm:$0xf] %vm1164, %v1070
    %1200 = vst.msk [vmem:[%s3 + $0x8c] sm:$0xf] %vm1164, %v1071
    %1201 = vst.msk [vmem:[%s3 + $0x90] sm:$0xf] %vm1164, %v1072
    %1202 = vst.msk [vmem:[%s3 + $0x94] sm:$0xf] %vm1164, %v1073
    %1203 = vst.msk [vmem:[%s3 + $0x98] sm:$0xf] %vm1164, %v1074
    %1204 = vst.msk [vmem:[%s3 + $0x9c] sm:$0xf] %vm1164, %v1075
    %1205 = vst.msk [vmem:[%s3 + $0xa0] sm:$0xf] %vm1164, %v1076
    %1206 = vst.msk [vmem:[%s3 + $0xa4] sm:$0xf] %vm1164, %v1077
    %1207 = vst.msk [vmem:[%s3 + $0xa8] sm:$0xf] %vm1164, %v1078
    %1208 = vst.msk [vmem:[%s3 + $0xac] sm:$0xf] %vm1164, %v1079
    %1209 = vst.msk [vmem:[%s3 + $0xb0] sm:$0xf] %vm1164, %v1080
    %1210 = vst.msk [vmem:[%s3 + $0xb4] sm:$0xf] %vm1164, %v1081
    %1211 = vst.msk [vmem:[%s3 + $0xb8] sm:$0xf] %vm1164, %v1082
    %1212 = vst.msk [vmem:[%s3 + $0xbc] sm:$0xf] %vm1164, %v1083
    %1213 = vst.msk [vmem:[%s3 + $0xc0] sm:$0xf] %vm1164, %v1084
    %1214 = vst.msk [vmem:[%s3 + $0xc4] sm:$0xf] %vm1164, %v1085
    %1215 = vst.msk [vmem:[%s3 + $0xc8] sm:$0xf] %vm1164, %v1086
    %1216 = vst.msk [vmem:[%s3 + $0xcc] sm:$0xf] %vm1164, %v1087
    %1217 = vst.msk [vmem:[%s3 + $0xd0] sm:$0xf] %vm1164, %v1088
    %1218 = vst.msk [vmem:[%s3 + $0xd4] sm:$0xf] %vm1164, %v1089
    %1219 = vst.msk [vmem:[%s3 + $0xd8] sm:$0xf] %vm1164, %v1090
    %1220 = vst.msk [vmem:[%s3 + $0xdc] sm:$0xf] %vm1164, %v1091
    %1221 = vst.msk [vmem:[%s3 + $0xe0] sm:$0xf] %vm1164, %v1092
    %1222 = vst.msk [vmem:[%s3 + $0xe4] sm:$0xf] %vm1164, %v1093
    %1223 = vst.msk [vmem:[%s3 + $0xe8] sm:$0xf] %vm1164, %v1094
    %1224 = vst.msk [vmem:[%s3 + $0xec] sm:$0xf] %vm1164, %v1095
    %1225 = vst.msk [vmem:[%s3 + $0xf0] sm:$0xf] %vm1164, %v1096
    %1226 = vst.msk [vmem:[%s3 + $0xf4] sm:$0xf] %vm1164, %v1097
    %1227 = vst.msk [vmem:[%s3 + $0xf8] sm:$0xf] %vm1164, %v1098
    %1228 = vst.msk [vmem:[%s3 + $0xfc] sm:$0xf] %vm1164, %v1099
    // Predicated region
    $region18: #{forward.7} parent=1 // pred_check
      _
    $region19: #{forward.7} parent=1 // pred_check_branch
      %1230 = sbr.rel (0) target = $region21
    $region20: #{forward.7} parent=1 // pred_region
      _
    $region21: #{forward.7} parent=1 // pred_fallthru
      _
    // Predicated region
    $region22: #{forward.7} parent=1 // pred_check
      _
    $region23: #{forward.7} parent=1 // pred_check_branch
      %1232 = sbr.rel (0) target = $region25
    $region24: #{forward.7} parent=1 // pred_region
      _
    $region25: #{forward.7} parent=1 // pred_fallthru
      _
    %1233 = vsyncpa [#allocation3], 1

// kernel: forward.8
$region0: #{forward.8}
  #allocation0 [shape = 'u32[]', space=smem, size = 0x4, offset = 0x4, fixed_abs, tag = 'smem constant byte address 0x4 - core index']
  #allocation1 [shape = 'u32[144,128]{1,0:T(1,128)}', space=vmem, size = 0x12000, scoped, tag = 'internal scratch']
  %s0 = inlined_call_operand.vmem [shape: bf16[128,288], index: 0, kind: input, shape index: {}]
  %s1 = inlined_call_operand.vmem [shape: bf16[288,64], index: 1, kind: input, shape index: {}]
  %s2 = inlined_call_operand.vmem [shape: f32[1,64], index: 2, kind: input, shape index: {}]
  %s3 = inlined_call_operand.vmem [shape: bf16[128,64], index: 3, kind: output, shape index: {}]
  %s4 = sld [smem:[#allocation0]]
  $region22: #{forward.8} parent=0
    _
  %s6 = ssub.s32 1, %s4
  %s7 = scalar_select 0, %s6, %s4
  // Predicated region
  $region2: #{forward.8} parent=0 // pred_check
    _
  $region3: #{forward.8} parent=0 // pred_check_branch
    %9 = sbr.rel (0) target = $region5
  $region4: #{forward.8} parent=0 // pred_region
    _
  $region5: #{forward.8} parent=0 // pred_fallthru
    _
  // Predicated region
  $region6: #{forward.8} parent=0 // pred_check
    _
  $region7: #{forward.8} parent=0 // pred_check_branch
    %11 = sbr.rel (0) target = $region9
  $region8: #{forward.8} parent=0 // pred_region
    _
  $region9: #{forward.8} parent=0 // pred_fallthru
    _
  // Predicated region
  $region10: #{forward.8} parent=0 // pred_check
    _
  $region11: #{forward.8} parent=0 // pred_check_branch
    %13 = sbr.rel (0) target = $region13
  $region12: #{forward.8} parent=0 // pred_region
    _
  $region13: #{forward.8} parent=0 // pred_fallthru
    _
  %v15 = vld [vmem:[%s0] sm:$0xff]
  %v16 = vld [vmem:[%s0 + $0x8] sm:$0xf]
  %v17 = vld [vmem:[%s0 + $0xc] sm:$0xff]
  %v18 = vld [vmem:[%s0 + $0x14] sm:$0xf]
  %v19 = vld [vmem:[%s0 + $0x18] sm:$0xff]
  %v20 = vld [vmem:[%s0 + $0x20] sm:$0xf]
  %v21 = vld [vmem:[%s0 + $0x24] sm:$0xff]
  %v22 = vld [vmem:[%s0 + $0x2c] sm:$0xf]
  %v23 = vld [vmem:[%s0 + $0x30] sm:$0xff]
  %v24 = vld [vmem:[%s0 + $0x38] sm:$0xf]
  %v25 = vld [vmem:[%s0 + $0x3c] sm:$0xff]
  %v26 = vld [vmem:[%s0 + $0x44] sm:$0xf]
  %v27 = vld [vmem:[%s0 + $0x48] sm:$0xff]
  %v28 = vld [vmem:[%s0 + $0x50] sm:$0xf]
  %v29 = vld [vmem:[%s0 + $0x54] sm:$0xff]
  %v30 = vld [vmem:[%s0 + $0x5c] sm:$0xf]
  %v31 = vld [vmem:[%s0 + $0x60] sm:$0xff]
  %v32 = vld [vmem:[%s0 + $0x68] sm:$0xf]
  %v33 = vld [vmem:[%s0 + $0x6c] sm:$0xff]
  %v34 = vld [vmem:[%s0 + $0x74] sm:$0xf]
  %v35 = vld [vmem:[%s0 + $0x78] sm:$0xff]
  %v36 = vld [vmem:[%s0 + $0x80] sm:$0xf]
  %v37 = vld [vmem:[%s0 + $0x84] sm:$0xff]
  %v38 = vld [vmem:[%s0 + $0x8c] sm:$0xf]
  %v39 = vld [vmem:[%s0 + $0x90] sm:$0xff]
  %v40 = vld [vmem:[%s0 + $0x98] sm:$0xf]
  %v41 = vld [vmem:[%s0 + $0x9c] sm:$0xff]
  %v42 = vld [vmem:[%s0 + $0xa4] sm:$0xf]
  %v43 = vld [vmem:[%s0 + $0xa8] sm:$0xff]
  %v44 = vld [vmem:[%s0 + $0xb0] sm:$0xf]
  %v45 = vld [vmem:[%s0 + $0xb4] sm:$0xff]
  %v46 = vld [vmem:[%s0 + $0xbc] sm:$0xf]
  %v47 = vld [vmem:[%s1] sm:$0xf]
  %v48 = vld [vmem:[%s1 + $0x4] sm:$0xf]
  %v49 = vld [vmem:[%s1 + $0x8] sm:$0xf]
  %v50 = vld [vmem:[%s1 + $0xc] sm:$0xf]
  %v51 = vld [vmem:[%s1 + $0x10] sm:$0xf]
  %v52 = vld [vmem:[%s1 + $0x14] sm:$0xf]
  %v53 = vld [vmem:[%s1 + $0x18] sm:$0xf]
  %v54 = vld [vmem:[%s1 + $0x1c] sm:$0xf]
  %v55 = vld [vmem:[%s1 + $0x20] sm:$0xf]
  %v56 = vld [vmem:[%s1 + $0x24] sm:$0xf]
  %v57 = vld [vmem:[%s1 + $0x28] sm:$0xf]
  %v58 = vld [vmem:[%s1 + $0x2c] sm:$0xf]
  %v59 = vld [vmem:[%s1 + $0x30] sm:$0xf]
  %v60 = vld [vmem:[%s1 + $0x34] sm:$0xf]
  %v61 = vld [vmem:[%s1 + $0x38] sm:$0xf]
  %v62 = vld [vmem:[%s1 + $0x3c] sm:$0xf]
  %v63 = vld [vmem:[%s1 + $0x40] sm:$0xf]
  %v64 = vld [vmem:[%s1 + $0x44] sm:$0xf]
  %v65 = vld [vmem:[%s1 + $0x48] sm:$0xf]
  %v66 = vld [vmem:[%s1 + $0x4c] sm:$0xf]
  %v67 = vld [vmem:[%s1 + $0x50] sm:$0xf]
  %v68 = vld [vmem:[%s1 + $0x54] sm:$0xf]
  %v69 = vld [vmem:[%s1 + $0x58] sm:$0xf]
  %v70 = vld [vmem:[%s1 + $0x5c] sm:$0xf]
  %v71 = vld [vmem:[%s1 + $0x60] sm:$0xf]
  %v72 = vld [vmem:[%s1 + $0x64] sm:$0xf]
  %v73 = vld [vmem:[%s1 + $0x68] sm:$0xf]
  %v74 = vld [vmem:[%s1 + $0x6c] sm:$0xf]
  %v75 = vld [vmem:[%s1 + $0x70] sm:$0xf]
  %v76 = vld [vmem:[%s1 + $0x74] sm:$0xf]
  %v77 = vld [vmem:[%s1 + $0x78] sm:$0xf]
  %v78 = vld [vmem:[%s1 + $0x7c] sm:$0xf]
  %v79 = vld [vmem:[%s1 + $0x80] sm:$0xf]
  %v80 = vld [vmem:[%s1 + $0x84] sm:$0xf]
  %v81 = vld [vmem:[%s1 + $0x88] sm:$0xf]
  %v82 = vld [vmem:[%s1 + $0x8c] sm:$0xf]
  %v83 = vld [vmem:[%s2] sm:$0x1]
  %v85 = vlaneseq
  %v86 = vshrl.u32 %v85, 7
  %v87 = vsub.s32 0, %v86
  %v88 = vrot.slane %v83, %v87
  %v122 = vunpack.c.l.b16 %v15
  %v123 = vunpack.c.h.b16 %v15
  %v124 = vunpack.c.l.b16 %v16
  %v125 = vunpack.c.l.b16 %v17
  %v126 = vunpack.c.h.b16 %v17
  %v127 = vunpack.c.l.b16 %v18
  %v128 = vunpack.c.l.b16 %v19
  %v129 = vunpack.c.h.b16 %v19
  %v130 = vunpack.c.l.b16 %v20
  %v131 = vunpack.c.l.b16 %v21
  %v132 = vunpack.c.h.b16 %v21
  %v133 = vunpack.c.l.b16 %v22
  %v134 = vunpack.c.l.b16 %v23
  %v135 = vunpack.c.h.b16 %v23
  %v136 = vunpack.c.l.b16 %v24
  %v137 = vunpack.c.l.b16 %v25
  %v138 = vunpack.c.h.b16 %v25
  %v139 = vunpack.c.l.b16 %v26
  %v140 = vunpack.c.l.b16 %v27
  %v141 = vunpack.c.h.b16 %v27
  %v142 = vunpack.c.l.b16 %v28
  %v143 = vunpack.c.l.b16 %v29
  %v144 = vunpack.c.h.b16 %v29
  %v145 = vunpack.c.l.b16 %v30
  %v146 = vunpack.c.l.b16 %v31
  %v147 = vunpack.c.h.b16 %v31
  %v148 = vunpack.c.l.b16 %v32
  %v149 = vunpack.c.l.b16 %v33
  %v150 = vunpack.c.h.b16 %v33
  %v151 = vunpack.c.l.b16 %v34
  %v152 = vunpack.c.l.b16 %v35
  %v153 = vunpack.c.h.b16 %v35
  %v154 = vunpack.c.l.b16 %v36
  %v155 = vunpack.c.l.b16 %v37
  %v156 = vunpack.c.h.b16 %v37
  %v157 = vunpack.c.l.b16 %v38
  %v158 = vunpack.c.l.b16 %v39
  %v159 = vunpack.c.h.b16 %v39
  %v160 = vunpack.c.l.b16 %v40
  %v161 = vunpack.c.l.b16 %v41
  %v162 = vunpack.c.h.b16 %v41
  %v163 = vunpack.c.l.b16 %v42
  %v164 = vunpack.c.l.b16 %v43
  %v165 = vunpack.c.h.b16 %v43
  %v166 = vunpack.c.l.b16 %v44
  %v167 = vunpack.c.l.b16 %v45
  %v168 = vunpack.c.h.b16 %v45
  %v169 = vunpack.c.l.b16 %v46
  %v170 = vpack.c.b16 %v125, %v122
  %v171 = vpack.c.b16 %v126, %v123
  %v172 = vpack.c.b16 %v127, %v124
  %v173 = vpack.c.b16 %v131, %v128
  %v174 = vpack.c.b16 %v132, %v129
  %v175 = vpack.c.b16 %v133, %v130
  %v176 = vpack.c.b16 %v137, %v134
  %v177 = vpack.c.b16 %v138, %v135
  %v178 = vpack.c.b16 %v139, %v136
  %v179 = vpack.c.b16 %v143, %v140
  %v180 = vpack.c.b16 %v144, %v141
  %v181 = vpack.c.b16 %v145, %v142
  %v182 = vpack.c.b16 %v149, %v146
  %v183 = vpack.c.b16 %v150, %v147
  %v184 = vpack.c.b16 %v151, %v148
  %v185 = vpack.c.b16 %v155, %v152
  %v186 = vpack.c.b16 %v156, %v153
  %v187 = vpack.c.b16 %v157, %v154
  %v188 = vpack.c.b16 %v161, %v158
  %v189 = vpack.c.b16 %v162, %v159
  %v190 = vpack.c.b16 %v163, %v160
  %v191 = vpack.c.b16 %v167, %v164
  %v192 = vpack.c.b16 %v168, %v165
  %v193 = vpack.c.b16 %v169, %v166
  %v246 = vunpack.c.l.b16 %v47
  %v247 = vunpack.c.l.b16 %v48
  %v248 = vunpack.c.l.b16 %v49
  %v249 = vunpack.c.l.b16 %v50
  %v250 = vunpack.c.l.b16 %v51
  %v251 = vunpack.c.l.b16 %v52
  %v252 = vunpack.c.l.b16 %v53
  %v253 = vunpack.c.l.b16 %v54
  %v254 = vunpack.c.l.b16 %v55
  %v255 = vunpack.c.l.b16 %v56
  %v256 = vunpack.c.l.b16 %v57
  %v257 = vunpack.c.l.b16 %v58
  %v258 = vunpack.c.l.b16 %v59
  %v259 = vunpack.c.l.b16 %v60
  %v260 = vunpack.c.l.b16 %v61
  %v261 = vunpack.c.l.b16 %v62
  %v262 = vunpack.c.l.b16 %v63
  %v263 = vunpack.c.l.b16 %v64
  %v264 = vunpack.c.l.b16 %v65
  %v265 = vunpack.c.l.b16 %v66
  %v266 = vunpack.c.l.b16 %v67
  %v267 = vunpack.c.l.b16 %v68
  %v268 = vunpack.c.l.b16 %v69
  %v269 = vunpack.c.l.b16 %v70
  %v270 = vunpack.c.l.b16 %v71
  %v271 = vunpack.c.l.b16 %v72
  %v272 = vunpack.c.l.b16 %v73
  %v273 = vunpack.c.l.b16 %v74
  %v274 = vunpack.c.l.b16 %v75
  %v275 = vunpack.c.l.b16 %v76
  %v276 = vunpack.c.l.b16 %v77
  %v277 = vunpack.c.l.b16 %v78
  %v278 = vunpack.c.l.b16 %v79
  %v279 = vunpack.c.l.b16 %v80
  %v280 = vunpack.c.l.b16 %v81
  %v281 = vunpack.c.l.b16 %v82
  %v282 = vpack.c.b16 %v247, %v246
  %v283 = vpack.c.b16 %v249, %v248
  %v284 = vpack.c.b16 %v251, %v250
  %v285 = vpack.c.b16 %v253, %v252
  %v286 = vpack.c.b16 %v255, %v254
  %v287 = vpack.c.b16 %v257, %v256
  %v288 = vpack.c.b16 %v259, %v258
  %v289 = vpack.c.b16 %v261, %v260
  %v290 = vpack.c.b16 %v263, %v262
  %v291 = vpack.c.b16 %v265, %v264
  %v292 = vpack.c.b16 %v267, %v266
  %v293 = vpack.c.b16 %v269, %v268
  %v294 = vpack.c.b16 %v271, %v270
  %v295 = vpack.c.b16 %v273, %v272
  %v296 = vpack.c.b16 %v275, %v274
  %v297 = vpack.c.b16 %v277, %v276
  %v298 = vpack.c.b16 %v279, %v278
  %v299 = vpack.c.b16 %v281, %v280
  %vm318 = vcmask 261120
  %v320 = vsel %vm318, %v172, 0
  %v323 = vsel %vm318, %v175, 0
  %v326 = vsel %vm318, %v178, 0
  %v329 = vsel %vm318, %v181, 0
  %v332 = vsel %vm318, %v184, 0
  %v335 = vsel %vm318, %v187, 0
  %v338 = vsel %vm318, %v190, 0
  %v341 = vsel %vm318, %v193, 0
  %343 = vmatprep.subr.bf16.mxu0 0
  %344 = vmatpush1.bf16.msra.mxu0 %v282
  %345 = vmatprep.subr.bf16.mxu0 0
  %346 = vmatpush1.bf16.msra.mxu0 %v283
  %347 = vmatprep.subr.bf16.mxu0 0
  %348 = vmatpush1.bf16.msra.mxu0 %v284
  %349 = vmatprep.subr.bf16.mxu0 0
  %350 = vmatpush1.bf16.msra.mxu0 %v285
  %351 = vmatprep.subr.bf16.mxu0 0
  %352 = vmatpush1.bf16.msra.mxu0 %v286
  %353 = vmatprep.subr.bf16.mxu0 0
  %354 = vmatpush1.bf16.msra.mxu0 %v287
  %355 = vmatprep.subr.bf16.mxu0 0
  %356 = vmatpush1.bf16.msra.mxu0 %v288
  %357 = vmatprep.subr.bf16.mxu0 0
  %358 = vmatpush1.bf16.msra.mxu0 %v289
  %359 = vmatprep.subr.bf16.mxu0 0
  %360 = vmatpush1.bf16.msra.mxu0 %v290
  %361 = vmatprep.subr.bf16.mxu0 0
  %362 = vmatpush1.bf16.msra.mxu0 %v291
  %363 = vmatprep.subr.bf16.mxu0 0
  %364 = vmatpush1.bf16.msra.mxu0 %v292
  %365 = vmatprep.subr.bf16.mxu0 0
  %366 = vmatpush1.bf16.msra.mxu0 %v293
  %367 = vmatprep.subr.bf16.mxu0 0
  %368 = vmatpush1.bf16.msra.mxu0 %v294
  %369 = vmatprep.subr.bf16.mxu0 0
  %370 = vmatpush1.bf16.msra.mxu0 %v295
  %371 = vmatprep.subr.bf16.mxu0 0
  %372 = vmatpush1.bf16.msra.mxu0 %v296
  %373 = vmatprep.subr.bf16.mxu0 0
  %374 = vmatpush1.bf16.msra.mxu0 %v297
  %375 = vmatprep.mubr.bf16.mxu0 %v171
  %376 = vmatmul.mubr.bf16.gmra.mrb[0].mxu0 %v170
  %v377 = vpop.f32.mrb[0].mxu0
  %v378 = vadd.f32 %v88, %v377
  %v379 = vpop.f32.mrb[0].mxu0
  %v380 = vpop.f32.mrb[0].mxu0
  %v381 = vadd.f32 %v88, %v380
  %v382 = vpop.f32.mrb[0].mxu0
  %383 = vmatprep.mubr.bf16.mxu0 %v174
  %384 = vmatmul.mubr.bf16.gmra.mrb[0].mxu0 %v173
  %v385 = vpop.f32.mrb[0].mxu0
  %v386 = vadd.f32 %v88, %v385
  %v387 = vpop.f32.mrb[0].mxu0
  %v388 = vpop.f32.mrb[0].mxu0
  %v389 = vadd.f32 %v88, %v388
  %v390 = vpop.f32.mrb[0].mxu0
  %391 = vmatprep.mubr.bf16.mxu0 %v177
  %392 = vmatmul.mubr.bf16.gmra.mrb[0].mxu0 %v176
  %v393 = vpop.f32.mrb[0].mxu0
  %v394 = vadd.f32 %v88, %v393
  %v395 = vpop.f32.mrb[0].mxu0
  %v396 = vpop.f32.mrb[0].mxu0
  %v397 = vadd.f32 %v88, %v396
  %v398 = vpop.f32.mrb[0].mxu0
  %399 = vmatprep.mubr.bf16.mxu0 %v180
  %400 = vmatmul.mubr.bf16.gmra.mrb[0].mxu0 %v179
  %v401 = vpop.f32.mrb[0].mxu0
  %v402 = vadd.f32 %v88, %v401
  %v403 = vpop.f32.mrb[0].mxu0
  %v404 = vpop.f32.mrb[0].mxu0
  %v405 = vadd.f32 %v88, %v404
  %v406 = vpop.f32.mrb[0].mxu0
  %407 = vmatprep.mubr.bf16.mxu0 %v183
  %408 = vmatmul.mubr.bf16.gmra.mrb[0].mxu0 %v182
  %v409 = vpop.f32.mrb[0].mxu0
  %v410 = vadd.f32 %v88, %v409
  %v411 = vpop.f32.mrb[0].mxu0
  %v412 = vpop.f32.mrb[0].mxu0
  %v413 = vadd.f32 %v88, %v412
  %v414 = vpop.f32.mrb[0].mxu0
  %415 = vmatprep.mubr.bf16.mxu0 %v186
  %416 = vmatmul.mubr.bf16.gmra.mrb[0].mxu0 %v185
  %v417 = vpop.f32.mrb[0].mxu0
  %v418 = vadd.f32 %v88, %v417
  %v419 = vpop.f32.mrb[0].mxu0
  %v420 = vpop.f32.mrb[0].mxu0
  %v421 = vadd.f32 %v88, %v420
  %v422 = vpop.f32.mrb[0].mxu0
  %423 = vmatprep.mubr.bf16.mxu0 %v189
  %424 = vmatmul.mubr.bf16.gmra.mrb[0].mxu0 %v188
  %v425 = vpop.f32.mrb[0].mxu0
  %v426 = vadd.f32 %v88, %v425
  %v427 = vpop.f32.mrb[0].mxu0
  %v428 = vpop.f32.mrb[0].mxu0
  %v429 = vadd.f32 %v88, %v428
  %v430 = vpop.f32.mrb[0].mxu0
  %431 = vmatprep.mubr.bf16.mxu0 %v192
  %432 = vmatmul.mubr.bf16.gmra.mrb[0].mxu0 %v191
  %v433 = vpop.f32.mrb[0].mxu0
  %v434 = vadd.f32 %v88, %v433
  %v435 = vpop.f32.mrb[0].mxu0
  %v436 = vpop.f32.mrb[0].mxu0
  %v437 = vadd.f32 %v88, %v436
  %v438 = vpop.f32.mrb[0].mxu0
  %439 = vdwg.mxu0
  %440 = vmatprep.subr.bf16.mxu0 0
  %441 = vmatpush1.bf16.msra.mxu0 %v298
  %442 = vmatprep.subr.bf16.mxu0 0
  %443 = vmatpush1.bf16.msra.mxu0 %v299
  %444 = vmatprep.subr.bf16.mxu0 0
  %445 = vmatpush1.bf16.msra.mxu0 0
  %446 = vmatprep.subr.bf16.mxu0 0
  %447 = vmatpush1.bf16.msra.mxu0 0
  %448 = vmatprep.subr.bf16.mxu0 0
  %449 = vmatpush1.bf16.msra.mxu0 0
  %450 = vmatprep.subr.bf16.mxu0 0
  %451 = vmatpush1.bf16.msra.mxu0 0
  %452 = vmatprep.subr.bf16.mxu0 0
  %453 = vmatpush1.bf16.msra.mxu0 0
  %454 = vmatprep.subr.bf16.mxu0 0
  %455 = vmatpush1.bf16.msra.mxu0 0
  %456 = vmatprep.subr.bf16.mxu0 0
  %457 = vmatpush1.bf16.msra.mxu0 0
  %458 = vmatprep.subr.bf16.mxu0 0
  %459 = vmatpush1.bf16.msra.mxu0 0
  %460 = vmatprep.subr.bf16.mxu0 0
  %461 = vmatpush1.bf16.msra.mxu0 0
  %462 = vmatprep.subr.bf16.mxu0 0
  %463 = vmatpush1.bf16.msra.mxu0 0
  %464 = vmatprep.subr.bf16.mxu0 0
  %465 = vmatpush1.bf16.msra.mxu0 0
  %466 = vmatprep.subr.bf16.mxu0 0
  %467 = vmatpush1.bf16.msra.mxu0 0
  %468 = vmatprep.subr.bf16.mxu0 0
  %469 = vmatpush1.bf16.msra.mxu0 0
  %470 = vmatprep.subr.bf16.mxu0 0
  %471 = vmatpush1.bf16.msra.mxu0 0
  %472 = vmatprep.mubr.bf16.mxu0 0
  %473 = vmatmul.mubr.bf16.gmra.mrb[0].mxu0 %v320
  %v474 = vpop.f32.mrb[0].mxu0
  %v475 = vadd.f32 %v378, %v474
  %v476 = vpop.f32.mrb[0].mxu0
  %v477 = vpop.f32.mrb[0].mxu0
  %v478 = vadd.f32 %v381, %v477
  %v479 = vpop.f32.mrb[0].mxu0
  %480 = vmatprep.mubr.bf16.mxu0 0
  %481 = vmatmul.mubr.bf16.gmra.mrb[0].mxu0 %v323
  %v482 = vpop.f32.mrb[0].mxu0
  %v483 = vadd.f32 %v386, %v482
  %v484 = vpop.f32.mrb[0].mxu0
  %v485 = vpop.f32.mrb[0].mxu0
  %v486 = vadd.f32 %v389, %v485
  %v487 = vpop.f32.mrb[0].mxu0
  %488 = vmatprep.mubr.bf16.mxu0 0
  %489 = vmatmul.mubr.bf16.gmra.mrb[0].mxu0 %v326
  %v490 = vpop.f32.mrb[0].mxu0
  %v491 = vadd.f32 %v394, %v490
  %v492 = vpop.f32.mrb[0].mxu0
  %v493 = vpop.f32.mrb[0].mxu0
  %v494 = vadd.f32 %v397, %v493
  %v495 = vpop.f32.mrb[0].mxu0
  %496 = vmatprep.mubr.bf16.mxu0 0
  %497 = vmatmul.mubr.bf16.gmra.mrb[0].mxu0 %v329
  %v498 = vpop.f32.mrb[0].mxu0
  %v499 = vadd.f32 %v402, %v498
  %v500 = vpop.f32.mrb[0].mxu0
  %v501 = vpop.f32.mrb[0].mxu0
  %v502 = vadd.f32 %v405, %v501
  %v503 = vpop.f32.mrb[0].mxu0
  %504 = vmatprep.mubr.bf16.mxu0 0
  %505 = vmatmul.mubr.bf16.gmra.mrb[0].mxu0 %v332
  %v506 = vpop.f32.mrb[0].mxu0
  %v507 = vadd.f32 %v410, %v506
  %v508 = vpop.f32.mrb[0].mxu0
  %v509 = vpop.f32.mrb[0].mxu0
  %v510 = vadd.f32 %v413, %v509
  %v511 = vpop.f32.mrb[0].mxu0
  %512 = vmatprep.mubr.bf16.mxu0 0
  %513 = vmatmul.mubr.bf16.gmra.mrb[0].mxu0 %v335
  %v514 = vpop.f32.mrb[0].mxu0
  %v515 = vadd.f32 %v418, %v514
  %v516 = vpop.f32.mrb[0].mxu0
  %v517 = vpop.f32.mrb[0].mxu0
  %v518 = vadd.f32 %v421, %v517
  %v519 = vpop.f32.mrb[0].mxu0
  %520 = vmatprep.mubr.bf16.mxu0 0
  %521 = vmatmul.mubr.bf16.gmra.mrb[0].mxu0 %v338
  %v522 = vpop.f32.mrb[0].mxu0
  %v523 = vadd.f32 %v426, %v522
  %v524 = vpop.f32.mrb[0].mxu0
  %v525 = vpop.f32.mrb[0].mxu0
  %v526 = vadd.f32 %v429, %v525
  %v527 = vpop.f32.mrb[0].mxu0
  %528 = vmatprep.mubr.bf16.mxu0 0
  %529 = vmatmul.mubr.bf16.gmra.mrb[0].mxu0 %v341
  %v530 = vpop.f32.mrb[0].mxu0
  %v531 = vadd.f32 %v434, %v530
  %v532 = vpop.f32.mrb[0].mxu0
  %v533 = vpop.f32.mrb[0].mxu0
  %v534 = vadd.f32 %v437, %v533
  %v535 = vpop.f32.mrb[0].mxu0
  %536 = vdwg.mxu0
  %v537 = vmax.f32 %v475, 0.0
  %v538 = vmax.f32 %v478, 0.0
  %v539 = vmax.f32 %v483, 0.0
  %v540 = vmax.f32 %v486, 0.0
  %v541 = vmax.f32 %v491, 0.0
  %v542 = vmax.f32 %v494, 0.0
  %v543 = vmax.f32 %v499, 0.0
  %v544 = vmax.f32 %v502, 0.0
  %v545 = vmax.f32 %v507, 0.0
  %v546 = vmax.f32 %v510, 0.0
  %v547 = vmax.f32 %v515, 0.0
  %v548 = vmax.f32 %v518, 0.0
  %v549 = vmax.f32 %v523, 0.0
  %v550 = vmax.f32 %v526, 0.0
  %v551 = vmax.f32 %v531, 0.0
  %v552 = vmax.f32 %v534, 0.0
  %v553 = vpack.c.bf16 %v538, %v537
  %v554 = vpack.c.bf16 %v540, %v539
  %v555 = vpack.c.bf16 %v542, %v541
  %v556 = vpack.c.bf16 %v544, %v543
  %v557 = vpack.c.bf16 %v546, %v545
  %v558 = vpack.c.bf16 %v548, %v547
  %v559 = vpack.c.bf16 %v550, %v549
  %v560 = vpack.c.bf16 %v552, %v551
  %v569 = vunpack.c.l.b16 %v553
  %v570 = vunpack.c.h.b16 %v553
  %v571 = vunpack.c.l.b16 %v554
  %v572 = vunpack.c.h.b16 %v554
  %v573 = vunpack.c.l.b16 %v555
  %v574 = vunpack.c.h.b16 %v555
  %v575 = vunpack.c.l.b16 %v556
  %v576 = vunpack.c.h.b16 %v556
  %v577 = vunpack.c.l.b16 %v557
  %v578 = vunpack.c.h.b16 %v557
  %v579 = vunpack.c.l.b16 %v558
  %v580 = vunpack.c.h.b16 %v558
  %v581 = vunpack.c.l.b16 %v559
  %v582 = vunpack.c.h.b16 %v559
  %v583 = vunpack.c.l.b16 %v560
  %v584 = vunpack.c.h.b16 %v560
  %v585 = vpack.c.b16 %v569, %v569
  %v586 = vpack.c.b16 %v570, %v570
  %v587 = vpack.c.b16 %v571, %v571
  %v588 = vpack.c.b16 %v572, %v572
  %v589 = vpack.c.b16 %v573, %v573
  %v590 = vpack.c.b16 %v574, %v574
  %v591 = vpack.c.b16 %v575, %v575
  %v592 = vpack.c.b16 %v576, %v576
  %v593 = vpack.c.b16 %v577, %v577
  %v594 = vpack.c.b16 %v578, %v578
  %v595 = vpack.c.b16 %v579, %v579
  %v596 = vpack.c.b16 %v580, %v580
  %v597 = vpack.c.b16 %v581, %v581
  %v598 = vpack.c.b16 %v582, %v582
  %v599 = vpack.c.b16 %v583, %v583
  %v600 = vpack.c.b16 %v584, %v584
  %vm617 = vcmask 519168
  %618 = vst.msk [vmem:[%s3] sm:$0xf] %vm617, %v585
  %619 = vst.msk [vmem:[%s3 + $0x4] sm:$0xf] %vm617, %v586
  %620 = vst.msk [vmem:[%s3 + $0x8] sm:$0xf] %vm617, %v587
  %621 = vst.msk [vmem:[%s3 + $0xc] sm:$0xf] %vm617, %v588
  %622 = vst.msk [vmem:[%s3 + $0x10] sm:$0xf] %vm617, %v589
  %623 = vst.msk [vmem:[%s3 + $0x14] sm:$0xf] %vm617, %v590
  %624 = vst.msk [vmem:[%s3 + $0x18] sm:$0xf] %vm617, %v591
  %625 = vst.msk [vmem:[%s3 + $0x1c] sm:$0xf] %vm617, %v592
  %626 = vst.msk [vmem:[%s3 + $0x20] sm:$0xf] %vm617, %v593
  %627 = vst.msk [vmem:[%s3 + $0x24] sm:$0xf] %vm617, %v594
  %628 = vst.msk [vmem:[%s3 + $0x28] sm:$0xf] %vm617, %v595
  %629 = vst.msk [vmem:[%s3 + $0x2c] sm:$0xf] %vm617, %v596
  %630 = vst.msk [vmem:[%s3 + $0x30] sm:$0xf] %vm617, %v597
  %631 = vst.msk [vmem:[%s3 + $0x34] sm:$0xf] %vm617, %v598
  %632 = vst.msk [vmem:[%s3 + $0x38] sm:$0xf] %vm617, %v599
  %633 = vst.msk [vmem:[%s3 + $0x3c] sm:$0xf] %vm617, %v600
  // Predicated region
  $region14: #{forward.8} parent=0 // pred_check
    _
  $region15: #{forward.8} parent=0 // pred_check_branch
    %635 = sbr.rel (0) target = $region17
  $region16: #{forward.8} parent=0 // pred_region
    _
  $region17: #{forward.8} parent=0 // pred_fallthru
    _
  // Predicated region
  $region18: #{forward.8} parent=0 // pred_check
    _
  $region19: #{forward.8} parent=0 // pred_check_branch
    %637 = sbr.rel (0) target = $region21
  $region20: #{forward.8} parent=0 // pred_region
    _
  $region21: #{forward.8} parent=0 // pred_fallthru
    _

// kernel: forward.9
$region0: #{forward.9}
  #allocation0 [shape = 'u32[]', space=smem, size = 0x4, offset = 0x4, fixed_abs, tag = 'smem constant byte address 0x4 - core index']
  #allocation1 [shape = 'u32[144,128]{1,0:T(1,128)}', space=vmem, size = 0x12000, scoped, tag = 'internal scratch']
  %s0 = inlined_call_operand.vmem [shape: bf16[32,576], index: 0, kind: input, shape index: {}]
  %s1 = inlined_call_operand.vmem [shape: bf16[576,128], index: 1, kind: input, shape index: {}]
  %s2 = inlined_call_operand.vmem [shape: f32[1,128], index: 2, kind: input, shape index: {}]
  %s3 = inlined_call_operand.vmem [shape: bf16[32,128], index: 3, kind: output, shape index: {}]
  %s4 = sld [smem:[#allocation0]]
  $region22: #{forward.9} parent=0
    _
  %s6 = ssub.s32 1, %s4
  %s7 = scalar_select 0, %s6, %s4
  // Predicated region
  $region2: #{forward.9} parent=0 // pred_check
    _
  $region3: #{forward.9} parent=0 // pred_check_branch
    %9 = sbr.rel (0) target = $region5
  $region4: #{forward.9} parent=0 // pred_region
    _
  $region5: #{forward.9} parent=0 // pred_fallthru
    _
  // Predicated region
  $region6: #{forward.9} parent=0 // pred_check
    _
  $region7: #{forward.9} parent=0 // pred_check_branch
    %11 = sbr.rel (0) target = $region9
  $region8: #{forward.9} parent=0 // pred_region
    _
  $region9: #{forward.9} parent=0 // pred_fallthru
    _
  // Predicated region
  $region10: #{forward.9} parent=0 // pred_check
    _
  $region11: #{forward.9} parent=0 // pred_check_branch
    %13 = sbr.rel (0) target = $region13
  $region12: #{forward.9} parent=0 // pred_region
    _
  $region13: #{forward.9} parent=0 // pred_fallthru
    _
  %v15 = vld [vmem:[%s0] sm:$0xff]
  %v16 = vld [vmem:[%s0 + $0x8] sm:$0xff]
  %v17 = vld [vmem:[%s0 + $0x10] sm:$0xf]
  %v18 = vld [vmem:[%s0 + $0x14] sm:$0xff]
  %v19 = vld [vmem:[%s0 + $0x1c] sm:$0xff]
  %v20 = vld [vmem:[%s0 + $0x24] sm:$0xf]
  %v21 = vld [vmem:[%s0 + $0x28] sm:$0xff]
  %v22 = vld [vmem:[%s0 + $0x30] sm:$0xff]
  %v23 = vld [vmem:[%s0 + $0x38] sm:$0xf]
  %v24 = vld [vmem:[%s0 + $0x3c] sm:$0xff]
  %v25 = vld [vmem:[%s0 + $0x44] sm:$0xff]
  %v26 = vld [vmem:[%s0 + $0x4c] sm:$0xf]
  %v27 = vld [vmem:[%s1] sm:$0xf]
  %v28 = vld [vmem:[%s1 + $0x4] sm:$0xf]
  %v29 = vld [vmem:[%s1 + $0x8] sm:$0xf]
  %v30 = vld [vmem:[%s1 + $0xc] sm:$0xf]
  %v31 = vld [vmem:[%s1 + $0x10] sm:$0xf]
  %v32 = vld [vmem:[%s1 + $0x14] sm:$0xf]
  %v33 = vld [vmem:[%s1 + $0x18] sm:$0xf]
  %v34 = vld [vmem:[%s1 + $0x1c] sm:$0xf]
  %v35 = vld [vmem:[%s1 + $0x20] sm:$0xf]
  %v36 = vld [vmem:[%s1 + $0x24] sm:$0xf]
  %v37 = vld [vmem:[%s1 + $0x28] sm:$0xf]
  %v38 = vld [vmem:[%s1 + $0x2c] sm:$0xf]
  %v39 = vld [vmem:[%s1 + $0x30] sm:$0xf]
  %v40 = vld [vmem:[%s1 + $0x34] sm:$0xf]
  %v41 = vld [vmem:[%s1 + $0x38] sm:$0xf]
  %v42 = vld [vmem:[%s1 + $0x3c] sm:$0xf]
  %v43 = vld [vmem:[%s1 + $0x40] sm:$0xf]
  %v44 = vld [vmem:[%s1 + $0x44] sm:$0xf]
  %v45 = vld [vmem:[%s1 + $0x48] sm:$0xf]
  %v46 = vld [vmem:[%s1 + $0x4c] sm:$0xf]
  %v47 = vld [vmem:[%s1 + $0x50] sm:$0xf]
  %v48 = vld [vmem:[%s1 + $0x54] sm:$0xf]
  %v49 = vld [vmem:[%s1 + $0x58] sm:$0xf]
  %v50 = vld [vmem:[%s1 + $0x5c] sm:$0xf]
  %v51 = vld [vmem:[%s1 + $0x60] sm:$0xf]
  %v52 = vld [vmem:[%s1 + $0x64] sm:$0xf]
  %v53 = vld [vmem:[%s1 + $0x68] sm:$0xf]
  %v54 = vld [vmem:[%s1 + $0x6c] sm:$0xf]
  %v55 = vld [vmem:[%s1 + $0x70] sm:$0xf]
  %v56 = vld [vmem:[%s1 + $0x74] sm:$0xf]
  %v57 = vld [vmem:[%s1 + $0x78] sm:$0xf]
  %v58 = vld [vmem:[%s1 + $0x7c] sm:$0xf]
  %v59 = vld [vmem:[%s1 + $0x80] sm:$0xf]
  %v60 = vld [vmem:[%s1 + $0x84] sm:$0xf]
  %v61 = vld [vmem:[%s1 + $0x88] sm:$0xf]
  %v62 = vld [vmem:[%s1 + $0x8c] sm:$0xf]
  %v63 = vld [vmem:[%s1 + $0x90] sm:$0xf]
  %v64 = vld [vmem:[%s1 + $0x94] sm:$0xf]
  %v65 = vld [vmem:[%s1 + $0x98] sm:$0xf]
  %v66 = vld [vmem:[%s1 + $0x9c] sm:$0xf]
  %v67 = vld [vmem:[%s1 + $0xa0] sm:$0xf]
  %v68 = vld [vmem:[%s1 + $0xa4] sm:$0xf]
  %v69 = vld [vmem:[%s1 + $0xa8] sm:$0xf]
  %v70 = vld [vmem:[%s1 + $0xac] sm:$0xf]
  %v71 = vld [vmem:[%s1 + $0xb0] sm:$0xf]
  %v72 = vld [vmem:[%s1 + $0xb4] sm:$0xf]
  %v73 = vld [vmem:[%s1 + $0xb8] sm:$0xf]
  %v74 = vld [vmem:[%s1 + $0xbc] sm:$0xf]
  %v75 = vld [vmem:[%s1 + $0xc0] sm:$0xf]
  %v76 = vld [vmem:[%s1 + $0xc4] sm:$0xf]
  %v77 = vld [vmem:[%s1 + $0xc8] sm:$0xf]
  %v78 = vld [vmem:[%s1 + $0xcc] sm:$0xf]
  %v79 = vld [vmem:[%s1 + $0xd0] sm:$0xf]
  %v80 = vld [vmem:[%s1 + $0xd4] sm:$0xf]
  %v81 = vld [vmem:[%s1 + $0xd8] sm:$0xf]
  %v82 = vld [vmem:[%s1 + $0xdc] sm:$0xf]
  %v83 = vld [vmem:[%s1 + $0xe0] sm:$0xf]
  %v84 = vld [vmem:[%s1 + $0xe4] sm:$0xf]
  %v85 = vld [vmem:[%s1 + $0xe8] sm:$0xf]
  %v86 = vld [vmem:[%s1 + $0xec] sm:$0xf]
  %v87 = vld [vmem:[%s1 + $0xf0] sm:$0xf]
  %v88 = vld [vmem:[%s1 + $0xf4] sm:$0xf]
  %v89 = vld [vmem:[%s1 + $0xf8] sm:$0xf]
  %v90 = vld [vmem:[%s1 + $0xfc] sm:$0xf]
  %v91 = vld [vmem:[%s1 + $0x100] sm:$0xf]
  %v92 = vld [vmem:[%s1 + $0x104] sm:$0xf]
  %v93 = vld [vmem:[%s1 + $0x108] sm:$0xf]
  %v94 = vld [vmem:[%s1 + $0x10c] sm:$0xf]
  %v95 = vld [vmem:[%s1 + $0x110] sm:$0xf]
  %v96 = vld [vmem:[%s1 + $0x114] sm:$0xf]
  %v97 = vld [vmem:[%s1 + $0x118] sm:$0xf]
  %v98 = vld [vmem:[%s1 + $0x11c] sm:$0xf]
  %v99 = vld [vmem:[%s2] sm:$0x1]
  %v101 = vlaneseq
  %v102 = vshrl.u32 %v101, 7
  %v103 = vsub.s32 0, %v102
  %v104 = vrot.slane %v99, %v103
  %v118 = vunpack.c.l.b16 %v15
  %v119 = vunpack.c.h.b16 %v15
  %v120 = vunpack.c.l.b16 %v16
  %v121 = vunpack.c.h.b16 %v16
  %v122 = vunpack.c.l.b16 %v17
  %v123 = vunpack.c.l.b16 %v18
  %v124 = vunpack.c.h.b16 %v18
  %v125 = vunpack.c.l.b16 %v19
  %v126 = vunpack.c.h.b16 %v19
  %v127 = vunpack.c.l.b16 %v20
  %v128 = vunpack.c.l.b16 %v21
  %v129 = vunpack.c.h.b16 %v21
  %v130 = vunpack.c.l.b16 %v22
  %v131 = vunpack.c.h.b16 %v22
  %v132 = vunpack.c.l.b16 %v23
  %v133 = vunpack.c.l.b16 %v24
  %v134 = vunpack.c.h.b16 %v24
  %v135 = vunpack.c.l.b16 %v25
  %v136 = vunpack.c.h.b16 %v25
  %v137 = vunpack.c.l.b16 %v26
  %v138 = vpack.c.b16 %v123, %v118
  %v139 = vpack.c.b16 %v124, %v119
  %v140 = vpack.c.b16 %v125, %v120
  %v141 = vpack.c.b16 %v126, %v121
  %v142 = vpack.c.b16 %v127, %v122
  %v143 = vpack.c.b16 %v133, %v128
  %v144 = vpack.c.b16 %v134, %v129
  %v145 = vpack.c.b16 %v135, %v130
  %v146 = vpack.c.b16 %v136, %v131
  %v147 = vpack.c.b16 %v137, %v132
  %v228 = vunpack.c.l.b16 %v27
  %v229 = vunpack.c.l.b16 %v28
  %v230 = vunpack.c.l.b16 %v29
  %v231 = vunpack.c.l.b16 %v30
  %v232 = vunpack.c.l.b16 %v31
  %v233 = vunpack.c.l.b16 %v32
  %v234 = vunpack.c.l.b16 %v33
  %v235 = vunpack.c.l.b16 %v34
  %v236 = vunpack.c.l.b16 %v35
  %v237 = vunpack.c.l.b16 %v36
  %v238 = vunpack.c.l.b16 %v37
  %v239 = vunpack.c.l.b16 %v38
  %v240 = vunpack.c.l.b16 %v39
  %v241 = vunpack.c.l.b16 %v40
  %v242 = vunpack.c.l.b16 %v41
  %v243 = vunpack.c.l.b16 %v42
  %v244 = vunpack.c.l.b16 %v43
  %v245 = vunpack.c.l.b16 %v44
  %v246 = vunpack.c.l.b16 %v45
  %v247 = vunpack.c.l.b16 %v46
  %v248 = vunpack.c.l.b16 %v47
  %v249 = vunpack.c.l.b16 %v48
  %v250 = vunpack.c.l.b16 %v49
  %v251 = vunpack.c.l.b16 %v50
  %v252 = vunpack.c.l.b16 %v51
  %v253 = vunpack.c.l.b16 %v52
  %v254 = vunpack.c.l.b16 %v53
  %v255 = vunpack.c.l.b16 %v54
  %v256 = vunpack.c.l.b16 %v55
  %v257 = vunpack.c.l.b16 %v56
  %v258 = vunpack.c.l.b16 %v57
  %v259 = vunpack.c.l.b16 %v58
  %v260 = vunpack.c.l.b16 %v59
  %v261 = vunpack.c.l.b16 %v60
  %v262 = vunpack.c.l.b16 %v61
  %v263 = vunpack.c.l.b16 %v62
  %v264 = vunpack.c.l.b16 %v63
  %v265 = vunpack.c.l.b16 %v64
  %v266 = vunpack.c.l.b16 %v65
  %v267 = vunpack.c.l.b16 %v66
  %v268 = vunpack.c.l.b16 %v67
  %v269 = vunpack.c.l.b16 %v68
  %v270 = vunpack.c.l.b16 %v69
  %v271 = vunpack.c.l.b16 %v70
  %v272 = vunpack.c.l.b16 %v71
  %v273 = vunpack.c.l.b16 %v72
  %v274 = vunpack.c.l.b16 %v73
  %v275 = vunpack.c.l.b16 %v74
  %v276 = vunpack.c.l.b16 %v75
  %v277 = vunpack.c.l.b16 %v76
  %v278 = vunpack.c.l.b16 %v77
  %v279 = vunpack.c.l.b16 %v78
  %v280 = vunpack.c.l.b16 %v79
  %v281 = vunpack.c.l.b16 %v80
  %v282 = vunpack.c.l.b16 %v81
  %v283 = vunpack.c.l.b16 %v82
  %v284 = vunpack.c.l.b16 %v83
  %v285 = vunpack.c.l.b16 %v84
  %v286 = vunpack.c.l.b16 %v85
  %v287 = vunpack.c.l.b16 %v86
  %v288 = vunpack.c.l.b16 %v87
  %v289 = vunpack.c.l.b16 %v88
  %v290 = vunpack.c.l.b16 %v89
  %v291 = vunpack.c.l.b16 %v90
  %v292 = vunpack.c.l.b16 %v91
  %v293 = vunpack.c.l.b16 %v92
  %v294 = vunpack.c.l.b16 %v93
  %v295 = vunpack.c.l.b16 %v94
  %v296 = vunpack.c.l.b16 %v95
  %v297 = vunpack.c.l.b16 %v96
  %v298 = vunpack.c.l.b16 %v97
  %v299 = vunpack.c.l.b16 %v98
  %v300 = vpack.c.b16 %v229, %v228
  %v301 = vpack.c.b16 %v231, %v230
  %v302 = vpack.c.b16 %v233, %v232
  %v303 = vpack.c.b16 %v235, %v234
  %v304 = vpack.c.b16 %v237, %v236
  %v305 = vpack.c.b16 %v239, %v238
  %v306 = vpack.c.b16 %v241, %v240
  %v307 = vpack.c.b16 %v243, %v242
  %v308 = vpack.c.b16 %v245, %v244
  %v309 = vpack.c.b16 %v247, %v246
  %v310 = vpack.c.b16 %v249, %v248
  %v311 = vpack.c.b16 %v251, %v250
  %v312 = vpack.c.b16 %v253, %v252
  %v313 = vpack.c.b16 %v255, %v254
  %v314 = vpack.c.b16 %v257, %v256
  %v315 = vpack.c.b16 %v259, %v258
  %v316 = vpack.c.b16 %v261, %v260
  %v317 = vpack.c.b16 %v263, %v262
  %v318 = vpack.c.b16 %v265, %v264
  %v319 = vpack.c.b16 %v267, %v266
  %v320 = vpack.c.b16 %v269, %v268
  %v321 = vpack.c.b16 %v271, %v270
  %v322 = vpack.c.b16 %v273, %v272
  %v323 = vpack.c.b16 %v275, %v274
  %v324 = vpack.c.b16 %v277, %v276
  %v325 = vpack.c.b16 %v279, %v278
  %v326 = vpack.c.b16 %v281, %v280
  %v327 = vpack.c.b16 %v283, %v282
  %v328 = vpack.c.b16 %v285, %v284
  %v329 = vpack.c.b16 %v287, %v286
  %v330 = vpack.c.b16 %v289, %v288
  %v331 = vpack.c.b16 %v291, %v290
  %v332 = vpack.c.b16 %v293, %v292
  %v333 = vpack.c.b16 %v295, %v294
  %v334 = vpack.c.b16 %v297, %v296
  %v335 = vpack.c.b16 %v299, %v298
  %vm372 = vcmask 523264
  %v374 = vsel %vm372, %v142, 0
  %v377 = vsel %vm372, %v147, 0
  %379 = vmatprep.subr.bf16.mxu0 0
  %380 = vmatpush1.bf16.msra.mxu0 %v300
  %381 = vmatprep.subr.bf16.mxu0 0
  %382 = vmatpush1.bf16.msra.mxu0 %v301
  %383 = vmatprep.subr.bf16.mxu0 0
  %384 = vmatpush1.bf16.msra.mxu0 %v302
  %385 = vmatprep.subr.bf16.mxu0 0
  %386 = vmatpush1.bf16.msra.mxu0 %v303
  %387 = vmatprep.subr.bf16.mxu0 0
  %388 = vmatpush1.bf16.msra.mxu0 %v304
  %389 = vmatprep.subr.bf16.mxu0 0
  %390 = vmatpush1.bf16.msra.mxu0 %v305
  %391 = vmatprep.subr.bf16.mxu0 0
  %392 = vmatpush1.bf16.msra.mxu0 %v306
  %393 = vmatprep.subr.bf16.mxu0 0
  %394 = vmatpush1.bf16.msra.mxu0 %v307
  %395 = vmatprep.subr.bf16.mxu0 0
  %396 = vmatpush1.bf16.msra.mxu0 %v308
  %397 = vmatprep.subr.bf16.mxu0 0
  %398 = vmatpush1.bf16.msra.mxu0 %v309
  %399 = vmatprep.subr.bf16.mxu0 0
  %400 = vmatpush1.bf16.msra.mxu0 %v310
  %401 = vmatprep.subr.bf16.mxu0 0
  %402 = vmatpush1.bf16.msra.mxu0 %v311
  %403 = vmatprep.subr.bf16.mxu0 0
  %404 = vmatpush1.bf16.msra.mxu0 %v312
  %405 = vmatprep.subr.bf16.mxu0 0
  %406 = vmatpush1.bf16.msra.mxu0 %v313
  %407 = vmatprep.subr.bf16.mxu0 0
  %408 = vmatpush1.bf16.msra.mxu0 %v314
  %409 = vmatprep.subr.bf16.mxu0 0
  %410 = vmatpush1.bf16.msra.mxu0 %v315
  %411 = vmatprep.mubr.bf16.mxu0 %v139
  %412 = vmatmul.mubr.bf16.gmra.mrb[0].mxu0 %v138
  %v413 = vpop.f32.mrb[0].mxu0
  %v414 = vadd.f32 %v104, %v413
  %v415 = vpop.f32.mrb[0].mxu0
  %v416 = vpop.f32.mrb[0].mxu0
  %v417 = vadd.f32 %v104, %v416
  %v418 = vpop.f32.mrb[0].mxu0
  %419 = vmatprep.mubr.bf16.mxu0 %v144
  %420 = vmatmul.mubr.bf16.gmra.mrb[0].mxu0 %v143
  %v421 = vpop.f32.mrb[0].mxu0
  %v422 = vadd.f32 %v104, %v421
  %v423 = vpop.f32.mrb[0].mxu0
  %v424 = vpop.f32.mrb[0].mxu0
  %v425 = vadd.f32 %v104, %v424
  %v426 = vpop.f32.mrb[0].mxu0
  %427 = vdwg.mxu0
  %428 = vmatprep.subr.bf16.mxu0 0
  %429 = vmatpush1.bf16.msra.mxu0 %v316
  %430 = vmatprep.subr.bf16.mxu0 0
  %431 = vmatpush1.bf16.msra.mxu0 %v317
  %432 = vmatprep.subr.bf16.mxu0 0
  %433 = vmatpush1.bf16.msra.mxu0 %v318
  %434 = vmatprep.subr.bf16.mxu0 0
  %435 = vmatpush1.bf16.msra.mxu0 %v319
  %436 = vmatprep.subr.bf16.mxu0 0
  %437 = vmatpush1.bf16.msra.mxu0 %v320
  %438 = vmatprep.subr.bf16.mxu0 0
  %439 = vmatpush1.bf16.msra.mxu0 %v321
  %440 = vmatprep.subr.bf16.mxu0 0
  %441 = vmatpush1.bf16.msra.mxu0 %v322
  %442 = vmatprep.subr.bf16.mxu0 0
  %443 = vmatpush1.bf16.msra.mxu0 %v323
  %444 = vmatprep.subr.bf16.mxu0 0
  %445 = vmatpush1.bf16.msra.mxu0 %v324
  %446 = vmatprep.subr.bf16.mxu0 0
  %447 = vmatpush1.bf16.msra.mxu0 %v325
  %448 = vmatprep.subr.bf16.mxu0 0
  %449 = vmatpush1.bf16.msra.mxu0 %v326
  %450 = vmatprep.subr.bf16.mxu0 0
  %451 = vmatpush1.bf16.msra.mxu0 %v327
  %452 = vmatprep.subr.bf16.mxu0 0
  %453 = vmatpush1.bf16.msra.mxu0 %v328
  %454 = vmatprep.subr.bf16.mxu0 0
  %455 = vmatpush1.bf16.msra.mxu0 %v329
  %456 = vmatprep.subr.bf16.mxu0 0
  %457 = vmatpush1.bf16.msra.mxu0 %v330
  %458 = vmatprep.subr.bf16.mxu0 0
  %459 = vmatpush1.bf16.msra.mxu0 %v331
  %460 = vmatprep.mubr.bf16.mxu0 %v141
  %461 = vmatmul.mubr.bf16.gmra.mrb[0].mxu0 %v140
  %v462 = vpop.f32.mrb[0].mxu0
  %v463 = vadd.f32 %v414, %v462
  %v464 = vpop.f32.mrb[0].mxu0
  %v465 = vpop.f32.mrb[0].mxu0
  %v466 = vadd.f32 %v417, %v465
  %v467 = vpop.f32.mrb[0].mxu0
  %468 = vmatprep.mubr.bf16.mxu0 %v146
  %469 = vmatmul.mubr.bf16.gmra.mrb[0].mxu0 %v145
  %v470 = vpop.f32.mrb[0].mxu0
  %v471 = vadd.f32 %v422, %v470
  %v472 = vpop.f32.mrb[0].mxu0
  %v473 = vpop.f32.mrb[0].mxu0
  %v474 = vadd.f32 %v425, %v473
  %v475 = vpop.f32.mrb[0].mxu0
  %476 = vdwg.mxu0
  %477 = vmatprep.subr.bf16.mxu0 0
  %478 = vmatpush1.bf16.msra.mxu0 %v332
  %479 = vmatprep.subr.bf16.mxu0 0
  %480 = vmatpush1.bf16.msra.mxu0 %v333
  %481 = vmatprep.subr.bf16.mxu0 0
  %482 = vmatpush1.bf16.msra.mxu0 %v334
  %483 = vmatprep.subr.bf16.mxu0 0
  %484 = vmatpush1.bf16.msra.mxu0 %v335
  %485 = vmatprep.subr.bf16.mxu0 0
  %486 = vmatpush1.bf16.msra.mxu0 0
  %487 = vmatprep.subr.bf16.mxu0 0
  %488 = vmatpush1.bf16.msra.mxu0 0
  %489 = vmatprep.subr.bf16.mxu0 0
  %490 = vmatpush1.bf16.msra.mxu0 0
  %491 = vmatprep.subr.bf16.mxu0 0
  %492 = vmatpush1.bf16.msra.mxu0 0
  %493 = vmatprep.subr.bf16.mxu0 0
  %494 = vmatpush1.bf16.msra.mxu0 0
  %495 = vmatprep.subr.bf16.mxu0 0
  %496 = vmatpush1.bf16.msra.mxu0 0
  %497 = vmatprep.subr.bf16.mxu0 0
  %498 = vmatpush1.bf16.msra.mxu0 0
  %499 = vmatprep.subr.bf16.mxu0 0
  %500 = vmatpush1.bf16.msra.mxu0 0
  %501 = vmatprep.subr.bf16.mxu0 0
  %502 = vmatpush1.bf16.msra.mxu0 0
  %503 = vmatprep.subr.bf16.mxu0 0
  %504 = vmatpush1.bf16.msra.mxu0 0
  %505 = vmatprep.subr.bf16.mxu0 0
  %506 = vmatpush1.bf16.msra.mxu0 0
  %507 = vmatprep.subr.bf16.mxu0 0
  %508 = vmatpush1.bf16.msra.mxu0 0
  %509 = vmatprep.mubr.bf16.mxu0 0
  %510 = vmatmul.mubr.bf16.gmra.mrb[0].mxu0 %v374
  %v511 = vpop.f32.mrb[0].mxu0
  %v512 = vadd.f32 %v463, %v511
  %v513 = vpop.f32.mrb[0].mxu0
  %v514 = vpop.f32.mrb[0].mxu0
  %v515 = vadd.f32 %v466, %v514
  %v516 = vpop.f32.mrb[0].mxu0
  %517 = vmatprep.mubr.bf16.mxu0 0
  %518 = vmatmul.mubr.bf16.gmra.mrb[0].mxu0 %v377
  %v519 = vpop.f32.mrb[0].mxu0
  %v520 = vadd.f32 %v471, %v519
  %v521 = vpop.f32.mrb[0].mxu0
  %v522 = vpop.f32.mrb[0].mxu0
  %v523 = vadd.f32 %v474, %v522
  %v524 = vpop.f32.mrb[0].mxu0
  %525 = vdwg.mxu0
  %v526 = vmax.f32 %v512, 0.0
  %v527 = vmax.f32 %v515, 0.0
  %v528 = vmax.f32 %v520, 0.0
  %v529 = vmax.f32 %v523, 0.0
  %v530 = vpack.c.bf16 %v527, %v526
  %v531 = vpack.c.bf16 %v529, %v528
  %v534 = vunpack.c.l.b16 %v530
  %v535 = vunpack.c.h.b16 %v530
  %v536 = vunpack.c.l.b16 %v531
  %v537 = vunpack.c.h.b16 %v531
  %v538 = vpack.c.b16 %v534, %v534
  %v539 = vpack.c.b16 %v535, %v535
  %v540 = vpack.c.b16 %v536, %v536
  %v541 = vpack.c.b16 %v537, %v537
  %546 = vst [vmem:[%s3] sm:$0xf] %v538
  %547 = vst [vmem:[%s3 + $0x4] sm:$0xf] %v539
  %548 = vst [vmem:[%s3 + $0x8] sm:$0xf] %v540
  %549 = vst [vmem:[%s3 + $0xc] sm:$0xf] %v541
  // Predicated region
  $region14: #{forward.9} parent=0 // pred_check
    _
  $region15: #{forward.9} parent=0 // pred_check_branch
    %551 = sbr.rel (0) target = $region17
  $region16: #{forward.9} parent=0 // pred_region
    _
  $region17: #{forward.9} parent=0 // pred_fallthru
    _
  // Predicated region
  $region18: #{forward.9} parent=0 // pred_check
    _
  $region19: #{forward.9} parent=0 // pred_check_branch
    %553 = sbr.rel (0) target = $region21
  $region20: #{forward.9} parent=0 // pred_region
    _
  $region21: #{forward.9} parent=0 // pred_fallthru
    _

// kernel: forward.10
$region0: #{forward.10}
  #allocation0 [shape = 'u32[]', space=smem, size = 0x4, offset = 0x4, fixed_abs, tag = 'smem constant byte address 0x4 - core index']
  #allocation1 [shape = 'u32[144,128]{1,0:T(1,128)}', space=vmem, size = 0x12000, scoped, tag = 'internal scratch']
  %s0 = inlined_call_operand.vmem [shape: bf16[8,1152], index: 0, kind: input, shape index: {}]
  %s1 = inlined_call_operand.vmem [shape: bf16[1152,256], index: 1, kind: input, shape index: {}]
  %s2 = inlined_call_operand.vmem [shape: f32[1,256], index: 2, kind: input, shape index: {}]
  %s3 = inlined_call_operand.vmem [shape: bf16[8,256], index: 3, kind: output, shape index: {}]
  %s4 = sld [smem:[#allocation0]]
  $region22: #{forward.10} parent=0
    _
  %s6 = ssub.s32 1, %s4
  %s7 = scalar_select 0, %s6, %s4
  // Predicated region
  $region2: #{forward.10} parent=0 // pred_check
    _
  $region3: #{forward.10} parent=0 // pred_check_branch
    %9 = sbr.rel (0) target = $region5
  $region4: #{forward.10} parent=0 // pred_region
    _
  $region5: #{forward.10} parent=0 // pred_fallthru
    _
  // Predicated region
  $region6: #{forward.10} parent=0 // pred_check
    _
  $region7: #{forward.10} parent=0 // pred_check_branch
    %11 = sbr.rel (0) target = $region9
  $region8: #{forward.10} parent=0 // pred_region
    _
  $region9: #{forward.10} parent=0 // pred_fallthru
    _
  // Predicated region
  $region10: #{forward.10} parent=0 // pred_check
    _
  $region11: #{forward.10} parent=0 // pred_check_branch
    %13 = sbr.rel (0) target = $region13
  $region12: #{forward.10} parent=0 // pred_region
    _
  $region13: #{forward.10} parent=0 // pred_fallthru
    _
  %v15 = vld [vmem:[%s0] sm:$0xff]
  %v16 = vld [vmem:[%s0 + $0x8] sm:$0xff]
  %v17 = vld [vmem:[%s0 + $0x10] sm:$0xff]
  %v18 = vld [vmem:[%s0 + $0x18] sm:$0xff]
  %v19 = vld [vmem:[%s0 + $0x20] sm:$0xf]
  %v20 = vld [vmem:[%s1] sm:$0xff]
  %v21 = vld [vmem:[%s1 + $0x8] sm:$0xff]
  %v22 = vld [vmem:[%s1 + $0x10] sm:$0xff]
  %v23 = vld [vmem:[%s1 + $0x18] sm:$0xff]
  %v24 = vld [vmem:[%s1 + $0x20] sm:$0xff]
  %v25 = vld [vmem:[%s1 + $0x28] sm:$0xff]
  %v26 = vld [vmem:[%s1 + $0x30] sm:$0xff]
  %v27 = vld [vmem:[%s1 + $0x38] sm:$0xff]
  %v28 = vld [vmem:[%s1 + $0x40] sm:$0xff]
  %v29 = vld [vmem:[%s1 + $0x48] sm:$0xff]
  %v30 = vld [vmem:[%s1 + $0x50] sm:$0xff]
  %v31 = vld [vmem:[%s1 + $0x58] sm:$0xff]
  %v32 = vld [vmem:[%s1 + $0x60] sm:$0xff]
  %v33 = vld [vmem:[%s1 + $0x68] sm:$0xff]
  %v34 = vld [vmem:[%s1 + $0x70] sm:$0xff]
  %v35 = vld [vmem:[%s1 + $0x78] sm:$0xff]
  %v36 = vld [vmem:[%s1 + $0x80] sm:$0xff]
  %v37 = vld [vmem:[%s1 + $0x88] sm:$0xff]
  %v38 = vld [vmem:[%s1 + $0x90] sm:$0xff]
  %v39 = vld [vmem:[%s1 + $0x98] sm:$0xff]
  %v40 = vld [vmem:[%s1 + $0xa0] sm:$0xff]
  %v41 = vld [vmem:[%s1 + $0xa8] sm:$0xff]
  %v42 = vld [vmem:[%s1 + $0xb0] sm:$0xff]
  %v43 = vld [vmem:[%s1 + $0xb8] sm:$0xff]
  %v44 = vld [vmem:[%s1 + $0xc0] sm:$0xff]
  %v45 = vld [vmem:[%s1 + $0xc8] sm:$0xff]
  %v46 = vld [vmem:[%s1 + $0xd0] sm:$0xff]
  %v47 = vld [vmem:[%s1 + $0xd8] sm:$0xff]
  %v48 = vld [vmem:[%s1 + $0xe0] sm:$0xff]
  %v49 = vld [vmem:[%s1 + $0xe8] sm:$0xff]
  %v50 = vld [vmem:[%s1 + $0xf0] sm:$0xff]
  %v51 = vld [vmem:[%s1 + $0xf8] sm:$0xff]
  %v52 = vld [vmem:[%s1 + $0x100] sm:$0xff]
  %v53 = vld [vmem:[%s1 + $0x108] sm:$0xff]
  %v54 = vld [vmem:[%s1 + $0x110] sm:$0xff]
  %v55 = vld [vmem:[%s1 + $0x118] sm:$0xff]
  %v56 = vld [vmem:[%s1 + $0x120] sm:$0xff]
  %v57 = vld [vmem:[%s1 + $0x128] sm:$0xff]
  %v58 = vld [vmem:[%s1 + $0x130] sm:$0xff]
  %v59 = vld [vmem:[%s1 + $0x138] sm:$0xff]
  %v60 = vld [vmem:[%s1 + $0x140] sm:$0xff]
  %v61 = vld [vmem:[%s1 + $0x148] sm:$0xff]
  %v62 = vld [vmem:[%s1 + $0x150] sm:$0xff]
  %v63 = vld [vmem:[%s1 + $0x158] sm:$0xff]
  %v64 = vld [vmem:[%s1 + $0x160] sm:$0xff]
  %v65 = vld [vmem:[%s1 + $0x168] sm:$0xff]
  %v66 = vld [vmem:[%s1 + $0x170] sm:$0xff]
  %v67 = vld [vmem:[%s1 + $0x178] sm:$0xff]
  %v68 = vld [vmem:[%s1 + $0x180] sm:$0xff]
  %v69 = vld [vmem:[%s1 + $0x188] sm:$0xff]
  %v70 = vld [vmem:[%s1 + $0x190] sm:$0xff]
  %v71 = vld [vmem:[%s1 + $0x198] sm:$0xff]
  %v72 = vld [vmem:[%s1 + $0x1a0] sm:$0xff]
  %v73 = vld [vmem:[%s1 + $0x1a8] sm:$0xff]
  %v74 = vld [vmem:[%s1 + $0x1b0] sm:$0xff]
  %v75 = vld [vmem:[%s1 + $0x1b8] sm:$0xff]
  %v76 = vld [vmem:[%s1 + $0x1c0] sm:$0xff]
  %v77 = vld [vmem:[%s1 + $0x1c8] sm:$0xff]
  %v78 = vld [vmem:[%s1 + $0x1d0] sm:$0xff]
  %v79 = vld [vmem:[%s1 + $0x1d8] sm:$0xff]
  %v80 = vld [vmem:[%s1 + $0x1e0] sm:$0xff]
  %v81 = vld [vmem:[%s1 + $0x1e8] sm:$0xff]
  %v82 = vld [vmem:[%s1 + $0x1f0] sm:$0xff]
  %v83 = vld [vmem:[%s1 + $0x1f8] sm:$0xff]
  %v84 = vld [vmem:[%s1 + $0x200] sm:$0xff]
  %v85 = vld [vmem:[%s1 + $0x208] sm:$0xff]
  %v86 = vld [vmem:[%s1 + $0x210] sm:$0xff]
  %v87 = vld [vmem:[%s1 + $0x218] sm:$0xff]
  %v88 = vld [vmem:[%s1 + $0x220] sm:$0xff]
  %v89 = vld [vmem:[%s1 + $0x228] sm:$0xff]
  %v90 = vld [vmem:[%s1 + $0x230] sm:$0xff]
  %v91 = vld [vmem:[%s1 + $0x238] sm:$0xff]
  %v92 = vld [vmem:[%s1 + $0x240] sm:$0xff]
  %v93 = vld [vmem:[%s1 + $0x248] sm:$0xff]
  %v94 = vld [vmem:[%s1 + $0x250] sm:$0xff]
  %v95 = vld [vmem:[%s1 + $0x258] sm:$0xff]
  %v96 = vld [vmem:[%s1 + $0x260] sm:$0xff]
  %v97 = vld [vmem:[%s1 + $0x268] sm:$0xff]
  %v98 = vld [vmem:[%s1 + $0x270] sm:$0xff]
  %v99 = vld [vmem:[%s1 + $0x278] sm:$0xff]
  %v100 = vld [vmem:[%s1 + $0x280] sm:$0xff]
  %v101 = vld [vmem:[%s1 + $0x288] sm:$0xff]
  %v102 = vld [vmem:[%s1 + $0x290] sm:$0xff]
  %v103 = vld [vmem:[%s1 + $0x298] sm:$0xff]
  %v104 = vld [vmem:[%s1 + $0x2a0] sm:$0xff]
  %v105 = vld [vmem:[%s1 + $0x2a8] sm:$0xff]
  %v106 = vld [vmem:[%s1 + $0x2b0] sm:$0xff]
  %v107 = vld [vmem:[%s1 + $0x2b8] sm:$0xff]
  %v108 = vld [vmem:[%s1 + $0x2c0] sm:$0xff]
  %v109 = vld [vmem:[%s1 + $0x2c8] sm:$0xff]
  %v110 = vld [vmem:[%s1 + $0x2d0] sm:$0xff]
  %v111 = vld [vmem:[%s1 + $0x2d8] sm:$0xff]
  %v112 = vld [vmem:[%s1 + $0x2e0] sm:$0xff]
  %v113 = vld [vmem:[%s1 + $0x2e8] sm:$0xff]
  %v114 = vld [vmem:[%s1 + $0x2f0] sm:$0xff]
  %v115 = vld [vmem:[%s1 + $0x2f8] sm:$0xff]
  %v116 = vld [vmem:[%s1 + $0x300] sm:$0xff]
  %v117 = vld [vmem:[%s1 + $0x308] sm:$0xff]
  %v118 = vld [vmem:[%s1 + $0x310] sm:$0xff]
  %v119 = vld [vmem:[%s1 + $0x318] sm:$0xff]
  %v120 = vld [vmem:[%s1 + $0x320] sm:$0xff]
  %v121 = vld [vmem:[%s1 + $0x328] sm:$0xff]
  %v122 = vld [vmem:[%s1 + $0x330] sm:$0xff]
  %v123 = vld [vmem:[%s1 + $0x338] sm:$0xff]
  %v124 = vld [vmem:[%s1 + $0x340] sm:$0xff]
  %v125 = vld [vmem:[%s1 + $0x348] sm:$0xff]
  %v126 = vld [vmem:[%s1 + $0x350] sm:$0xff]
  %v127 = vld [vmem:[%s1 + $0x358] sm:$0xff]
  %v128 = vld [vmem:[%s1 + $0x360] sm:$0xff]
  %v129 = vld [vmem:[%s1 + $0x368] sm:$0xff]
  %v130 = vld [vmem:[%s1 + $0x370] sm:$0xff]
  %v131 = vld [vmem:[%s1 + $0x378] sm:$0xff]
  %v132 = vld [vmem:[%s1 + $0x380] sm:$0xff]
  %v133 = vld [vmem:[%s1 + $0x388] sm:$0xff]
  %v134 = vld [vmem:[%s1 + $0x390] sm:$0xff]
  %v135 = vld [vmem:[%s1 + $0x398] sm:$0xff]
  %v136 = vld [vmem:[%s1 + $0x3a0] sm:$0xff]
  %v137 = vld [vmem:[%s1 + $0x3a8] sm:$0xff]
  %v138 = vld [vmem:[%s1 + $0x3b0] sm:$0xff]
  %v139 = vld [vmem:[%s1 + $0x3b8] sm:$0xff]
  %v140 = vld [vmem:[%s1 + $0x3c0] sm:$0xff]
  %v141 = vld [vmem:[%s1 + $0x3c8] sm:$0xff]
  %v142 = vld [vmem:[%s1 + $0x3d0] sm:$0xff]
  %v143 = vld [vmem:[%s1 + $0x3d8] sm:$0xff]
  %v144 = vld [vmem:[%s1 + $0x3e0] sm:$0xff]
  %v145 = vld [vmem:[%s1 + $0x3e8] sm:$0xff]
  %v146 = vld [vmem:[%s1 + $0x3f0] sm:$0xff]
  %v147 = vld [vmem:[%s1 + $0x3f8] sm:$0xff]
  %v148 = vld [vmem:[%s1 + $0x400] sm:$0xff]
  %v149 = vld [vmem:[%s1 + $0x408] sm:$0xff]
  %v150 = vld [vmem:[%s1 + $0x410] sm:$0xff]
  %v151 = vld [vmem:[%s1 + $0x418] sm:$0xff]
  %v152 = vld [vmem:[%s1 + $0x420] sm:$0xff]
  %v153 = vld [vmem:[%s1 + $0x428] sm:$0xff]
  %v154 = vld [vmem:[%s1 + $0x430] sm:$0xff]
  %v155 = vld [vmem:[%s1 + $0x438] sm:$0xff]
  %v156 = vld [vmem:[%s1 + $0x440] sm:$0xff]
  %v157 = vld [vmem:[%s1 + $0x448] sm:$0xff]
  %v158 = vld [vmem:[%s1 + $0x450] sm:$0xff]
  %v159 = vld [vmem:[%s1 + $0x458] sm:$0xff]
  %v160 = vld [vmem:[%s1 + $0x460] sm:$0xff]
  %v161 = vld [vmem:[%s1 + $0x468] sm:$0xff]
  %v162 = vld [vmem:[%s1 + $0x470] sm:$0xff]
  %v163 = vld [vmem:[%s1 + $0x478] sm:$0xff]
  %v164 = vld [vmem:[%s2] sm:$0x3]
  %v166 = vlaneseq
  %v167 = vshrl.u32 %v166, 7
  %v168 = vsub.s32 0, %v167
  %v169 = vrot.slane %v164, %v168
  %v170 = vlaneseq
  %v171 = vshrl.u32 %v170, 7
  %v172 = vsub.s32 1, %v171
  %v173 = vrot.slane %v164, %v172
  %v181 = vunpack.c.l.b16 %v15
  %v182 = vunpack.c.h.b16 %v15
  %v183 = vunpack.c.l.b16 %v16
  %v184 = vunpack.c.h.b16 %v16
  %v185 = vunpack.c.l.b16 %v17
  %v186 = vunpack.c.h.b16 %v17
  %v187 = vunpack.c.l.b16 %v18
  %v188 = vunpack.c.h.b16 %v18
  %v189 = vunpack.c.l.b16 %v19
  %v190 = vpack.c.b16 %v181, %v181
  %v191 = vpack.c.b16 %v182, %v182
  %v192 = vpack.c.b16 %v183, %v183
  %v193 = vpack.c.b16 %v184, %v184
  %v194 = vpack.c.b16 %v185, %v185
  %v195 = vpack.c.b16 %v186, %v186
  %v196 = vpack.c.b16 %v187, %v187
  %v197 = vpack.c.b16 %v188, %v188
  %v198 = vpack.c.b16 %v189, %v189
  %v352 = vunpack.c.l.b16 %v20
  %v353 = vunpack.c.h.b16 %v20
  %v354 = vunpack.c.l.b16 %v21
  %v355 = vunpack.c.h.b16 %v21
  %v356 = vunpack.c.l.b16 %v22
  %v357 = vunpack.c.h.b16 %v22
  %v358 = vunpack.c.l.b16 %v23
  %v359 = vunpack.c.h.b16 %v23
  %v360 = vunpack.c.l.b16 %v24
  %v361 = vunpack.c.h.b16 %v24
  %v362 = vunpack.c.l.b16 %v25
  %v363 = vunpack.c.h.b16 %v25
  %v364 = vunpack.c.l.b16 %v26
  %v365 = vunpack.c.h.b16 %v26
  %v366 = vunpack.c.l.b16 %v27
  %v367 = vunpack.c.h.b16 %v27
  %v368 = vunpack.c.l.b16 %v28
  %v369 = vunpack.c.h.b16 %v28
  %v370 = vunpack.c.l.b16 %v29
  %v371 = vunpack.c.h.b16 %v29
  %v372 = vunpack.c.l.b16 %v30
  %v373 = vunpack.c.h.b16 %v30
  %v374 = vunpack.c.l.b16 %v31
  %v375 = vunpack.c.h.b16 %v31
  %v376 = vunpack.c.l.b16 %v32
  %v377 = vunpack.c.h.b16 %v32
  %v378 = vunpack.c.l.b16 %v33
  %v379 = vunpack.c.h.b16 %v33
  %v380 = vunpack.c.l.b16 %v34
  %v381 = vunpack.c.h.b16 %v34
  %v382 = vunpack.c.l.b16 %v35
  %v383 = vunpack.c.h.b16 %v35
  %v384 = vunpack.c.l.b16 %v36
  %v385 = vunpack.c.h.b16 %v36
  %v386 = vunpack.c.l.b16 %v37
  %v387 = vunpack.c.h.b16 %v37
  %v388 = vunpack.c.l.b16 %v38
  %v389 = vunpack.c.h.b16 %v38
  %v390 = vunpack.c.l.b16 %v39
  %v391 = vunpack.c.h.b16 %v39
  %v392 = vunpack.c.l.b16 %v40
  %v393 = vunpack.c.h.b16 %v40
  %v394 = vunpack.c.l.b16 %v41
  %v395 = vunpack.c.h.b16 %v41
  %v396 = vunpack.c.l.b16 %v42
  %v397 = vunpack.c.h.b16 %v42
  %v398 = vunpack.c.l.b16 %v43
  %v399 = vunpack.c.h.b16 %v43
  %v400 = vunpack.c.l.b16 %v44
  %v401 = vunpack.c.h.b16 %v44
  %v402 = vunpack.c.l.b16 %v45
  %v403 = vunpack.c.h.b16 %v45
  %v404 = vunpack.c.l.b16 %v46
  %v405 = vunpack.c.h.b16 %v46
  %v406 = vunpack.c.l.b16 %v47
  %v407 = vunpack.c.h.b16 %v47
  %v408 = vunpack.c.l.b16 %v48
  %v409 = vunpack.c.h.b16 %v48
  %v410 = vunpack.c.l.b16 %v49
  %v411 = vunpack.c.h.b16 %v49
  %v412 = vunpack.c.l.b16 %v50
  %v413 = vunpack.c.h.b16 %v50
  %v414 = vunpack.c.l.b16 %v51
  %v415 = vunpack.c.h.b16 %v51
  %v416 = vunpack.c.l.b16 %v52
  %v417 = vunpack.c.h.b16 %v52
  %v418 = vunpack.c.l.b16 %v53
  %v419 = vunpack.c.h.b16 %v53
  %v420 = vunpack.c.l.b16 %v54
  %v421 = vunpack.c.h.b16 %v54
  %v422 = vunpack.c.l.b16 %v55
  %v423 = vunpack.c.h.b16 %v55
  %v424 = vunpack.c.l.b16 %v56
  %v425 = vunpack.c.h.b16 %v56
  %v426 = vunpack.c.l.b16 %v57
  %v427 = vunpack.c.h.b16 %v57
  %v428 = vunpack.c.l.b16 %v58
  %v429 = vunpack.c.h.b16 %v58
  %v430 = vunpack.c.l.b16 %v59
  %v431 = vunpack.c.h.b16 %v59
  %v432 = vunpack.c.l.b16 %v60
  %v433 = vunpack.c.h.b16 %v60
  %v434 = vunpack.c.l.b16 %v61
  %v435 = vunpack.c.h.b16 %v61
  %v436 = vunpack.c.l.b16 %v62
  %v437 = vunpack.c.h.b16 %v62
  %v438 = vunpack.c.l.b16 %v63
  %v439 = vunpack.c.h.b16 %v63
  %v440 = vunpack.c.l.b16 %v64
  %v441 = vunpack.c.h.b16 %v64
  %v442 = vunpack.c.l.b16 %v65
  %v443 = vunpack.c.h.b16 %v65
  %v444 = vunpack.c.l.b16 %v66
  %v445 = vunpack.c.h.b16 %v66
  %v446 = vunpack.c.l.b16 %v67
  %v447 = vunpack.c.h.b16 %v67
  %v448 = vunpack.c.l.b16 %v68
  %v449 = vunpack.c.h.b16 %v68
  %v450 = vunpack.c.l.b16 %v69
  %v451 = vunpack.c.h.b16 %v69
  %v452 = vunpack.c.l.b16 %v70
  %v453 = vunpack.c.h.b16 %v70
  %v454 = vunpack.c.l.b16 %v71
  %v455 = vunpack.c.h.b16 %v71
  %v456 = vunpack.c.l.b16 %v72
  %v457 = vunpack.c.h.b16 %v72
  %v458 = vunpack.c.l.b16 %v73
  %v459 = vunpack.c.h.b16 %v73
  %v460 = vunpack.c.l.b16 %v74
  %v461 = vunpack.c.h.b16 %v74
  %v462 = vunpack.c.l.b16 %v75
  %v463 = vunpack.c.h.b16 %v75
  %v464 = vunpack.c.l.b16 %v76
  %v465 = vunpack.c.h.b16 %v76
  %v466 = vunpack.c.l.b16 %v77
  %v467 = vunpack.c.h.b16 %v77
  %v468 = vunpack.c.l.b16 %v78
  %v469 = vunpack.c.h.b16 %v78
  %v470 = vunpack.c.l.b16 %v79
  %v471 = vunpack.c.h.b16 %v79
  %v472 = vunpack.c.l.b16 %v80
  %v473 = vunpack.c.h.b16 %v80
  %v474 = vunpack.c.l.b16 %v81
  %v475 = vunpack.c.h.b16 %v81
  %v476 = vunpack.c.l.b16 %v82
  %v477 = vunpack.c.h.b16 %v82
  %v478 = vunpack.c.l.b16 %v83
  %v479 = vunpack.c.h.b16 %v83
  %v480 = vunpack.c.l.b16 %v84
  %v481 = vunpack.c.h.b16 %v84
  %v482 = vunpack.c.l.b16 %v85
  %v483 = vunpack.c.h.b16 %v85
  %v484 = vunpack.c.l.b16 %v86
  %v485 = vunpack.c.h.b16 %v86
  %v486 = vunpack.c.l.b16 %v87
  %v487 = vunpack.c.h.b16 %v87
  %v488 = vunpack.c.l.b16 %v88
  %v489 = vunpack.c.h.b16 %v88
  %v490 = vunpack.c.l.b16 %v89
  %v491 = vunpack.c.h.b16 %v89
  %v492 = vunpack.c.l.b16 %v90
  %v493 = vunpack.c.h.b16 %v90
  %v494 = vunpack.c.l.b16 %v91
  %v495 = vunpack.c.h.b16 %v91
  %v496 = vunpack.c.l.b16 %v92
  %v497 = vunpack.c.h.b16 %v92
  %v498 = vunpack.c.l.b16 %v93
  %v499 = vunpack.c.h.b16 %v93
  %v500 = vunpack.c.l.b16 %v94
  %v501 = vunpack.c.h.b16 %v94
  %v502 = vunpack.c.l.b16 %v95
  %v503 = vunpack.c.h.b16 %v95
  %v504 = vunpack.c.l.b16 %v96
  %v505 = vunpack.c.h.b16 %v96
  %v506 = vunpack.c.l.b16 %v97
  %v507 = vunpack.c.h.b16 %v97
  %v508 = vunpack.c.l.b16 %v98
  %v509 = vunpack.c.h.b16 %v98
  %v510 = vunpack.c.l.b16 %v99
  %v511 = vunpack.c.h.b16 %v99
  %v512 = vunpack.c.l.b16 %v100
  %v513 = vunpack.c.h.b16 %v100
  %v514 = vunpack.c.l.b16 %v101
  %v515 = vunpack.c.h.b16 %v101
  %v516 = vunpack.c.l.b16 %v102
  %v517 = vunpack.c.h.b16 %v102
  %v518 = vunpack.c.l.b16 %v103
  %v519 = vunpack.c.h.b16 %v103
  %v520 = vunpack.c.l.b16 %v104
  %v521 = vunpack.c.h.b16 %v104
  %v522 = vunpack.c.l.b16 %v105
  %v523 = vunpack.c.h.b16 %v105
  %v524 = vunpack.c.l.b16 %v106
  %v525 = vunpack.c.h.b16 %v106
  %v526 = vunpack.c.l.b16 %v107
  %v527 = vunpack.c.h.b16 %v107
  %v528 = vunpack.c.l.b16 %v108
  %v529 = vunpack.c.h.b16 %v108
  %v530 = vunpack.c.l.b16 %v109
  %v531 = vunpack.c.h.b16 %v109
  %v532 = vunpack.c.l.b16 %v110
  %v533 = vunpack.c.h.b16 %v110
  %v534 = vunpack.c.l.b16 %v111
  %v535 = vunpack.c.h.b16 %v111
  %v536 = vunpack.c.l.b16 %v112
  %v537 = vunpack.c.h.b16 %v112
  %v538 = vunpack.c.l.b16 %v113
  %v539 = vunpack.c.h.b16 %v113
  %v540 = vunpack.c.l.b16 %v114
  %v541 = vunpack.c.h.b16 %v114
  %v542 = vunpack.c.l.b16 %v115
  %v543 = vunpack.c.h.b16 %v115
  %v544 = vunpack.c.l.b16 %v116
  %v545 = vunpack.c.h.b16 %v116
  %v546 = vunpack.c.l.b16 %v117
  %v547 = vunpack.c.h.b16 %v117
  %v548 = vunpack.c.l.b16 %v118
  %v549 = vunpack.c.h.b16 %v118
  %v550 = vunpack.c.l.b16 %v119
  %v551 = vunpack.c.h.b16 %v119
  %v552 = vunpack.c.l.b16 %v120
  %v553 = vunpack.c.h.b16 %v120
  %v554 = vunpack.c.l.b16 %v121
  %v555 = vunpack.c.h.b16 %v121
  %v556 = vunpack.c.l.b16 %v122
  %v557 = vunpack.c.h.b16 %v122
  %v558 = vunpack.c.l.b16 %v123
  %v559 = vunpack.c.h.b16 %v123
  %v560 = vunpack.c.l.b16 %v124
  %v561 = vunpack.c.h.b16 %v124
  %v562 = vunpack.c.l.b16 %v125
  %v563 = vunpack.c.h.b16 %v125
  %v564 = vunpack.c.l.b16 %v126
  %v565 = vunpack.c.h.b16 %v126
  %v566 = vunpack.c.l.b16 %v127
  %v567 = vunpack.c.h.b16 %v127
  %v568 = vunpack.c.l.b16 %v128
  %v569 = vunpack.c.h.b16 %v128
  %v570 = vunpack.c.l.b16 %v129
  %v571 = vunpack.c.h.b16 %v129
  %v572 = vunpack.c.l.b16 %v130
  %v573 = vunpack.c.h.b16 %v130
  %v574 = vunpack.c.l.b16 %v131
  %v575 = vunpack.c.h.b16 %v131
  %v576 = vunpack.c.l.b16 %v132
  %v577 = vunpack.c.h.b16 %v132
  %v578 = vunpack.c.l.b16 %v133
  %v579 = vunpack.c.h.b16 %v133
  %v580 = vunpack.c.l.b16 %v134
  %v581 = vunpack.c.h.b16 %v134
  %v582 = vunpack.c.l.b16 %v135
  %v583 = vunpack.c.h.b16 %v135
  %v584 = vunpack.c.l.b16 %v136
  %v585 = vunpack.c.h.b16 %v136
  %v586 = vunpack.c.l.b16 %v137
  %v587 = vunpack.c.h.b16 %v137
  %v588 = vunpack.c.l.b16 %v138
  %v589 = vunpack.c.h.b16 %v138
  %v590 = vunpack.c.l.b16 %v139
  %v591 = vunpack.c.h.b16 %v139
  %v592 = vunpack.c.l.b16 %v140
  %v593 = vunpack.c.h.b16 %v140
  %v594 = vunpack.c.l.b16 %v141
  %v595 = vunpack.c.h.b16 %v141
  %v596 = vunpack.c.l.b16 %v142
  %v597 = vunpack.c.h.b16 %v142
  %v598 = vunpack.c.l.b16 %v143
  %v599 = vunpack.c.h.b16 %v143
  %v600 = vunpack.c.l.b16 %v144
  %v601 = vunpack.c.h.b16 %v144
  %v602 = vunpack.c.l.b16 %v145
  %v603 = vunpack.c.h.b16 %v145
  %v604 = vunpack.c.l.b16 %v146
  %v605 = vunpack.c.h.b16 %v146
  %v606 = vunpack.c.l.b16 %v147
  %v607 = vunpack.c.h.b16 %v147
  %v608 = vunpack.c.l.b16 %v148
  %v609 = vunpack.c.h.b16 %v148
  %v610 = vunpack.c.l.b16 %v149
  %v611 = vunpack.c.h.b16 %v149
  %v612 = vunpack.c.l.b16 %v150
  %v613 = vunpack.c.h.b16 %v150
  %v614 = vunpack.c.l.b16 %v151
  %v615 = vunpack.c.h.b16 %v151
  %v616 = vunpack.c.l.b16 %v152
  %v617 = vunpack.c.h.b16 %v152
  %v618 = vunpack.c.l.b16 %v153
  %v619 = vunpack.c.h.b16 %v153
  %v620 = vunpack.c.l.b16 %v154
  %v621 = vunpack.c.h.b16 %v154
  %v622 = vunpack.c.l.b16 %v155
  %v623 = vunpack.c.h.b16 %v155
  %v624 = vunpack.c.l.b16 %v156
  %v625 = vunpack.c.h.b16 %v156
  %v626 = vunpack.c.l.b16 %v157
  %v627 = vunpack.c.h.b16 %v157
  %v628 = vunpack.c.l.b16 %v158
  %v629 = vunpack.c.h.b16 %v158
  %v630 = vunpack.c.l.b16 %v159
  %v631 = vunpack.c.h.b16 %v159
  %v632 = vunpack.c.l.b16 %v160
  %v633 = vunpack.c.h.b16 %v160
  %v634 = vunpack.c.l.b16 %v161
  %v635 = vunpack.c.h.b16 %v161
  %v636 = vunpack.c.l.b16 %v162
  %v637 = vunpack.c.h.b16 %v162
  %v638 = vunpack.c.l.b16 %v163
  %v639 = vunpack.c.h.b16 %v163
  %v640 = vpack.c.b16 %v354, %v352
  %v641 = vpack.c.b16 %v355, %v353
  %v642 = vpack.c.b16 %v358, %v356
  %v643 = vpack.c.b16 %v359, %v357
  %v644 = vpack.c.b16 %v362, %v360
  %v645 = vpack.c.b16 %v363, %v361
  %v646 = vpack.c.b16 %v366, %v364
  %v647 = vpack.c.b16 %v367, %v365
  %v648 = vpack.c.b16 %v370, %v368
  %v649 = vpack.c.b16 %v371, %v369
  %v650 = vpack.c.b16 %v374, %v372
  %v651 = vpack.c.b16 %v375, %v373
  %v652 = vpack.c.b16 %v378, %v376
  %v653 = vpack.c.b16 %v379, %v377
  %v654 = vpack.c.b16 %v382, %v380
  %v655 = vpack.c.b16 %v383, %v381
  %v656 = vpack.c.b16 %v386, %v384
  %v657 = vpack.c.b16 %v387, %v385
  %v658 = vpack.c.b16 %v390, %v388
  %v659 = vpack.c.b16 %v391, %v389
  %v660 = vpack.c.b16 %v394, %v392
  %v661 = vpack.c.b16 %v395, %v393
  %v662 = vpack.c.b16 %v398, %v396
  %v663 = vpack.c.b16 %v399, %v397
  %v664 = vpack.c.b16 %v402, %v400
  %v665 = vpack.c.b16 %v403, %v401
  %v666 = vpack.c.b16 %v406, %v404
  %v667 = vpack.c.b16 %v407, %v405
  %v668 = vpack.c.b16 %v410, %v408
  %v669 = vpack.c.b16 %v411, %v409
  %v670 = vpack.c.b16 %v414, %v412
  %v671 = vpack.c.b16 %v415, %v413
  %v672 = vpack.c.b16 %v418, %v416
  %v673 = vpack.c.b16 %v419, %v417
  %v674 = vpack.c.b16 %v422, %v420
  %v675 = vpack.c.b16 %v423, %v421
  %v676 = vpack.c.b16 %v426, %v424
  %v677 = vpack.c.b16 %v427, %v425
  %v678 = vpack.c.b16 %v430, %v428
  %v679 = vpack.c.b16 %v431, %v429
  %v680 = vpack.c.b16 %v434, %v432
  %v681 = vpack.c.b16 %v435, %v433
  %v682 = vpack.c.b16 %v438, %v436
  %v683 = vpack.c.b16 %v439, %v437
  %v684 = vpack.c.b16 %v442, %v440
  %v685 = vpack.c.b16 %v443, %v441
  %v686 = vpack.c.b16 %v446, %v444
  %v687 = vpack.c.b16 %v447, %v445
  %v688 = vpack.c.b16 %v450, %v448
  %v689 = vpack.c.b16 %v451, %v449
  %v690 = vpack.c.b16 %v454, %v452
  %v691 = vpack.c.b16 %v455, %v453
  %v692 = vpack.c.b16 %v458, %v456
  %v693 = vpack.c.b16 %v459, %v457
  %v694 = vpack.c.b16 %v462, %v460
  %v695 = vpack.c.b16 %v463, %v461
  %v696 = vpack.c.b16 %v466, %v464
  %v697 = vpack.c.b16 %v467, %v465
  %v698 = vpack.c.b16 %v470, %v468
  %v699 = vpack.c.b16 %v471, %v469
  %v700 = vpack.c.b16 %v474, %v472
  %v701 = vpack.c.b16 %v475, %v473
  %v702 = vpack.c.b16 %v478, %v476
  %v703 = vpack.c.b16 %v479, %v477
  %v704 = vpack.c.b16 %v482, %v480
  %v705 = vpack.c.b16 %v483, %v481
  %v706 = vpack.c.b16 %v486, %v484
  %v707 = vpack.c.b16 %v487, %v485
  %v708 = vpack.c.b16 %v490, %v488
  %v709 = vpack.c.b16 %v491, %v489
  %v710 = vpack.c.b16 %v494, %v492
  %v711 = vpack.c.b16 %v495, %v493
  %v712 = vpack.c.b16 %v498, %v496
  %v713 = vpack.c.b16 %v499, %v497
  %v714 = vpack.c.b16 %v502, %v500
  %v715 = vpack.c.b16 %v503, %v501
  %v716 = vpack.c.b16 %v506, %v504
  %v717 = vpack.c.b16 %v507, %v505
  %v718 = vpack.c.b16 %v510, %v508
  %v719 = vpack.c.b16 %v511, %v509
  %v720 = vpack.c.b16 %v514, %v512
  %v721 = vpack.c.b16 %v515, %v513
  %v722 = vpack.c.b16 %v518, %v516
  %v723 = vpack.c.b16 %v519, %v517
  %v724 = vpack.c.b16 %v522, %v520
  %v725 = vpack.c.b16 %v523, %v521
  %v726 = vpack.c.b16 %v526, %v524
  %v727 = vpack.c.b16 %v527, %v525
  %v728 = vpack.c.b16 %v530, %v528
  %v729 = vpack.c.b16 %v531, %v529
  %v730 = vpack.c.b16 %v534, %v532
  %v731 = vpack.c.b16 %v535, %v533
  %v732 = vpack.c.b16 %v538, %v536
  %v733 = vpack.c.b16 %v539, %v537
  %v734 = vpack.c.b16 %v542, %v540
  %v735 = vpack.c.b16 %v543, %v541
  %v736 = vpack.c.b16 %v546, %v544
  %v737 = vpack.c.b16 %v547, %v545
  %v738 = vpack.c.b16 %v550, %v548
  %v739 = vpack.c.b16 %v551, %v549
  %v740 = vpack.c.b16 %v554, %v552
  %v741 = vpack.c.b16 %v555, %v553
  %v742 = vpack.c.b16 %v558, %v556
  %v743 = vpack.c.b16 %v559, %v557
  %v744 = vpack.c.b16 %v562, %v560
  %v745 = vpack.c.b16 %v563, %v561
  %v746 = vpack.c.b16 %v566, %v564
  %v747 = vpack.c.b16 %v567, %v565
  %v748 = vpack.c.b16 %v570, %v568
  %v749 = vpack.c.b16 %v571, %v569
  %v750 = vpack.c.b16 %v574, %v572
  %v751 = vpack.c.b16 %v575, %v573
  %v752 = vpack.c.b16 %v578, %v576
  %v753 = vpack.c.b16 %v579, %v577
  %v754 = vpack.c.b16 %v582, %v580
  %v755 = vpack.c.b16 %v583, %v581
  %v756 = vpack.c.b16 %v586, %v584
  %v757 = vpack.c.b16 %v587, %v585
  %v758 = vpack.c.b16 %v590, %v588
  %v759 = vpack.c.b16 %v591, %v589
  %v760 = vpack.c.b16 %v594, %v592
  %v761 = vpack.c.b16 %v595, %v593
  %v762 = vpack.c.b16 %v598, %v596
  %v763 = vpack.c.b16 %v599, %v597
  %v764 = vpack.c.b16 %v602, %v600
  %v765 = vpack.c.b16 %v603, %v601
  %v766 = vpack.c.b16 %v606, %v604
  %v767 = vpack.c.b16 %v607, %v605
  %v768 = vpack.c.b16 %v610, %v608
  %v769 = vpack.c.b16 %v611, %v609
  %v770 = vpack.c.b16 %v614, %v612
  %v771 = vpack.c.b16 %v615, %v613
  %v772 = vpack.c.b16 %v618, %v616
  %v773 = vpack.c.b16 %v619, %v617
  %v774 = vpack.c.b16 %v622, %v620
  %v775 = vpack.c.b16 %v623, %v621
  %v776 = vpack.c.b16 %v626, %v624
  %v777 = vpack.c.b16 %v627, %v625
  %v778 = vpack.c.b16 %v630, %v628
  %v779 = vpack.c.b16 %v631, %v629
  %v780 = vpack.c.b16 %v634, %v632
  %v781 = vpack.c.b16 %v635, %v633
  %v782 = vpack.c.b16 %v638, %v636
  %v783 = vpack.c.b16 %v639, %v637
  %928 = vmatprep.subr.bf16.mxu0 %v641
  %929 = vmatpush1.bf16.msra.mxu0 %v640
  %930 = vmatprep.subr.bf16.mxu0 %v643
  %931 = vmatpush1.bf16.msra.mxu0 %v642
  %932 = vmatprep.subr.bf16.mxu0 %v645
  %933 = vmatpush1.bf16.msra.mxu0 %v644
  %934 = vmatprep.subr.bf16.mxu0 %v647
  %935 = vmatpush1.bf16.msra.mxu0 %v646
  %936 = vmatprep.subr.bf16.mxu0 %v649
  %937 = vmatpush1.bf16.msra.mxu0 %v648
  %938 = vmatprep.subr.bf16.mxu0 %v651
  %939 = vmatpush1.bf16.msra.mxu0 %v650
  %940 = vmatprep.subr.bf16.mxu0 %v653
  %941 = vmatpush1.bf16.msra.mxu0 %v652
  %942 = vmatprep.subr.bf16.mxu0 %v655
  %943 = vmatpush1.bf16.msra.mxu0 %v654
  %944 = vmatprep.subr.bf16.mxu0 %v657
  %945 = vmatpush1.bf16.msra.mxu0 %v656
  %946 = vmatprep.subr.bf16.mxu0 %v659
  %947 = vmatpush1.bf16.msra.mxu0 %v658
  %948 = vmatprep.subr.bf16.mxu0 %v661
  %949 = vmatpush1.bf16.msra.mxu0 %v660
  %950 = vmatprep.subr.bf16.mxu0 %v663
  %951 = vmatpush1.bf16.msra.mxu0 %v662
  %952 = vmatprep.subr.bf16.mxu0 %v665
  %953 = vmatpush1.bf16.msra.mxu0 %v664
  %954 = vmatprep.subr.bf16.mxu0 %v667
  %955 = vmatpush1.bf16.msra.mxu0 %v666
  %956 = vmatprep.subr.bf16.mxu0 %v669
  %957 = vmatpush1.bf16.msra.mxu0 %v668
  %958 = vmatprep.subr.bf16.mxu0 %v671
  %959 = vmatpush1.bf16.msra.mxu0 %v670
  %960 = vmatprep.mubr.bf16.mxu0 %v191
  %961 = vmatmul.mubr.bf16.gmra.mrb[0].mxu0 %v190
  %v962 = vpop.f32.mrb[0].mxu0
  %v963 = vadd.f32 %v169, %v962
  %v964 = vpop.f32.mrb[0].mxu0
  %v965 = vadd.f32 %v173, %v964
  %v966 = vpop.f32.mrb[0].mxu0
  %v967 = vpop.f32.mrb[0].mxu0
  %968 = vdwg.mxu0
  %969 = vmatprep.subr.bf16.mxu0 %v673
  %970 = vmatpush1.bf16.msra.mxu0 %v672
  %971 = vmatprep.subr.bf16.mxu0 %v675
  %972 = vmatpush1.bf16.msra.mxu0 %v674
  %973 = vmatprep.subr.bf16.mxu0 %v677
  %974 = vmatpush1.bf16.msra.mxu0 %v676
  %975 = vmatprep.subr.bf16.mxu0 %v679
  %976 = vmatpush1.bf16.msra.mxu0 %v678
  %977 = vmatprep.subr.bf16.mxu0 %v681
  %978 = vmatpush1.bf16.msra.mxu0 %v680
  %979 = vmatprep.subr.bf16.mxu0 %v683
  %980 = vmatpush1.bf16.msra.mxu0 %v682
  %981 = vmatprep.subr.bf16.mxu0 %v685
  %982 = vmatpush1.bf16.msra.mxu0 %v684
  %983 = vmatprep.subr.bf16.mxu0 %v687
  %984 = vmatpush1.bf16.msra.mxu0 %v686
  %985 = vmatprep.subr.bf16.mxu0 %v689
  %986 = vmatpush1.bf16.msra.mxu0 %v688
  %987 = vmatprep.subr.bf16.mxu0 %v691
  %988 = vmatpush1.bf16.msra.mxu0 %v690
  %989 = vmatprep.subr.bf16.mxu0 %v693
  %990 = vmatpush1.bf16.msra.mxu0 %v692
  %991 = vmatprep.subr.bf16.mxu0 %v695
  %992 = vmatpush1.bf16.msra.mxu0 %v694
  %993 = vmatprep.subr.bf16.mxu0 %v697
  %994 = vmatpush1.bf16.msra.mxu0 %v696
  %995 = vmatprep.subr.bf16.mxu0 %v699
  %996 = vmatpush1.bf16.msra.mxu0 %v698
  %997 = vmatprep.subr.bf16.mxu0 %v701
  %998 = vmatpush1.bf16.msra.mxu0 %v700
  %999 = vmatprep.subr.bf16.mxu0 %v703
  %1000 = vmatpush1.bf16.msra.mxu0 %v702
  %1001 = vmatprep.mubr.bf16.mxu0 %v193
  %1002 = vmatmul.mubr.bf16.gmra.mrb[0].mxu0 %v192
  %v1003 = vpop.f32.mrb[0].mxu0
  %v1004 = vadd.f32 %v963, %v1003
  %v1005 = vpop.f32.mrb[0].mxu0
  %v1006 = vadd.f32 %v965, %v1005
  %v1007 = vpop.f32.mrb[0].mxu0
  %v1008 = vpop.f32.mrb[0].mxu0
  %1009 = vdwg.mxu0
  %1010 = vmatprep.subr.bf16.mxu0 %v705
  %1011 = vmatpush1.bf16.msra.mxu0 %v704
  %1012 = vmatprep.subr.bf16.mxu0 %v707
  %1013 = vmatpush1.bf16.msra.mxu0 %v706
  %1014 = vmatprep.subr.bf16.mxu0 %v709
  %1015 = vmatpush1.bf16.msra.mxu0 %v708
  %1016 = vmatprep.subr.bf16.mxu0 %v711
  %1017 = vmatpush1.bf16.msra.mxu0 %v710
  %1018 = vmatprep.subr.bf16.mxu0 %v713
  %1019 = vmatpush1.bf16.msra.mxu0 %v712
  %1020 = vmatprep.subr.bf16.mxu0 %v715
  %1021 = vmatpush1.bf16.msra.mxu0 %v714
  %1022 = vmatprep.subr.bf16.mxu0 %v717
  %1023 = vmatpush1.bf16.msra.mxu0 %v716
  %1024 = vmatprep.subr.bf16.mxu0 %v719
  %1025 = vmatpush1.bf16.msra.mxu0 %v718
  %1026 = vmatprep.subr.bf16.mxu0 %v721
  %1027 = vmatpush1.bf16.msra.mxu0 %v720
  %1028 = vmatprep.subr.bf16.mxu0 %v723
  %1029 = vmatpush1.bf16.msra.mxu0 %v722
  %1030 = vmatprep.subr.bf16.mxu0 %v725
  %1031 = vmatpush1.bf16.msra.mxu0 %v724
  %1032 = vmatprep.subr.bf16.mxu0 %v727
  %1033 = vmatpush1.bf16.msra.mxu0 %v726
  %1034 = vmatprep.subr.bf16.mxu0 %v729
  %1035 = vmatpush1.bf16.msra.mxu0 %v728
  %1036 = vmatprep.subr.bf16.mxu0 %v731
  %1037 = vmatpush1.bf16.msra.mxu0 %v730
  %1038 = vmatprep.subr.bf16.mxu0 %v733
  %1039 = vmatpush1.bf16.msra.mxu0 %v732
  %1040 = vmatprep.subr.bf16.mxu0 %v735
  %1041 = vmatpush1.bf16.msra.mxu0 %v734
  %1042 = vmatprep.mubr.bf16.mxu0 %v195
  %1043 = vmatmul.mubr.bf16.gmra.mrb[0].mxu0 %v194
  %v1044 = vpop.f32.mrb[0].mxu0
  %v1045 = vadd.f32 %v1004, %v1044
  %v1046 = vpop.f32.mrb[0].mxu0
  %v1047 = vadd.f32 %v1006, %v1046
  %v1048 = vpop.f32.mrb[0].mxu0
  %v1049 = vpop.f32.mrb[0].mxu0
  %1050 = vdwg.mxu0
  %1051 = vmatprep.subr.bf16.mxu0 %v737
  %1052 = vmatpush1.bf16.msra.mxu0 %v736
  %1053 = vmatprep.subr.bf16.mxu0 %v739
  %1054 = vmatpush1.bf16.msra.mxu0 %v738
  %1055 = vmatprep.subr.bf16.mxu0 %v741
  %1056 = vmatpush1.bf16.msra.mxu0 %v740
  %1057 = vmatprep.subr.bf16.mxu0 %v743
  %1058 = vmatpush1.bf16.msra.mxu0 %v742
  %1059 = vmatprep.subr.bf16.mxu0 %v745
  %1060 = vmatpush1.bf16.msra.mxu0 %v744
  %1061 = vmatprep.subr.bf16.mxu0 %v747
  %1062 = vmatpush1.bf16.msra.mxu0 %v746
  %1063 = vmatprep.subr.bf16.mxu0 %v749
  %1064 = vmatpush1.bf16.msra.mxu0 %v748
  %1065 = vmatprep.subr.bf16.mxu0 %v751
  %1066 = vmatpush1.bf16.msra.mxu0 %v750
  %1067 = vmatprep.subr.bf16.mxu0 %v753
  %1068 = vmatpush1.bf16.msra.mxu0 %v752
  %1069 = vmatprep.subr.bf16.mxu0 %v755
  %1070 = vmatpush1.bf16.msra.mxu0 %v754
  %1071 = vmatprep.subr.bf16.mxu0 %v757
  %1072 = vmatpush1.bf16.msra.mxu0 %v756
  %1073 = vmatprep.subr.bf16.mxu0 %v759
  %1074 = vmatpush1.bf16.msra.mxu0 %v758
  %1075 = vmatprep.subr.bf16.mxu0 %v761
  %1076 = vmatpush1.bf16.msra.mxu0 %v760
  %1077 = vmatprep.subr.bf16.mxu0 %v763
  %1078 = vmatpush1.bf16.msra.mxu0 %v762
  %1079 = vmatprep.subr.bf16.mxu0 %v765
  %1080 = vmatpush1.bf16.msra.mxu0 %v764
  %1081 = vmatprep.subr.bf16.mxu0 %v767
  %1082 = vmatpush1.bf16.msra.mxu0 %v766
  %1083 = vmatprep.mubr.bf16.mxu0 %v197
  %1084 = vmatmul.mubr.bf16.gmra.mrb[0].mxu0 %v196
  %v1085 = vpop.f32.mrb[0].mxu0
  %v1086 = vadd.f32 %v1045, %v1085
  %v1087 = vpop.f32.mrb[0].mxu0
  %v1088 = vadd.f32 %v1047, %v1087
  %v1089 = vpop.f32.mrb[0].mxu0
  %v1090 = vpop.f32.mrb[0].mxu0
  %1091 = vdwg.mxu0
  %1092 = vmatprep.subr.bf16.mxu0 %v769
  %1093 = vmatpush1.bf16.msra.mxu0 %v768
  %1094 = vmatprep.subr.bf16.mxu0 %v771
  %1095 = vmatpush1.bf16.msra.mxu0 %v770
  %1096 = vmatprep.subr.bf16.mxu0 %v773
  %1097 = vmatpush1.bf16.msra.mxu0 %v772
  %1098 = vmatprep.subr.bf16.mxu0 %v775
  %1099 = vmatpush1.bf16.msra.mxu0 %v774
  %1100 = vmatprep.subr.bf16.mxu0 %v777
  %1101 = vmatpush1.bf16.msra.mxu0 %v776
  %1102 = vmatprep.subr.bf16.mxu0 %v779
  %1103 = vmatpush1.bf16.msra.mxu0 %v778
  %1104 = vmatprep.subr.bf16.mxu0 %v781
  %1105 = vmatpush1.bf16.msra.mxu0 %v780
  %1106 = vmatprep.subr.bf16.mxu0 %v783
  %1107 = vmatpush1.bf16.msra.mxu0 %v782
  %1108 = vmatprep.subr.bf16.mxu0 0
  %1109 = vmatpush1.bf16.msra.mxu0 0
  %1110 = vmatprep.subr.bf16.mxu0 0
  %1111 = vmatpush1.bf16.msra.mxu0 0
  %1112 = vmatprep.subr.bf16.mxu0 0
  %1113 = vmatpush1.bf16.msra.mxu0 0
  %1114 = vmatprep.subr.bf16.mxu0 0
  %1115 = vmatpush1.bf16.msra.mxu0 0
  %1116 = vmatprep.subr.bf16.mxu0 0
  %1117 = vmatpush1.bf16.msra.mxu0 0
  %1118 = vmatprep.subr.bf16.mxu0 0
  %1119 = vmatpush1.bf16.msra.mxu0 0
  %1120 = vmatprep.subr.bf16.mxu0 0
  %1121 = vmatpush1.bf16.msra.mxu0 0
  %1122 = vmatprep.subr.bf16.mxu0 0
  %1123 = vmatpush1.bf16.msra.mxu0 0
  %1124 = vmatprep.mubr.bf16.mxu0 0
  %1125 = vmatmul.mubr.bf16.gmra.mrb[0].mxu0 %v198
  %v1126 = vpop.f32.mrb[0].mxu0
  %v1127 = vadd.f32 %v1086, %v1126
  %v1128 = vpop.f32.mrb[0].mxu0
  %v1129 = vadd.f32 %v1088, %v1128
  %v1130 = vpop.f32.mrb[0].mxu0
  %v1131 = vpop.f32.mrb[0].mxu0
  %1132 = vdwg.mxu0
  %v1133 = vmax.f32 %v1127, 0.0
  %v1134 = vmax.f32 %v1129, 0.0
  %v1135 = vpack.c.bf16 %v1133, %v1133
  %v1136 = vpack.c.bf16 %v1134, %v1134
  %v1139 = vunpack.c.l.b16 %v1135
  %v1140 = vunpack.c.l.b16 %v1136
  %v1141 = vpack.c.b16 %v1140, %v1139
  %1143 = vst [vmem:[%s3] sm:$0xff] %v1141
  // Predicated region
  $region14: #{forward.10} parent=0 // pred_check
    _
  $region15: #{forward.10} parent=0 // pred_check_branch
    %1145 = sbr.rel (0) target = $region17
  $region16: #{forward.10} parent=0 // pred_region
    _
  $region17: #{forward.10} parent=0 // pred_fallthru
    _
  // Predicated region
  $region18: #{forward.10} parent=0 // pred_check
    _
  $region19: #{forward.10} parent=0 // pred_check_branch
    %1147 = sbr.rel (0) target = $region21
  $region20: #{forward.10} parent=0 // pred_region
    _
  $region21: #{forward.10} parent=0 // pred_fallthru
    _

// kernel: forward.11
$region0: #{forward.11}
  #allocation0 [shape = 'u32[]', space=smem, size = 0x4, offset = 0x4, fixed_abs, tag = 'smem constant byte address 0x4 - core index']
  #allocation1 [shape = 'u32[144,128]{1,0:T(1,128)}', space=vmem, size = 0x12000, scoped, tag = 'internal scratch']
  #allocation2 [shape = 'f32[2,128]{1,0:T(2,128)}', space=vmem, size = 0x400, scoped, tag = 'scratch operand']
  %s0 = inlined_call_operand.vmem [shape: bf16[2,2304], index: 0, kind: input, shape index: {}]
  %s1 = inlined_call_operand.vmem [shape: bf16[2304,2048], index: 1, kind: input, shape index: {}]
  %s2 = inlined_call_operand.vmem [shape: f32[1,2048], index: 2, kind: input, shape index: {}]
  %s3 = inlined_call_operand.vmem [shape: bf16[2048,128], index: 3, kind: input, shape index: {}]
  %s4 = inlined_call_operand.vmem [shape: f32[1,128], index: 4, kind: input, shape index: {}]
  %s5 = inlined_call_operand.hbm [shape: f32[2,128], index: 5, kind: output, shape index: {}]
  %s6 = sld [smem:[#allocation0]]
  $region84: #{forward.11} parent=0
    _
  %s8 = ssub.s32 1, %s6
  %s9 = scalar_select 0, %s8, %s6
  $region1: #{forward.11} parent=0
    #allocation3 [shape = 'u8[4718592]{0}', space=vmem, size = 0x480000, scoped, tag = 'input window, operand 1']
    #allocation4 [shape = 'u8[1024]{0}', space=vmem, size = 0x400, scoped, tag = 'output window, operand 0, single buffered']
    #allocation5 [shape = 's32[2]{0}', space=sflag, size = 0x8, scoped, tag = 'scoped memory for forward.11']
    %10 = vsyncpa [#allocation5], 0
    loop: start=0, step=1, limit=6
    $region2: #{forward.11} parent=1 // loop_pre_header
      _
    $region3: #{forward.11} parent=1 // loop_header
      %s12 = sphi 0, %s16
      %p13 = scmp.ge.s32.totalorder %s12, 6
      %s20 = sphi 0, %s20
      %s22 = sphi 0, %s20
      %s23 = sphi 0, %s22
      %s37 = sphi 0, %s23
      %s43 = sphi 0, %s45
      %s46 = sphi 0, %s43
      %s47 = sphi 0, %s46
      %s63 = sphi 0, %s47
      %s69 = sphi 0, %s71
      %s72 = sphi 0, %s69
      %s73 = sphi 0, %s72
      %s89 = sphi 0, %s73
      %s95 = sphi 0, %s97
      %s98 = sphi 0, %s95
      %s99 = sphi 0, %s98
      %s115 = sphi 0, %s99
      %s119 = sphi 0, %s119
      %s121 = sphi 0, %s119
      %s122 = sphi 0, %s121
      %s136 = sphi 0, %s122
      %s140 = sphi 0, %s140
      %s142 = sphi 0, %s140
      %s143 = sphi 0, %s142
      %s157 = sphi 0, %s143
    $region4: #{forward.11} parent=1 // loop_header_branch
      %15 = sbr.rel (%p13) target = $region8
    $region5: #{forward.11} parent=1 // loop_body
      %s17 = ssub.s32 %s12, 1
      %s18 = ssub.s32 %s12, 2
      %s19 = sadd.s32 %s12, 1
      %s21 = sadd.s32 %s20, 1
      %p24 = scmp.eq.s32.totalorder %s12, 3
      %p25 = scmp.ne.s32.totalorder %s20, %s22
      %p26 = scmp.eq.s32.totalorder %s12, 0
      %p27 = por %p25, %p26
      %p28 = scmp.ne.s32.totalorder %s20, %s22
      %p29 = scmp.eq.s32.totalorder %s17, 3
      %p30 = por %p28, %p29
      %p31 = scmp.ne.s32.totalorder %s22, %s23
      %p32 = scmp.eq.s32.totalorder %s17, 0
      %p33 = por %p31, %p32
      %p34 = scmp.ne.s32.totalorder %s22, %s23
      %p35 = scmp.eq.s32.totalorder %s18, 3
      %p36 = por %p34, %p35
      %p38 = scmp.ne.s32.totalorder %s23, %s37
      %p39 = scmp.eq.s32.totalorder %s18, 0
      %p40 = por %p38, %p39
      %s41 = ssub.s32 %s12, %s19
      %p42 = scmp.eq.s32.totalorder %s41, 0
      %s44 = sadd.s32 %s43, 1
      %s45 = scalar_select %p42, %s43, %s44
      %p48 = pneg %p42
      %p49 = scmp.eq.s32.totalorder %s12, 3
      %p50 = por %p48, %p49
      %p51 = scmp.ne.s32.totalorder %s43, %s46
      %p52 = scmp.eq.s32.totalorder %s12, 0
      %p53 = por %p51, %p52
      %p54 = scmp.ne.s32.totalorder %s43, %s46
      %p55 = scmp.eq.s32.totalorder %s17, 3
      %p56 = por %p54, %p55
      %p57 = scmp.ne.s32.totalorder %s46, %s47
      %p58 = scmp.eq.s32.totalorder %s17, 0
      %p59 = por %p57, %p58
      %p60 = scmp.ne.s32.totalorder %s46, %s47
      %p61 = scmp.eq.s32.totalorder %s18, 3
      %p62 = por %p60, %p61
      %p64 = scmp.ne.s32.totalorder %s47, %s63
      %p65 = scmp.eq.s32.totalorder %s18, 0
      %p66 = por %p64, %p65
      %s67 = ssub.s32 %s12, %s19
      %p68 = scmp.eq.s32.totalorder %s67, 0
      %s70 = sadd.s32 %s69, 1
      %s71 = scalar_select %p68, %s69, %s70
      %p74 = pneg %p68
      %p75 = scmp.eq.s32.totalorder %s12, 3
      %p76 = por %p74, %p75
      %p77 = scmp.ne.s32.totalorder %s69, %s72
      %p78 = scmp.eq.s32.totalorder %s12, 0
      %p79 = por %p77, %p78
      %p80 = scmp.ne.s32.totalorder %s69, %s72
      %p81 = scmp.eq.s32.totalorder %s17, 3
      %p82 = por %p80, %p81
      %p83 = scmp.ne.s32.totalorder %s72, %s73
      %p84 = scmp.eq.s32.totalorder %s17, 0
      %p85 = por %p83, %p84
      %p86 = scmp.ne.s32.totalorder %s72, %s73
      %p87 = scmp.eq.s32.totalorder %s18, 3
      %p88 = por %p86, %p87
      %p90 = scmp.ne.s32.totalorder %s73, %s89
      %p91 = scmp.eq.s32.totalorder %s18, 0
      %p92 = por %p90, %p91
      %s93 = ssub.s32 %s12, %s19
      %p94 = scmp.eq.s32.totalorder %s93, 0
      %s96 = sadd.s32 %s95, 1
      %s97 = scalar_select %p94, %s95, %s96
      %p100 = pneg %p94
      %p101 = scmp.eq.s32.totalorder %s12, 3
      %p102 = por %p100, %p101
      %p103 = scmp.ne.s32.totalorder %s95, %s98
      %p104 = scmp.eq.s32.totalorder %s12, 0
      %p105 = por %p103, %p104
      %p106 = scmp.ne.s32.totalorder %s95, %s98
      %p107 = scmp.eq.s32.totalorder %s17, 3
      %p108 = por %p106, %p107
      %p109 = scmp.ne.s32.totalorder %s98, %s99
      %p110 = scmp.eq.s32.totalorder %s17, 0
      %p111 = por %p109, %p110
      %p112 = scmp.ne.s32.totalorder %s98, %s99
      %p113 = scmp.eq.s32.totalorder %s18, 3
      %p114 = por %p112, %p113
      %p116 = scmp.ne.s32.totalorder %s99, %s115
      %p117 = scmp.eq.s32.totalorder %s18, 0
      %p118 = por %p116, %p117
      %s120 = sadd.s32 %s119, 1
      %p123 = scmp.eq.s32.totalorder %s12, 3
      %p124 = scmp.ne.s32.totalorder %s119, %s121
      %p125 = scmp.eq.s32.totalorder %s12, 0
      %p126 = por %p124, %p125
      %p127 = scmp.ne.s32.totalorder %s119, %s121
      %p128 = scmp.eq.s32.totalorder %s17, 3
      %p129 = por %p127, %p128
      %p130 = scmp.ne.s32.totalorder %s121, %s122
      %p131 = scmp.eq.s32.totalorder %s17, 0
      %p132 = por %p130, %p131
      %p133 = scmp.ne.s32.totalorder %s121, %s122
      %p134 = scmp.eq.s32.totalorder %s18, 3
      %p135 = por %p133, %p134
      %p137 = scmp.ne.s32.totalorder %s122, %s136
      %p138 = scmp.eq.s32.totalorder %s18, 0
      %p139 = por %p137, %p138
      %s141 = sadd.s32 %s140, 1
      %p144 = scmp.eq.s32.totalorder %s12, 3
      %p145 = scmp.ne.s32.totalorder %s140, %s142
      %p146 = scmp.eq.s32.totalorder %s12, 0
      %p147 = por %p145, %p146
      %p148 = scmp.ne.s32.totalorder %s140, %s142
      %p149 = scmp.eq.s32.totalorder %s17, 3
      %p150 = por %p148, %p149
      %p151 = scmp.ne.s32.totalorder %s142, %s143
      %p152 = scmp.eq.s32.totalorder %s17, 0
      %p153 = por %p151, %p152
      %p154 = scmp.ne.s32.totalorder %s142, %s143
      %p155 = scmp.eq.s32.totalorder %s18, 3
      %p156 = por %p154, %p155
      %p158 = scmp.ne.s32.totalorder %s143, %s157
      %p159 = scmp.eq.s32.totalorder %s18, 0
      %p160 = por %p158, %p159
      %p161 = scmp.le.s32.totalorder 1, %s12
      %p162 = scmp.lt.s32.totalorder %s12, 5
      %p163 = pnand %p161, %p162
      %p164 = pneg %p163
      // Predicated region
      $region9: #{forward.11} parent=5 // pred_check
        _
      $region10: #{forward.11} parent=5 // pred_check_branch
        %166 = sbr.rel (%p163) target = $region12
      $region11: #{forward.11} parent=5 // pred_region
        %s167 = ssub.s32 %s12, 1
        // Predicated region
        $region13: #{forward.11} parent=11 // pred_check
          %p168 = pneg %p33
        $region14: #{forward.11} parent=11 // pred_check_branch
          %170 = sbr.rel (%p168) target = $region16
        $region15: #{forward.11} parent=11 // pred_region
          _
        $region16: #{forward.11} parent=11 // pred_fallthru
          _
        // Predicated region
        $region17: #{forward.11} parent=11 // pred_check
          %p171 = pneg %p132
        $region18: #{forward.11} parent=11 // pred_check_branch
          %173 = sbr.rel (%p171) target = $region20
        $region19: #{forward.11} parent=11 // pred_region
          _
        $region20: #{forward.11} parent=11 // pred_fallthru
          _
      $region12: #{forward.11} parent=5 // pred_fallthru
        _
      %p174 = scmp.lt.s32.totalorder %s12, 4
      // Predicated region
      $region21: #{forward.11} parent=5 // pred_check
        %p175 = pneg %p174
      $region22: #{forward.11} parent=5 // pred_check_branch
        %177 = sbr.rel (%p175) target = $region24
      $region23: #{forward.11} parent=5 // pred_region
        // Predicated region
        $region25: #{forward.11} parent=23 // pred_check
          %p178 = pneg %p53
        $region26: #{forward.11} parent=23 // pred_check_branch
          %180 = sbr.rel (%p178) target = $region28
        $region27: #{forward.11} parent=23 // pred_region
          %s181 = sand.u32 %s43, 1
          %s182 = sand.u32 %s43, 1
          %s183 = smul.addr %s182, 4608
          %s184 = scalar_lea.vmem [#allocation3], %s183
          %s185 = smul.u32 4, %s12
          %s186 = smul.addr %s185, 4
          %s187 = scalar_lea.vmem %s1, %s186
          // Predicated region
          $region29: #{forward.11} parent=27 // pred_check
            _
          $region30: #{forward.11} parent=27 // pred_check_branch
            %189 = sbr.rel (0) target = $region32
          $region31: #{forward.11} parent=27 // pred_region
            // Predicated region
            $region33: #{forward.11} parent=31 // pred_check
              _
            $region34: #{forward.11} parent=31 // pred_check_branch
              %191 = sbr.rel (0) target = $region36
            $region35: #{forward.11} parent=31 // pred_region
              loop: start=0, step=1, limit=1
              $region37: #{forward.11} parent=35 // loop_pre_header
                _
              $region38: #{forward.11} parent=35 // loop_header
                %s193 = sphi 0, %s197
                %p194 = scmp.ge.s32.totalorder %s193, 1
                %s198 = sphi %s187, %s187
                %s199 = sphi %s184, %s184
              $region39: #{forward.11} parent=35 // loop_header_branch
                %196 = sbr.rel (%p194) target = $region43
              $region40: #{forward.11} parent=35 // loop_body
                %v200 = vld [vmem:[%s198] sm:$0xff]
                %201 = vst [vmem:[%s199] sm:$0xff] %v200
                %v202 = vld [vmem:[%s198 + $0x8] sm:$0xff]
                %203 = vst [vmem:[%s199 + $0x8] sm:$0xff] %v202
                %v204 = vld [vmem:[%s198 + $0x40] sm:$0xff]
                %205 = vst [vmem:[%s199 + $0x10] sm:$0xff] %v204
                %v206 = vld [vmem:[%s198 + $0x48] sm:$0xff]
                %207 = vst [vmem:[%s199 + $0x18] sm:$0xff] %v206
                %v208 = vld [vmem:[%s198 + $0x80] sm:$0xff]
                %209 = vst [vmem:[%s199 + $0x20] sm:$0xff] %v208
                %v210 = vld [vmem:[%s198 + $0x88] sm:$0xff]
                %211 = vst [vmem:[%s199 + $0x28] sm:$0xff] %v210
                %v212 = vld [vmem:[%s198 + $0xc0] sm:$0xff]
                %213 = vst [vmem:[%s199 + $0x30] sm:$0xff] %v212
                %v214 = vld [vmem:[%s198 + $0xc8] sm:$0xff]
                %215 = vst [vmem:[%s199 + $0x38] sm:$0xff] %v214
                %v216 = vld [vmem:[%s198 + $0x100] sm:$0xff]
                %217 = vst [vmem:[%s199 + $0x40] sm:$0xff] %v216
                %v218 = vld [vmem:[%s198 + $0x108] sm:$0xff]
                %219 = vst [vmem:[%s199 + $0x48] sm:$0xff] %v218
                %v220 = vld [vmem:[%s198 + $0x140] sm:$0xff]
                %221 = vst [vmem:[%s199 + $0x50] sm:$0xff] %v220
                %v222 = vld [vmem:[%s198 + $0x148] sm:$0xff]
                %223 = vst [vmem:[%s199 + $0x58] sm:$0xff] %v222
                %v224 = vld [vmem:[%s198 + $0x180] sm:$0xff]
                %225 = vst [vmem:[%s199 + $0x60] sm:$0xff] %v224
                %v226 = vld [vmem:[%s198 + $0x188] sm:$0xff]
                %227 = vst [vmem:[%s199 + $0x68] sm:$0xff] %v226
                %v228 = vld [vmem:[%s198 + $0x1c0] sm:$0xff]
                %229 = vst [vmem:[%s199 + $0x70] sm:$0xff] %v228
                %v230 = vld [vmem:[%s198 + $0x1c8] sm:$0xff]
                %231 = vst [vmem:[%s199 + $0x78] sm:$0xff] %v230
                %v232 = vld [vmem:[%s198 + $0x200] sm:$0xff]
                %233 = vst [vmem:[%s199 + $0x80] sm:$0xff] %v232
                %v234 = vld [vmem:[%s198 + $0x208] sm:$0xff]
                %235 = vst [vmem:[%s199 + $0x88] sm:$0xff] %v234
                %v236 = vld [vmem:[%s198 + $0x240] sm:$0xff]
                %237 = vst [vmem:[%s199 + $0x90] sm:$0xff] %v236
                %v238 = vld [vmem:[%s198 + $0x248] sm:$0xff]
                %239 = vst [vmem:[%s199 + $0x98] sm:$0xff] %v238
                %v240 = vld [vmem:[%s198 + $0x280] sm:$0xff]
                %241 = vst [vmem:[%s199 + $0xa0] sm:$0xff] %v240
                %v242 = vld [vmem:[%s198 + $0x288] sm:$0xff]
                %243 = vst [vmem:[%s199 + $0xa8] sm:$0xff] %v242
                %v244 = vld [vmem:[%s198 + $0x2c0] sm:$0xff]
                %245 = vst [vmem:[%s199 + $0xb0] sm:$0xff] %v244
                %v246 = vld [vmem:[%s198 + $0x2c8] sm:$0xff]
                %247 = vst [vmem:[%s199 + $0xb8] sm:$0xff] %v246
                %v248 = vld [vmem:[%s198 + $0x300] sm:$0xff]
                %249 = vst [vmem:[%s199 + $0xc0] sm:$0xff] %v248
                %v250 = vld [vmem:[%s198 + $0x308] sm:$0xff]
                %251 = vst [vmem:[%s199 + $0xc8] sm:$0xff] %v250
                %v252 = vld [vmem:[%s198 + $0x340] sm:$0xff]
                %253 = vst [vmem:[%s199 + $0xd0] sm:$0xff] %v252
                %v254 = vld [vmem:[%s198 + $0x348] sm:$0xff]
                %255 = vst [vmem:[%s199 + $0xd8] sm:$0xff] %v254
                %v256 = vld [vmem:[%s198 + $0x380] sm:$0xff]
                %257 = vst [vmem:[%s199 + $0xe0] sm:$0xff] %v256
                %v258 = vld [vmem:[%s198 + $0x388] sm:$0xff]
                %259 = vst [vmem:[%s199 + $0xe8] sm:$0xff] %v258
                %v260 = vld [vmem:[%s198 + $0x3c0] sm:$0xff]
                %261 = vst [vmem:[%s199 + $0xf0] sm:$0xff] %v260
                %v262 = vld [vmem:[%s198 + $0x3c8] sm:$0xff]
                %263 = vst [vmem:[%s199 + $0xf8] sm:$0xff] %v262
                %v264 = vld [vmem:[%s198 + $0x400] sm:$0xff]
                %265 = vst [vmem:[%s199 + $0x100] sm:$0xff] %v264
                %v266 = vld [vmem:[%s198 + $0x408] sm:$0xff]
                %267 = vst [vmem:[%s199 + $0x108] sm:$0xff] %v266
                %v268 = vld [vmem:[%s198 + $0x440] sm:$0xff]
                %269 = vst [vmem:[%s199 + $0x110] sm:$0xff] %v268
                %v270 = vld [vmem:[%s198 + $0x448] sm:$0xff]
                %271 = vst [vmem:[%s199 + $0x118] sm:$0xff] %v270
                %v272 = vld [vmem:[%s198 + $0x480] sm:$0xff]
                %273 = vst [vmem:[%s199 + $0x120] sm:$0xff] %v272
                %v274 = vld [vmem:[%s198 + $0x488] sm:$0xff]
                %275 = vst [vmem:[%s199 + $0x128] sm:$0xff] %v274
                %v276 = vld [vmem:[%s198 + $0x4c0] sm:$0xff]
                %277 = vst [vmem:[%s199 + $0x130] sm:$0xff] %v276
                %v278 = vld [vmem:[%s198 + $0x4c8] sm:$0xff]
                %279 = vst [vmem:[%s199 + $0x138] sm:$0xff] %v278
                %v280 = vld [vmem:[%s198 + $0x500] sm:$0xff]
                %281 = vst [vmem:[%s199 + $0x140] sm:$0xff] %v280
                %v282 = vld [vmem:[%s198 + $0x508] sm:$0xff]
                %283 = vst [vmem:[%s199 + $0x148] sm:$0xff] %v282
                %v284 = vld [vmem:[%s198 + $0x540] sm:$0xff]
                %285 = vst [vmem:[%s199 + $0x150] sm:$0xff] %v284
                %v286 = vld [vmem:[%s198 + $0x548] sm:$0xff]
                %287 = vst [vmem:[%s199 + $0x158] sm:$0xff] %v286
                %v288 = vld [vmem:[%s198 + $0x580] sm:$0xff]
                %289 = vst [vmem:[%s199 + $0x160] sm:$0xff] %v288
                %v290 = vld [vmem:[%s198 + $0x588] sm:$0xff]
                %291 = vst [vmem:[%s199 + $0x168] sm:$0xff] %v290
                %v292 = vld [vmem:[%s198 + $0x5c0] sm:$0xff]
                %293 = vst [vmem:[%s199 + $0x170] sm:$0xff] %v292
                %v294 = vld [vmem:[%s198 + $0x5c8] sm:$0xff]
                %295 = vst [vmem:[%s199 + $0x178] sm:$0xff] %v294
                %v296 = vld [vmem:[%s198 + $0x600] sm:$0xff]
                %297 = vst [vmem:[%s199 + $0x180] sm:$0xff] %v296
                %v298 = vld [vmem:[%s198 + $0x608] sm:$0xff]
                %299 = vst [vmem:[%s199 + $0x188] sm:$0xff] %v298
                %v300 = vld [vmem:[%s198 + $0x640] sm:$0xff]
                %301 = vst [vmem:[%s199 + $0x190] sm:$0xff] %v300
                %v302 = vld [vmem:[%s198 + $0x648] sm:$0xff]
                %303 = vst [vmem:[%s199 + $0x198] sm:$0xff] %v302
                %v304 = vld [vmem:[%s198 + $0x680] sm:$0xff]
                %305 = vst [vmem:[%s199 + $0x1a0] sm:$0xff] %v304
                %v306 = vld [vmem:[%s198 + $0x688] sm:$0xff]
                %307 = vst [vmem:[%s199 + $0x1a8] sm:$0xff] %v306
                %v308 = vld [vmem:[%s198 + $0x6c0] sm:$0xff]
                %309 = vst [vmem:[%s199 + $0x1b0] sm:$0xff] %v308
                %v310 = vld [vmem:[%s198 + $0x6c8] sm:$0xff]
                %311 = vst [vmem:[%s199 + $0x1b8] sm:$0xff] %v310
                %v312 = vld [vmem:[%s198 + $0x700] sm:$0xff]
                %313 = vst [vmem:[%s199 + $0x1c0] sm:$0xff] %v312
                %v314 = vld [vmem:[%s198 + $0x708] sm:$0xff]
                %315 = vst [vmem:[%s199 + $0x1c8] sm:$0xff] %v314
                %v316 = vld [vmem:[%s198 + $0x740] sm:$0xff]
                %317 = vst [vmem:[%s199 + $0x1d0] sm:$0xff] %v316
                %v318 = vld [vmem:[%s198 + $0x748] sm:$0xff]
                %319 = vst [vmem:[%s199 + $0x1d8] sm:$0xff] %v318
                %v320 = vld [vmem:[%s198 + $0x780] sm:$0xff]
                %321 = vst [vmem:[%s199 + $0x1e0] sm:$0xff] %v320
                %v322 = vld [vmem:[%s198 + $0x788] sm:$0xff]
                %323 = vst [vmem:[%s199 + $0x1e8] sm:$0xff] %v322
                %v324 = vld [vmem:[%s198 + $0x7c0] sm:$0xff]
                %325 = vst [vmem:[%s199 + $0x1f0] sm:$0xff] %v324
                %v326 = vld [vmem:[%s198 + $0x7c8] sm:$0xff]
                %327 = vst [vmem:[%s199 + $0x1f8] sm:$0xff] %v326
                %v328 = vld [vmem:[%s198 + $0x800] sm:$0xff]
                %329 = vst [vmem:[%s199 + $0x200] sm:$0xff] %v328
                %v330 = vld [vmem:[%s198 + $0x808] sm:$0xff]
                %331 = vst [vmem:[%s199 + $0x208] sm:$0xff] %v330
                %v332 = vld [vmem:[%s198 + $0x840] sm:$0xff]
                %333 = vst [vmem:[%s199 + $0x210] sm:$0xff] %v332
                %v334 = vld [vmem:[%s198 + $0x848] sm:$0xff]
                %335 = vst [vmem:[%s199 + $0x218] sm:$0xff] %v334
                %v336 = vld [vmem:[%s198 + $0x880] sm:$0xff]
                %337 = vst [vmem:[%s199 + $0x220] sm:$0xff] %v336
                %v338 = vld [vmem:[%s198 + $0x888] sm:$0xff]
                %339 = vst [vmem:[%s199 + $0x228] sm:$0xff] %v338
                %v340 = vld [vmem:[%s198 + $0x8c0] sm:$0xff]
                %341 = vst [vmem:[%s199 + $0x230] sm:$0xff] %v340
                %v342 = vld [vmem:[%s198 + $0x8c8] sm:$0xff]
                %343 = vst [vmem:[%s199 + $0x238] sm:$0xff] %v342
                %v344 = vld [vmem:[%s198 + $0x900] sm:$0xff]
                %345 = vst [vmem:[%s199 + $0x240] sm:$0xff] %v344
                %v346 = vld [vmem:[%s198 + $0x908] sm:$0xff]
                %347 = vst [vmem:[%s199 + $0x248] sm:$0xff] %v346
                %v348 = vld [vmem:[%s198 + $0x940] sm:$0xff]
                %349 = vst [vmem:[%s199 + $0x250] sm:$0xff] %v348
                %v350 = vld [vmem:[%s198 + $0x948] sm:$0xff]
                %351 = vst [vmem:[%s199 + $0x258] sm:$0xff] %v350
                %v352 = vld [vmem:[%s198 + $0x980] sm:$0xff]
                %353 = vst [vmem:[%s199 + $0x260] sm:$0xff] %v352
                %v354 = vld [vmem:[%s198 + $0x988] sm:$0xff]
                %355 = vst [vmem:[%s199 + $0x268] sm:$0xff] %v354
                %v356 = vld [vmem:[%s198 + $0x9c0] sm:$0xff]
                %357 = vst [vmem:[%s199 + $0x270] sm:$0xff] %v356
                %v358 = vld [vmem:[%s198 + $0x9c8] sm:$0xff]
                %359 = vst [vmem:[%s199 + $0x278] sm:$0xff] %v358
                %v360 = vld [vmem:[%s198 + $0xa00] sm:$0xff]
                %361 = vst [vmem:[%s199 + $0x280] sm:$0xff] %v360
                %v362 = vld [vmem:[%s198 + $0xa08] sm:$0xff]
                %363 = vst [vmem:[%s199 + $0x288] sm:$0xff] %v362
                %v364 = vld [vmem:[%s198 + $0xa40] sm:$0xff]
                %365 = vst [vmem:[%s199 + $0x290] sm:$0xff] %v364
                %v366 = vld [vmem:[%s198 + $0xa48] sm:$0xff]
                %367 = vst [vmem:[%s199 + $0x298] sm:$0xff] %v366
                %v368 = vld [vmem:[%s198 + $0xa80] sm:$0xff]
                %369 = vst [vmem:[%s199 + $0x2a0] sm:$0xff] %v368
                %v370 = vld [vmem:[%s198 + $0xa88] sm:$0xff]
                %371 = vst [vmem:[%s199 + $0x2a8] sm:$0xff] %v370
                %v372 = vld [vmem:[%s198 + $0xac0] sm:$0xff]
                %373 = vst [vmem:[%s199 + $0x2b0] sm:$0xff] %v372
                %v374 = vld [vmem:[%s198 + $0xac8] sm:$0xff]
                %375 = vst [vmem:[%s199 + $0x2b8] sm:$0xff] %v374
                %v376 = vld [vmem:[%s198 + $0xb00] sm:$0xff]
                %377 = vst [vmem:[%s199 + $0x2c0] sm:$0xff] %v376
                %v378 = vld [vmem:[%s198 + $0xb08] sm:$0xff]
                %379 = vst [vmem:[%s199 + $0x2c8] sm:$0xff] %v378
                %v380 = vld [vmem:[%s198 + $0xb40] sm:$0xff]
                %381 = vst [vmem:[%s199 + $0x2d0] sm:$0xff] %v380
                %v382 = vld [vmem:[%s198 + $0xb48] sm:$0xff]
                %383 = vst [vmem:[%s199 + $0x2d8] sm:$0xff] %v382
                %v384 = vld [vmem:[%s198 + $0xb80] sm:$0xff]
                %385 = vst [vmem:[%s199 + $0x2e0] sm:$0xff] %v384
                %v386 = vld [vmem:[%s198 + $0xb88] sm:$0xff]
                %387 = vst [vmem:[%s199 + $0x2e8] sm:$0xff] %v386
                %v388 = vld [vmem:[%s198 + $0xbc0] sm:$0xff]
                %389 = vst [vmem:[%s199 + $0x2f0] sm:$0xff] %v388
                %v390 = vld [vmem:[%s198 + $0xbc8] sm:$0xff]
                %391 = vst [vmem:[%s199 + $0x2f8] sm:$0xff] %v390
                %v392 = vld [vmem:[%s198 + $0xc00] sm:$0xff]
                %393 = vst [vmem:[%s199 + $0x300] sm:$0xff] %v392
                %v394 = vld [vmem:[%s198 + $0xc08] sm:$0xff]
                %395 = vst [vmem:[%s199 + $0x308] sm:$0xff] %v394
                %v396 = vld [vmem:[%s198 + $0xc40] sm:$0xff]
                %397 = vst [vmem:[%s199 + $0x310] sm:$0xff] %v396
                %v398 = vld [vmem:[%s198 + $0xc48] sm:$0xff]
                %399 = vst [vmem:[%s199 + $0x318] sm:$0xff] %v398
                %v400 = vld [vmem:[%s198 + $0xc80] sm:$0xff]
                %401 = vst [vmem:[%s199 + $0x320] sm:$0xff] %v400
                %v402 = vld [vmem:[%s198 + $0xc88] sm:$0xff]
                %403 = vst [vmem:[%s199 + $0x328] sm:$0xff] %v402
                %v404 = vld [vmem:[%s198 + $0xcc0] sm:$0xff]
                %405 = vst [vmem:[%s199 + $0x330] sm:$0xff] %v404
                %v406 = vld [vmem:[%s198 + $0xcc8] sm:$0xff]
                %407 = vst [vmem:[%s199 + $0x338] sm:$0xff] %v406
                %v408 = vld [vmem:[%s198 + $0xd00] sm:$0xff]
                %409 = vst [vmem:[%s199 + $0x340] sm:$0xff] %v408
                %v410 = vld [vmem:[%s198 + $0xd08] sm:$0xff]
                %411 = vst [vmem:[%s199 + $0x348] sm:$0xff] %v410
                %v412 = vld [vmem:[%s198 + $0xd40] sm:$0xff]
                %413 = vst [vmem:[%s199 + $0x350] sm:$0xff] %v412
                %v414 = vld [vmem:[%s198 + $0xd48] sm:$0xff]
                %415 = vst [vmem:[%s199 + $0x358] sm:$0xff] %v414
                %v416 = vld [vmem:[%s198 + $0xd80] sm:$0xff]
                %417 = vst [vmem:[%s199 + $0x360] sm:$0xff] %v416
                %v418 = vld [vmem:[%s198 + $0xd88] sm:$0xff]
                %419 = vst [vmem:[%s199 + $0x368] sm:$0xff] %v418
                %v420 = vld [vmem:[%s198 + $0xdc0] sm:$0xff]
                %421 = vst [vmem:[%s199 + $0x370] sm:$0xff] %v420
                %v422 = vld [vmem:[%s198 + $0xdc8] sm:$0xff]
                %423 = vst [vmem:[%s199 + $0x378] sm:$0xff] %v422
                %v424 = vld [vmem:[%s198 + $0xe00] sm:$0xff]
                %425 = vst [vmem:[%s199 + $0x380] sm:$0xff] %v424
                %v426 = vld [vmem:[%s198 + $0xe08] sm:$0xff]
                %427 = vst [vmem:[%s199 + $0x388] sm:$0xff] %v426
                %v428 = vld [vmem:[%s198 + $0xe40] sm:$0xff]
                %429 = vst [vmem:[%s199 + $0x390] sm:$0xff] %v428
                %v430 = vld [vmem:[%s198 + $0xe48] sm:$0xff]
                %431 = vst [vmem:[%s199 + $0x398] sm:$0xff] %v430
                %v432 = vld [vmem:[%s198 + $0xe80] sm:$0xff]
                %433 = vst [vmem:[%s199 + $0x3a0] sm:$0xff] %v432
                %v434 = vld [vmem:[%s198 + $0xe88] sm:$0xff]
                %435 = vst [vmem:[%s199 + $0x3a8] sm:$0xff] %v434
                %v436 = vld [vmem:[%s198 + $0xec0] sm:$0xff]
                %437 = vst [vmem:[%s199 + $0x3b0] sm:$0xff] %v436
                %v438 = vld [vmem:[%s198 + $0xec8] sm:$0xff]
                %439 = vst [vmem:[%s199 + $0x3b8] sm:$0xff] %v438
                %v440 = vld [vmem:[%s198 + $0xf00] sm:$0xff]
                %441 = vst [vmem:[%s199 + $0x3c0] sm:$0xff] %v440
                %v442 = vld [vmem:[%s198 + $0xf08] sm:$0xff]
                %443 = vst [vmem:[%s199 + $0x3c8] sm:$0xff] %v442
                %v444 = vld [vmem:[%s198 + $0xf40] sm:$0xff]
                %445 = vst [vmem:[%s199 + $0x3d0] sm:$0xff] %v444
                %v446 = vld [vmem:[%s198 + $0xf48] sm:$0xff]
                %447 = vst [vmem:[%s199 + $0x3d8] sm:$0xff] %v446
                %v448 = vld [vmem:[%s198 + $0xf80] sm:$0xff]
                %449 = vst [vmem:[%s199 + $0x3e0] sm:$0xff] %v448
                %v450 = vld [vmem:[%s198 + $0xf88] sm:$0xff]
                %451 = vst [vmem:[%s199 + $0x3e8] sm:$0xff] %v450
                %v452 = vld [vmem:[%s198 + $0xfc0] sm:$0xff]
                %453 = vst [vmem:[%s199 + $0x3f0] sm:$0xff] %v452
                %v454 = vld [vmem:[%s198 + $0xfc8] sm:$0xff]
                %455 = vst [vmem:[%s199 + $0x3f8] sm:$0xff] %v454
                %v456 = vld [vmem:[%s198 + $0x1000] sm:$0xff]
                %457 = vst [vmem:[%s199 + $0x400] sm:$0xff] %v456
                %v458 = vld [vmem:[%s198 + $0x1008] sm:$0xff]
                %459 = vst [vmem:[%s199 + $0x408] sm:$0xff] %v458
                %v460 = vld [vmem:[%s198 + $0x1040] sm:$0xff]
                %461 = vst [vmem:[%s199 + $0x410] sm:$0xff] %v460
                %v462 = vld [vmem:[%s198 + $0x1048] sm:$0xff]
                %463 = vst [vmem:[%s199 + $0x418] sm:$0xff] %v462
                %v464 = vld [vmem:[%s198 + $0x1080] sm:$0xff]
                %465 = vst [vmem:[%s199 + $0x420] sm:$0xff] %v464
                %v466 = vld [vmem:[%s198 + $0x1088] sm:$0xff]
                %467 = vst [vmem:[%s199 + $0x428] sm:$0xff] %v466
                %v468 = vld [vmem:[%s198 + $0x10c0] sm:$0xff]
                %469 = vst [vmem:[%s199 + $0x430] sm:$0xff] %v468
                %v470 = vld [vmem:[%s198 + $0x10c8] sm:$0xff]
                %471 = vst [vmem:[%s199 + $0x438] sm:$0xff] %v470
                %v472 = vld [vmem:[%s198 + $0x1100] sm:$0xff]
                %473 = vst [vmem:[%s199 + $0x440] sm:$0xff] %v472
                %v474 = vld [vmem:[%s198 + $0x1108] sm:$0xff]
                %475 = vst [vmem:[%s199 + $0x448] sm:$0xff] %v474
                %v476 = vld [vmem:[%s198 + $0x1140] sm:$0xff]
                %477 = vst [vmem:[%s199 + $0x450] sm:$0xff] %v476
                %v478 = vld [vmem:[%s198 + $0x1148] sm:$0xff]
                %479 = vst [vmem:[%s199 + $0x458] sm:$0xff] %v478
                %v480 = vld [vmem:[%s198 + $0x1180] sm:$0xff]
                %481 = vst [vmem:[%s199 + $0x460] sm:$0xff] %v480
                %v482 = vld [vmem:[%s198 + $0x1188] sm:$0xff]
                %483 = vst [vmem:[%s199 + $0x468] sm:$0xff] %v482
                %v484 = vld [vmem:[%s198 + $0x11c0] sm:$0xff]
                %485 = vst [vmem:[%s199 + $0x470] sm:$0xff] %v484
                %v486 = vld [vmem:[%s198 + $0x11c8] sm:$0xff]
                %487 = vst [vmem:[%s199 + $0x478] sm:$0xff] %v486
                %v488 = vld [vmem:[%s198 + $0x1200] sm:$0xff]
                %489 = vst [vmem:[%s199 + $0x480] sm:$0xff] %v488
                %v490 = vld [vmem:[%s198 + $0x1208] sm:$0xff]
                %491 = vst [vmem:[%s199 + $0x488] sm:$0xff] %v490
                %v492 = vld [vmem:[%s198 + $0x1240] sm:$0xff]
                %493 = vst [vmem:[%s199 + $0x490] sm:$0xff] %v492
                %v494 = vld [vmem:[%s198 + $0x1248] sm:$0xff]
                %495 = vst [vmem:[%s199 + $0x498] sm:$0xff] %v494
                %v496 = vld [vmem:[%s198 + $0x1280] sm:$0xff]
                %497 = vst [vmem:[%s199 + $0x4a0] sm:$0xff] %v496
                %v498 = vld [vmem:[%s198 + $0x1288] sm:$0xff]
                %499 = vst [vmem:[%s199 + $0x4a8] sm:$0xff] %v498
                %v500 = vld [vmem:[%s198 + $0x12c0] sm:$0xff]
                %501 = vst [vmem:[%s199 + $0x4b0] sm:$0xff] %v500
                %v502 = vld [vmem:[%s198 + $0x12c8] sm:$0xff]
                %503 = vst [vmem:[%s199 + $0x4b8] sm:$0xff] %v502
                %v504 = vld [vmem:[%s198 + $0x1300] sm:$0xff]
                %505 = vst [vmem:[%s199 + $0x4c0] sm:$0xff] %v504
                %v506 = vld [vmem:[%s198 + $0x1308] sm:$0xff]
                %507 = vst [vmem:[%s199 + $0x4c8] sm:$0xff] %v506
                %v508 = vld [vmem:[%s198 + $0x1340] sm:$0xff]
                %509 = vst [vmem:[%s199 + $0x4d0] sm:$0xff] %v508
                %v510 = vld [vmem:[%s198 + $0x1348] sm:$0xff]
                %511 = vst [vmem:[%s199 + $0x4d8] sm:$0xff] %v510
                %v512 = vld [vmem:[%s198 + $0x1380] sm:$0xff]
                %513 = vst [vmem:[%s199 + $0x4e0] sm:$0xff] %v512
                %v514 = vld [vmem:[%s198 + $0x1388] sm:$0xff]
                %515 = vst [vmem:[%s199 + $0x4e8] sm:$0xff] %v514
                %v516 = vld [vmem:[%s198 + $0x13c0] sm:$0xff]
                %517 = vst [vmem:[%s199 + $0x4f0] sm:$0xff] %v516
                %v518 = vld [vmem:[%s198 + $0x13c8] sm:$0xff]
                %519 = vst [vmem:[%s199 + $0x4f8] sm:$0xff] %v518
                %v520 = vld [vmem:[%s198 + $0x1400] sm:$0xff]
                %521 = vst [vmem:[%s199 + $0x500] sm:$0xff] %v520
                %v522 = vld [vmem:[%s198 + $0x1408] sm:$0xff]
                %523 = vst [vmem:[%s199 + $0x508] sm:$0xff] %v522
                %v524 = vld [vmem:[%s198 + $0x1440] sm:$0xff]
                %525 = vst [vmem:[%s199 + $0x510] sm:$0xff] %v524
                %v526 = vld [vmem:[%s198 + $0x1448] sm:$0xff]
                %527 = vst [vmem:[%s199 + $0x518] sm:$0xff] %v526
                %v528 = vld [vmem:[%s198 + $0x1480] sm:$0xff]
                %529 = vst [vmem:[%s199 + $0x520] sm:$0xff] %v528
                %v530 = vld [vmem:[%s198 + $0x1488] sm:$0xff]
                %531 = vst [vmem:[%s199 + $0x528] sm:$0xff] %v530
                %v532 = vld [vmem:[%s198 + $0x14c0] sm:$0xff]
                %533 = vst [vmem:[%s199 + $0x530] sm:$0xff] %v532
                %v534 = vld [vmem:[%s198 + $0x14c8] sm:$0xff]
                %535 = vst [vmem:[%s199 + $0x538] sm:$0xff] %v534
                %v536 = vld [vmem:[%s198 + $0x1500] sm:$0xff]
                %537 = vst [vmem:[%s199 + $0x540] sm:$0xff] %v536
                %v538 = vld [vmem:[%s198 + $0x1508] sm:$0xff]
                %539 = vst [vmem:[%s199 + $0x548] sm:$0xff] %v538
                %v540 = vld [vmem:[%s198 + $0x1540] sm:$0xff]
                %541 = vst [vmem:[%s199 + $0x550] sm:$0xff] %v540
                %v542 = vld [vmem:[%s198 + $0x1548] sm:$0xff]
                %543 = vst [vmem:[%s199 + $0x558] sm:$0xff] %v542
                %v544 = vld [vmem:[%s198 + $0x1580] sm:$0xff]
                %545 = vst [vmem:[%s199 + $0x560] sm:$0xff] %v544
                %v546 = vld [vmem:[%s198 + $0x1588] sm:$0xff]
                %547 = vst [vmem:[%s199 + $0x568] sm:$0xff] %v546
                %v548 = vld [vmem:[%s198 + $0x15c0] sm:$0xff]
                %549 = vst [vmem:[%s199 + $0x570] sm:$0xff] %v548
                %v550 = vld [vmem:[%s198 + $0x15c8] sm:$0xff]
                %551 = vst [vmem:[%s199 + $0x578] sm:$0xff] %v550
                %v552 = vld [vmem:[%s198 + $0x1600] sm:$0xff]
                %553 = vst [vmem:[%s199 + $0x580] sm:$0xff] %v552
                %v554 = vld [vmem:[%s198 + $0x1608] sm:$0xff]
                %555 = vst [vmem:[%s199 + $0x588] sm:$0xff] %v554
                %v556 = vld [vmem:[%s198 + $0x1640] sm:$0xff]
                %557 = vst [vmem:[%s199 + $0x590] sm:$0xff] %v556
                %v558 = vld [vmem:[%s198 + $0x1648] sm:$0xff]
                %559 = vst [vmem:[%s199 + $0x598] sm:$0xff] %v558
                %v560 = vld [vmem:[%s198 + $0x1680] sm:$0xff]
                %561 = vst [vmem:[%s199 + $0x5a0] sm:$0xff] %v560
                %v562 = vld [vmem:[%s198 + $0x1688] sm:$0xff]
                %563 = vst [vmem:[%s199 + $0x5a8] sm:$0xff] %v562
                %v564 = vld [vmem:[%s198 + $0x16c0] sm:$0xff]
                %565 = vst [vmem:[%s199 + $0x5b0] sm:$0xff] %v564
                %v566 = vld [vmem:[%s198 + $0x16c8] sm:$0xff]
                %567 = vst [vmem:[%s199 + $0x5b8] sm:$0xff] %v566
                %v568 = vld [vmem:[%s198 + $0x1700] sm:$0xff]
                %569 = vst [vmem:[%s199 + $0x5c0] sm:$0xff] %v568
                %v570 = vld [vmem:[%s198 + $0x1708] sm:$0xff]
                %571 = vst [vmem:[%s199 + $0x5c8] sm:$0xff] %v570
                %v572 = vld [vmem:[%s198 + $0x1740] sm:$0xff]
                %573 = vst [vmem:[%s199 + $0x5d0] sm:$0xff] %v572
                %v574 = vld [vmem:[%s198 + $0x1748] sm:$0xff]
                %575 = vst [vmem:[%s199 + $0x5d8] sm:$0xff] %v574
                %v576 = vld [vmem:[%s198 + $0x1780] sm:$0xff]
                %577 = vst [vmem:[%s199 + $0x5e0] sm:$0xff] %v576
                %v578 = vld [vmem:[%s198 + $0x1788] sm:$0xff]
                %579 = vst [vmem:[%s199 + $0x5e8] sm:$0xff] %v578
                %v580 = vld [vmem:[%s198 + $0x17c0] sm:$0xff]
                %581 = vst [vmem:[%s199 + $0x5f0] sm:$0xff] %v580
                %v582 = vld [vmem:[%s198 + $0x17c8] sm:$0xff]
                %583 = vst [vmem:[%s199 + $0x5f8] sm:$0xff] %v582
                %v584 = vld [vmem:[%s198 + $0x1800] sm:$0xff]
                %585 = vst [vmem:[%s199 + $0x600] sm:$0xff] %v584
                %v586 = vld [vmem:[%s198 + $0x1808] sm:$0xff]
                %587 = vst [vmem:[%s199 + $0x608] sm:$0xff] %v586
                %v588 = vld [vmem:[%s198 + $0x1840] sm:$0xff]
                %589 = vst [vmem:[%s199 + $0x610] sm:$0xff] %v588
                %v590 = vld [vmem:[%s198 + $0x1848] sm:$0xff]
                %591 = vst [vmem:[%s199 + $0x618] sm:$0xff] %v590
                %v592 = vld [vmem:[%s198 + $0x1880] sm:$0xff]
                %593 = vst [vmem:[%s199 + $0x620] sm:$0xff] %v592
                %v594 = vld [vmem:[%s198 + $0x1888] sm:$0xff]
                %595 = vst [vmem:[%s199 + $0x628] sm:$0xff] %v594
                %v596 = vld [vmem:[%s198 + $0x18c0] sm:$0xff]
                %597 = vst [vmem:[%s199 + $0x630] sm:$0xff] %v596
                %v598 = vld [vmem:[%s198 + $0x18c8] sm:$0xff]
                %599 = vst [vmem:[%s199 + $0x638] sm:$0xff] %v598
                %v600 = vld [vmem:[%s198 + $0x1900] sm:$0xff]
                %601 = vst [vmem:[%s199 + $0x640] sm:$0xff] %v600
                %v602 = vld [vmem:[%s198 + $0x1908] sm:$0xff]
                %603 = vst [vmem:[%s199 + $0x648] sm:$0xff] %v602
                %v604 = vld [vmem:[%s198 + $0x1940] sm:$0xff]
                %605 = vst [vmem:[%s199 + $0x650] sm:$0xff] %v604
                %v606 = vld [vmem:[%s198 + $0x1948] sm:$0xff]
                %607 = vst [vmem:[%s199 + $0x658] sm:$0xff] %v606
                %v608 = vld [vmem:[%s198 + $0x1980] sm:$0xff]
                %609 = vst [vmem:[%s199 + $0x660] sm:$0xff] %v608
                %v610 = vld [vmem:[%s198 + $0x1988] sm:$0xff]
                %611 = vst [vmem:[%s199 + $0x668] sm:$0xff] %v610
                %v612 = vld [vmem:[%s198 + $0x19c0] sm:$0xff]
                %613 = vst [vmem:[%s199 + $0x670] sm:$0xff] %v612
                %v614 = vld [vmem:[%s198 + $0x19c8] sm:$0xff]
                %615 = vst [vmem:[%s199 + $0x678] sm:$0xff] %v614
                %v616 = vld [vmem:[%s198 + $0x1a00] sm:$0xff]
                %617 = vst [vmem:[%s199 + $0x680] sm:$0xff] %v616
                %v618 = vld [vmem:[%s198 + $0x1a08] sm:$0xff]
                %619 = vst [vmem:[%s199 + $0x688] sm:$0xff] %v618
                %v620 = vld [vmem:[%s198 + $0x1a40] sm:$0xff]
                %621 = vst [vmem:[%s199 + $0x690] sm:$0xff] %v620
                %v622 = vld [vmem:[%s198 + $0x1a48] sm:$0xff]
                %623 = vst [vmem:[%s199 + $0x698] sm:$0xff] %v622
                %v624 = vld [vmem:[%s198 + $0x1a80] sm:$0xff]
                %625 = vst [vmem:[%s199 + $0x6a0] sm:$0xff] %v624
                %v626 = vld [vmem:[%s198 + $0x1a88] sm:$0xff]
                %627 = vst [vmem:[%s199 + $0x6a8] sm:$0xff] %v626
                %v628 = vld [vmem:[%s198 + $0x1ac0] sm:$0xff]
                %629 = vst [vmem:[%s199 + $0x6b0] sm:$0xff] %v628
                %v630 = vld [vmem:[%s198 + $0x1ac8] sm:$0xff]
                %631 = vst [vmem:[%s199 + $0x6b8] sm:$0xff] %v630
                %v632 = vld [vmem:[%s198 + $0x1b00] sm:$0xff]
                %633 = vst [vmem:[%s199 + $0x6c0] sm:$0xff] %v632
                %v634 = vld [vmem:[%s198 + $0x1b08] sm:$0xff]
                %635 = vst [vmem:[%s199 + $0x6c8] sm:$0xff] %v634
                %v636 = vld [vmem:[%s198 + $0x1b40] sm:$0xff]
                %637 = vst [vmem:[%s199 + $0x6d0] sm:$0xff] %v636
                %v638 = vld [vmem:[%s198 + $0x1b48] sm:$0xff]
                %639 = vst [vmem:[%s199 + $0x6d8] sm:$0xff] %v638
                %v640 = vld [vmem:[%s198 + $0x1b80] sm:$0xff]
                %641 = vst [vmem:[%s199 + $0x6e0] sm:$0xff] %v640
                %v642 = vld [vmem:[%s198 + $0x1b88] sm:$0xff]
                %643 = vst [vmem:[%s199 + $0x6e8] sm:$0xff] %v642
                %v644 = vld [vmem:[%s198 + $0x1bc0] sm:$0xff]
                %645 = vst [vmem:[%s199 + $0x6f0] sm:$0xff] %v644
                %v646 = vld [vmem:[%s198 + $0x1bc8] sm:$0xff]
                %647 = vst [vmem:[%s199 + $0x6f8] sm:$0xff] %v646
                %v648 = vld [vmem:[%s198 + $0x1c00] sm:$0xff]
                %649 = vst [vmem:[%s199 + $0x700] sm:$0xff] %v648
                %v650 = vld [vmem:[%s198 + $0x1c08] sm:$0xff]
                %651 = vst [vmem:[%s199 + $0x708] sm:$0xff] %v650
                %v652 = vld [vmem:[%s198 + $0x1c40] sm:$0xff]
                %653 = vst [vmem:[%s199 + $0x710] sm:$0xff] %v652
                %v654 = vld [vmem:[%s198 + $0x1c48] sm:$0xff]
                %655 = vst [vmem:[%s199 + $0x718] sm:$0xff] %v654
                %v656 = vld [vmem:[%s198 + $0x1c80] sm:$0xff]
                %657 = vst [vmem:[%s199 + $0x720] sm:$0xff] %v656
                %v658 = vld [vmem:[%s198 + $0x1c88] sm:$0xff]
                %659 = vst [vmem:[%s199 + $0x728] sm:$0xff] %v658
                %v660 = vld [vmem:[%s198 + $0x1cc0] sm:$0xff]
                %661 = vst [vmem:[%s199 + $0x730] sm:$0xff] %v660
                %v662 = vld [vmem:[%s198 + $0x1cc8] sm:$0xff]
                %663 = vst [vmem:[%s199 + $0x738] sm:$0xff] %v662
                %v664 = vld [vmem:[%s198 + $0x1d00] sm:$0xff]
                %665 = vst [vmem:[%s199 + $0x740] sm:$0xff] %v664
                %v666 = vld [vmem:[%s198 + $0x1d08] sm:$0xff]
                %667 = vst [vmem:[%s199 + $0x748] sm:$0xff] %v666
                %v668 = vld [vmem:[%s198 + $0x1d40] sm:$0xff]
                %669 = vst [vmem:[%s199 + $0x750] sm:$0xff] %v668
                %v670 = vld [vmem:[%s198 + $0x1d48] sm:$0xff]
                %671 = vst [vmem:[%s199 + $0x758] sm:$0xff] %v670
                %v672 = vld [vmem:[%s198 + $0x1d80] sm:$0xff]
                %673 = vst [vmem:[%s199 + $0x760] sm:$0xff] %v672
                %v674 = vld [vmem:[%s198 + $0x1d88] sm:$0xff]
                %675 = vst [vmem:[%s199 + $0x768] sm:$0xff] %v674
                %v676 = vld [vmem:[%s198 + $0x1dc0] sm:$0xff]
                %677 = vst [vmem:[%s199 + $0x770] sm:$0xff] %v676
                %v678 = vld [vmem:[%s198 + $0x1dc8] sm:$0xff]
                %679 = vst [vmem:[%s199 + $0x778] sm:$0xff] %v678
                %v680 = vld [vmem:[%s198 + $0x1e00] sm:$0xff]
                %681 = vst [vmem:[%s199 + $0x780] sm:$0xff] %v680
                %v682 = vld [vmem:[%s198 + $0x1e08] sm:$0xff]
                %683 = vst [vmem:[%s199 + $0x788] sm:$0xff] %v682
                %v684 = vld [vmem:[%s198 + $0x1e40] sm:$0xff]
                %685 = vst [vmem:[%s199 + $0x790] sm:$0xff] %v684
                %v686 = vld [vmem:[%s198 + $0x1e48] sm:$0xff]
                %687 = vst [vmem:[%s199 + $0x798] sm:$0xff] %v686
                %v688 = vld [vmem:[%s198 + $0x1e80] sm:$0xff]
                %689 = vst [vmem:[%s199 + $0x7a0] sm:$0xff] %v688
                %v690 = vld [vmem:[%s198 + $0x1e88] sm:$0xff]
                %691 = vst [vmem:[%s199 + $0x7a8] sm:$0xff] %v690
                %v692 = vld [vmem:[%s198 + $0x1ec0] sm:$0xff]
                %693 = vst [vmem:[%s199 + $0x7b0] sm:$0xff] %v692
                %v694 = vld [vmem:[%s198 + $0x1ec8] sm:$0xff]
                %695 = vst [vmem:[%s199 + $0x7b8] sm:$0xff] %v694
                %v696 = vld [vmem:[%s198 + $0x1f00] sm:$0xff]
                %697 = vst [vmem:[%s199 + $0x7c0] sm:$0xff] %v696
                %v698 = vld [vmem:[%s198 + $0x1f08] sm:$0xff]
                %699 = vst [vmem:[%s199 + $0x7c8] sm:$0xff] %v698
                %v700 = vld [vmem:[%s198 + $0x1f40] sm:$0xff]
                %701 = vst [vmem:[%s199 + $0x7d0] sm:$0xff] %v700
                %v702 = vld [vmem:[%s198 + $0x1f48] sm:$0xff]
                %703 = vst [vmem:[%s199 + $0x7d8] sm:$0xff] %v702
                %v704 = vld [vmem:[%s198 + $0x1f80] sm:$0xff]
                %705 = vst [vmem:[%s199 + $0x7e0] sm:$0xff] %v704
                %v706 = vld [vmem:[%s198 + $0x1f88] sm:$0xff]
                %707 = vst [vmem:[%s199 + $0x7e8] sm:$0xff] %v706
                %v708 = vld [vmem:[%s198 + $0x1fc0] sm:$0xff]
                %709 = vst [vmem:[%s199 + $0x7f0] sm:$0xff] %v708
                %v710 = vld [vmem:[%s198 + $0x1fc8] sm:$0xff]
                %711 = vst [vmem:[%s199 + $0x7f8] sm:$0xff] %v710
                %v712 = vld [vmem:[%s198 + $0x2000] sm:$0xff]
                %713 = vst [vmem:[%s199 + $0x800] sm:$0xff] %v712
                %v714 = vld [vmem:[%s198 + $0x2008] sm:$0xff]
                %715 = vst [vmem:[%s199 + $0x808] sm:$0xff] %v714
                %v716 = vld [vmem:[%s198 + $0x2040] sm:$0xff]
                %717 = vst [vmem:[%s199 + $0x810] sm:$0xff] %v716
                %v718 = vld [vmem:[%s198 + $0x2048] sm:$0xff]
                %719 = vst [vmem:[%s199 + $0x818] sm:$0xff] %v718
                %v720 = vld [vmem:[%s198 + $0x2080] sm:$0xff]
                %721 = vst [vmem:[%s199 + $0x820] sm:$0xff] %v720
                %v722 = vld [vmem:[%s198 + $0x2088] sm:$0xff]
                %723 = vst [vmem:[%s199 + $0x828] sm:$0xff] %v722
                %v724 = vld [vmem:[%s198 + $0x20c0] sm:$0xff]
                %725 = vst [vmem:[%s199 + $0x830] sm:$0xff] %v724
                %v726 = vld [vmem:[%s198 + $0x20c8] sm:$0xff]
                %727 = vst [vmem:[%s199 + $0x838] sm:$0xff] %v726
                %v728 = vld [vmem:[%s198 + $0x2100] sm:$0xff]
                %729 = vst [vmem:[%s199 + $0x840] sm:$0xff] %v728
                %v730 = vld [vmem:[%s198 + $0x2108] sm:$0xff]
                %731 = vst [vmem:[%s199 + $0x848] sm:$0xff] %v730
                %v732 = vld [vmem:[%s198 + $0x2140] sm:$0xff]
                %733 = vst [vmem:[%s199 + $0x850] sm:$0xff] %v732
                %v734 = vld [vmem:[%s198 + $0x2148] sm:$0xff]
                %735 = vst [vmem:[%s199 + $0x858] sm:$0xff] %v734
                %v736 = vld [vmem:[%s198 + $0x2180] sm:$0xff]
                %737 = vst [vmem:[%s199 + $0x860] sm:$0xff] %v736
                %v738 = vld [vmem:[%s198 + $0x2188] sm:$0xff]
                %739 = vst [vmem:[%s199 + $0x868] sm:$0xff] %v738
                %v740 = vld [vmem:[%s198 + $0x21c0] sm:$0xff]
                %741 = vst [vmem:[%s199 + $0x870] sm:$0xff] %v740
                %v742 = vld [vmem:[%s198 + $0x21c8] sm:$0xff]
                %743 = vst [vmem:[%s199 + $0x878] sm:$0xff] %v742
                %v744 = vld [vmem:[%s198 + $0x2200] sm:$0xff]
                %745 = vst [vmem:[%s199 + $0x880] sm:$0xff] %v744
                %v746 = vld [vmem:[%s198 + $0x2208] sm:$0xff]
                %747 = vst [vmem:[%s199 + $0x888] sm:$0xff] %v746
                %v748 = vld [vmem:[%s198 + $0x2240] sm:$0xff]
                %749 = vst [vmem:[%s199 + $0x890] sm:$0xff] %v748
                %v750 = vld [vmem:[%s198 + $0x2248] sm:$0xff]
                %751 = vst [vmem:[%s199 + $0x898] sm:$0xff] %v750
                %v752 = vld [vmem:[%s198 + $0x2280] sm:$0xff]
                %753 = vst [vmem:[%s199 + $0x8a0] sm:$0xff] %v752
                %v754 = vld [vmem:[%s198 + $0x2288] sm:$0xff]
                %755 = vst [vmem:[%s199 + $0x8a8] sm:$0xff] %v754
                %v756 = vld [vmem:[%s198 + $0x22c0] sm:$0xff]
                %757 = vst [vmem:[%s199 + $0x8b0] sm:$0xff] %v756
                %v758 = vld [vmem:[%s198 + $0x22c8] sm:$0xff]
                %759 = vst [vmem:[%s199 + $0x8b8] sm:$0xff] %v758
                %v760 = vld [vmem:[%s198 + $0x2300] sm:$0xff]
                %761 = vst [vmem:[%s199 + $0x8c0] sm:$0xff] %v760
                %v762 = vld [vmem:[%s198 + $0x2308] sm:$0xff]
                %763 = vst [vmem:[%s199 + $0x8c8] sm:$0xff] %v762
                %v764 = vld [vmem:[%s198 + $0x2340] sm:$0xff]
                %765 = vst [vmem:[%s199 + $0x8d0] sm:$0xff] %v764
                %v766 = vld [vmem:[%s198 + $0x2348] sm:$0xff]
                %767 = vst [vmem:[%s199 + $0x8d8] sm:$0xff] %v766
                %v768 = vld [vmem:[%s198 + $0x2380] sm:$0xff]
                %769 = vst [vmem:[%s199 + $0x8e0] sm:$0xff] %v768
                %v770 = vld [vmem:[%s198 + $0x2388] sm:$0xff]
                %771 = vst [vmem:[%s199 + $0x8e8] sm:$0xff] %v770
                %v772 = vld [vmem:[%s198 + $0x23c0] sm:$0xff]
                %773 = vst [vmem:[%s199 + $0x8f0] sm:$0xff] %v772
                %v774 = vld [vmem:[%s198 + $0x23c8] sm:$0xff]
                %775 = vst [vmem:[%s199 + $0x8f8] sm:$0xff] %v774
                %v776 = vld [vmem:[%s198 + $0x2400] sm:$0xff]
                %777 = vst [vmem:[%s199 + $0x900] sm:$0xff] %v776
                %v778 = vld [vmem:[%s198 + $0x2408] sm:$0xff]
                %779 = vst [vmem:[%s199 + $0x908] sm:$0xff] %v778
                %v780 = vld [vmem:[%s198 + $0x2440] sm:$0xff]
                %781 = vst [vmem:[%s199 + $0x910] sm:$0xff] %v780
                %v782 = vld [vmem:[%s198 + $0x2448] sm:$0xff]
                %783 = vst [vmem:[%s199 + $0x918] sm:$0xff] %v782
                %v784 = vld [vmem:[%s198 + $0x2480] sm:$0xff]
                %785 = vst [vmem:[%s199 + $0x920] sm:$0xff] %v784
                %v786 = vld [vmem:[%s198 + $0x2488] sm:$0xff]
                %787 = vst [vmem:[%s199 + $0x928] sm:$0xff] %v786
                %v788 = vld [vmem:[%s198 + $0x24c0] sm:$0xff]
                %789 = vst [vmem:[%s199 + $0x930] sm:$0xff] %v788
                %v790 = vld [vmem:[%s198 + $0x24c8] sm:$0xff]
                %791 = vst [vmem:[%s199 + $0x938] sm:$0xff] %v790
                %v792 = vld [vmem:[%s198 + $0x2500] sm:$0xff]
                %793 = vst [vmem:[%s199 + $0x940] sm:$0xff] %v792
                %v794 = vld [vmem:[%s198 + $0x2508] sm:$0xff]
                %795 = vst [vmem:[%s199 + $0x948] sm:$0xff] %v794
                %v796 = vld [vmem:[%s198 + $0x2540] sm:$0xff]
                %797 = vst [vmem:[%s199 + $0x950] sm:$0xff] %v796
                %v798 = vld [vmem:[%s198 + $0x2548] sm:$0xff]
                %799 = vst [vmem:[%s199 + $0x958] sm:$0xff] %v798
                %v800 = vld [vmem:[%s198 + $0x2580] sm:$0xff]
                %801 = vst [vmem:[%s199 + $0x960] sm:$0xff] %v800
                %v802 = vld [vmem:[%s198 + $0x2588] sm:$0xff]
                %803 = vst [vmem:[%s199 + $0x968] sm:$0xff] %v802
                %v804 = vld [vmem:[%s198 + $0x25c0] sm:$0xff]
                %805 = vst [vmem:[%s199 + $0x970] sm:$0xff] %v804
                %v806 = vld [vmem:[%s198 + $0x25c8] sm:$0xff]
                %807 = vst [vmem:[%s199 + $0x978] sm:$0xff] %v806
                %v808 = vld [vmem:[%s198 + $0x2600] sm:$0xff]
                %809 = vst [vmem:[%s199 + $0x980] sm:$0xff] %v808
                %v810 = vld [vmem:[%s198 + $0x2608] sm:$0xff]
                %811 = vst [vmem:[%s199 + $0x988] sm:$0xff] %v810
                %v812 = vld [vmem:[%s198 + $0x2640] sm:$0xff]
                %813 = vst [vmem:[%s199 + $0x990] sm:$0xff] %v812
                %v814 = vld [vmem:[%s198 + $0x2648] sm:$0xff]
                %815 = vst [vmem:[%s199 + $0x998] sm:$0xff] %v814
                %v816 = vld [vmem:[%s198 + $0x2680] sm:$0xff]
                %817 = vst [vmem:[%s199 + $0x9a0] sm:$0xff] %v816
                %v818 = vld [vmem:[%s198 + $0x2688] sm:$0xff]
                %819 = vst [vmem:[%s199 + $0x9a8] sm:$0xff] %v818
                %v820 = vld [vmem:[%s198 + $0x26c0] sm:$0xff]
                %821 = vst [vmem:[%s199 + $0x9b0] sm:$0xff] %v820
                %v822 = vld [vmem:[%s198 + $0x26c8] sm:$0xff]
                %823 = vst [vmem:[%s199 + $0x9b8] sm:$0xff] %v822
                %v824 = vld [vmem:[%s198 + $0x2700] sm:$0xff]
                %825 = vst [vmem:[%s199 + $0x9c0] sm:$0xff] %v824
                %v826 = vld [vmem:[%s198 + $0x2708] sm:$0xff]
                %827 = vst [vmem:[%s199 + $0x9c8] sm:$0xff] %v826
                %v828 = vld [vmem:[%s198 + $0x2740] sm:$0xff]
                %829 = vst [vmem:[%s199 + $0x9d0] sm:$0xff] %v828
                %v830 = vld [vmem:[%s198 + $0x2748] sm:$0xff]
                %831 = vst [vmem:[%s199 + $0x9d8] sm:$0xff] %v830
                %v832 = vld [vmem:[%s198 + $0x2780] sm:$0xff]
                %833 = vst [vmem:[%s199 + $0x9e0] sm:$0xff] %v832
                %v834 = vld [vmem:[%s198 + $0x2788] sm:$0xff]
                %835 = vst [vmem:[%s199 + $0x9e8] sm:$0xff] %v834
                %v836 = vld [vmem:[%s198 + $0x27c0] sm:$0xff]
                %837 = vst [vmem:[%s199 + $0x9f0] sm:$0xff] %v836
                %v838 = vld [vmem:[%s198 + $0x27c8] sm:$0xff]
                %839 = vst [vmem:[%s199 + $0x9f8] sm:$0xff] %v838
                %v840 = vld [vmem:[%s198 + $0x2800] sm:$0xff]
                %841 = vst [vmem:[%s199 + $0xa00] sm:$0xff] %v840
                %v842 = vld [vmem:[%s198 + $0x2808] sm:$0xff]
                %843 = vst [vmem:[%s199 + $0xa08] sm:$0xff] %v842
                %v844 = vld [vmem:[%s198 + $0x2840] sm:$0xff]
                %845 = vst [vmem:[%s199 + $0xa10] sm:$0xff] %v844
                %v846 = vld [vmem:[%s198 + $0x2848] sm:$0xff]
                %847 = vst [vmem:[%s199 + $0xa18] sm:$0xff] %v846
                %v848 = vld [vmem:[%s198 + $0x2880] sm:$0xff]
                %849 = vst [vmem:[%s199 + $0xa20] sm:$0xff] %v848
                %v850 = vld [vmem:[%s198 + $0x2888] sm:$0xff]
                %851 = vst [vmem:[%s199 + $0xa28] sm:$0xff] %v850
                %v852 = vld [vmem:[%s198 + $0x28c0] sm:$0xff]
                %853 = vst [vmem:[%s199 + $0xa30] sm:$0xff] %v852
                %v854 = vld [vmem:[%s198 + $0x28c8] sm:$0xff]
                %855 = vst [vmem:[%s199 + $0xa38] sm:$0xff] %v854
                %v856 = vld [vmem:[%s198 + $0x2900] sm:$0xff]
                %857 = vst [vmem:[%s199 + $0xa40] sm:$0xff] %v856
                %v858 = vld [vmem:[%s198 + $0x2908] sm:$0xff]
                %859 = vst [vmem:[%s199 + $0xa48] sm:$0xff] %v858
                %v860 = vld [vmem:[%s198 + $0x2940] sm:$0xff]
                %861 = vst [vmem:[%s199 + $0xa50] sm:$0xff] %v860
                %v862 = vld [vmem:[%s198 + $0x2948] sm:$0xff]
                %863 = vst [vmem:[%s199 + $0xa58] sm:$0xff] %v862
                %v864 = vld [vmem:[%s198 + $0x2980] sm:$0xff]
                %865 = vst [vmem:[%s199 + $0xa60] sm:$0xff] %v864
                %v866 = vld [vmem:[%s198 + $0x2988] sm:$0xff]
                %867 = vst [vmem:[%s199 + $0xa68] sm:$0xff] %v866
                %v868 = vld [vmem:[%s198 + $0x29c0] sm:$0xff]
                %869 = vst [vmem:[%s199 + $0xa70] sm:$0xff] %v868
                %v870 = vld [vmem:[%s198 + $0x29c8] sm:$0xff]
                %871 = vst [vmem:[%s199 + $0xa78] sm:$0xff] %v870
                %v872 = vld [vmem:[%s198 + $0x2a00] sm:$0xff]
                %873 = vst [vmem:[%s199 + $0xa80] sm:$0xff] %v872
                %v874 = vld [vmem:[%s198 + $0x2a08] sm:$0xff]
                %875 = vst [vmem:[%s199 + $0xa88] sm:$0xff] %v874
                %v876 = vld [vmem:[%s198 + $0x2a40] sm:$0xff]
                %877 = vst [vmem:[%s199 + $0xa90] sm:$0xff] %v876
                %v878 = vld [vmem:[%s198 + $0x2a48] sm:$0xff]
                %879 = vst [vmem:[%s199 + $0xa98] sm:$0xff] %v878
                %v880 = vld [vmem:[%s198 + $0x2a80] sm:$0xff]
                %881 = vst [vmem:[%s199 + $0xaa0] sm:$0xff] %v880
                %v882 = vld [vmem:[%s198 + $0x2a88] sm:$0xff]
                %883 = vst [vmem:[%s199 + $0xaa8] sm:$0xff] %v882
                %v884 = vld [vmem:[%s198 + $0x2ac0] sm:$0xff]
                %885 = vst [vmem:[%s199 + $0xab0] sm:$0xff] %v884
                %v886 = vld [vmem:[%s198 + $0x2ac8] sm:$0xff]
                %887 = vst [vmem:[%s199 + $0xab8] sm:$0xff] %v886
                %v888 = vld [vmem:[%s198 + $0x2b00] sm:$0xff]
                %889 = vst [vmem:[%s199 + $0xac0] sm:$0xff] %v888
                %v890 = vld [vmem:[%s198 + $0x2b08] sm:$0xff]
                %891 = vst [vmem:[%s199 + $0xac8] sm:$0xff] %v890
                %v892 = vld [vmem:[%s198 + $0x2b40] sm:$0xff]
                %893 = vst [vmem:[%s199 + $0xad0] sm:$0xff] %v892
                %v894 = vld [vmem:[%s198 + $0x2b48] sm:$0xff]
                %895 = vst [vmem:[%s199 + $0xad8] sm:$0xff] %v894
                %v896 = vld [vmem:[%s198 + $0x2b80] sm:$0xff]
                %897 = vst [vmem:[%s199 + $0xae0] sm:$0xff] %v896
                %v898 = vld [vmem:[%s198 + $0x2b88] sm:$0xff]
                %899 = vst [vmem:[%s199 + $0xae8] sm:$0xff] %v898
                %v900 = vld [vmem:[%s198 + $0x2bc0] sm:$0xff]
                %901 = vst [vmem:[%s199 + $0xaf0] sm:$0xff] %v900
                %v902 = vld [vmem:[%s198 + $0x2bc8] sm:$0xff]
                %903 = vst [vmem:[%s199 + $0xaf8] sm:$0xff] %v902
                %v904 = vld [vmem:[%s198 + $0x2c00] sm:$0xff]
                %905 = vst [vmem:[%s199 + $0xb00] sm:$0xff] %v904
                %v906 = vld [vmem:[%s198 + $0x2c08] sm:$0xff]
                %907 = vst [vmem:[%s199 + $0xb08] sm:$0xff] %v906
                %v908 = vld [vmem:[%s198 + $0x2c40] sm:$0xff]
                %909 = vst [vmem:[%s199 + $0xb10] sm:$0xff] %v908
                %v910 = vld [vmem:[%s198 + $0x2c48] sm:$0xff]
                %911 = vst [vmem:[%s199 + $0xb18] sm:$0xff] %v910
                %v912 = vld [vmem:[%s198 + $0x2c80] sm:$0xff]
                %913 = vst [vmem:[%s199 + $0xb20] sm:$0xff] %v912
                %v914 = vld [vmem:[%s198 + $0x2c88] sm:$0xff]
                %915 = vst [vmem:[%s199 + $0xb28] sm:$0xff] %v914
                %v916 = vld [vmem:[%s198 + $0x2cc0] sm:$0xff]
                %917 = vst [vmem:[%s199 + $0xb30] sm:$0xff] %v916
                %v918 = vld [vmem:[%s198 + $0x2cc8] sm:$0xff]
                %919 = vst [vmem:[%s199 + $0xb38] sm:$0xff] %v918
                %v920 = vld [vmem:[%s198 + $0x2d00] sm:$0xff]
                %921 = vst [vmem:[%s199 + $0xb40] sm:$0xff] %v920
                %v922 = vld [vmem:[%s198 + $0x2d08] sm:$0xff]
                %923 = vst [vmem:[%s199 + $0xb48] sm:$0xff] %v922
                %v924 = vld [vmem:[%s198 + $0x2d40] sm:$0xff]
                %925 = vst [vmem:[%s199 + $0xb50] sm:$0xff] %v924
                %v926 = vld [vmem:[%s198 + $0x2d48] sm:$0xff]
                %927 = vst [vmem:[%s199 + $0xb58] sm:$0xff] %v926
                %v928 = vld [vmem:[%s198 + $0x2d80] sm:$0xff]
                %929 = vst [vmem:[%s199 + $0xb60] sm:$0xff] %v928
                %v930 = vld [vmem:[%s198 + $0x2d88] sm:$0xff]
                %931 = vst [vmem:[%s199 + $0xb68] sm:$0xff] %v930
                %v932 = vld [vmem:[%s198 + $0x2dc0] sm:$0xff]
                %933 = vst [vmem:[%s199 + $0xb70] sm:$0xff] %v932
                %v934 = vld [vmem:[%s198 + $0x2dc8] sm:$0xff]
                %935 = vst [vmem:[%s199 + $0xb78] sm:$0xff] %v934
                %v936 = vld [vmem:[%s198 + $0x2e00] sm:$0xff]
                %937 = vst [vmem:[%s199 + $0xb80] sm:$0xff] %v936
                %v938 = vld [vmem:[%s198 + $0x2e08] sm:$0xff]
                %939 = vst [vmem:[%s199 + $0xb88] sm:$0xff] %v938
                %v940 = vld [vmem:[%s198 + $0x2e40] sm:$0xff]
                %941 = vst [vmem:[%s199 + $0xb90] sm:$0xff] %v940
                %v942 = vld [vmem:[%s198 + $0x2e48] sm:$0xff]
                %943 = vst [vmem:[%s199 + $0xb98] sm:$0xff] %v942
                %v944 = vld [vmem:[%s198 + $0x2e80] sm:$0xff]
                %945 = vst [vmem:[%s199 + $0xba0] sm:$0xff] %v944
                %v946 = vld [vmem:[%s198 + $0x2e88] sm:$0xff]
                %947 = vst [vmem:[%s199 + $0xba8] sm:$0xff] %v946
                %v948 = vld [vmem:[%s198 + $0x2ec0] sm:$0xff]
                %949 = vst [vmem:[%s199 + $0xbb0] sm:$0xff] %v948
                %v950 = vld [vmem:[%s198 + $0x2ec8] sm:$0xff]
                %951 = vst [vmem:[%s199 + $0xbb8] sm:$0xff] %v950
                %v952 = vld [vmem:[%s198 + $0x2f00] sm:$0xff]
                %953 = vst [vmem:[%s199 + $0xbc0] sm:$0xff] %v952
                %v954 = vld [vmem:[%s198 + $0x2f08] sm:$0xff]
                %955 = vst [vmem:[%s199 + $0xbc8] sm:$0xff] %v954
                %v956 = vld [vmem:[%s198 + $0x2f40] sm:$0xff]
                %957 = vst [vmem:[%s199 + $0xbd0] sm:$0xff] %v956
                %v958 = vld [vmem:[%s198 + $0x2f48] sm:$0xff]
                %959 = vst [vmem:[%s199 + $0xbd8] sm:$0xff] %v958
                %v960 = vld [vmem:[%s198 + $0x2f80] sm:$0xff]
                %961 = vst [vmem:[%s199 + $0xbe0] sm:$0xff] %v960
                %v962 = vld [vmem:[%s198 + $0x2f88] sm:$0xff]
                %963 = vst [vmem:[%s199 + $0xbe8] sm:$0xff] %v962
                %v964 = vld [vmem:[%s198 + $0x2fc0] sm:$0xff]
                %965 = vst [vmem:[%s199 + $0xbf0] sm:$0xff] %v964
                %v966 = vld [vmem:[%s198 + $0x2fc8] sm:$0xff]
                %967 = vst [vmem:[%s199 + $0xbf8] sm:$0xff] %v966
                %v968 = vld [vmem:[%s198 + $0x3000] sm:$0xff]
                %969 = vst [vmem:[%s199 + $0xc00] sm:$0xff] %v968
                %v970 = vld [vmem:[%s198 + $0x3008] sm:$0xff]
                %971 = vst [vmem:[%s199 + $0xc08] sm:$0xff] %v970
                %v972 = vld [vmem:[%s198 + $0x3040] sm:$0xff]
                %973 = vst [vmem:[%s199 + $0xc10] sm:$0xff] %v972
                %v974 = vld [vmem:[%s198 + $0x3048] sm:$0xff]
                %975 = vst [vmem:[%s199 + $0xc18] sm:$0xff] %v974
                %v976 = vld [vmem:[%s198 + $0x3080] sm:$0xff]
                %977 = vst [vmem:[%s199 + $0xc20] sm:$0xff] %v976
                %v978 = vld [vmem:[%s198 + $0x3088] sm:$0xff]
                %979 = vst [vmem:[%s199 + $0xc28] sm:$0xff] %v978
                %v980 = vld [vmem:[%s198 + $0x30c0] sm:$0xff]
                %981 = vst [vmem:[%s199 + $0xc30] sm:$0xff] %v980
                %v982 = vld [vmem:[%s198 + $0x30c8] sm:$0xff]
                %983 = vst [vmem:[%s199 + $0xc38] sm:$0xff] %v982
                %v984 = vld [vmem:[%s198 + $0x3100] sm:$0xff]
                %985 = vst [vmem:[%s199 + $0xc40] sm:$0xff] %v984
                %v986 = vld [vmem:[%s198 + $0x3108] sm:$0xff]
                %987 = vst [vmem:[%s199 + $0xc48] sm:$0xff] %v986
                %v988 = vld [vmem:[%s198 + $0x3140] sm:$0xff]
                %989 = vst [vmem:[%s199 + $0xc50] sm:$0xff] %v988
                %v990 = vld [vmem:[%s198 + $0x3148] sm:$0xff]
                %991 = vst [vmem:[%s199 + $0xc58] sm:$0xff] %v990
                %v992 = vld [vmem:[%s198 + $0x3180] sm:$0xff]
                %993 = vst [vmem:[%s199 + $0xc60] sm:$0xff] %v992
                %v994 = vld [vmem:[%s198 + $0x3188] sm:$0xff]
                %995 = vst [vmem:[%s199 + $0xc68] sm:$0xff] %v994
                %v996 = vld [vmem:[%s198 + $0x31c0] sm:$0xff]
                %997 = vst [vmem:[%s199 + $0xc70] sm:$0xff] %v996
                %v998 = vld [vmem:[%s198 + $0x31c8] sm:$0xff]
                %999 = vst [vmem:[%s199 + $0xc78] sm:$0xff] %v998
                %v1000 = vld [vmem:[%s198 + $0x3200] sm:$0xff]
                %1001 = vst [vmem:[%s199 + $0xc80] sm:$0xff] %v1000
                %v1002 = vld [vmem:[%s198 + $0x3208] sm:$0xff]
                %1003 = vst [vmem:[%s199 + $0xc88] sm:$0xff] %v1002
                %v1004 = vld [vmem:[%s198 + $0x3240] sm:$0xff]
                %1005 = vst [vmem:[%s199 + $0xc90] sm:$0xff] %v1004
                %v1006 = vld [vmem:[%s198 + $0x3248] sm:$0xff]
                %1007 = vst [vmem:[%s199 + $0xc98] sm:$0xff] %v1006
                %v1008 = vld [vmem:[%s198 + $0x3280] sm:$0xff]
                %1009 = vst [vmem:[%s199 + $0xca0] sm:$0xff] %v1008
                %v1010 = vld [vmem:[%s198 + $0x3288] sm:$0xff]
                %1011 = vst [vmem:[%s199 + $0xca8] sm:$0xff] %v1010
                %v1012 = vld [vmem:[%s198 + $0x32c0] sm:$0xff]
                %1013 = vst [vmem:[%s199 + $0xcb0] sm:$0xff] %v1012
                %v1014 = vld [vmem:[%s198 + $0x32c8] sm:$0xff]
                %1015 = vst [vmem:[%s199 + $0xcb8] sm:$0xff] %v1014
                %v1016 = vld [vmem:[%s198 + $0x3300] sm:$0xff]
                %1017 = vst [vmem:[%s199 + $0xcc0] sm:$0xff] %v1016
                %v1018 = vld [vmem:[%s198 + $0x3308] sm:$0xff]
                %1019 = vst [vmem:[%s199 + $0xcc8] sm:$0xff] %v1018
                %v1020 = vld [vmem:[%s198 + $0x3340] sm:$0xff]
                %1021 = vst [vmem:[%s199 + $0xcd0] sm:$0xff] %v1020
                %v1022 = vld [vmem:[%s198 + $0x3348] sm:$0xff]
                %1023 = vst [vmem:[%s199 + $0xcd8] sm:$0xff] %v1022
                %v1024 = vld [vmem:[%s198 + $0x3380] sm:$0xff]
                %1025 = vst [vmem:[%s199 + $0xce0] sm:$0xff] %v1024
                %v1026 = vld [vmem:[%s198 + $0x3388] sm:$0xff]
                %1027 = vst [vmem:[%s199 + $0xce8] sm:$0xff] %v1026
                %v1028 = vld [vmem:[%s198 + $0x33c0] sm:$0xff]
                %1029 = vst [vmem:[%s199 + $0xcf0] sm:$0xff] %v1028
                %v1030 = vld [vmem:[%s198 + $0x33c8] sm:$0xff]
                %1031 = vst [vmem:[%s199 + $0xcf8] sm:$0xff] %v1030
                %v1032 = vld [vmem:[%s198 + $0x3400] sm:$0xff]
                %1033 = vst [vmem:[%s199 + $0xd00] sm:$0xff] %v1032
                %v1034 = vld [vmem:[%s198 + $0x3408] sm:$0xff]
                %1035 = vst [vmem:[%s199 + $0xd08] sm:$0xff] %v1034
                %v1036 = vld [vmem:[%s198 + $0x3440] sm:$0xff]
                %1037 = vst [vmem:[%s199 + $0xd10] sm:$0xff] %v1036
                %v1038 = vld [vmem:[%s198 + $0x3448] sm:$0xff]
                %1039 = vst [vmem:[%s199 + $0xd18] sm:$0xff] %v1038
                %v1040 = vld [vmem:[%s198 + $0x3480] sm:$0xff]
                %1041 = vst [vmem:[%s199 + $0xd20] sm:$0xff] %v1040
                %v1042 = vld [vmem:[%s198 + $0x3488] sm:$0xff]
                %1043 = vst [vmem:[%s199 + $0xd28] sm:$0xff] %v1042
                %v1044 = vld [vmem:[%s198 + $0x34c0] sm:$0xff]
                %1045 = vst [vmem:[%s199 + $0xd30] sm:$0xff] %v1044
                %v1046 = vld [vmem:[%s198 + $0x34c8] sm:$0xff]
                %1047 = vst [vmem:[%s199 + $0xd38] sm:$0xff] %v1046
                %v1048 = vld [vmem:[%s198 + $0x3500] sm:$0xff]
                %1049 = vst [vmem:[%s199 + $0xd40] sm:$0xff] %v1048
                %v1050 = vld [vmem:[%s198 + $0x3508] sm:$0xff]
                %1051 = vst [vmem:[%s199 + $0xd48] sm:$0xff] %v1050
                %v1052 = vld [vmem:[%s198 + $0x3540] sm:$0xff]
                %1053 = vst [vmem:[%s199 + $0xd50] sm:$0xff] %v1052
                %v1054 = vld [vmem:[%s198 + $0x3548] sm:$0xff]
                %1055 = vst [vmem:[%s199 + $0xd58] sm:$0xff] %v1054
                %v1056 = vld [vmem:[%s198 + $0x3580] sm:$0xff]
                %1057 = vst [vmem:[%s199 + $0xd60] sm:$0xff] %v1056
                %v1058 = vld [vmem:[%s198 + $0x3588] sm:$0xff]
                %1059 = vst [vmem:[%s199 + $0xd68] sm:$0xff] %v1058
                %v1060 = vld [vmem:[%s198 + $0x35c0] sm:$0xff]
                %1061 = vst [vmem:[%s199 + $0xd70] sm:$0xff] %v1060
                %v1062 = vld [vmem:[%s198 + $0x35c8] sm:$0xff]
                %1063 = vst [vmem:[%s199 + $0xd78] sm:$0xff] %v1062
                %v1064 = vld [vmem:[%s198 + $0x3600] sm:$0xff]
                %1065 = vst [vmem:[%s199 + $0xd80] sm:$0xff] %v1064
                %v1066 = vld [vmem:[%s198 + $0x3608] sm:$0xff]
                %1067 = vst [vmem:[%s199 + $0xd88] sm:$0xff] %v1066
                %v1068 = vld [vmem:[%s198 + $0x3640] sm:$0xff]
                %1069 = vst [vmem:[%s199 + $0xd90] sm:$0xff] %v1068
                %v1070 = vld [vmem:[%s198 + $0x3648] sm:$0xff]
                %1071 = vst [vmem:[%s199 + $0xd98] sm:$0xff] %v1070
                %v1072 = vld [vmem:[%s198 + $0x3680] sm:$0xff]
                %1073 = vst [vmem:[%s199 + $0xda0] sm:$0xff] %v1072
                %v1074 = vld [vmem:[%s198 + $0x3688] sm:$0xff]
                %1075 = vst [vmem:[%s199 + $0xda8] sm:$0xff] %v1074
                %v1076 = vld [vmem:[%s198 + $0x36c0] sm:$0xff]
                %1077 = vst [vmem:[%s199 + $0xdb0] sm:$0xff] %v1076
                %v1078 = vld [vmem:[%s198 + $0x36c8] sm:$0xff]
                %1079 = vst [vmem:[%s199 + $0xdb8] sm:$0xff] %v1078
                %v1080 = vld [vmem:[%s198 + $0x3700] sm:$0xff]
                %1081 = vst [vmem:[%s199 + $0xdc0] sm:$0xff] %v1080
                %v1082 = vld [vmem:[%s198 + $0x3708] sm:$0xff]
                %1083 = vst [vmem:[%s199 + $0xdc8] sm:$0xff] %v1082
                %v1084 = vld [vmem:[%s198 + $0x3740] sm:$0xff]
                %1085 = vst [vmem:[%s199 + $0xdd0] sm:$0xff] %v1084
                %v1086 = vld [vmem:[%s198 + $0x3748] sm:$0xff]
                %1087 = vst [vmem:[%s199 + $0xdd8] sm:$0xff] %v1086
                %v1088 = vld [vmem:[%s198 + $0x3780] sm:$0xff]
                %1089 = vst [vmem:[%s199 + $0xde0] sm:$0xff] %v1088
                %v1090 = vld [vmem:[%s198 + $0x3788] sm:$0xff]
                %1091 = vst [vmem:[%s199 + $0xde8] sm:$0xff] %v1090
                %v1092 = vld [vmem:[%s198 + $0x37c0] sm:$0xff]
                %1093 = vst [vmem:[%s199 + $0xdf0] sm:$0xff] %v1092
                %v1094 = vld [vmem:[%s198 + $0x37c8] sm:$0xff]
                %1095 = vst [vmem:[%s199 + $0xdf8] sm:$0xff] %v1094
                %v1096 = vld [vmem:[%s198 + $0x3800] sm:$0xff]
                %1097 = vst [vmem:[%s199 + $0xe00] sm:$0xff] %v1096
                %v1098 = vld [vmem:[%s198 + $0x3808] sm:$0xff]
                %1099 = vst [vmem:[%s199 + $0xe08] sm:$0xff] %v1098
                %v1100 = vld [vmem:[%s198 + $0x3840] sm:$0xff]
                %1101 = vst [vmem:[%s199 + $0xe10] sm:$0xff] %v1100
                %v1102 = vld [vmem:[%s198 + $0x3848] sm:$0xff]
                %1103 = vst [vmem:[%s199 + $0xe18] sm:$0xff] %v1102
                %v1104 = vld [vmem:[%s198 + $0x3880] sm:$0xff]
                %1105 = vst [vmem:[%s199 + $0xe20] sm:$0xff] %v1104
                %v1106 = vld [vmem:[%s198 + $0x3888] sm:$0xff]
                %1107 = vst [vmem:[%s199 + $0xe28] sm:$0xff] %v1106
                %v1108 = vld [vmem:[%s198 + $0x38c0] sm:$0xff]
                %1109 = vst [vmem:[%s199 + $0xe30] sm:$0xff] %v1108
                %v1110 = vld [vmem:[%s198 + $0x38c8] sm:$0xff]
                %1111 = vst [vmem:[%s199 + $0xe38] sm:$0xff] %v1110
                %v1112 = vld [vmem:[%s198 + $0x3900] sm:$0xff]
                %1113 = vst [vmem:[%s199 + $0xe40] sm:$0xff] %v1112
                %v1114 = vld [vmem:[%s198 + $0x3908] sm:$0xff]
                %1115 = vst [vmem:[%s199 + $0xe48] sm:$0xff] %v1114
                %v1116 = vld [vmem:[%s198 + $0x3940] sm:$0xff]
                %1117 = vst [vmem:[%s199 + $0xe50] sm:$0xff] %v1116
                %v1118 = vld [vmem:[%s198 + $0x3948] sm:$0xff]
                %1119 = vst [vmem:[%s199 + $0xe58] sm:$0xff] %v1118
                %v1120 = vld [vmem:[%s198 + $0x3980] sm:$0xff]
                %1121 = vst [vmem:[%s199 + $0xe60] sm:$0xff] %v1120
                %v1122 = vld [vmem:[%s198 + $0x3988] sm:$0xff]
                %1123 = vst [vmem:[%s199 + $0xe68] sm:$0xff] %v1122
                %v1124 = vld [vmem:[%s198 + $0x39c0] sm:$0xff]
                %1125 = vst [vmem:[%s199 + $0xe70] sm:$0xff] %v1124
                %v1126 = vld [vmem:[%s198 + $0x39c8] sm:$0xff]
                %1127 = vst [vmem:[%s199 + $0xe78] sm:$0xff] %v1126
                %v1128 = vld [vmem:[%s198 + $0x3a00] sm:$0xff]
                %1129 = vst [vmem:[%s199 + $0xe80] sm:$0xff] %v1128
                %v1130 = vld [vmem:[%s198 + $0x3a08] sm:$0xff]
                %1131 = vst [vmem:[%s199 + $0xe88] sm:$0xff] %v1130
                %v1132 = vld [vmem:[%s198 + $0x3a40] sm:$0xff]
                %1133 = vst [vmem:[%s199 + $0xe90] sm:$0xff] %v1132
                %v1134 = vld [vmem:[%s198 + $0x3a48] sm:$0xff]
                %1135 = vst [vmem:[%s199 + $0xe98] sm:$0xff] %v1134
                %v1136 = vld [vmem:[%s198 + $0x3a80] sm:$0xff]
                %1137 = vst [vmem:[%s199 + $0xea0] sm:$0xff] %v1136
                %v1138 = vld [vmem:[%s198 + $0x3a88] sm:$0xff]
                %1139 = vst [vmem:[%s199 + $0xea8] sm:$0xff] %v1138
                %v1140 = vld [vmem:[%s198 + $0x3ac0] sm:$0xff]
                %1141 = vst [vmem:[%s199 + $0xeb0] sm:$0xff] %v1140
                %v1142 = vld [vmem:[%s198 + $0x3ac8] sm:$0xff]
                %1143 = vst [vmem:[%s199 + $0xeb8] sm:$0xff] %v1142
                %v1144 = vld [vmem:[%s198 + $0x3b00] sm:$0xff]
                %1145 = vst [vmem:[%s199 + $0xec0] sm:$0xff] %v1144
                %v1146 = vld [vmem:[%s198 + $0x3b08] sm:$0xff]
                %1147 = vst [vmem:[%s199 + $0xec8] sm:$0xff] %v1146
                %v1148 = vld [vmem:[%s198 + $0x3b40] sm:$0xff]
                %1149 = vst [vmem:[%s199 + $0xed0] sm:$0xff] %v1148
                %v1150 = vld [vmem:[%s198 + $0x3b48] sm:$0xff]
                %1151 = vst [vmem:[%s199 + $0xed8] sm:$0xff] %v1150
                %v1152 = vld [vmem:[%s198 + $0x3b80] sm:$0xff]
                %1153 = vst [vmem:[%s199 + $0xee0] sm:$0xff] %v1152
                %v1154 = vld [vmem:[%s198 + $0x3b88] sm:$0xff]
                %1155 = vst [vmem:[%s199 + $0xee8] sm:$0xff] %v1154
                %v1156 = vld [vmem:[%s198 + $0x3bc0] sm:$0xff]
                %1157 = vst [vmem:[%s199 + $0xef0] sm:$0xff] %v1156
                %v1158 = vld [vmem:[%s198 + $0x3bc8] sm:$0xff]
                %1159 = vst [vmem:[%s199 + $0xef8] sm:$0xff] %v1158
                %v1160 = vld [vmem:[%s198 + $0x3c00] sm:$0xff]
                %1161 = vst [vmem:[%s199 + $0xf00] sm:$0xff] %v1160
                %v1162 = vld [vmem:[%s198 + $0x3c08] sm:$0xff]
                %1163 = vst [vmem:[%s199 + $0xf08] sm:$0xff] %v1162
                %v1164 = vld [vmem:[%s198 + $0x3c40] sm:$0xff]
                %1165 = vst [vmem:[%s199 + $0xf10] sm:$0xff] %v1164
                %v1166 = vld [vmem:[%s198 + $0x3c48] sm:$0xff]
                %1167 = vst [vmem:[%s199 + $0xf18] sm:$0xff] %v1166
                %v1168 = vld [vmem:[%s198 + $0x3c80] sm:$0xff]
                %1169 = vst [vmem:[%s199 + $0xf20] sm:$0xff] %v1168
                %v1170 = vld [vmem:[%s198 + $0x3c88] sm:$0xff]
                %1171 = vst [vmem:[%s199 + $0xf28] sm:$0xff] %v1170
                %v1172 = vld [vmem:[%s198 + $0x3cc0] sm:$0xff]
                %1173 = vst [vmem:[%s199 + $0xf30] sm:$0xff] %v1172
                %v1174 = vld [vmem:[%s198 + $0x3cc8] sm:$0xff]
                %1175 = vst [vmem:[%s199 + $0xf38] sm:$0xff] %v1174
                %v1176 = vld [vmem:[%s198 + $0x3d00] sm:$0xff]
                %1177 = vst [vmem:[%s199 + $0xf40] sm:$0xff] %v1176
                %v1178 = vld [vmem:[%s198 + $0x3d08] sm:$0xff]
                %1179 = vst [vmem:[%s199 + $0xf48] sm:$0xff] %v1178
                %v1180 = vld [vmem:[%s198 + $0x3d40] sm:$0xff]
                %1181 = vst [vmem:[%s199 + $0xf50] sm:$0xff] %v1180
                %v1182 = vld [vmem:[%s198 + $0x3d48] sm:$0xff]
                %1183 = vst [vmem:[%s199 + $0xf58] sm:$0xff] %v1182
                %v1184 = vld [vmem:[%s198 + $0x3d80] sm:$0xff]
                %1185 = vst [vmem:[%s199 + $0xf60] sm:$0xff] %v1184
                %v1186 = vld [vmem:[%s198 + $0x3d88] sm:$0xff]
                %1187 = vst [vmem:[%s199 + $0xf68] sm:$0xff] %v1186
                %v1188 = vld [vmem:[%s198 + $0x3dc0] sm:$0xff]
                %1189 = vst [vmem:[%s199 + $0xf70] sm:$0xff] %v1188
                %v1190 = vld [vmem:[%s198 + $0x3dc8] sm:$0xff]
                %1191 = vst [vmem:[%s199 + $0xf78] sm:$0xff] %v1190
                %v1192 = vld [vmem:[%s198 + $0x3e00] sm:$0xff]
                %1193 = vst [vmem:[%s199 + $0xf80] sm:$0xff] %v1192
                %v1194 = vld [vmem:[%s198 + $0x3e08] sm:$0xff]
                %1195 = vst [vmem:[%s199 + $0xf88] sm:$0xff] %v1194
                %v1196 = vld [vmem:[%s198 + $0x3e40] sm:$0xff]
                %1197 = vst [vmem:[%s199 + $0xf90] sm:$0xff] %v1196
                %v1198 = vld [vmem:[%s198 + $0x3e48] sm:$0xff]
                %1199 = vst [vmem:[%s199 + $0xf98] sm:$0xff] %v1198
                %v1200 = vld [vmem:[%s198 + $0x3e80] sm:$0xff]
                %1201 = vst [vmem:[%s199 + $0xfa0] sm:$0xff] %v1200
                %v1202 = vld [vmem:[%s198 + $0x3e88] sm:$0xff]
                %1203 = vst [vmem:[%s199 + $0xfa8] sm:$0xff] %v1202
                %v1204 = vld [vmem:[%s198 + $0x3ec0] sm:$0xff]
                %1205 = vst [vmem:[%s199 + $0xfb0] sm:$0xff] %v1204
                %v1206 = vld [vmem:[%s198 + $0x3ec8] sm:$0xff]
                %1207 = vst [vmem:[%s199 + $0xfb8] sm:$0xff] %v1206
                %v1208 = vld [vmem:[%s198 + $0x3f00] sm:$0xff]
                %1209 = vst [vmem:[%s199 + $0xfc0] sm:$0xff] %v1208
                %v1210 = vld [vmem:[%s198 + $0x3f08] sm:$0xff]
                %1211 = vst [vmem:[%s199 + $0xfc8] sm:$0xff] %v1210
                %v1212 = vld [vmem:[%s198 + $0x3f40] sm:$0xff]
                %1213 = vst [vmem:[%s199 + $0xfd0] sm:$0xff] %v1212
                %v1214 = vld [vmem:[%s198 + $0x3f48] sm:$0xff]
                %1215 = vst [vmem:[%s199 + $0xfd8] sm:$0xff] %v1214
                %v1216 = vld [vmem:[%s198 + $0x3f80] sm:$0xff]
                %1217 = vst [vmem:[%s199 + $0xfe0] sm:$0xff] %v1216
                %v1218 = vld [vmem:[%s198 + $0x3f88] sm:$0xff]
                %1219 = vst [vmem:[%s199 + $0xfe8] sm:$0xff] %v1218
                %v1220 = vld [vmem:[%s198 + $0x3fc0] sm:$0xff]
                %1221 = vst [vmem:[%s199 + $0xff0] sm:$0xff] %v1220
                %v1222 = vld [vmem:[%s198 + $0x3fc8] sm:$0xff]
                %1223 = vst [vmem:[%s199 + $0xff8] sm:$0xff] %v1222
                %v1224 = vld [vmem:[%s198 + $0x4000] sm:$0xff]
                %1225 = vst [vmem:[%s199 + $0x1000] sm:$0xff] %v1224
                %v1226 = vld [vmem:[%s198 + $0x4008] sm:$0xff]
                %1227 = vst [vmem:[%s199 + $0x1008] sm:$0xff] %v1226
                %v1228 = vld [vmem:[%s198 + $0x4040] sm:$0xff]
                %1229 = vst [vmem:[%s199 + $0x1010] sm:$0xff] %v1228
                %v1230 = vld [vmem:[%s198 + $0x4048] sm:$0xff]
                %1231 = vst [vmem:[%s199 + $0x1018] sm:$0xff] %v1230
                %v1232 = vld [vmem:[%s198 + $0x4080] sm:$0xff]
                %1233 = vst [vmem:[%s199 + $0x1020] sm:$0xff] %v1232
                %v1234 = vld [vmem:[%s198 + $0x4088] sm:$0xff]
                %1235 = vst [vmem:[%s199 + $0x1028] sm:$0xff] %v1234
                %v1236 = vld [vmem:[%s198 + $0x40c0] sm:$0xff]
                %1237 = vst [vmem:[%s199 + $0x1030] sm:$0xff] %v1236
                %v1238 = vld [vmem:[%s198 + $0x40c8] sm:$0xff]
                %1239 = vst [vmem:[%s199 + $0x1038] sm:$0xff] %v1238
                %v1240 = vld [vmem:[%s198 + $0x4100] sm:$0xff]
                %1241 = vst [vmem:[%s199 + $0x1040] sm:$0xff] %v1240
                %v1242 = vld [vmem:[%s198 + $0x4108] sm:$0xff]
                %1243 = vst [vmem:[%s199 + $0x1048] sm:$0xff] %v1242
                %v1244 = vld [vmem:[%s198 + $0x4140] sm:$0xff]
                %1245 = vst [vmem:[%s199 + $0x1050] sm:$0xff] %v1244
                %v1246 = vld [vmem:[%s198 + $0x4148] sm:$0xff]
                %1247 = vst [vmem:[%s199 + $0x1058] sm:$0xff] %v1246
                %v1248 = vld [vmem:[%s198 + $0x4180] sm:$0xff]
                %1249 = vst [vmem:[%s199 + $0x1060] sm:$0xff] %v1248
                %v1250 = vld [vmem:[%s198 + $0x4188] sm:$0xff]
                %1251 = vst [vmem:[%s199 + $0x1068] sm:$0xff] %v1250
                %v1252 = vld [vmem:[%s198 + $0x41c0] sm:$0xff]
                %1253 = vst [vmem:[%s199 + $0x1070] sm:$0xff] %v1252
                %v1254 = vld [vmem:[%s198 + $0x41c8] sm:$0xff]
                %1255 = vst [vmem:[%s199 + $0x1078] sm:$0xff] %v1254
                %v1256 = vld [vmem:[%s198 + $0x4200] sm:$0xff]
                %1257 = vst [vmem:[%s199 + $0x1080] sm:$0xff] %v1256
                %v1258 = vld [vmem:[%s198 + $0x4208] sm:$0xff]
                %1259 = vst [vmem:[%s199 + $0x1088] sm:$0xff] %v1258
                %v1260 = vld [vmem:[%s198 + $0x4240] sm:$0xff]
                %1261 = vst [vmem:[%s199 + $0x1090] sm:$0xff] %v1260
                %v1262 = vld [vmem:[%s198 + $0x4248] sm:$0xff]
                %1263 = vst [vmem:[%s199 + $0x1098] sm:$0xff] %v1262
                %v1264 = vld [vmem:[%s198 + $0x4280] sm:$0xff]
                %1265 = vst [vmem:[%s199 + $0x10a0] sm:$0xff] %v1264
                %v1266 = vld [vmem:[%s198 + $0x4288] sm:$0xff]
                %1267 = vst [vmem:[%s199 + $0x10a8] sm:$0xff] %v1266
                %v1268 = vld [vmem:[%s198 + $0x42c0] sm:$0xff]
                %1269 = vst [vmem:[%s199 + $0x10b0] sm:$0xff] %v1268
                %v1270 = vld [vmem:[%s198 + $0x42c8] sm:$0xff]
                %1271 = vst [vmem:[%s199 + $0x10b8] sm:$0xff] %v1270
                %v1272 = vld [vmem:[%s198 + $0x4300] sm:$0xff]
                %1273 = vst [vmem:[%s199 + $0x10c0] sm:$0xff] %v1272
                %v1274 = vld [vmem:[%s198 + $0x4308] sm:$0xff]
                %1275 = vst [vmem:[%s199 + $0x10c8] sm:$0xff] %v1274
                %v1276 = vld [vmem:[%s198 + $0x4340] sm:$0xff]
                %1277 = vst [vmem:[%s199 + $0x10d0] sm:$0xff] %v1276
                %v1278 = vld [vmem:[%s198 + $0x4348] sm:$0xff]
                %1279 = vst [vmem:[%s199 + $0x10d8] sm:$0xff] %v1278
                %v1280 = vld [vmem:[%s198 + $0x4380] sm:$0xff]
                %1281 = vst [vmem:[%s199 + $0x10e0] sm:$0xff] %v1280
                %v1282 = vld [vmem:[%s198 + $0x4388] sm:$0xff]
                %1283 = vst [vmem:[%s199 + $0x10e8] sm:$0xff] %v1282
                %v1284 = vld [vmem:[%s198 + $0x43c0] sm:$0xff]
                %1285 = vst [vmem:[%s199 + $0x10f0] sm:$0xff] %v1284
                %v1286 = vld [vmem:[%s198 + $0x43c8] sm:$0xff]
                %1287 = vst [vmem:[%s199 + $0x10f8] sm:$0xff] %v1286
                %v1288 = vld [vmem:[%s198 + $0x4400] sm:$0xff]
                %1289 = vst [vmem:[%s199 + $0x1100] sm:$0xff] %v1288
                %v1290 = vld [vmem:[%s198 + $0x4408] sm:$0xff]
                %1291 = vst [vmem:[%s199 + $0x1108] sm:$0xff] %v1290
                %v1292 = vld [vmem:[%s198 + $0x4440] sm:$0xff]
                %1293 = vst [vmem:[%s199 + $0x1110] sm:$0xff] %v1292
                %v1294 = vld [vmem:[%s198 + $0x4448] sm:$0xff]
                %1295 = vst [vmem:[%s199 + $0x1118] sm:$0xff] %v1294
                %v1296 = vld [vmem:[%s198 + $0x4480] sm:$0xff]
                %1297 = vst [vmem:[%s199 + $0x1120] sm:$0xff] %v1296
                %v1298 = vld [vmem:[%s198 + $0x4488] sm:$0xff]
                %1299 = vst [vmem:[%s199 + $0x1128] sm:$0xff] %v1298
                %v1300 = vld [vmem:[%s198 + $0x44c0] sm:$0xff]
                %1301 = vst [vmem:[%s199 + $0x1130] sm:$0xff] %v1300
                %v1302 = vld [vmem:[%s198 + $0x44c8] sm:$0xff]
                %1303 = vst [vmem:[%s199 + $0x1138] sm:$0xff] %v1302
                %v1304 = vld [vmem:[%s198 + $0x4500] sm:$0xff]
                %1305 = vst [vmem:[%s199 + $0x1140] sm:$0xff] %v1304
                %v1306 = vld [vmem:[%s198 + $0x4508] sm:$0xff]
                %1307 = vst [vmem:[%s199 + $0x1148] sm:$0xff] %v1306
                %v1308 = vld [vmem:[%s198 + $0x4540] sm:$0xff]
                %1309 = vst [vmem:[%s199 + $0x1150] sm:$0xff] %v1308
                %v1310 = vld [vmem:[%s198 + $0x4548] sm:$0xff]
                %1311 = vst [vmem:[%s199 + $0x1158] sm:$0xff] %v1310
                %v1312 = vld [vmem:[%s198 + $0x4580] sm:$0xff]
                %1313 = vst [vmem:[%s199 + $0x1160] sm:$0xff] %v1312
                %v1314 = vld [vmem:[%s198 + $0x4588] sm:$0xff]
                %1315 = vst [vmem:[%s199 + $0x1168] sm:$0xff] %v1314
                %v1316 = vld [vmem:[%s198 + $0x45c0] sm:$0xff]
                %1317 = vst [vmem:[%s199 + $0x1170] sm:$0xff] %v1316
                %v1318 = vld [vmem:[%s198 + $0x45c8] sm:$0xff]
                %1319 = vst [vmem:[%s199 + $0x1178] sm:$0xff] %v1318
                %v1320 = vld [vmem:[%s198 + $0x4600] sm:$0xff]
                %1321 = vst [vmem:[%s199 + $0x1180] sm:$0xff] %v1320
                %v1322 = vld [vmem:[%s198 + $0x4608] sm:$0xff]
                %1323 = vst [vmem:[%s199 + $0x1188] sm:$0xff] %v1322
                %v1324 = vld [vmem:[%s198 + $0x4640] sm:$0xff]
                %1325 = vst [vmem:[%s199 + $0x1190] sm:$0xff] %v1324
                %v1326 = vld [vmem:[%s198 + $0x4648] sm:$0xff]
                %1327 = vst [vmem:[%s199 + $0x1198] sm:$0xff] %v1326
                %v1328 = vld [vmem:[%s198 + $0x4680] sm:$0xff]
                %1329 = vst [vmem:[%s199 + $0x11a0] sm:$0xff] %v1328
                %v1330 = vld [vmem:[%s198 + $0x4688] sm:$0xff]
                %1331 = vst [vmem:[%s199 + $0x11a8] sm:$0xff] %v1330
                %v1332 = vld [vmem:[%s198 + $0x46c0] sm:$0xff]
                %1333 = vst [vmem:[%s199 + $0x11b0] sm:$0xff] %v1332
                %v1334 = vld [vmem:[%s198 + $0x46c8] sm:$0xff]
                %1335 = vst [vmem:[%s199 + $0x11b8] sm:$0xff] %v1334
                %v1336 = vld [vmem:[%s198 + $0x4700] sm:$0xff]
                %1337 = vst [vmem:[%s199 + $0x11c0] sm:$0xff] %v1336
                %v1338 = vld [vmem:[%s198 + $0x4708] sm:$0xff]
                %1339 = vst [vmem:[%s199 + $0x11c8] sm:$0xff] %v1338
                %v1340 = vld [vmem:[%s198 + $0x4740] sm:$0xff]
                %1341 = vst [vmem:[%s199 + $0x11d0] sm:$0xff] %v1340
                %v1342 = vld [vmem:[%s198 + $0x4748] sm:$0xff]
                %1343 = vst [vmem:[%s199 + $0x11d8] sm:$0xff] %v1342
                %v1344 = vld [vmem:[%s198 + $0x4780] sm:$0xff]
                %1345 = vst [vmem:[%s199 + $0x11e0] sm:$0xff] %v1344
                %v1346 = vld [vmem:[%s198 + $0x4788] sm:$0xff]
                %1347 = vst [vmem:[%s199 + $0x11e8] sm:$0xff] %v1346
                %v1348 = vld [vmem:[%s198 + $0x47c0] sm:$0xff]
                %1349 = vst [vmem:[%s199 + $0x11f0] sm:$0xff] %v1348
                %v1350 = vld [vmem:[%s198 + $0x47c8] sm:$0xff]
                %1351 = vst [vmem:[%s199 + $0x11f8] sm:$0xff] %v1350
              $region41: #{forward.11} parent=35 // loop_footer
                %s197 = sadd.s32 1, %s193
              $region42: #{forward.11} parent=35 // loop_footer_branch
                %192 = sbr.rel target = $region38
              $region43: #{forward.11} parent=35 // loop_exit
                _
            $region36: #{forward.11} parent=31 // pred_fallthru
              _
            // Predicated region
            $region44: #{forward.11} parent=31 // pred_check
              _
            $region45: #{forward.11} parent=31 // pred_check_branch
              %1353 = sbr.rel target = $region47
            $region46: #{forward.11} parent=31 // pred_region
              _
            $region47: #{forward.11} parent=31 // pred_fallthru
              _
          $region32: #{forward.11} parent=27 // pred_fallthru
            _
          %1354 = vnop
        $region28: #{forward.11} parent=23 // pred_fallthru
          _
        // Predicated region
        $region48: #{forward.11} parent=23 // pred_check
          %p1355 = pneg %p79
        $region49: #{forward.11} parent=23 // pred_check_branch
          %1357 = sbr.rel (%p1355) target = $region51
        $region50: #{forward.11} parent=23 // pred_region
          %s1358 = smul.u32 4, %s12
          %p1359 = scmp.lt.s32.totalorder %s1358, 15
          %s1360 = scalar_select %p1359, %s1358, 15
          %s1361 = scalar_lea.vmem %s2, %s1360
          %s1362 = smul.u32 4, %s12
        $region51: #{forward.11} parent=23 // pred_fallthru
          _
        // Predicated region
        $region52: #{forward.11} parent=23 // pred_check
          %p1363 = pneg %p105
        $region53: #{forward.11} parent=23 // pred_check_branch
          %1365 = sbr.rel (%p1363) target = $region55
        $region54: #{forward.11} parent=23 // pred_region
          %s1366 = smul.u32 64, %s12
          %p1367 = scmp.lt.s32.totalorder %s1366, 255
          %s1368 = scalar_select %p1367, %s1366, 255
          %s1369 = smul.addr %s1368, 4
          %s1370 = scalar_lea.vmem %s3, %s1369
          %s1371 = smul.u32 64, %s12
        $region55: #{forward.11} parent=23 // pred_fallthru
          _
      $region24: #{forward.11} parent=5 // pred_fallthru
        _
      %p1372 = scmp.le.s32.totalorder 1, %s12
      %p1373 = scmp.lt.s32.totalorder %s12, 5
      %p1374 = pnand %p1372, %p1373
      %p1375 = pneg %p1374
      // Predicated region
      $region56: #{forward.11} parent=5 // pred_check
        _
      $region57: #{forward.11} parent=5 // pred_check_branch
        %1377 = sbr.rel (%p1374) target = $region59
      $region58: #{forward.11} parent=5 // pred_region
        %s1378 = ssub.s32 %s12, 1
        %s1379 = sand.u32 %s46, 1
        %s1380 = sand.u32 %s46, 1
        %s1381 = smul.addr %s1380, 4608
        %s1382 = scalar_lea.vmem [#allocation3], %s1381
        // Predicated region
        $region60: #{forward.11} parent=58 // pred_check
          %p1383 = pneg %p59
        $region61: #{forward.11} parent=58 // pred_check_branch
          %1385 = sbr.rel (%p1383) target = $region63
        $region62: #{forward.11} parent=58 // pred_region
          _
        $region63: #{forward.11} parent=58 // pred_fallthru
          _
        %p1386 = pneg %p33
        %p1387 = pneg %p30
        %s1388 = sand.u32 %s46, 1
        %s1389 = sand.u32 %s46, 1
        %s1390 = smul.addr %s1389, 4608
        %s1391 = scalar_lea.vmem [#allocation3], %s1390
        %p1392 = pneg %p59
        %p1393 = pneg %p56
        %s1394 = smul.u32 4, %s17
        %p1395 = scmp.lt.s32.totalorder %s1394, 15
        %s1396 = scalar_select %p1395, %s1394, 15
        %s1397 = scalar_lea.vmem %s2, %s1396
        %p1398 = pneg %p85
        %p1399 = pneg %p82
        %s1400 = smul.u32 64, %s17
        %p1401 = scmp.lt.s32.totalorder %s1400, 255
        %s1402 = scalar_select %p1401, %s1400, 255
        %s1403 = smul.addr %s1402, 4
        %s1404 = scalar_lea.vmem %s3, %s1403
        %p1405 = pneg %p111
        %p1406 = pneg %p108
        %p1407 = pneg %p132
        %p1408 = pneg %p129
        %p1409 = pneg %p153
        %p1410 = pneg %p150
        %s1411 = smul.u32 4, %s17
        %s1412 = smul.u32 4, %s17
        %p1413 = scmp.lt.s32.totalorder %s1412, 15
        %s1414 = scalar_select %p1413, %s1412, 15
        %s1415 = scalar_lea.vmem %s2, %s1414
        %s1416 = smul.u32 4, %s17
        %s1417 = smul.u32 64, %s17
        %p1418 = scmp.lt.s32.totalorder %s1417, 255
        %s1419 = scalar_select %p1418, %s1417, 255
        %s1420 = smul.addr %s1419, 4
        %s1421 = scalar_lea.vmem %s3, %s1420
        %s1422 = smul.u32 64, %s17
        %p1424 = scmp.eq.s32.totalorder %s17, 0
        // Predicated region
        $region64: #{forward.11} parent=58 // pred_check
          %p1425 = pneg %p1424
        $region65: #{forward.11} parent=58 // pred_check_branch
          %1427 = sbr.rel (%p1425) target = $region67
        $region66: #{forward.11} parent=58 // pred_region
          %1428 = vst [vmem:[#allocation2] sm:$0x3] 0.0
        $region67: #{forward.11} parent=58 // pred_fallthru
          _
        %v1429 = vld [vmem:[%s0] sm:$0xff]
        %v1430 = vld [vmem:[%s0 + $0x8] sm:$0xff]
        %v1431 = vld [vmem:[%s0 + $0x10] sm:$0x3]
        %v1432 = vld [vmem:[%s1382] sm:$0xff]
        %v1433 = vld [vmem:[%s1382 + $0x8] sm:$0xff]
        %v1434 = vld [vmem:[%s1382 + $0x10] sm:$0xff]
        %v1435 = vld [vmem:[%s1382 + $0x18] sm:$0xff]
        %v1436 = vld [vmem:[%s1382 + $0x20] sm:$0xff]
        %v1437 = vld [vmem:[%s1382 + $0x28] sm:$0xff]
        %v1438 = vld [vmem:[%s1382 + $0x30] sm:$0xff]
        %v1439 = vld [vmem:[%s1382 + $0x38] sm:$0xff]
        %v1440 = vld [vmem:[%s1382 + $0x40] sm:$0xff]
        %v1441 = vld [vmem:[%s1382 + $0x48] sm:$0xff]
        %v1442 = vld [vmem:[%s1382 + $0x50] sm:$0xff]
        %v1443 = vld [vmem:[%s1382 + $0x58] sm:$0xff]
        %v1444 = vld [vmem:[%s1382 + $0x60] sm:$0xff]
        %v1445 = vld [vmem:[%s1382 + $0x68] sm:$0xff]
        %v1446 = vld [vmem:[%s1382 + $0x70] sm:$0xff]
        %v1447 = vld [vmem:[%s1382 + $0x78] sm:$0xff]
        %v1448 = vld [vmem:[%s1382 + $0x80] sm:$0xff]
        %v1449 = vld [vmem:[%s1382 + $0x88] sm:$0xff]
        %v1450 = vld [vmem:[%s1382 + $0x90] sm:$0xff]
        %v1451 = vld [vmem:[%s1382 + $0x98] sm:$0xff]
        %v1452 = vld [vmem:[%s1382 + $0xa0] sm:$0xff]
        %v1453 = vld [vmem:[%s1382 + $0xa8] sm:$0xff]
        %v1454 = vld [vmem:[%s1382 + $0xb0] sm:$0xff]
        %v1455 = vld [vmem:[%s1382 + $0xb8] sm:$0xff]
        %v1456 = vld [vmem:[%s1382 + $0xc0] sm:$0xff]
        %v1457 = vld [vmem:[%s1382 + $0xc8] sm:$0xff]
        %v1458 = vld [vmem:[%s1382 + $0xd0] sm:$0xff]
        %v1459 = vld [vmem:[%s1382 + $0xd8] sm:$0xff]
        %v1460 = vld [vmem:[%s1382 + $0xe0] sm:$0xff]
        %v1461 = vld [vmem:[%s1382 + $0xe8] sm:$0xff]
        %v1462 = vld [vmem:[%s1382 + $0xf0] sm:$0xff]
        %v1463 = vld [vmem:[%s1382 + $0xf8] sm:$0xff]
        %v1464 = vld [vmem:[%s1382 + $0x100] sm:$0xff]
        %v1465 = vld [vmem:[%s1382 + $0x108] sm:$0xff]
        %v1466 = vld [vmem:[%s1382 + $0x110] sm:$0xff]
        %v1467 = vld [vmem:[%s1382 + $0x118] sm:$0xff]
        %v1468 = vld [vmem:[%s1382 + $0x120] sm:$0xff]
        %v1469 = vld [vmem:[%s1382 + $0x128] sm:$0xff]
        %v1470 = vld [vmem:[%s1382 + $0x130] sm:$0xff]
        %v1471 = vld [vmem:[%s1382 + $0x138] sm:$0xff]
        %v1472 = vld [vmem:[%s1382 + $0x140] sm:$0xff]
        %v1473 = vld [vmem:[%s1382 + $0x148] sm:$0xff]
        %v1474 = vld [vmem:[%s1382 + $0x150] sm:$0xff]
        %v1475 = vld [vmem:[%s1382 + $0x158] sm:$0xff]
        %v1476 = vld [vmem:[%s1382 + $0x160] sm:$0xff]
        %v1477 = vld [vmem:[%s1382 + $0x168] sm:$0xff]
        %v1478 = vld [vmem:[%s1382 + $0x170] sm:$0xff]
        %v1479 = vld [vmem:[%s1382 + $0x178] sm:$0xff]
        %v1480 = vld [vmem:[%s1382 + $0x180] sm:$0xff]
        %v1481 = vld [vmem:[%s1382 + $0x188] sm:$0xff]
        %v1482 = vld [vmem:[%s1382 + $0x190] sm:$0xff]
        %v1483 = vld [vmem:[%s1382 + $0x198] sm:$0xff]
        %v1484 = vld [vmem:[%s1382 + $0x1a0] sm:$0xff]
        %v1485 = vld [vmem:[%s1382 + $0x1a8] sm:$0xff]
        %v1486 = vld [vmem:[%s1382 + $0x1b0] sm:$0xff]
        %v1487 = vld [vmem:[%s1382 + $0x1b8] sm:$0xff]
        %v1488 = vld [vmem:[%s1382 + $0x1c0] sm:$0xff]
        %v1489 = vld [vmem:[%s1382 + $0x1c8] sm:$0xff]
        %v1490 = vld [vmem:[%s1382 + $0x1d0] sm:$0xff]
        %v1491 = vld [vmem:[%s1382 + $0x1d8] sm:$0xff]
        %v1492 = vld [vmem:[%s1382 + $0x1e0] sm:$0xff]
        %v1493 = vld [vmem:[%s1382 + $0x1e8] sm:$0xff]
        %v1494 = vld [vmem:[%s1382 + $0x1f0] sm:$0xff]
        %v1495 = vld [vmem:[%s1382 + $0x1f8] sm:$0xff]
        %v1496 = vld [vmem:[%s1382 + $0x200] sm:$0xff]
        %v1497 = vld [vmem:[%s1382 + $0x208] sm:$0xff]
        %v1498 = vld [vmem:[%s1382 + $0x210] sm:$0xff]
        %v1499 = vld [vmem:[%s1382 + $0x218] sm:$0xff]
        %v1500 = vld [vmem:[%s1382 + $0x220] sm:$0xff]
        %v1501 = vld [vmem:[%s1382 + $0x228] sm:$0xff]
        %v1502 = vld [vmem:[%s1382 + $0x230] sm:$0xff]
        %v1503 = vld [vmem:[%s1382 + $0x238] sm:$0xff]
        %v1504 = vld [vmem:[%s1382 + $0x240] sm:$0xff]
        %v1505 = vld [vmem:[%s1382 + $0x248] sm:$0xff]
        %v1506 = vld [vmem:[%s1382 + $0x250] sm:$0xff]
        %v1507 = vld [vmem:[%s1382 + $0x258] sm:$0xff]
        %v1508 = vld [vmem:[%s1382 + $0x260] sm:$0xff]
        %v1509 = vld [vmem:[%s1382 + $0x268] sm:$0xff]
        %v1510 = vld [vmem:[%s1382 + $0x270] sm:$0xff]
        %v1511 = vld [vmem:[%s1382 + $0x278] sm:$0xff]
        %v1512 = vld [vmem:[%s1382 + $0x280] sm:$0xff]
        %v1513 = vld [vmem:[%s1382 + $0x288] sm:$0xff]
        %v1514 = vld [vmem:[%s1382 + $0x290] sm:$0xff]
        %v1515 = vld [vmem:[%s1382 + $0x298] sm:$0xff]
        %v1516 = vld [vmem:[%s1382 + $0x2a0] sm:$0xff]
        %v1517 = vld [vmem:[%s1382 + $0x2a8] sm:$0xff]
        %v1518 = vld [vmem:[%s1382 + $0x2b0] sm:$0xff]
        %v1519 = vld [vmem:[%s1382 + $0x2b8] sm:$0xff]
        %v1520 = vld [vmem:[%s1382 + $0x2c0] sm:$0xff]
        %v1521 = vld [vmem:[%s1382 + $0x2c8] sm:$0xff]
        %v1522 = vld [vmem:[%s1382 + $0x2d0] sm:$0xff]
        %v1523 = vld [vmem:[%s1382 + $0x2d8] sm:$0xff]
        %v1524 = vld [vmem:[%s1382 + $0x2e0] sm:$0xff]
        %v1525 = vld [vmem:[%s1382 + $0x2e8] sm:$0xff]
        %v1526 = vld [vmem:[%s1382 + $0x2f0] sm:$0xff]
        %v1527 = vld [vmem:[%s1382 + $0x2f8] sm:$0xff]
        %v1528 = vld [vmem:[%s1382 + $0x300] sm:$0xff]
        %v1529 = vld [vmem:[%s1382 + $0x308] sm:$0xff]
        %v1530 = vld [vmem:[%s1382 + $0x310] sm:$0xff]
        %v1531 = vld [vmem:[%s1382 + $0x318] sm:$0xff]
        %v1532 = vld [vmem:[%s1382 + $0x320] sm:$0xff]
        %v1533 = vld [vmem:[%s1382 + $0x328] sm:$0xff]
        %v1534 = vld [vmem:[%s1382 + $0x330] sm:$0xff]
        %v1535 = vld [vmem:[%s1382 + $0x338] sm:$0xff]
        %v1536 = vld [vmem:[%s1382 + $0x340] sm:$0xff]
        %v1537 = vld [vmem:[%s1382 + $0x348] sm:$0xff]
        %v1538 = vld [vmem:[%s1382 + $0x350] sm:$0xff]
        %v1539 = vld [vmem:[%s1382 + $0x358] sm:$0xff]
        %v1540 = vld [vmem:[%s1382 + $0x360] sm:$0xff]
        %v1541 = vld [vmem:[%s1382 + $0x368] sm:$0xff]
        %v1542 = vld [vmem:[%s1382 + $0x370] sm:$0xff]
        %v1543 = vld [vmem:[%s1382 + $0x378] sm:$0xff]
        %v1544 = vld [vmem:[%s1382 + $0x380] sm:$0xff]
        %v1545 = vld [vmem:[%s1382 + $0x388] sm:$0xff]
        %v1546 = vld [vmem:[%s1382 + $0x390] sm:$0xff]
        %v1547 = vld [vmem:[%s1382 + $0x398] sm:$0xff]
        %v1548 = vld [vmem:[%s1382 + $0x3a0] sm:$0xff]
        %v1549 = vld [vmem:[%s1382 + $0x3a8] sm:$0xff]
        %v1550 = vld [vmem:[%s1382 + $0x3b0] sm:$0xff]
        %v1551 = vld [vmem:[%s1382 + $0x3b8] sm:$0xff]
        %v1552 = vld [vmem:[%s1382 + $0x3c0] sm:$0xff]
        %v1553 = vld [vmem:[%s1382 + $0x3c8] sm:$0xff]
        %v1554 = vld [vmem:[%s1382 + $0x3d0] sm:$0xff]
        %v1555 = vld [vmem:[%s1382 + $0x3d8] sm:$0xff]
        %v1556 = vld [vmem:[%s1382 + $0x3e0] sm:$0xff]
        %v1557 = vld [vmem:[%s1382 + $0x3e8] sm:$0xff]
        %v1558 = vld [vmem:[%s1382 + $0x3f0] sm:$0xff]
        %v1559 = vld [vmem:[%s1382 + $0x3f8] sm:$0xff]
        %v1560 = vld [vmem:[%s1382 + $0x400] sm:$0xff]
        %v1561 = vld [vmem:[%s1382 + $0x408] sm:$0xff]
        %v1562 = vld [vmem:[%s1382 + $0x410] sm:$0xff]
        %v1563 = vld [vmem:[%s1382 + $0x418] sm:$0xff]
        %v1564 = vld [vmem:[%s1382 + $0x420] sm:$0xff]
        %v1565 = vld [vmem:[%s1382 + $0x428] sm:$0xff]
        %v1566 = vld [vmem:[%s1382 + $0x430] sm:$0xff]
        %v1567 = vld [vmem:[%s1382 + $0x438] sm:$0xff]
        %v1568 = vld [vmem:[%s1382 + $0x440] sm:$0xff]
        %v1569 = vld [vmem:[%s1382 + $0x448] sm:$0xff]
        %v1570 = vld [vmem:[%s1382 + $0x450] sm:$0xff]
        %v1571 = vld [vmem:[%s1382 + $0x458] sm:$0xff]
        %v1572 = vld [vmem:[%s1382 + $0x460] sm:$0xff]
        %v1573 = vld [vmem:[%s1382 + $0x468] sm:$0xff]
        %v1574 = vld [vmem:[%s1382 + $0x470] sm:$0xff]
        %v1575 = vld [vmem:[%s1382 + $0x478] sm:$0xff]
        %v1576 = vld [vmem:[%s1382 + $0x480] sm:$0xff]
        %v1577 = vld [vmem:[%s1382 + $0x488] sm:$0xff]
        %v1578 = vld [vmem:[%s1382 + $0x490] sm:$0xff]
        %v1579 = vld [vmem:[%s1382 + $0x498] sm:$0xff]
        %v1580 = vld [vmem:[%s1382 + $0x4a0] sm:$0xff]
        %v1581 = vld [vmem:[%s1382 + $0x4a8] sm:$0xff]
        %v1582 = vld [vmem:[%s1382 + $0x4b0] sm:$0xff]
        %v1583 = vld [vmem:[%s1382 + $0x4b8] sm:$0xff]
        %v1584 = vld [vmem:[%s1382 + $0x4c0] sm:$0xff]
        %v1585 = vld [vmem:[%s1382 + $0x4c8] sm:$0xff]
        %v1586 = vld [vmem:[%s1382 + $0x4d0] sm:$0xff]
        %v1587 = vld [vmem:[%s1382 + $0x4d8] sm:$0xff]
        %v1588 = vld [vmem:[%s1382 + $0x4e0] sm:$0xff]
        %v1589 = vld [vmem:[%s1382 + $0x4e8] sm:$0xff]
        %v1590 = vld [vmem:[%s1382 + $0x4f0] sm:$0xff]
        %v1591 = vld [vmem:[%s1382 + $0x4f8] sm:$0xff]
        %v1592 = vld [vmem:[%s1382 + $0x500] sm:$0xff]
        %v1593 = vld [vmem:[%s1382 + $0x508] sm:$0xff]
        %v1594 = vld [vmem:[%s1382 + $0x510] sm:$0xff]
        %v1595 = vld [vmem:[%s1382 + $0x518] sm:$0xff]
        %v1596 = vld [vmem:[%s1382 + $0x520] sm:$0xff]
        %v1597 = vld [vmem:[%s1382 + $0x528] sm:$0xff]
        %v1598 = vld [vmem:[%s1382 + $0x530] sm:$0xff]
        %v1599 = vld [vmem:[%s1382 + $0x538] sm:$0xff]
        %v1600 = vld [vmem:[%s1382 + $0x540] sm:$0xff]
        %v1601 = vld [vmem:[%s1382 + $0x548] sm:$0xff]
        %v1602 = vld [vmem:[%s1382 + $0x550] sm:$0xff]
        %v1603 = vld [vmem:[%s1382 + $0x558] sm:$0xff]
        %v1604 = vld [vmem:[%s1382 + $0x560] sm:$0xff]
        %v1605 = vld [vmem:[%s1382 + $0x568] sm:$0xff]
        %v1606 = vld [vmem:[%s1382 + $0x570] sm:$0xff]
        %v1607 = vld [vmem:[%s1382 + $0x578] sm:$0xff]
        %v1608 = vld [vmem:[%s1382 + $0x580] sm:$0xff]
        %v1609 = vld [vmem:[%s1382 + $0x588] sm:$0xff]
        %v1610 = vld [vmem:[%s1382 + $0x590] sm:$0xff]
        %v1611 = vld [vmem:[%s1382 + $0x598] sm:$0xff]
        %v1612 = vld [vmem:[%s1382 + $0x5a0] sm:$0xff]
        %v1613 = vld [vmem:[%s1382 + $0x5a8] sm:$0xff]
        %v1614 = vld [vmem:[%s1382 + $0x5b0] sm:$0xff]
        %v1615 = vld [vmem:[%s1382 + $0x5b8] sm:$0xff]
        %v1616 = vld [vmem:[%s1382 + $0x5c0] sm:$0xff]
        %v1617 = vld [vmem:[%s1382 + $0x5c8] sm:$0xff]
        %v1618 = vld [vmem:[%s1382 + $0x5d0] sm:$0xff]
        %v1619 = vld [vmem:[%s1382 + $0x5d8] sm:$0xff]
        %v1620 = vld [vmem:[%s1382 + $0x5e0] sm:$0xff]
        %v1621 = vld [vmem:[%s1382 + $0x5e8] sm:$0xff]
        %v1622 = vld [vmem:[%s1382 + $0x5f0] sm:$0xff]
        %v1623 = vld [vmem:[%s1382 + $0x5f8] sm:$0xff]
        %v1624 = vld [vmem:[%s1382 + $0x600] sm:$0xff]
        %v1625 = vld [vmem:[%s1382 + $0x608] sm:$0xff]
        %v1626 = vld [vmem:[%s1382 + $0x610] sm:$0xff]
        %v1627 = vld [vmem:[%s1382 + $0x618] sm:$0xff]
        %v1628 = vld [vmem:[%s1382 + $0x620] sm:$0xff]
        %v1629 = vld [vmem:[%s1382 + $0x628] sm:$0xff]
        %v1630 = vld [vmem:[%s1382 + $0x630] sm:$0xff]
        %v1631 = vld [vmem:[%s1382 + $0x638] sm:$0xff]
        %v1632 = vld [vmem:[%s1382 + $0x640] sm:$0xff]
        %v1633 = vld [vmem:[%s1382 + $0x648] sm:$0xff]
        %v1634 = vld [vmem:[%s1382 + $0x650] sm:$0xff]
        %v1635 = vld [vmem:[%s1382 + $0x658] sm:$0xff]
        %v1636 = vld [vmem:[%s1382 + $0x660] sm:$0xff]
        %v1637 = vld [vmem:[%s1382 + $0x668] sm:$0xff]
        %v1638 = vld [vmem:[%s1382 + $0x670] sm:$0xff]
        %v1639 = vld [vmem:[%s1382 + $0x678] sm:$0xff]
        %v1640 = vld [vmem:[%s1382 + $0x680] sm:$0xff]
        %v1641 = vld [vmem:[%s1382 + $0x688] sm:$0xff]
        %v1642 = vld [vmem:[%s1382 + $0x690] sm:$0xff]
        %v1643 = vld [vmem:[%s1382 + $0x698] sm:$0xff]
        %v1644 = vld [vmem:[%s1382 + $0x6a0] sm:$0xff]
        %v1645 = vld [vmem:[%s1382 + $0x6a8] sm:$0xff]
        %v1646 = vld [vmem:[%s1382 + $0x6b0] sm:$0xff]
        %v1647 = vld [vmem:[%s1382 + $0x6b8] sm:$0xff]
        %v1648 = vld [vmem:[%s1382 + $0x6c0] sm:$0xff]
        %v1649 = vld [vmem:[%s1382 + $0x6c8] sm:$0xff]
        %v1650 = vld [vmem:[%s1382 + $0x6d0] sm:$0xff]
        %v1651 = vld [vmem:[%s1382 + $0x6d8] sm:$0xff]
        %v1652 = vld [vmem:[%s1382 + $0x6e0] sm:$0xff]
        %v1653 = vld [vmem:[%s1382 + $0x6e8] sm:$0xff]
        %v1654 = vld [vmem:[%s1382 + $0x6f0] sm:$0xff]
        %v1655 = vld [vmem:[%s1382 + $0x6f8] sm:$0xff]
        %v1656 = vld [vmem:[%s1382 + $0x700] sm:$0xff]
        %v1657 = vld [vmem:[%s1382 + $0x708] sm:$0xff]
        %v1658 = vld [vmem:[%s1382 + $0x710] sm:$0xff]
        %v1659 = vld [vmem:[%s1382 + $0x718] sm:$0xff]
        %v1660 = vld [vmem:[%s1382 + $0x720] sm:$0xff]
        %v1661 = vld [vmem:[%s1382 + $0x728] sm:$0xff]
        %v1662 = vld [vmem:[%s1382 + $0x730] sm:$0xff]
        %v1663 = vld [vmem:[%s1382 + $0x738] sm:$0xff]
        %v1664 = vld [vmem:[%s1382 + $0x740] sm:$0xff]
        %v1665 = vld [vmem:[%s1382 + $0x748] sm:$0xff]
        %v1666 = vld [vmem:[%s1382 + $0x750] sm:$0xff]
        %v1667 = vld [vmem:[%s1382 + $0x758] sm:$0xff]
        %v1668 = vld [vmem:[%s1382 + $0x760] sm:$0xff]
        %v1669 = vld [vmem:[%s1382 + $0x768] sm:$0xff]
        %v1670 = vld [vmem:[%s1382 + $0x770] sm:$0xff]
        %v1671 = vld [vmem:[%s1382 + $0x778] sm:$0xff]
        %v1672 = vld [vmem:[%s1382 + $0x780] sm:$0xff]
        %v1673 = vld [vmem:[%s1382 + $0x788] sm:$0xff]
        %v1674 = vld [vmem:[%s1382 + $0x790] sm:$0xff]
        %v1675 = vld [vmem:[%s1382 + $0x798] sm:$0xff]
        %v1676 = vld [vmem:[%s1382 + $0x7a0] sm:$0xff]
        %v1677 = vld [vmem:[%s1382 + $0x7a8] sm:$0xff]
        %v1678 = vld [vmem:[%s1382 + $0x7b0] sm:$0xff]
        %v1679 = vld [vmem:[%s1382 + $0x7b8] sm:$0xff]
        %v1680 = vld [vmem:[%s1382 + $0x7c0] sm:$0xff]
        %v1681 = vld [vmem:[%s1382 + $0x7c8] sm:$0xff]
        %v1682 = vld [vmem:[%s1382 + $0x7d0] sm:$0xff]
        %v1683 = vld [vmem:[%s1382 + $0x7d8] sm:$0xff]
        %v1684 = vld [vmem:[%s1382 + $0x7e0] sm:$0xff]
        %v1685 = vld [vmem:[%s1382 + $0x7e8] sm:$0xff]
        %v1686 = vld [vmem:[%s1382 + $0x7f0] sm:$0xff]
        %v1687 = vld [vmem:[%s1382 + $0x7f8] sm:$0xff]
        %v1688 = vld [vmem:[%s1382 + $0x800] sm:$0xff]
        %v1689 = vld [vmem:[%s1382 + $0x808] sm:$0xff]
        %v1690 = vld [vmem:[%s1382 + $0x810] sm:$0xff]
        %v1691 = vld [vmem:[%s1382 + $0x818] sm:$0xff]
        %v1692 = vld [vmem:[%s1382 + $0x820] sm:$0xff]
        %v1693 = vld [vmem:[%s1382 + $0x828] sm:$0xff]
        %v1694 = vld [vmem:[%s1382 + $0x830] sm:$0xff]
        %v1695 = vld [vmem:[%s1382 + $0x838] sm:$0xff]
        %v1696 = vld [vmem:[%s1382 + $0x840] sm:$0xff]
        %v1697 = vld [vmem:[%s1382 + $0x848] sm:$0xff]
        %v1698 = vld [vmem:[%s1382 + $0x850] sm:$0xff]
        %v1699 = vld [vmem:[%s1382 + $0x858] sm:$0xff]
        %v1700 = vld [vmem:[%s1382 + $0x860] sm:$0xff]
        %v1701 = vld [vmem:[%s1382 + $0x868] sm:$0xff]
        %v1702 = vld [vmem:[%s1382 + $0x870] sm:$0xff]
        %v1703 = vld [vmem:[%s1382 + $0x878] sm:$0xff]
        %v1704 = vld [vmem:[%s1382 + $0x880] sm:$0xff]
        %v1705 = vld [vmem:[%s1382 + $0x888] sm:$0xff]
        %v1706 = vld [vmem:[%s1382 + $0x890] sm:$0xff]
        %v1707 = vld [vmem:[%s1382 + $0x898] sm:$0xff]
        %v1708 = vld [vmem:[%s1382 + $0x8a0] sm:$0xff]
        %v1709 = vld [vmem:[%s1382 + $0x8a8] sm:$0xff]
        %v1710 = vld [vmem:[%s1382 + $0x8b0] sm:$0xff]
        %v1711 = vld [vmem:[%s1382 + $0x8b8] sm:$0xff]
        %v1712 = vld [vmem:[%s1382 + $0x8c0] sm:$0xff]
        %v1713 = vld [vmem:[%s1382 + $0x8c8] sm:$0xff]
        %v1714 = vld [vmem:[%s1382 + $0x8d0] sm:$0xff]
        %v1715 = vld [vmem:[%s1382 + $0x8d8] sm:$0xff]
        %v1716 = vld [vmem:[%s1382 + $0x8e0] sm:$0xff]
        %v1717 = vld [vmem:[%s1382 + $0x8e8] sm:$0xff]
        %v1718 = vld [vmem:[%s1382 + $0x8f0] sm:$0xff]
        %v1719 = vld [vmem:[%s1382 + $0x8f8] sm:$0xff]
        %v1720 = vld [vmem:[%s1382 + $0x900] sm:$0xff]
        %v1721 = vld [vmem:[%s1382 + $0x908] sm:$0xff]
        %v1722 = vld [vmem:[%s1382 + $0x910] sm:$0xff]
        %v1723 = vld [vmem:[%s1382 + $0x918] sm:$0xff]
        %v1724 = vld [vmem:[%s1382 + $0x920] sm:$0xff]
        %v1725 = vld [vmem:[%s1382 + $0x928] sm:$0xff]
        %v1726 = vld [vmem:[%s1382 + $0x930] sm:$0xff]
        %v1727 = vld [vmem:[%s1382 + $0x938] sm:$0xff]
        %v1728 = vld [vmem:[%s1382 + $0x940] sm:$0xff]
        %v1729 = vld [vmem:[%s1382 + $0x948] sm:$0xff]
        %v1730 = vld [vmem:[%s1382 + $0x950] sm:$0xff]
        %v1731 = vld [vmem:[%s1382 + $0x958] sm:$0xff]
        %v1732 = vld [vmem:[%s1382 + $0x960] sm:$0xff]
        %v1733 = vld [vmem:[%s1382 + $0x968] sm:$0xff]
        %v1734 = vld [vmem:[%s1382 + $0x970] sm:$0xff]
        %v1735 = vld [vmem:[%s1382 + $0x978] sm:$0xff]
        %v1736 = vld [vmem:[%s1382 + $0x980] sm:$0xff]
        %v1737 = vld [vmem:[%s1382 + $0x988] sm:$0xff]
        %v1738 = vld [vmem:[%s1382 + $0x990] sm:$0xff]
        %v1739 = vld [vmem:[%s1382 + $0x998] sm:$0xff]
        %v1740 = vld [vmem:[%s1382 + $0x9a0] sm:$0xff]
        %v1741 = vld [vmem:[%s1382 + $0x9a8] sm:$0xff]
        %v1742 = vld [vmem:[%s1382 + $0x9b0] sm:$0xff]
        %v1743 = vld [vmem:[%s1382 + $0x9b8] sm:$0xff]
        %v1744 = vld [vmem:[%s1382 + $0x9c0] sm:$0xff]
        %v1745 = vld [vmem:[%s1382 + $0x9c8] sm:$0xff]
        %v1746 = vld [vmem:[%s1382 + $0x9d0] sm:$0xff]
        %v1747 = vld [vmem:[%s1382 + $0x9d8] sm:$0xff]
        %v1748 = vld [vmem:[%s1382 + $0x9e0] sm:$0xff]
        %v1749 = vld [vmem:[%s1382 + $0x9e8] sm:$0xff]
        %v1750 = vld [vmem:[%s1382 + $0x9f0] sm:$0xff]
        %v1751 = vld [vmem:[%s1382 + $0x9f8] sm:$0xff]
        %v1752 = vld [vmem:[%s1382 + $0xa00] sm:$0xff]
        %v1753 = vld [vmem:[%s1382 + $0xa08] sm:$0xff]
        %v1754 = vld [vmem:[%s1382 + $0xa10] sm:$0xff]
        %v1755 = vld [vmem:[%s1382 + $0xa18] sm:$0xff]
        %v1756 = vld [vmem:[%s1382 + $0xa20] sm:$0xff]
        %v1757 = vld [vmem:[%s1382 + $0xa28] sm:$0xff]
        %v1758 = vld [vmem:[%s1382 + $0xa30] sm:$0xff]
        %v1759 = vld [vmem:[%s1382 + $0xa38] sm:$0xff]
        %v1760 = vld [vmem:[%s1382 + $0xa40] sm:$0xff]
        %v1761 = vld [vmem:[%s1382 + $0xa48] sm:$0xff]
        %v1762 = vld [vmem:[%s1382 + $0xa50] sm:$0xff]
        %v1763 = vld [vmem:[%s1382 + $0xa58] sm:$0xff]
        %v1764 = vld [vmem:[%s1382 + $0xa60] sm:$0xff]
        %v1765 = vld [vmem:[%s1382 + $0xa68] sm:$0xff]
        %v1766 = vld [vmem:[%s1382 + $0xa70] sm:$0xff]
        %v1767 = vld [vmem:[%s1382 + $0xa78] sm:$0xff]
        %v1768 = vld [vmem:[%s1382 + $0xa80] sm:$0xff]
        %v1769 = vld [vmem:[%s1382 + $0xa88] sm:$0xff]
        %v1770 = vld [vmem:[%s1382 + $0xa90] sm:$0xff]
        %v1771 = vld [vmem:[%s1382 + $0xa98] sm:$0xff]
        %v1772 = vld [vmem:[%s1382 + $0xaa0] sm:$0xff]
        %v1773 = vld [vmem:[%s1382 + $0xaa8] sm:$0xff]
        %v1774 = vld [vmem:[%s1382 + $0xab0] sm:$0xff]
        %v1775 = vld [vmem:[%s1382 + $0xab8] sm:$0xff]
        %v1776 = vld [vmem:[%s1382 + $0xac0] sm:$0xff]
        %v1777 = vld [vmem:[%s1382 + $0xac8] sm:$0xff]
        %v1778 = vld [vmem:[%s1382 + $0xad0] sm:$0xff]
        %v1779 = vld [vmem:[%s1382 + $0xad8] sm:$0xff]
        %v1780 = vld [vmem:[%s1382 + $0xae0] sm:$0xff]
        %v1781 = vld [vmem:[%s1382 + $0xae8] sm:$0xff]
        %v1782 = vld [vmem:[%s1382 + $0xaf0] sm:$0xff]
        %v1783 = vld [vmem:[%s1382 + $0xaf8] sm:$0xff]
        %v1784 = vld [vmem:[%s1382 + $0xb00] sm:$0xff]
        %v1785 = vld [vmem:[%s1382 + $0xb08] sm:$0xff]
        %v1786 = vld [vmem:[%s1382 + $0xb10] sm:$0xff]
        %v1787 = vld [vmem:[%s1382 + $0xb18] sm:$0xff]
        %v1788 = vld [vmem:[%s1382 + $0xb20] sm:$0xff]
        %v1789 = vld [vmem:[%s1382 + $0xb28] sm:$0xff]
        %v1790 = vld [vmem:[%s1382 + $0xb30] sm:$0xff]
        %v1791 = vld [vmem:[%s1382 + $0xb38] sm:$0xff]
        %v1792 = vld [vmem:[%s1382 + $0xb40] sm:$0xff]
        %v1793 = vld [vmem:[%s1382 + $0xb48] sm:$0xff]
        %v1794 = vld [vmem:[%s1382 + $0xb50] sm:$0xff]
        %v1795 = vld [vmem:[%s1382 + $0xb58] sm:$0xff]
        %v1796 = vld [vmem:[%s1382 + $0xb60] sm:$0xff]
        %v1797 = vld [vmem:[%s1382 + $0xb68] sm:$0xff]
        %v1798 = vld [vmem:[%s1382 + $0xb70] sm:$0xff]
        %v1799 = vld [vmem:[%s1382 + $0xb78] sm:$0xff]
        %v1800 = vld [vmem:[%s1382 + $0xb80] sm:$0xff]
        %v1801 = vld [vmem:[%s1382 + $0xb88] sm:$0xff]
        %v1802 = vld [vmem:[%s1382 + $0xb90] sm:$0xff]
        %v1803 = vld [vmem:[%s1382 + $0xb98] sm:$0xff]
        %v1804 = vld [vmem:[%s1382 + $0xba0] sm:$0xff]
        %v1805 = vld [vmem:[%s1382 + $0xba8] sm:$0xff]
        %v1806 = vld [vmem:[%s1382 + $0xbb0] sm:$0xff]
        %v1807 = vld [vmem:[%s1382 + $0xbb8] sm:$0xff]
        %v1808 = vld [vmem:[%s1382 + $0xbc0] sm:$0xff]
        %v1809 = vld [vmem:[%s1382 + $0xbc8] sm:$0xff]
        %v1810 = vld [vmem:[%s1382 + $0xbd0] sm:$0xff]
        %v1811 = vld [vmem:[%s1382 + $0xbd8] sm:$0xff]
        %v1812 = vld [vmem:[%s1382 + $0xbe0] sm:$0xff]
        %v1813 = vld [vmem:[%s1382 + $0xbe8] sm:$0xff]
        %v1814 = vld [vmem:[%s1382 + $0xbf0] sm:$0xff]
        %v1815 = vld [vmem:[%s1382 + $0xbf8] sm:$0xff]
        %v1816 = vld [vmem:[%s1382 + $0xc00] sm:$0xff]
        %v1817 = vld [vmem:[%s1382 + $0xc08] sm:$0xff]
        %v1818 = vld [vmem:[%s1382 + $0xc10] sm:$0xff]
        %v1819 = vld [vmem:[%s1382 + $0xc18] sm:$0xff]
        %v1820 = vld [vmem:[%s1382 + $0xc20] sm:$0xff]
        %v1821 = vld [vmem:[%s1382 + $0xc28] sm:$0xff]
        %v1822 = vld [vmem:[%s1382 + $0xc30] sm:$0xff]
        %v1823 = vld [vmem:[%s1382 + $0xc38] sm:$0xff]
        %v1824 = vld [vmem:[%s1382 + $0xc40] sm:$0xff]
        %v1825 = vld [vmem:[%s1382 + $0xc48] sm:$0xff]
        %v1826 = vld [vmem:[%s1382 + $0xc50] sm:$0xff]
        %v1827 = vld [vmem:[%s1382 + $0xc58] sm:$0xff]
        %v1828 = vld [vmem:[%s1382 + $0xc60] sm:$0xff]
        %v1829 = vld [vmem:[%s1382 + $0xc68] sm:$0xff]
        %v1830 = vld [vmem:[%s1382 + $0xc70] sm:$0xff]
        %v1831 = vld [vmem:[%s1382 + $0xc78] sm:$0xff]
        %v1832 = vld [vmem:[%s1382 + $0xc80] sm:$0xff]
        %v1833 = vld [vmem:[%s1382 + $0xc88] sm:$0xff]
        %v1834 = vld [vmem:[%s1382 + $0xc90] sm:$0xff]
        %v1835 = vld [vmem:[%s1382 + $0xc98] sm:$0xff]
        %v1836 = vld [vmem:[%s1382 + $0xca0] sm:$0xff]
        %v1837 = vld [vmem:[%s1382 + $0xca8] sm:$0xff]
        %v1838 = vld [vmem:[%s1382 + $0xcb0] sm:$0xff]
        %v1839 = vld [vmem:[%s1382 + $0xcb8] sm:$0xff]
        %v1840 = vld [vmem:[%s1382 + $0xcc0] sm:$0xff]
        %v1841 = vld [vmem:[%s1382 + $0xcc8] sm:$0xff]
        %v1842 = vld [vmem:[%s1382 + $0xcd0] sm:$0xff]
        %v1843 = vld [vmem:[%s1382 + $0xcd8] sm:$0xff]
        %v1844 = vld [vmem:[%s1382 + $0xce0] sm:$0xff]
        %v1845 = vld [vmem:[%s1382 + $0xce8] sm:$0xff]
        %v1846 = vld [vmem:[%s1382 + $0xcf0] sm:$0xff]
        %v1847 = vld [vmem:[%s1382 + $0xcf8] sm:$0xff]
        %v1848 = vld [vmem:[%s1382 + $0xd00] sm:$0xff]
        %v1849 = vld [vmem:[%s1382 + $0xd08] sm:$0xff]
        %v1850 = vld [vmem:[%s1382 + $0xd10] sm:$0xff]
        %v1851 = vld [vmem:[%s1382 + $0xd18] sm:$0xff]
        %v1852 = vld [vmem:[%s1382 + $0xd20] sm:$0xff]
        %v1853 = vld [vmem:[%s1382 + $0xd28] sm:$0xff]
        %v1854 = vld [vmem:[%s1382 + $0xd30] sm:$0xff]
        %v1855 = vld [vmem:[%s1382 + $0xd38] sm:$0xff]
        %v1856 = vld [vmem:[%s1382 + $0xd40] sm:$0xff]
        %v1857 = vld [vmem:[%s1382 + $0xd48] sm:$0xff]
        %v1858 = vld [vmem:[%s1382 + $0xd50] sm:$0xff]
        %v1859 = vld [vmem:[%s1382 + $0xd58] sm:$0xff]
        %v1860 = vld [vmem:[%s1382 + $0xd60] sm:$0xff]
        %v1861 = vld [vmem:[%s1382 + $0xd68] sm:$0xff]
        %v1862 = vld [vmem:[%s1382 + $0xd70] sm:$0xff]
        %v1863 = vld [vmem:[%s1382 + $0xd78] sm:$0xff]
        %v1864 = vld [vmem:[%s1382 + $0xd80] sm:$0xff]
        %v1865 = vld [vmem:[%s1382 + $0xd88] sm:$0xff]
        %v1866 = vld [vmem:[%s1382 + $0xd90] sm:$0xff]
        %v1867 = vld [vmem:[%s1382 + $0xd98] sm:$0xff]
        %v1868 = vld [vmem:[%s1382 + $0xda0] sm:$0xff]
        %v1869 = vld [vmem:[%s1382 + $0xda8] sm:$0xff]
        %v1870 = vld [vmem:[%s1382 + $0xdb0] sm:$0xff]
        %v1871 = vld [vmem:[%s1382 + $0xdb8] sm:$0xff]
        %v1872 = vld [vmem:[%s1382 + $0xdc0] sm:$0xff]
        %v1873 = vld [vmem:[%s1382 + $0xdc8] sm:$0xff]
        %v1874 = vld [vmem:[%s1382 + $0xdd0] sm:$0xff]
        %v1875 = vld [vmem:[%s1382 + $0xdd8] sm:$0xff]
        %v1876 = vld [vmem:[%s1382 + $0xde0] sm:$0xff]
        %v1877 = vld [vmem:[%s1382 + $0xde8] sm:$0xff]
        %v1878 = vld [vmem:[%s1382 + $0xdf0] sm:$0xff]
        %v1879 = vld [vmem:[%s1382 + $0xdf8] sm:$0xff]
        %v1880 = vld [vmem:[%s1382 + $0xe00] sm:$0xff]
        %v1881 = vld [vmem:[%s1382 + $0xe08] sm:$0xff]
        %v1882 = vld [vmem:[%s1382 + $0xe10] sm:$0xff]
        %v1883 = vld [vmem:[%s1382 + $0xe18] sm:$0xff]
        %v1884 = vld [vmem:[%s1382 + $0xe20] sm:$0xff]
        %v1885 = vld [vmem:[%s1382 + $0xe28] sm:$0xff]
        %v1886 = vld [vmem:[%s1382 + $0xe30] sm:$0xff]
        %v1887 = vld [vmem:[%s1382 + $0xe38] sm:$0xff]
        %v1888 = vld [vmem:[%s1382 + $0xe40] sm:$0xff]
        %v1889 = vld [vmem:[%s1382 + $0xe48] sm:$0xff]
        %v1890 = vld [vmem:[%s1382 + $0xe50] sm:$0xff]
        %v1891 = vld [vmem:[%s1382 + $0xe58] sm:$0xff]
        %v1892 = vld [vmem:[%s1382 + $0xe60] sm:$0xff]
        %v1893 = vld [vmem:[%s1382 + $0xe68] sm:$0xff]
        %v1894 = vld [vmem:[%s1382 + $0xe70] sm:$0xff]
        %v1895 = vld [vmem:[%s1382 + $0xe78] sm:$0xff]
        %v1896 = vld [vmem:[%s1382 + $0xe80] sm:$0xff]
        %v1897 = vld [vmem:[%s1382 + $0xe88] sm:$0xff]
        %v1898 = vld [vmem:[%s1382 + $0xe90] sm:$0xff]
        %v1899 = vld [vmem:[%s1382 + $0xe98] sm:$0xff]
        %v1900 = vld [vmem:[%s1382 + $0xea0] sm:$0xff]
        %v1901 = vld [vmem:[%s1382 + $0xea8] sm:$0xff]
        %v1902 = vld [vmem:[%s1382 + $0xeb0] sm:$0xff]
        %v1903 = vld [vmem:[%s1382 + $0xeb8] sm:$0xff]
        %v1904 = vld [vmem:[%s1382 + $0xec0] sm:$0xff]
        %v1905 = vld [vmem:[%s1382 + $0xec8] sm:$0xff]
        %v1906 = vld [vmem:[%s1382 + $0xed0] sm:$0xff]
        %v1907 = vld [vmem:[%s1382 + $0xed8] sm:$0xff]
        %v1908 = vld [vmem:[%s1382 + $0xee0] sm:$0xff]
        %v1909 = vld [vmem:[%s1382 + $0xee8] sm:$0xff]
        %v1910 = vld [vmem:[%s1382 + $0xef0] sm:$0xff]
        %v1911 = vld [vmem:[%s1382 + $0xef8] sm:$0xff]
        %v1912 = vld [vmem:[%s1382 + $0xf00] sm:$0xff]
        %v1913 = vld [vmem:[%s1382 + $0xf08] sm:$0xff]
        %v1914 = vld [vmem:[%s1382 + $0xf10] sm:$0xff]
        %v1915 = vld [vmem:[%s1382 + $0xf18] sm:$0xff]
        %v1916 = vld [vmem:[%s1382 + $0xf20] sm:$0xff]
        %v1917 = vld [vmem:[%s1382 + $0xf28] sm:$0xff]
        %v1918 = vld [vmem:[%s1382 + $0xf30] sm:$0xff]
        %v1919 = vld [vmem:[%s1382 + $0xf38] sm:$0xff]
        %v1920 = vld [vmem:[%s1382 + $0xf40] sm:$0xff]
        %v1921 = vld [vmem:[%s1382 + $0xf48] sm:$0xff]
        %v1922 = vld [vmem:[%s1382 + $0xf50] sm:$0xff]
        %v1923 = vld [vmem:[%s1382 + $0xf58] sm:$0xff]
        %v1924 = vld [vmem:[%s1382 + $0xf60] sm:$0xff]
        %v1925 = vld [vmem:[%s1382 + $0xf68] sm:$0xff]
        %v1926 = vld [vmem:[%s1382 + $0xf70] sm:$0xff]
        %v1927 = vld [vmem:[%s1382 + $0xf78] sm:$0xff]
        %v1928 = vld [vmem:[%s1382 + $0xf80] sm:$0xff]
        %v1929 = vld [vmem:[%s1382 + $0xf88] sm:$0xff]
        %v1930 = vld [vmem:[%s1382 + $0xf90] sm:$0xff]
        %v1931 = vld [vmem:[%s1382 + $0xf98] sm:$0xff]
        %v1932 = vld [vmem:[%s1382 + $0xfa0] sm:$0xff]
        %v1933 = vld [vmem:[%s1382 + $0xfa8] sm:$0xff]
        %v1934 = vld [vmem:[%s1382 + $0xfb0] sm:$0xff]
        %v1935 = vld [vmem:[%s1382 + $0xfb8] sm:$0xff]
        %v1936 = vld [vmem:[%s1382 + $0xfc0] sm:$0xff]
        %v1937 = vld [vmem:[%s1382 + $0xfc8] sm:$0xff]
        %v1938 = vld [vmem:[%s1382 + $0xfd0] sm:$0xff]
        %v1939 = vld [vmem:[%s1382 + $0xfd8] sm:$0xff]
        %v1940 = vld [vmem:[%s1382 + $0xfe0] sm:$0xff]
        %v1941 = vld [vmem:[%s1382 + $0xfe8] sm:$0xff]
        %v1942 = vld [vmem:[%s1382 + $0xff0] sm:$0xff]
        %v1943 = vld [vmem:[%s1382 + $0xff8] sm:$0xff]
        %v1944 = vld [vmem:[%s1382 + $0x1000] sm:$0xff]
        %v1945 = vld [vmem:[%s1382 + $0x1008] sm:$0xff]
        %v1946 = vld [vmem:[%s1382 + $0x1010] sm:$0xff]
        %v1947 = vld [vmem:[%s1382 + $0x1018] sm:$0xff]
        %v1948 = vld [vmem:[%s1382 + $0x1020] sm:$0xff]
        %v1949 = vld [vmem:[%s1382 + $0x1028] sm:$0xff]
        %v1950 = vld [vmem:[%s1382 + $0x1030] sm:$0xff]
        %v1951 = vld [vmem:[%s1382 + $0x1038] sm:$0xff]
        %v1952 = vld [vmem:[%s1382 + $0x1040] sm:$0xff]
        %v1953 = vld [vmem:[%s1382 + $0x1048] sm:$0xff]
        %v1954 = vld [vmem:[%s1382 + $0x1050] sm:$0xff]
        %v1955 = vld [vmem:[%s1382 + $0x1058] sm:$0xff]
        %v1956 = vld [vmem:[%s1382 + $0x1060] sm:$0xff]
        %v1957 = vld [vmem:[%s1382 + $0x1068] sm:$0xff]
        %v1958 = vld [vmem:[%s1382 + $0x1070] sm:$0xff]
        %v1959 = vld [vmem:[%s1382 + $0x1078] sm:$0xff]
        %v1960 = vld [vmem:[%s1382 + $0x1080] sm:$0xff]
        %v1961 = vld [vmem:[%s1382 + $0x1088] sm:$0xff]
        %v1962 = vld [vmem:[%s1382 + $0x1090] sm:$0xff]
        %v1963 = vld [vmem:[%s1382 + $0x1098] sm:$0xff]
        %v1964 = vld [vmem:[%s1382 + $0x10a0] sm:$0xff]
        %v1965 = vld [vmem:[%s1382 + $0x10a8] sm:$0xff]
        %v1966 = vld [vmem:[%s1382 + $0x10b0] sm:$0xff]
        %v1967 = vld [vmem:[%s1382 + $0x10b8] sm:$0xff]
        %v1968 = vld [vmem:[%s1382 + $0x10c0] sm:$0xff]
        %v1969 = vld [vmem:[%s1382 + $0x10c8] sm:$0xff]
        %v1970 = vld [vmem:[%s1382 + $0x10d0] sm:$0xff]
        %v1971 = vld [vmem:[%s1382 + $0x10d8] sm:$0xff]
        %v1972 = vld [vmem:[%s1382 + $0x10e0] sm:$0xff]
        %v1973 = vld [vmem:[%s1382 + $0x10e8] sm:$0xff]
        %v1974 = vld [vmem:[%s1382 + $0x10f0] sm:$0xff]
        %v1975 = vld [vmem:[%s1382 + $0x10f8] sm:$0xff]
        %v1976 = vld [vmem:[%s1382 + $0x1100] sm:$0xff]
        %v1977 = vld [vmem:[%s1382 + $0x1108] sm:$0xff]
        %v1978 = vld [vmem:[%s1382 + $0x1110] sm:$0xff]
        %v1979 = vld [vmem:[%s1382 + $0x1118] sm:$0xff]
        %v1980 = vld [vmem:[%s1382 + $0x1120] sm:$0xff]
        %v1981 = vld [vmem:[%s1382 + $0x1128] sm:$0xff]
        %v1982 = vld [vmem:[%s1382 + $0x1130] sm:$0xff]
        %v1983 = vld [vmem:[%s1382 + $0x1138] sm:$0xff]
        %v1984 = vld [vmem:[%s1382 + $0x1140] sm:$0xff]
        %v1985 = vld [vmem:[%s1382 + $0x1148] sm:$0xff]
        %v1986 = vld [vmem:[%s1382 + $0x1150] sm:$0xff]
        %v1987 = vld [vmem:[%s1382 + $0x1158] sm:$0xff]
        %v1988 = vld [vmem:[%s1382 + $0x1160] sm:$0xff]
        %v1989 = vld [vmem:[%s1382 + $0x1168] sm:$0xff]
        %v1990 = vld [vmem:[%s1382 + $0x1170] sm:$0xff]
        %v1991 = vld [vmem:[%s1382 + $0x1178] sm:$0xff]
        %v1992 = vld [vmem:[%s1382 + $0x1180] sm:$0xff]
        %v1993 = vld [vmem:[%s1382 + $0x1188] sm:$0xff]
        %v1994 = vld [vmem:[%s1382 + $0x1190] sm:$0xff]
        %v1995 = vld [vmem:[%s1382 + $0x1198] sm:$0xff]
        %v1996 = vld [vmem:[%s1382 + $0x11a0] sm:$0xff]
        %v1997 = vld [vmem:[%s1382 + $0x11a8] sm:$0xff]
        %v1998 = vld [vmem:[%s1382 + $0x11b0] sm:$0xff]
        %v1999 = vld [vmem:[%s1382 + $0x11b8] sm:$0xff]
        %v2000 = vld [vmem:[%s1382 + $0x11c0] sm:$0xff]
        %v2001 = vld [vmem:[%s1382 + $0x11c8] sm:$0xff]
        %v2002 = vld [vmem:[%s1382 + $0x11d0] sm:$0xff]
        %v2003 = vld [vmem:[%s1382 + $0x11d8] sm:$0xff]
        %v2004 = vld [vmem:[%s1382 + $0x11e0] sm:$0xff]
        %v2005 = vld [vmem:[%s1382 + $0x11e8] sm:$0xff]
        %v2006 = vld [vmem:[%s1382 + $0x11f0] sm:$0xff]
        %v2007 = vld [vmem:[%s1382 + $0x11f8] sm:$0xff]
        %v2008 = vld [vmem:[%s1415] sm:$0xf]
        %v2010 = vlaneseq
        %v2011 = vshrl.u32 %v2010, 7
        %v2012 = vsub.s32 0, %v2011
        %v2013 = vrot.slane %v2008, %v2012
        %v2014 = vlaneseq
        %v2015 = vshrl.u32 %v2014, 7
        %v2016 = vsub.s32 1, %v2015
        %v2017 = vrot.slane %v2008, %v2016
        %v2018 = vlaneseq
        %v2019 = vshrl.u32 %v2018, 7
        %v2020 = vsub.s32 2, %v2019
        %v2021 = vrot.slane %v2008, %v2020
        %v2022 = vlaneseq
        %v2023 = vshrl.u32 %v2022, 7
        %v2024 = vsub.s32 3, %v2023
        %v2025 = vrot.slane %v2008, %v2024
        %v2033 = vcombine.high %v1429, %v1429
        %v2035 = vunpack.c.l.s4 1966171168
        %v2036 = vunpack.c.0.s8 %v2035
        %v2037 = vlaneseq
        %v2038 = vshrl.u32 %v2037, 7
        %v2039 = vsub.s32 %v2036, %v2038
        %v2040 = vrot.slane %v1429, %v2039
        %v2042 = vunpack.c.l.s4 1966171168
        %v2043 = vunpack.c.0.s8 %v2042
        %v2044 = vlaneseq
        %v2045 = vshrl.u32 %v2044, 7
        %v2046 = vsub.s32 %v2043, %v2045
        %v2047 = vrot.slane %v2033, %v2046
        %v2048 = vcombine.high %v2040, %v2040
        %v2049 = vcombine.high %v2047, %v2047
        %v2051 = vunpack.c.l.s4 1966171168
        %v2052 = vunpack.c.0.s8 %v2051
        %v2053 = vlaneseq
        %v2054 = vshrl.u32 %v2053, 7
        %v2055 = vsub.s32 %v2052, %v2054
        %v2056 = vrot.slane %v2040, %v2055
        %v2058 = vunpack.c.l.s4 1966171168
        %v2059 = vunpack.c.0.s8 %v2058
        %v2060 = vlaneseq
        %v2061 = vshrl.u32 %v2060, 7
        %v2062 = vsub.s32 %v2059, %v2061
        %v2063 = vrot.slane %v2047, %v2062
        %v2065 = vunpack.c.l.s4 1966171168
        %v2066 = vunpack.c.0.s8 %v2065
        %v2067 = vlaneseq
        %v2068 = vshrl.u32 %v2067, 7
        %v2069 = vsub.s32 %v2066, %v2068
        %v2070 = vrot.slane %v2048, %v2069
        %v2072 = vunpack.c.l.s4 1966171168
        %v2073 = vunpack.c.0.s8 %v2072
        %v2074 = vlaneseq
        %v2075 = vshrl.u32 %v2074, 7
        %v2076 = vsub.s32 %v2073, %v2075
        %v2077 = vrot.slane %v2049, %v2076
        %v2078 = vcombine.high %v2056, %v2056
        %v2079 = vcombine.high %v2063, %v2063
        %v2080 = vcombine.high %v2070, %v2070
        %v2081 = vcombine.high %v2077, %v2077
        %v2082 = vcombine.high %v1430, %v1430
        %v2084 = vunpack.c.l.s4 1966171168
        %v2085 = vunpack.c.0.s8 %v2084
        %v2086 = vlaneseq
        %v2087 = vshrl.u32 %v2086, 7
        %v2088 = vsub.s32 %v2085, %v2087
        %v2089 = vrot.slane %v1430, %v2088
        %v2091 = vunpack.c.l.s4 1966171168
        %v2092 = vunpack.c.0.s8 %v2091
        %v2093 = vlaneseq
        %v2094 = vshrl.u32 %v2093, 7
        %v2095 = vsub.s32 %v2092, %v2094
        %v2096 = vrot.slane %v2082, %v2095
        %v2097 = vcombine.high %v2089, %v2089
        %v2098 = vcombine.high %v2096, %v2096
        %v2100 = vunpack.c.l.s4 1966171168
        %v2101 = vunpack.c.0.s8 %v2100
        %v2102 = vlaneseq
        %v2103 = vshrl.u32 %v2102, 7
        %v2104 = vsub.s32 %v2101, %v2103
        %v2105 = vrot.slane %v2089, %v2104
        %v2107 = vunpack.c.l.s4 1966171168
        %v2108 = vunpack.c.0.s8 %v2107
        %v2109 = vlaneseq
        %v2110 = vshrl.u32 %v2109, 7
        %v2111 = vsub.s32 %v2108, %v2110
        %v2112 = vrot.slane %v2096, %v2111
        %v2114 = vunpack.c.l.s4 1966171168
        %v2115 = vunpack.c.0.s8 %v2114
        %v2116 = vlaneseq
        %v2117 = vshrl.u32 %v2116, 7
        %v2118 = vsub.s32 %v2115, %v2117
        %v2119 = vrot.slane %v2097, %v2118
        %v2121 = vunpack.c.l.s4 1966171168
        %v2122 = vunpack.c.0.s8 %v2121
        %v2123 = vlaneseq
        %v2124 = vshrl.u32 %v2123, 7
        %v2125 = vsub.s32 %v2122, %v2124
        %v2126 = vrot.slane %v2098, %v2125
        %v2127 = vcombine.high %v2105, %v2105
        %v2128 = vcombine.high %v2112, %v2112
        %v2129 = vcombine.high %v2119, %v2119
        %v2130 = vcombine.high %v2126, %v2126
        %v2132 = vunpack.c.l.s4 1966171168
        %v2133 = vunpack.c.0.s8 %v2132
        %v2134 = vlaneseq
        %v2135 = vshrl.u32 %v2134, 7
        %v2136 = vsub.s32 %v2133, %v2135
        %v2137 = vrot.slane %v1431, %v2136
        %v2138 = vcombine.high %v2137, %v2137
        %v2140 = vunpack.c.l.s4 1966171168
        %v2141 = vunpack.c.0.s8 %v2140
        %v2142 = vlaneseq
        %v2143 = vshrl.u32 %v2142, 7
        %v2144 = vsub.s32 %v2141, %v2143
        %v2145 = vrot.slane %v2137, %v2144
        %v2147 = vunpack.c.l.s4 1966171168
        %v2148 = vunpack.c.0.s8 %v2147
        %v2149 = vlaneseq
        %v2150 = vshrl.u32 %v2149, 7
        %v2151 = vsub.s32 %v2148, %v2150
        %v2152 = vrot.slane %v2138, %v2151
        %v2747 = vunpack.c.l.b16 %v1432
        %v2748 = vunpack.c.h.b16 %v1432
        %v2749 = vunpack.c.l.b16 %v1433
        %v2750 = vunpack.c.h.b16 %v1433
        %v2751 = vunpack.c.l.b16 %v1434
        %v2752 = vunpack.c.h.b16 %v1434
        %v2753 = vunpack.c.l.b16 %v1435
        %v2754 = vunpack.c.h.b16 %v1435
        %v2755 = vunpack.c.l.b16 %v1436
        %v2756 = vunpack.c.h.b16 %v1436
        %v2757 = vunpack.c.l.b16 %v1437
        %v2758 = vunpack.c.h.b16 %v1437
        %v2759 = vunpack.c.l.b16 %v1438
        %v2760 = vunpack.c.h.b16 %v1438
        %v2761 = vunpack.c.l.b16 %v1439
        %v2762 = vunpack.c.h.b16 %v1439
        %v2763 = vunpack.c.l.b16 %v1440
        %v2764 = vunpack.c.h.b16 %v1440
        %v2765 = vunpack.c.l.b16 %v1441
        %v2766 = vunpack.c.h.b16 %v1441
        %v2767 = vunpack.c.l.b16 %v1442
        %v2768 = vunpack.c.h.b16 %v1442
        %v2769 = vunpack.c.l.b16 %v1443
        %v2770 = vunpack.c.h.b16 %v1443
        %v2771 = vunpack.c.l.b16 %v1444
        %v2772 = vunpack.c.h.b16 %v1444
        %v2773 = vunpack.c.l.b16 %v1445
        %v2774 = vunpack.c.h.b16 %v1445
        %v2775 = vunpack.c.l.b16 %v1446
        %v2776 = vunpack.c.h.b16 %v1446
        %v2777 = vunpack.c.l.b16 %v1447
        %v2778 = vunpack.c.h.b16 %v1447
        %v2779 = vunpack.c.l.b16 %v1448
        %v2780 = vunpack.c.h.b16 %v1448
        %v2781 = vunpack.c.l.b16 %v1449
        %v2782 = vunpack.c.h.b16 %v1449
        %v2783 = vunpack.c.l.b16 %v1450
        %v2784 = vunpack.c.h.b16 %v1450
        %v2785 = vunpack.c.l.b16 %v1451
        %v2786 = vunpack.c.h.b16 %v1451
        %v2787 = vunpack.c.l.b16 %v1452
        %v2788 = vunpack.c.h.b16 %v1452
        %v2789 = vunpack.c.l.b16 %v1453
        %v2790 = vunpack.c.h.b16 %v1453
        %v2791 = vunpack.c.l.b16 %v1454
        %v2792 = vunpack.c.h.b16 %v1454
        %v2793 = vunpack.c.l.b16 %v1455
        %v2794 = vunpack.c.h.b16 %v1455
        %v2795 = vunpack.c.l.b16 %v1456
        %v2796 = vunpack.c.h.b16 %v1456
        %v2797 = vunpack.c.l.b16 %v1457
        %v2798 = vunpack.c.h.b16 %v1457
        %v2799 = vunpack.c.l.b16 %v1458
        %v2800 = vunpack.c.h.b16 %v1458
        %v2801 = vunpack.c.l.b16 %v1459
        %v2802 = vunpack.c.h.b16 %v1459
        %v2803 = vunpack.c.l.b16 %v1460
        %v2804 = vunpack.c.h.b16 %v1460
        %v2805 = vunpack.c.l.b16 %v1461
        %v2806 = vunpack.c.h.b16 %v1461
        %v2807 = vunpack.c.l.b16 %v1462
        %v2808 = vunpack.c.h.b16 %v1462
        %v2809 = vunpack.c.l.b16 %v1463
        %v2810 = vunpack.c.h.b16 %v1463
        %v2811 = vunpack.c.l.b16 %v1464
        %v2812 = vunpack.c.h.b16 %v1464
        %v2813 = vunpack.c.l.b16 %v1465
        %v2814 = vunpack.c.h.b16 %v1465
        %v2815 = vunpack.c.l.b16 %v1466
        %v2816 = vunpack.c.h.b16 %v1466
        %v2817 = vunpack.c.l.b16 %v1467
        %v2818 = vunpack.c.h.b16 %v1467
        %v2819 = vunpack.c.l.b16 %v1468
        %v2820 = vunpack.c.h.b16 %v1468
        %v2821 = vunpack.c.l.b16 %v1469
        %v2822 = vunpack.c.h.b16 %v1469
        %v2823 = vunpack.c.l.b16 %v1470
        %v2824 = vunpack.c.h.b16 %v1470
        %v2825 = vunpack.c.l.b16 %v1471
        %v2826 = vunpack.c.h.b16 %v1471
        %v2827 = vunpack.c.l.b16 %v1472
        %v2828 = vunpack.c.h.b16 %v1472
        %v2829 = vunpack.c.l.b16 %v1473
        %v2830 = vunpack.c.h.b16 %v1473
        %v2831 = vunpack.c.l.b16 %v1474
        %v2832 = vunpack.c.h.b16 %v1474
        %v2833 = vunpack.c.l.b16 %v1475
        %v2834 = vunpack.c.h.b16 %v1475
        %v2835 = vunpack.c.l.b16 %v1476
        %v2836 = vunpack.c.h.b16 %v1476
        %v2837 = vunpack.c.l.b16 %v1477
        %v2838 = vunpack.c.h.b16 %v1477
        %v2839 = vunpack.c.l.b16 %v1478
        %v2840 = vunpack.c.h.b16 %v1478
        %v2841 = vunpack.c.l.b16 %v1479
        %v2842 = vunpack.c.h.b16 %v1479
        %v2843 = vunpack.c.l.b16 %v1480
        %v2844 = vunpack.c.h.b16 %v1480
        %v2845 = vunpack.c.l.b16 %v1481
        %v2846 = vunpack.c.h.b16 %v1481
        %v2847 = vunpack.c.l.b16 %v1482
        %v2848 = vunpack.c.h.b16 %v1482
        %v2849 = vunpack.c.l.b16 %v1483
        %v2850 = vunpack.c.h.b16 %v1483
        %v2851 = vunpack.c.l.b16 %v1484
        %v2852 = vunpack.c.h.b16 %v1484
        %v2853 = vunpack.c.l.b16 %v1485
        %v2854 = vunpack.c.h.b16 %v1485
        %v2855 = vunpack.c.l.b16 %v1486
        %v2856 = vunpack.c.h.b16 %v1486
        %v2857 = vunpack.c.l.b16 %v1487
        %v2858 = vunpack.c.h.b16 %v1487
        %v2859 = vunpack.c.l.b16 %v1488
        %v2860 = vunpack.c.h.b16 %v1488
        %v2861 = vunpack.c.l.b16 %v1489
        %v2862 = vunpack.c.h.b16 %v1489
        %v2863 = vunpack.c.l.b16 %v1490
        %v2864 = vunpack.c.h.b16 %v1490
        %v2865 = vunpack.c.l.b16 %v1491
        %v2866 = vunpack.c.h.b16 %v1491
        %v2867 = vunpack.c.l.b16 %v1492
        %v2868 = vunpack.c.h.b16 %v1492
        %v2869 = vunpack.c.l.b16 %v1493
        %v2870 = vunpack.c.h.b16 %v1493
        %v2871 = vunpack.c.l.b16 %v1494
        %v2872 = vunpack.c.h.b16 %v1494
        %v2873 = vunpack.c.l.b16 %v1495
        %v2874 = vunpack.c.h.b16 %v1495
        %v2875 = vunpack.c.l.b16 %v1496
        %v2876 = vunpack.c.h.b16 %v1496
        %v2877 = vunpack.c.l.b16 %v1497
        %v2878 = vunpack.c.h.b16 %v1497
        %v2879 = vunpack.c.l.b16 %v1498
        %v2880 = vunpack.c.h.b16 %v1498
        %v2881 = vunpack.c.l.b16 %v1499
        %v2882 = vunpack.c.h.b16 %v1499
        %v2883 = vunpack.c.l.b16 %v1500
        %v2884 = vunpack.c.h.b16 %v1500
        %v2885 = vunpack.c.l.b16 %v1501
        %v2886 = vunpack.c.h.b16 %v1501
        %v2887 = vunpack.c.l.b16 %v1502
        %v2888 = vunpack.c.h.b16 %v1502
        %v2889 = vunpack.c.l.b16 %v1503
        %v2890 = vunpack.c.h.b16 %v1503
        %v2891 = vunpack.c.l.b16 %v1504
        %v2892 = vunpack.c.h.b16 %v1504
        %v2893 = vunpack.c.l.b16 %v1505
        %v2894 = vunpack.c.h.b16 %v1505
        %v2895 = vunpack.c.l.b16 %v1506
        %v2896 = vunpack.c.h.b16 %v1506
        %v2897 = vunpack.c.l.b16 %v1507
        %v2898 = vunpack.c.h.b16 %v1507
        %v2899 = vunpack.c.l.b16 %v1508
        %v2900 = vunpack.c.h.b16 %v1508
        %v2901 = vunpack.c.l.b16 %v1509
        %v2902 = vunpack.c.h.b16 %v1509
        %v2903 = vunpack.c.l.b16 %v1510
        %v2904 = vunpack.c.h.b16 %v1510
        %v2905 = vunpack.c.l.b16 %v1511
        %v2906 = vunpack.c.h.b16 %v1511
        %v2907 = vunpack.c.l.b16 %v1512
        %v2908 = vunpack.c.h.b16 %v1512
        %v2909 = vunpack.c.l.b16 %v1513
        %v2910 = vunpack.c.h.b16 %v1513
        %v2911 = vunpack.c.l.b16 %v1514
        %v2912 = vunpack.c.h.b16 %v1514
        %v2913 = vunpack.c.l.b16 %v1515
        %v2914 = vunpack.c.h.b16 %v1515
        %v2915 = vunpack.c.l.b16 %v1516
        %v2916 = vunpack.c.h.b16 %v1516
        %v2917 = vunpack.c.l.b16 %v1517
        %v2918 = vunpack.c.h.b16 %v1517
        %v2919 = vunpack.c.l.b16 %v1518
        %v2920 = vunpack.c.h.b16 %v1518
        %v2921 = vunpack.c.l.b16 %v1519
        %v2922 = vunpack.c.h.b16 %v1519
        %v2923 = vunpack.c.l.b16 %v1520
        %v2924 = vunpack.c.h.b16 %v1520
        %v2925 = vunpack.c.l.b16 %v1521
        %v2926 = vunpack.c.h.b16 %v1521
        %v2927 = vunpack.c.l.b16 %v1522
        %v2928 = vunpack.c.h.b16 %v1522
        %v2929 = vunpack.c.l.b16 %v1523
        %v2930 = vunpack.c.h.b16 %v1523
        %v2931 = vunpack.c.l.b16 %v1524
        %v2932 = vunpack.c.h.b16 %v1524
        %v2933 = vunpack.c.l.b16 %v1525
        %v2934 = vunpack.c.h.b16 %v1525
        %v2935 = vunpack.c.l.b16 %v1526
        %v2936 = vunpack.c.h.b16 %v1526
        %v2937 = vunpack.c.l.b16 %v1527
        %v2938 = vunpack.c.h.b16 %v1527
        %v2939 = vunpack.c.l.b16 %v1528
        %v2940 = vunpack.c.h.b16 %v1528
        %v2941 = vunpack.c.l.b16 %v1529
        %v2942 = vunpack.c.h.b16 %v1529
        %v2943 = vunpack.c.l.b16 %v1530
        %v2944 = vunpack.c.h.b16 %v1530
        %v2945 = vunpack.c.l.b16 %v1531
        %v2946 = vunpack.c.h.b16 %v1531
        %v2947 = vunpack.c.l.b16 %v1532
        %v2948 = vunpack.c.h.b16 %v1532
        %v2949 = vunpack.c.l.b16 %v1533
        %v2950 = vunpack.c.h.b16 %v1533
        %v2951 = vunpack.c.l.b16 %v1534
        %v2952 = vunpack.c.h.b16 %v1534
        %v2953 = vunpack.c.l.b16 %v1535
        %v2954 = vunpack.c.h.b16 %v1535
        %v2955 = vunpack.c.l.b16 %v1536
        %v2956 = vunpack.c.h.b16 %v1536
        %v2957 = vunpack.c.l.b16 %v1537
        %v2958 = vunpack.c.h.b16 %v1537
        %v2959 = vunpack.c.l.b16 %v1538
        %v2960 = vunpack.c.h.b16 %v1538
        %v2961 = vunpack.c.l.b16 %v1539
        %v2962 = vunpack.c.h.b16 %v1539
        %v2963 = vunpack.c.l.b16 %v1540
        %v2964 = vunpack.c.h.b16 %v1540
        %v2965 = vunpack.c.l.b16 %v1541
        %v2966 = vunpack.c.h.b16 %v1541
        %v2967 = vunpack.c.l.b16 %v1542
        %v2968 = vunpack.c.h.b16 %v1542
        %v2969 = vunpack.c.l.b16 %v1543
        %v2970 = vunpack.c.h.b16 %v1543
        %v2971 = vunpack.c.l.b16 %v1544
        %v2972 = vunpack.c.h.b16 %v1544
        %v2973 = vunpack.c.l.b16 %v1545
        %v2974 = vunpack.c.h.b16 %v1545
        %v2975 = vunpack.c.l.b16 %v1546
        %v2976 = vunpack.c.h.b16 %v1546
        %v2977 = vunpack.c.l.b16 %v1547
        %v2978 = vunpack.c.h.b16 %v1547
        %v2979 = vunpack.c.l.b16 %v1548
        %v2980 = vunpack.c.h.b16 %v1548
        %v2981 = vunpack.c.l.b16 %v1549
        %v2982 = vunpack.c.h.b16 %v1549
        %v2983 = vunpack.c.l.b16 %v1550
        %v2984 = vunpack.c.h.b16 %v1550
        %v2985 = vunpack.c.l.b16 %v1551
        %v2986 = vunpack.c.h.b16 %v1551
        %v2987 = vunpack.c.l.b16 %v1552
        %v2988 = vunpack.c.h.b16 %v1552
        %v2989 = vunpack.c.l.b16 %v1553
        %v2990 = vunpack.c.h.b16 %v1553
        %v2991 = vunpack.c.l.b16 %v1554
        %v2992 = vunpack.c.h.b16 %v1554
        %v2993 = vunpack.c.l.b16 %v1555
        %v2994 = vunpack.c.h.b16 %v1555
        %v2995 = vunpack.c.l.b16 %v1556
        %v2996 = vunpack.c.h.b16 %v1556
        %v2997 = vunpack.c.l.b16 %v1557
        %v2998 = vunpack.c.h.b16 %v1557
        %v2999 = vunpack.c.l.b16 %v1558
        %v3000 = vunpack.c.h.b16 %v1558
        %v3001 = vunpack.c.l.b16 %v1559
        %v3002 = vunpack.c.h.b16 %v1559
        %v3003 = vunpack.c.l.b16 %v1560
        %v3004 = vunpack.c.h.b16 %v1560
        %v3005 = vunpack.c.l.b16 %v1561
        %v3006 = vunpack.c.h.b16 %v1561
        %v3007 = vunpack.c.l.b16 %v1562
        %v3008 = vunpack.c.h.b16 %v1562
        %v3009 = vunpack.c.l.b16 %v1563
        %v3010 = vunpack.c.h.b16 %v1563
        %v3011 = vunpack.c.l.b16 %v1564
        %v3012 = vunpack.c.h.b16 %v1564
        %v3013 = vunpack.c.l.b16 %v1565
        %v3014 = vunpack.c.h.b16 %v1565
        %v3015 = vunpack.c.l.b16 %v1566
        %v3016 = vunpack.c.h.b16 %v1566
        %v3017 = vunpack.c.l.b16 %v1567
        %v3018 = vunpack.c.h.b16 %v1567
        %v3019 = vunpack.c.l.b16 %v1568
        %v3020 = vunpack.c.h.b16 %v1568
        %v3021 = vunpack.c.l.b16 %v1569
        %v3022 = vunpack.c.h.b16 %v1569
        %v3023 = vunpack.c.l.b16 %v1570
        %v3024 = vunpack.c.h.b16 %v1570
        %v3025 = vunpack.c.l.b16 %v1571
        %v3026 = vunpack.c.h.b16 %v1571
        %v3027 = vunpack.c.l.b16 %v1572
        %v3028 = vunpack.c.h.b16 %v1572
        %v3029 = vunpack.c.l.b16 %v1573
        %v3030 = vunpack.c.h.b16 %v1573
        %v3031 = vunpack.c.l.b16 %v1574
        %v3032 = vunpack.c.h.b16 %v1574
        %v3033 = vunpack.c.l.b16 %v1575
        %v3034 = vunpack.c.h.b16 %v1575
        %v3035 = vunpack.c.l.b16 %v1576
        %v3036 = vunpack.c.h.b16 %v1576
        %v3037 = vunpack.c.l.b16 %v1577
        %v3038 = vunpack.c.h.b16 %v1577
        %v3039 = vunpack.c.l.b16 %v1578
        %v3040 = vunpack.c.h.b16 %v1578
        %v3041 = vunpack.c.l.b16 %v1579
        %v3042 = vunpack.c.h.b16 %v1579
        %v3043 = vunpack.c.l.b16 %v1580
        %v3044 = vunpack.c.h.b16 %v1580
        %v3045 = vunpack.c.l.b16 %v1581
        %v3046 = vunpack.c.h.b16 %v1581
        %v3047 = vunpack.c.l.b16 %v1582
        %v3048 = vunpack.c.h.b16 %v1582
        %v3049 = vunpack.c.l.b16 %v1583
        %v3050 = vunpack.c.h.b16 %v1583
        %v3051 = vunpack.c.l.b16 %v1584
        %v3052 = vunpack.c.h.b16 %v1584
        %v3053 = vunpack.c.l.b16 %v1585
        %v3054 = vunpack.c.h.b16 %v1585
        %v3055 = vunpack.c.l.b16 %v1586
        %v3056 = vunpack.c.h.b16 %v1586
        %v3057 = vunpack.c.l.b16 %v1587
        %v3058 = vunpack.c.h.b16 %v1587
        %v3059 = vunpack.c.l.b16 %v1588
        %v3060 = vunpack.c.h.b16 %v1588
        %v3061 = vunpack.c.l.b16 %v1589
        %v3062 = vunpack.c.h.b16 %v1589
        %v3063 = vunpack.c.l.b16 %v1590
        %v3064 = vunpack.c.h.b16 %v1590
        %v3065 = vunpack.c.l.b16 %v1591
        %v3066 = vunpack.c.h.b16 %v1591
        %v3067 = vunpack.c.l.b16 %v1592
        %v3068 = vunpack.c.h.b16 %v1592
        %v3069 = vunpack.c.l.b16 %v1593
        %v3070 = vunpack.c.h.b16 %v1593
        %v3071 = vunpack.c.l.b16 %v1594
        %v3072 = vunpack.c.h.b16 %v1594
        %v3073 = vunpack.c.l.b16 %v1595
        %v3074 = vunpack.c.h.b16 %v1595
        %v3075 = vunpack.c.l.b16 %v1596
        %v3076 = vunpack.c.h.b16 %v1596
        %v3077 = vunpack.c.l.b16 %v1597
        %v3078 = vunpack.c.h.b16 %v1597
        %v3079 = vunpack.c.l.b16 %v1598
        %v3080 = vunpack.c.h.b16 %v1598
        %v3081 = vunpack.c.l.b16 %v1599
        %v3082 = vunpack.c.h.b16 %v1599
        %v3083 = vunpack.c.l.b16 %v1600
        %v3084 = vunpack.c.h.b16 %v1600
        %v3085 = vunpack.c.l.b16 %v1601
        %v3086 = vunpack.c.h.b16 %v1601
        %v3087 = vunpack.c.l.b16 %v1602
        %v3088 = vunpack.c.h.b16 %v1602
        %v3089 = vunpack.c.l.b16 %v1603
        %v3090 = vunpack.c.h.b16 %v1603
        %v3091 = vunpack.c.l.b16 %v1604
        %v3092 = vunpack.c.h.b16 %v1604
        %v3093 = vunpack.c.l.b16 %v1605
        %v3094 = vunpack.c.h.b16 %v1605
        %v3095 = vunpack.c.l.b16 %v1606
        %v3096 = vunpack.c.h.b16 %v1606
        %v3097 = vunpack.c.l.b16 %v1607
        %v3098 = vunpack.c.h.b16 %v1607
        %v3099 = vunpack.c.l.b16 %v1608
        %v3100 = vunpack.c.h.b16 %v1608
        %v3101 = vunpack.c.l.b16 %v1609
        %v3102 = vunpack.c.h.b16 %v1609
        %v3103 = vunpack.c.l.b16 %v1610
        %v3104 = vunpack.c.h.b16 %v1610
        %v3105 = vunpack.c.l.b16 %v1611
        %v3106 = vunpack.c.h.b16 %v1611
        %v3107 = vunpack.c.l.b16 %v1612
        %v3108 = vunpack.c.h.b16 %v1612
        %v3109 = vunpack.c.l.b16 %v1613
        %v3110 = vunpack.c.h.b16 %v1613
        %v3111 = vunpack.c.l.b16 %v1614
        %v3112 = vunpack.c.h.b16 %v1614
        %v3113 = vunpack.c.l.b16 %v1615
        %v3114 = vunpack.c.h.b16 %v1615
        %v3115 = vunpack.c.l.b16 %v1616
        %v3116 = vunpack.c.h.b16 %v1616
        %v3117 = vunpack.c.l.b16 %v1617
        %v3118 = vunpack.c.h.b16 %v1617
        %v3119 = vunpack.c.l.b16 %v1618
        %v3120 = vunpack.c.h.b16 %v1618
        %v3121 = vunpack.c.l.b16 %v1619
        %v3122 = vunpack.c.h.b16 %v1619
        %v3123 = vunpack.c.l.b16 %v1620
        %v3124 = vunpack.c.h.b16 %v1620
        %v3125 = vunpack.c.l.b16 %v1621
        %v3126 = vunpack.c.h.b16 %v1621
        %v3127 = vunpack.c.l.b16 %v1622
        %v3128 = vunpack.c.h.b16 %v1622
        %v3129 = vunpack.c.l.b16 %v1623
        %v3130 = vunpack.c.h.b16 %v1623
        %v3131 = vunpack.c.l.b16 %v1624
        %v3132 = vunpack.c.h.b16 %v1624
        %v3133 = vunpack.c.l.b16 %v1625
        %v3134 = vunpack.c.h.b16 %v1625
        %v3135 = vunpack.c.l.b16 %v1626
        %v3136 = vunpack.c.h.b16 %v1626
        %v3137 = vunpack.c.l.b16 %v1627
        %v3138 = vunpack.c.h.b16 %v1627
        %v3139 = vunpack.c.l.b16 %v1628
        %v3140 = vunpack.c.h.b16 %v1628
        %v3141 = vunpack.c.l.b16 %v1629
        %v3142 = vunpack.c.h.b16 %v1629
        %v3143 = vunpack.c.l.b16 %v1630
        %v3144 = vunpack.c.h.b16 %v1630
        %v3145 = vunpack.c.l.b16 %v1631
        %v3146 = vunpack.c.h.b16 %v1631
        %v3147 = vunpack.c.l.b16 %v1632
        %v3148 = vunpack.c.h.b16 %v1632
        %v3149 = vunpack.c.l.b16 %v1633
        %v3150 = vunpack.c.h.b16 %v1633
        %v3151 = vunpack.c.l.b16 %v1634
        %v3152 = vunpack.c.h.b16 %v1634
        %v3153 = vunpack.c.l.b16 %v1635
        %v3154 = vunpack.c.h.b16 %v1635
        %v3155 = vunpack.c.l.b16 %v1636
        %v3156 = vunpack.c.h.b16 %v1636
        %v3157 = vunpack.c.l.b16 %v1637
        %v3158 = vunpack.c.h.b16 %v1637
        %v3159 = vunpack.c.l.b16 %v1638
        %v3160 = vunpack.c.h.b16 %v1638
        %v3161 = vunpack.c.l.b16 %v1639
        %v3162 = vunpack.c.h.b16 %v1639
        %v3163 = vunpack.c.l.b16 %v1640
        %v3164 = vunpack.c.h.b16 %v1640
        %v3165 = vunpack.c.l.b16 %v1641
        %v3166 = vunpack.c.h.b16 %v1641
        %v3167 = vunpack.c.l.b16 %v1642
        %v3168 = vunpack.c.h.b16 %v1642
        %v3169 = vunpack.c.l.b16 %v1643
        %v3170 = vunpack.c.h.b16 %v1643
        %v3171 = vunpack.c.l.b16 %v1644
        %v3172 = vunpack.c.h.b16 %v1644
        %v3173 = vunpack.c.l.b16 %v1645
        %v3174 = vunpack.c.h.b16 %v1645
        %v3175 = vunpack.c.l.b16 %v1646
        %v3176 = vunpack.c.h.b16 %v1646
        %v3177 = vunpack.c.l.b16 %v1647
        %v3178 = vunpack.c.h.b16 %v1647
        %v3179 = vunpack.c.l.b16 %v1648
        %v3180 = vunpack.c.h.b16 %v1648
        %v3181 = vunpack.c.l.b16 %v1649
        %v3182 = vunpack.c.h.b16 %v1649
        %v3183 = vunpack.c.l.b16 %v1650
        %v3184 = vunpack.c.h.b16 %v1650
        %v3185 = vunpack.c.l.b16 %v1651
        %v3186 = vunpack.c.h.b16 %v1651
        %v3187 = vunpack.c.l.b16 %v1652
        %v3188 = vunpack.c.h.b16 %v1652
        %v3189 = vunpack.c.l.b16 %v1653
        %v3190 = vunpack.c.h.b16 %v1653
        %v3191 = vunpack.c.l.b16 %v1654
        %v3192 = vunpack.c.h.b16 %v1654
        %v3193 = vunpack.c.l.b16 %v1655
        %v3194 = vunpack.c.h.b16 %v1655
        %v3195 = vunpack.c.l.b16 %v1656
        %v3196 = vunpack.c.h.b16 %v1656
        %v3197 = vunpack.c.l.b16 %v1657
        %v3198 = vunpack.c.h.b16 %v1657
        %v3199 = vunpack.c.l.b16 %v1658
        %v3200 = vunpack.c.h.b16 %v1658
        %v3201 = vunpack.c.l.b16 %v1659
        %v3202 = vunpack.c.h.b16 %v1659
        %v3203 = vunpack.c.l.b16 %v1660
        %v3204 = vunpack.c.h.b16 %v1660
        %v3205 = vunpack.c.l.b16 %v1661
        %v3206 = vunpack.c.h.b16 %v1661
        %v3207 = vunpack.c.l.b16 %v1662
        %v3208 = vunpack.c.h.b16 %v1662
        %v3209 = vunpack.c.l.b16 %v1663
        %v3210 = vunpack.c.h.b16 %v1663
        %v3211 = vunpack.c.l.b16 %v1664
        %v3212 = vunpack.c.h.b16 %v1664
        %v3213 = vunpack.c.l.b16 %v1665
        %v3214 = vunpack.c.h.b16 %v1665
        %v3215 = vunpack.c.l.b16 %v1666
        %v3216 = vunpack.c.h.b16 %v1666
        %v3217 = vunpack.c.l.b16 %v1667
        %v3218 = vunpack.c.h.b16 %v1667
        %v3219 = vunpack.c.l.b16 %v1668
        %v3220 = vunpack.c.h.b16 %v1668
        %v3221 = vunpack.c.l.b16 %v1669
        %v3222 = vunpack.c.h.b16 %v1669
        %v3223 = vunpack.c.l.b16 %v1670
        %v3224 = vunpack.c.h.b16 %v1670
        %v3225 = vunpack.c.l.b16 %v1671
        %v3226 = vunpack.c.h.b16 %v1671
        %v3227 = vunpack.c.l.b16 %v1672
        %v3228 = vunpack.c.h.b16 %v1672
        %v3229 = vunpack.c.l.b16 %v1673
        %v3230 = vunpack.c.h.b16 %v1673
        %v3231 = vunpack.c.l.b16 %v1674
        %v3232 = vunpack.c.h.b16 %v1674
        %v3233 = vunpack.c.l.b16 %v1675
        %v3234 = vunpack.c.h.b16 %v1675
        %v3235 = vunpack.c.l.b16 %v1676
        %v3236 = vunpack.c.h.b16 %v1676
        %v3237 = vunpack.c.l.b16 %v1677
        %v3238 = vunpack.c.h.b16 %v1677
        %v3239 = vunpack.c.l.b16 %v1678
        %v3240 = vunpack.c.h.b16 %v1678
        %v3241 = vunpack.c.l.b16 %v1679
        %v3242 = vunpack.c.h.b16 %v1679
        %v3243 = vunpack.c.l.b16 %v1680
        %v3244 = vunpack.c.h.b16 %v1680
        %v3245 = vunpack.c.l.b16 %v1681
        %v3246 = vunpack.c.h.b16 %v1681
        %v3247 = vunpack.c.l.b16 %v1682
        %v3248 = vunpack.c.h.b16 %v1682
        %v3249 = vunpack.c.l.b16 %v1683
        %v3250 = vunpack.c.h.b16 %v1683
        %v3251 = vunpack.c.l.b16 %v1684
        %v3252 = vunpack.c.h.b16 %v1684
        %v3253 = vunpack.c.l.b16 %v1685
        %v3254 = vunpack.c.h.b16 %v1685
        %v3255 = vunpack.c.l.b16 %v1686
        %v3256 = vunpack.c.h.b16 %v1686
        %v3257 = vunpack.c.l.b16 %v1687
        %v3258 = vunpack.c.h.b16 %v1687
        %v3259 = vunpack.c.l.b16 %v1688
        %v3260 = vunpack.c.h.b16 %v1688
        %v3261 = vunpack.c.l.b16 %v1689
        %v3262 = vunpack.c.h.b16 %v1689
        %v3263 = vunpack.c.l.b16 %v1690
        %v3264 = vunpack.c.h.b16 %v1690
        %v3265 = vunpack.c.l.b16 %v1691
        %v3266 = vunpack.c.h.b16 %v1691
        %v3267 = vunpack.c.l.b16 %v1692
        %v3268 = vunpack.c.h.b16 %v1692
        %v3269 = vunpack.c.l.b16 %v1693
        %v3270 = vunpack.c.h.b16 %v1693
        %v3271 = vunpack.c.l.b16 %v1694
        %v3272 = vunpack.c.h.b16 %v1694
        %v3273 = vunpack.c.l.b16 %v1695
        %v3274 = vunpack.c.h.b16 %v1695
        %v3275 = vunpack.c.l.b16 %v1696
        %v3276 = vunpack.c.h.b16 %v1696
        %v3277 = vunpack.c.l.b16 %v1697
        %v3278 = vunpack.c.h.b16 %v1697
        %v3279 = vunpack.c.l.b16 %v1698
        %v3280 = vunpack.c.h.b16 %v1698
        %v3281 = vunpack.c.l.b16 %v1699
        %v3282 = vunpack.c.h.b16 %v1699
        %v3283 = vunpack.c.l.b16 %v1700
        %v3284 = vunpack.c.h.b16 %v1700
        %v3285 = vunpack.c.l.b16 %v1701
        %v3286 = vunpack.c.h.b16 %v1701
        %v3287 = vunpack.c.l.b16 %v1702
        %v3288 = vunpack.c.h.b16 %v1702
        %v3289 = vunpack.c.l.b16 %v1703
        %v3290 = vunpack.c.h.b16 %v1703
        %v3291 = vunpack.c.l.b16 %v1704
        %v3292 = vunpack.c.h.b16 %v1704
        %v3293 = vunpack.c.l.b16 %v1705
        %v3294 = vunpack.c.h.b16 %v1705
        %v3295 = vunpack.c.l.b16 %v1706
        %v3296 = vunpack.c.h.b16 %v1706
        %v3297 = vunpack.c.l.b16 %v1707
        %v3298 = vunpack.c.h.b16 %v1707
        %v3299 = vunpack.c.l.b16 %v1708
        %v3300 = vunpack.c.h.b16 %v1708
        %v3301 = vunpack.c.l.b16 %v1709
        %v3302 = vunpack.c.h.b16 %v1709
        %v3303 = vunpack.c.l.b16 %v1710
        %v3304 = vunpack.c.h.b16 %v1710
        %v3305 = vunpack.c.l.b16 %v1711
        %v3306 = vunpack.c.h.b16 %v1711
        %v3307 = vunpack.c.l.b16 %v1712
        %v3308 = vunpack.c.h.b16 %v1712
        %v3309 = vunpack.c.l.b16 %v1713
        %v3310 = vunpack.c.h.b16 %v1713
        %v3311 = vunpack.c.l.b16 %v1714
        %v3312 = vunpack.c.h.b16 %v1714
        %v3313 = vunpack.c.l.b16 %v1715
        %v3314 = vunpack.c.h.b16 %v1715
        %v3315 = vunpack.c.l.b16 %v1716
        %v3316 = vunpack.c.h.b16 %v1716
        %v3317 = vunpack.c.l.b16 %v1717
        %v3318 = vunpack.c.h.b16 %v1717
        %v3319 = vunpack.c.l.b16 %v1718
        %v3320 = vunpack.c.h.b16 %v1718
        %v3321 = vunpack.c.l.b16 %v1719
        %v3322 = vunpack.c.h.b16 %v1719
        %v3323 = vunpack.c.l.b16 %v1720
        %v3324 = vunpack.c.h.b16 %v1720
        %v3325 = vunpack.c.l.b16 %v1721
        %v3326 = vunpack.c.h.b16 %v1721
        %v3327 = vunpack.c.l.b16 %v1722
        %v3328 = vunpack.c.h.b16 %v1722
        %v3329 = vunpack.c.l.b16 %v1723
        %v3330 = vunpack.c.h.b16 %v1723
        %v3331 = vunpack.c.l.b16 %v1724
        %v3332 = vunpack.c.h.b16 %v1724
        %v3333 = vunpack.c.l.b16 %v1725
        %v3334 = vunpack.c.h.b16 %v1725
        %v3335 = vunpack.c.l.b16 %v1726
        %v3336 = vunpack.c.h.b16 %v1726
        %v3337 = vunpack.c.l.b16 %v1727
        %v3338 = vunpack.c.h.b16 %v1727
        %v3339 = vunpack.c.l.b16 %v1728
        %v3340 = vunpack.c.h.b16 %v1728
        %v3341 = vunpack.c.l.b16 %v1729
        %v3342 = vunpack.c.h.b16 %v1729
        %v3343 = vunpack.c.l.b16 %v1730
        %v3344 = vunpack.c.h.b16 %v1730
        %v3345 = vunpack.c.l.b16 %v1731
        %v3346 = vunpack.c.h.b16 %v1731
        %v3347 = vunpack.c.l.b16 %v1732
        %v3348 = vunpack.c.h.b16 %v1732
        %v3349 = vunpack.c.l.b16 %v1733
        %v3350 = vunpack.c.h.b16 %v1733
        %v3351 = vunpack.c.l.b16 %v1734
        %v3352 = vunpack.c.h.b16 %v1734
        %v3353 = vunpack.c.l.b16 %v1735
        %v3354 = vunpack.c.h.b16 %v1735
        %v3355 = vunpack.c.l.b16 %v1736
        %v3356 = vunpack.c.h.b16 %v1736
        %v3357 = vunpack.c.l.b16 %v1737
        %v3358 = vunpack.c.h.b16 %v1737
        %v3359 = vunpack.c.l.b16 %v1738
        %v3360 = vunpack.c.h.b16 %v1738
        %v3361 = vunpack.c.l.b16 %v1739
        %v3362 = vunpack.c.h.b16 %v1739
        %v3363 = vunpack.c.l.b16 %v1740
        %v3364 = vunpack.c.h.b16 %v1740
        %v3365 = vunpack.c.l.b16 %v1741
        %v3366 = vunpack.c.h.b16 %v1741
        %v3367 = vunpack.c.l.b16 %v1742
        %v3368 = vunpack.c.h.b16 %v1742
        %v3369 = vunpack.c.l.b16 %v1743
        %v3370 = vunpack.c.h.b16 %v1743
        %v3371 = vunpack.c.l.b16 %v1744
        %v3372 = vunpack.c.h.b16 %v1744
        %v3373 = vunpack.c.l.b16 %v1745
        %v3374 = vunpack.c.h.b16 %v1745
        %v3375 = vunpack.c.l.b16 %v1746
        %v3376 = vunpack.c.h.b16 %v1746
        %v3377 = vunpack.c.l.b16 %v1747
        %v3378 = vunpack.c.h.b16 %v1747
        %v3379 = vunpack.c.l.b16 %v1748
        %v3380 = vunpack.c.h.b16 %v1748
        %v3381 = vunpack.c.l.b16 %v1749
        %v3382 = vunpack.c.h.b16 %v1749
        %v3383 = vunpack.c.l.b16 %v1750
        %v3384 = vunpack.c.h.b16 %v1750
        %v3385 = vunpack.c.l.b16 %v1751
        %v3386 = vunpack.c.h.b16 %v1751
        %v3387 = vunpack.c.l.b16 %v1752
        %v3388 = vunpack.c.h.b16 %v1752
        %v3389 = vunpack.c.l.b16 %v1753
        %v3390 = vunpack.c.h.b16 %v1753
        %v3391 = vunpack.c.l.b16 %v1754
        %v3392 = vunpack.c.h.b16 %v1754
        %v3393 = vunpack.c.l.b16 %v1755
        %v3394 = vunpack.c.h.b16 %v1755
        %v3395 = vunpack.c.l.b16 %v1756
        %v3396 = vunpack.c.h.b16 %v1756
        %v3397 = vunpack.c.l.b16 %v1757
        %v3398 = vunpack.c.h.b16 %v1757
        %v3399 = vunpack.c.l.b16 %v1758
        %v3400 = vunpack.c.h.b16 %v1758
        %v3401 = vunpack.c.l.b16 %v1759
        %v3402 = vunpack.c.h.b16 %v1759
        %v3403 = vunpack.c.l.b16 %v1760
        %v3404 = vunpack.c.h.b16 %v1760
        %v3405 = vunpack.c.l.b16 %v1761
        %v3406 = vunpack.c.h.b16 %v1761
        %v3407 = vunpack.c.l.b16 %v1762
        %v3408 = vunpack.c.h.b16 %v1762
        %v3409 = vunpack.c.l.b16 %v1763
        %v3410 = vunpack.c.h.b16 %v1763
        %v3411 = vunpack.c.l.b16 %v1764
        %v3412 = vunpack.c.h.b16 %v1764
        %v3413 = vunpack.c.l.b16 %v1765
        %v3414 = vunpack.c.h.b16 %v1765
        %v3415 = vunpack.c.l.b16 %v1766
        %v3416 = vunpack.c.h.b16 %v1766
        %v3417 = vunpack.c.l.b16 %v1767
        %v3418 = vunpack.c.h.b16 %v1767
        %v3419 = vunpack.c.l.b16 %v1768
        %v3420 = vunpack.c.h.b16 %v1768
        %v3421 = vunpack.c.l.b16 %v1769
        %v3422 = vunpack.c.h.b16 %v1769
        %v3423 = vunpack.c.l.b16 %v1770
        %v3424 = vunpack.c.h.b16 %v1770
        %v3425 = vunpack.c.l.b16 %v1771
        %v3426 = vunpack.c.h.b16 %v1771
        %v3427 = vunpack.c.l.b16 %v1772
        %v3428 = vunpack.c.h.b16 %v1772
        %v3429 = vunpack.c.l.b16 %v1773
        %v3430 = vunpack.c.h.b16 %v1773
        %v3431 = vunpack.c.l.b16 %v1774
        %v3432 = vunpack.c.h.b16 %v1774
        %v3433 = vunpack.c.l.b16 %v1775
        %v3434 = vunpack.c.h.b16 %v1775
        %v3435 = vunpack.c.l.b16 %v1776
        %v3436 = vunpack.c.h.b16 %v1776
        %v3437 = vunpack.c.l.b16 %v1777
        %v3438 = vunpack.c.h.b16 %v1777
        %v3439 = vunpack.c.l.b16 %v1778
        %v3440 = vunpack.c.h.b16 %v1778
        %v3441 = vunpack.c.l.b16 %v1779
        %v3442 = vunpack.c.h.b16 %v1779
        %v3443 = vunpack.c.l.b16 %v1780
        %v3444 = vunpack.c.h.b16 %v1780
        %v3445 = vunpack.c.l.b16 %v1781
        %v3446 = vunpack.c.h.b16 %v1781
        %v3447 = vunpack.c.l.b16 %v1782
        %v3448 = vunpack.c.h.b16 %v1782
        %v3449 = vunpack.c.l.b16 %v1783
        %v3450 = vunpack.c.h.b16 %v1783
        %v3451 = vunpack.c.l.b16 %v1784
        %v3452 = vunpack.c.h.b16 %v1784
        %v3453 = vunpack.c.l.b16 %v1785
        %v3454 = vunpack.c.h.b16 %v1785
        %v3455 = vunpack.c.l.b16 %v1786
        %v3456 = vunpack.c.h.b16 %v1786
        %v3457 = vunpack.c.l.b16 %v1787
        %v3458 = vunpack.c.h.b16 %v1787
        %v3459 = vunpack.c.l.b16 %v1788
        %v3460 = vunpack.c.h.b16 %v1788
        %v3461 = vunpack.c.l.b16 %v1789
        %v3462 = vunpack.c.h.b16 %v1789
        %v3463 = vunpack.c.l.b16 %v1790
        %v3464 = vunpack.c.h.b16 %v1790
        %v3465 = vunpack.c.l.b16 %v1791
        %v3466 = vunpack.c.h.b16 %v1791
        %v3467 = vunpack.c.l.b16 %v1792
        %v3468 = vunpack.c.h.b16 %v1792
        %v3469 = vunpack.c.l.b16 %v1793
        %v3470 = vunpack.c.h.b16 %v1793
        %v3471 = vunpack.c.l.b16 %v1794
        %v3472 = vunpack.c.h.b16 %v1794
        %v3473 = vunpack.c.l.b16 %v1795
        %v3474 = vunpack.c.h.b16 %v1795
        %v3475 = vunpack.c.l.b16 %v1796
        %v3476 = vunpack.c.h.b16 %v1796
        %v3477 = vunpack.c.l.b16 %v1797
        %v3478 = vunpack.c.h.b16 %v1797
        %v3479 = vunpack.c.l.b16 %v1798
        %v3480 = vunpack.c.h.b16 %v1798
        %v3481 = vunpack.c.l.b16 %v1799
        %v3482 = vunpack.c.h.b16 %v1799
        %v3483 = vunpack.c.l.b16 %v1800
        %v3484 = vunpack.c.h.b16 %v1800
        %v3485 = vunpack.c.l.b16 %v1801
        %v3486 = vunpack.c.h.b16 %v1801
        %v3487 = vunpack.c.l.b16 %v1802
        %v3488 = vunpack.c.h.b16 %v1802
        %v3489 = vunpack.c.l.b16 %v1803
        %v3490 = vunpack.c.h.b16 %v1803
        %v3491 = vunpack.c.l.b16 %v1804
        %v3492 = vunpack.c.h.b16 %v1804
        %v3493 = vunpack.c.l.b16 %v1805
        %v3494 = vunpack.c.h.b16 %v1805
        %v3495 = vunpack.c.l.b16 %v1806
        %v3496 = vunpack.c.h.b16 %v1806
        %v3497 = vunpack.c.l.b16 %v1807
        %v3498 = vunpack.c.h.b16 %v1807
        %v3499 = vunpack.c.l.b16 %v1808
        %v3500 = vunpack.c.h.b16 %v1808
        %v3501 = vunpack.c.l.b16 %v1809
        %v3502 = vunpack.c.h.b16 %v1809
        %v3503 = vunpack.c.l.b16 %v1810
        %v3504 = vunpack.c.h.b16 %v1810
        %v3505 = vunpack.c.l.b16 %v1811
        %v3506 = vunpack.c.h.b16 %v1811
        %v3507 = vunpack.c.l.b16 %v1812
        %v3508 = vunpack.c.h.b16 %v1812
        %v3509 = vunpack.c.l.b16 %v1813
        %v3510 = vunpack.c.h.b16 %v1813
        %v3511 = vunpack.c.l.b16 %v1814
        %v3512 = vunpack.c.h.b16 %v1814
        %v3513 = vunpack.c.l.b16 %v1815
        %v3514 = vunpack.c.h.b16 %v1815
        %v3515 = vunpack.c.l.b16 %v1816
        %v3516 = vunpack.c.h.b16 %v1816
        %v3517 = vunpack.c.l.b16 %v1817
        %v3518 = vunpack.c.h.b16 %v1817
        %v3519 = vunpack.c.l.b16 %v1818
        %v3520 = vunpack.c.h.b16 %v1818
        %v3521 = vunpack.c.l.b16 %v1819
        %v3522 = vunpack.c.h.b16 %v1819
        %v3523 = vunpack.c.l.b16 %v1820
        %v3524 = vunpack.c.h.b16 %v1820
        %v3525 = vunpack.c.l.b16 %v1821
        %v3526 = vunpack.c.h.b16 %v1821
        %v3527 = vunpack.c.l.b16 %v1822
        %v3528 = vunpack.c.h.b16 %v1822
        %v3529 = vunpack.c.l.b16 %v1823
        %v3530 = vunpack.c.h.b16 %v1823
        %v3531 = vunpack.c.l.b16 %v1824
        %v3532 = vunpack.c.h.b16 %v1824
        %v3533 = vunpack.c.l.b16 %v1825
        %v3534 = vunpack.c.h.b16 %v1825
        %v3535 = vunpack.c.l.b16 %v1826
        %v3536 = vunpack.c.h.b16 %v1826
        %v3537 = vunpack.c.l.b16 %v1827
        %v3538 = vunpack.c.h.b16 %v1827
        %v3539 = vunpack.c.l.b16 %v1828
        %v3540 = vunpack.c.h.b16 %v1828
        %v3541 = vunpack.c.l.b16 %v1829
        %v3542 = vunpack.c.h.b16 %v1829
        %v3543 = vunpack.c.l.b16 %v1830
        %v3544 = vunpack.c.h.b16 %v1830
        %v3545 = vunpack.c.l.b16 %v1831
        %v3546 = vunpack.c.h.b16 %v1831
        %v3547 = vunpack.c.l.b16 %v1832
        %v3548 = vunpack.c.h.b16 %v1832
        %v3549 = vunpack.c.l.b16 %v1833
        %v3550 = vunpack.c.h.b16 %v1833
        %v3551 = vunpack.c.l.b16 %v1834
        %v3552 = vunpack.c.h.b16 %v1834
        %v3553 = vunpack.c.l.b16 %v1835
        %v3554 = vunpack.c.h.b16 %v1835
        %v3555 = vunpack.c.l.b16 %v1836
        %v3556 = vunpack.c.h.b16 %v1836
        %v3557 = vunpack.c.l.b16 %v1837
        %v3558 = vunpack.c.h.b16 %v1837
        %v3559 = vunpack.c.l.b16 %v1838
        %v3560 = vunpack.c.h.b16 %v1838
        %v3561 = vunpack.c.l.b16 %v1839
        %v3562 = vunpack.c.h.b16 %v1839
        %v3563 = vunpack.c.l.b16 %v1840
        %v3564 = vunpack.c.h.b16 %v1840
        %v3565 = vunpack.c.l.b16 %v1841
        %v3566 = vunpack.c.h.b16 %v1841
        %v3567 = vunpack.c.l.b16 %v1842
        %v3568 = vunpack.c.h.b16 %v1842
        %v3569 = vunpack.c.l.b16 %v1843
        %v3570 = vunpack.c.h.b16 %v1843
        %v3571 = vunpack.c.l.b16 %v1844
        %v3572 = vunpack.c.h.b16 %v1844
        %v3573 = vunpack.c.l.b16 %v1845
        %v3574 = vunpack.c.h.b16 %v1845
        %v3575 = vunpack.c.l.b16 %v1846
        %v3576 = vunpack.c.h.b16 %v1846
        %v3577 = vunpack.c.l.b16 %v1847
        %v3578 = vunpack.c.h.b16 %v1847
        %v3579 = vunpack.c.l.b16 %v1848
        %v3580 = vunpack.c.h.b16 %v1848
        %v3581 = vunpack.c.l.b16 %v1849
        %v3582 = vunpack.c.h.b16 %v1849
        %v3583 = vunpack.c.l.b16 %v1850
        %v3584 = vunpack.c.h.b16 %v1850
        %v3585 = vunpack.c.l.b16 %v1851
        %v3586 = vunpack.c.h.b16 %v1851
        %v3587 = vunpack.c.l.b16 %v1852
        %v3588 = vunpack.c.h.b16 %v1852
        %v3589 = vunpack.c.l.b16 %v1853
        %v3590 = vunpack.c.h.b16 %v1853
        %v3591 = vunpack.c.l.b16 %v1854
        %v3592 = vunpack.c.h.b16 %v1854
        %v3593 = vunpack.c.l.b16 %v1855
        %v3594 = vunpack.c.h.b16 %v1855
        %v3595 = vunpack.c.l.b16 %v1856
        %v3596 = vunpack.c.h.b16 %v1856
        %v3597 = vunpack.c.l.b16 %v1857
        %v3598 = vunpack.c.h.b16 %v1857
        %v3599 = vunpack.c.l.b16 %v1858
        %v3600 = vunpack.c.h.b16 %v1858
        %v3601 = vunpack.c.l.b16 %v1859
        %v3602 = vunpack.c.h.b16 %v1859
        %v3603 = vunpack.c.l.b16 %v1860
        %v3604 = vunpack.c.h.b16 %v1860
        %v3605 = vunpack.c.l.b16 %v1861
        %v3606 = vunpack.c.h.b16 %v1861
        %v3607 = vunpack.c.l.b16 %v1862
        %v3608 = vunpack.c.h.b16 %v1862
        %v3609 = vunpack.c.l.b16 %v1863
        %v3610 = vunpack.c.h.b16 %v1863
        %v3611 = vunpack.c.l.b16 %v1864
        %v3612 = vunpack.c.h.b16 %v1864
        %v3613 = vunpack.c.l.b16 %v1865
        %v3614 = vunpack.c.h.b16 %v1865
        %v3615 = vunpack.c.l.b16 %v1866
        %v3616 = vunpack.c.h.b16 %v1866
        %v3617 = vunpack.c.l.b16 %v1867
        %v3618 = vunpack.c.h.b16 %v1867
        %v3619 = vunpack.c.l.b16 %v1868
        %v3620 = vunpack.c.h.b16 %v1868
        %v3621 = vunpack.c.l.b16 %v1869
        %v3622 = vunpack.c.h.b16 %v1869
        %v3623 = vunpack.c.l.b16 %v1870
        %v3624 = vunpack.c.h.b16 %v1870
        %v3625 = vunpack.c.l.b16 %v1871
        %v3626 = vunpack.c.h.b16 %v1871
        %v3627 = vunpack.c.l.b16 %v1872
        %v3628 = vunpack.c.h.b16 %v1872
        %v3629 = vunpack.c.l.b16 %v1873
        %v3630 = vunpack.c.h.b16 %v1873
        %v3631 = vunpack.c.l.b16 %v1874
        %v3632 = vunpack.c.h.b16 %v1874
        %v3633 = vunpack.c.l.b16 %v1875
        %v3634 = vunpack.c.h.b16 %v1875
        %v3635 = vunpack.c.l.b16 %v1876
        %v3636 = vunpack.c.h.b16 %v1876
        %v3637 = vunpack.c.l.b16 %v1877
        %v3638 = vunpack.c.h.b16 %v1877
        %v3639 = vunpack.c.l.b16 %v1878
        %v3640 = vunpack.c.h.b16 %v1878
        %v3641 = vunpack.c.l.b16 %v1879
        %v3642 = vunpack.c.h.b16 %v1879
        %v3643 = vunpack.c.l.b16 %v1880
        %v3644 = vunpack.c.h.b16 %v1880
        %v3645 = vunpack.c.l.b16 %v1881
        %v3646 = vunpack.c.h.b16 %v1881
        %v3647 = vunpack.c.l.b16 %v1882
        %v3648 = vunpack.c.h.b16 %v1882
        %v3649 = vunpack.c.l.b16 %v1883
        %v3650 = vunpack.c.h.b16 %v1883
        %v3651 = vunpack.c.l.b16 %v1884
        %v3652 = vunpack.c.h.b16 %v1884
        %v3653 = vunpack.c.l.b16 %v1885
        %v3654 = vunpack.c.h.b16 %v1885
        %v3655 = vunpack.c.l.b16 %v1886
        %v3656 = vunpack.c.h.b16 %v1886
        %v3657 = vunpack.c.l.b16 %v1887
        %v3658 = vunpack.c.h.b16 %v1887
        %v3659 = vunpack.c.l.b16 %v1888
        %v3660 = vunpack.c.h.b16 %v1888
        %v3661 = vunpack.c.l.b16 %v1889
        %v3662 = vunpack.c.h.b16 %v1889
        %v3663 = vunpack.c.l.b16 %v1890
        %v3664 = vunpack.c.h.b16 %v1890
        %v3665 = vunpack.c.l.b16 %v1891
        %v3666 = vunpack.c.h.b16 %v1891
        %v3667 = vunpack.c.l.b16 %v1892
        %v3668 = vunpack.c.h.b16 %v1892
        %v3669 = vunpack.c.l.b16 %v1893
        %v3670 = vunpack.c.h.b16 %v1893
        %v3671 = vunpack.c.l.b16 %v1894
        %v3672 = vunpack.c.h.b16 %v1894
        %v3673 = vunpack.c.l.b16 %v1895
        %v3674 = vunpack.c.h.b16 %v1895
        %v3675 = vunpack.c.l.b16 %v1896
        %v3676 = vunpack.c.h.b16 %v1896
        %v3677 = vunpack.c.l.b16 %v1897
        %v3678 = vunpack.c.h.b16 %v1897
        %v3679 = vunpack.c.l.b16 %v1898
        %v3680 = vunpack.c.h.b16 %v1898
        %v3681 = vunpack.c.l.b16 %v1899
        %v3682 = vunpack.c.h.b16 %v1899
        %v3683 = vunpack.c.l.b16 %v1900
        %v3684 = vunpack.c.h.b16 %v1900
        %v3685 = vunpack.c.l.b16 %v1901
        %v3686 = vunpack.c.h.b16 %v1901
        %v3687 = vunpack.c.l.b16 %v1902
        %v3688 = vunpack.c.h.b16 %v1902
        %v3689 = vunpack.c.l.b16 %v1903
        %v3690 = vunpack.c.h.b16 %v1903
        %v3691 = vunpack.c.l.b16 %v1904
        %v3692 = vunpack.c.h.b16 %v1904
        %v3693 = vunpack.c.l.b16 %v1905
        %v3694 = vunpack.c.h.b16 %v1905
        %v3695 = vunpack.c.l.b16 %v1906
        %v3696 = vunpack.c.h.b16 %v1906
        %v3697 = vunpack.c.l.b16 %v1907
        %v3698 = vunpack.c.h.b16 %v1907
        %v3699 = vunpack.c.l.b16 %v1908
        %v3700 = vunpack.c.h.b16 %v1908
        %v3701 = vunpack.c.l.b16 %v1909
        %v3702 = vunpack.c.h.b16 %v1909
        %v3703 = vunpack.c.l.b16 %v1910
        %v3704 = vunpack.c.h.b16 %v1910
        %v3705 = vunpack.c.l.b16 %v1911
        %v3706 = vunpack.c.h.b16 %v1911
        %v3707 = vunpack.c.l.b16 %v1912
        %v3708 = vunpack.c.h.b16 %v1912
        %v3709 = vunpack.c.l.b16 %v1913
        %v3710 = vunpack.c.h.b16 %v1913
        %v3711 = vunpack.c.l.b16 %v1914
        %v3712 = vunpack.c.h.b16 %v1914
        %v3713 = vunpack.c.l.b16 %v1915
        %v3714 = vunpack.c.h.b16 %v1915
        %v3715 = vunpack.c.l.b16 %v1916
        %v3716 = vunpack.c.h.b16 %v1916
        %v3717 = vunpack.c.l.b16 %v1917
        %v3718 = vunpack.c.h.b16 %v1917
        %v3719 = vunpack.c.l.b16 %v1918
        %v3720 = vunpack.c.h.b16 %v1918
        %v3721 = vunpack.c.l.b16 %v1919
        %v3722 = vunpack.c.h.b16 %v1919
        %v3723 = vunpack.c.l.b16 %v1920
        %v3724 = vunpack.c.h.b16 %v1920
        %v3725 = vunpack.c.l.b16 %v1921
        %v3726 = vunpack.c.h.b16 %v1921
        %v3727 = vunpack.c.l.b16 %v1922
        %v3728 = vunpack.c.h.b16 %v1922
        %v3729 = vunpack.c.l.b16 %v1923
        %v3730 = vunpack.c.h.b16 %v1923
        %v3731 = vunpack.c.l.b16 %v1924
        %v3732 = vunpack.c.h.b16 %v1924
        %v3733 = vunpack.c.l.b16 %v1925
        %v3734 = vunpack.c.h.b16 %v1925
        %v3735 = vunpack.c.l.b16 %v1926
        %v3736 = vunpack.c.h.b16 %v1926
        %v3737 = vunpack.c.l.b16 %v1927
        %v3738 = vunpack.c.h.b16 %v1927
        %v3739 = vunpack.c.l.b16 %v1928
        %v3740 = vunpack.c.h.b16 %v1928
        %v3741 = vunpack.c.l.b16 %v1929
        %v3742 = vunpack.c.h.b16 %v1929
        %v3743 = vunpack.c.l.b16 %v1930
        %v3744 = vunpack.c.h.b16 %v1930
        %v3745 = vunpack.c.l.b16 %v1931
        %v3746 = vunpack.c.h.b16 %v1931
        %v3747 = vunpack.c.l.b16 %v1932
        %v3748 = vunpack.c.h.b16 %v1932
        %v3749 = vunpack.c.l.b16 %v1933
        %v3750 = vunpack.c.h.b16 %v1933
        %v3751 = vunpack.c.l.b16 %v1934
        %v3752 = vunpack.c.h.b16 %v1934
        %v3753 = vunpack.c.l.b16 %v1935
        %v3754 = vunpack.c.h.b16 %v1935
        %v3755 = vunpack.c.l.b16 %v1936
        %v3756 = vunpack.c.h.b16 %v1936
        %v3757 = vunpack.c.l.b16 %v1937
        %v3758 = vunpack.c.h.b16 %v1937
        %v3759 = vunpack.c.l.b16 %v1938
        %v3760 = vunpack.c.h.b16 %v1938
        %v3761 = vunpack.c.l.b16 %v1939
        %v3762 = vunpack.c.h.b16 %v1939
        %v3763 = vunpack.c.l.b16 %v1940
        %v3764 = vunpack.c.h.b16 %v1940
        %v3765 = vunpack.c.l.b16 %v1941
        %v3766 = vunpack.c.h.b16 %v1941
        %v3767 = vunpack.c.l.b16 %v1942
        %v3768 = vunpack.c.h.b16 %v1942
        %v3769 = vunpack.c.l.b16 %v1943
        %v3770 = vunpack.c.h.b16 %v1943
        %v3771 = vunpack.c.l.b16 %v1944
        %v3772 = vunpack.c.h.b16 %v1944
        %v3773 = vunpack.c.l.b16 %v1945
        %v3774 = vunpack.c.h.b16 %v1945
        %v3775 = vunpack.c.l.b16 %v1946
        %v3776 = vunpack.c.h.b16 %v1946
        %v3777 = vunpack.c.l.b16 %v1947
        %v3778 = vunpack.c.h.b16 %v1947
        %v3779 = vunpack.c.l.b16 %v1948
        %v3780 = vunpack.c.h.b16 %v1948
        %v3781 = vunpack.c.l.b16 %v1949
        %v3782 = vunpack.c.h.b16 %v1949
        %v3783 = vunpack.c.l.b16 %v1950
        %v3784 = vunpack.c.h.b16 %v1950
        %v3785 = vunpack.c.l.b16 %v1951
        %v3786 = vunpack.c.h.b16 %v1951
        %v3787 = vunpack.c.l.b16 %v1952
        %v3788 = vunpack.c.h.b16 %v1952
        %v3789 = vunpack.c.l.b16 %v1953
        %v3790 = vunpack.c.h.b16 %v1953
        %v3791 = vunpack.c.l.b16 %v1954
        %v3792 = vunpack.c.h.b16 %v1954
        %v3793 = vunpack.c.l.b16 %v1955
        %v3794 = vunpack.c.h.b16 %v1955
        %v3795 = vunpack.c.l.b16 %v1956
        %v3796 = vunpack.c.h.b16 %v1956
        %v3797 = vunpack.c.l.b16 %v1957
        %v3798 = vunpack.c.h.b16 %v1957
        %v3799 = vunpack.c.l.b16 %v1958
        %v3800 = vunpack.c.h.b16 %v1958
        %v3801 = vunpack.c.l.b16 %v1959
        %v3802 = vunpack.c.h.b16 %v1959
        %v3803 = vunpack.c.l.b16 %v1960
        %v3804 = vunpack.c.h.b16 %v1960
        %v3805 = vunpack.c.l.b16 %v1961
        %v3806 = vunpack.c.h.b16 %v1961
        %v3807 = vunpack.c.l.b16 %v1962
        %v3808 = vunpack.c.h.b16 %v1962
        %v3809 = vunpack.c.l.b16 %v1963
        %v3810 = vunpack.c.h.b16 %v1963
        %v3811 = vunpack.c.l.b16 %v1964
        %v3812 = vunpack.c.h.b16 %v1964
        %v3813 = vunpack.c.l.b16 %v1965
        %v3814 = vunpack.c.h.b16 %v1965
        %v3815 = vunpack.c.l.b16 %v1966
        %v3816 = vunpack.c.h.b16 %v1966
        %v3817 = vunpack.c.l.b16 %v1967
        %v3818 = vunpack.c.h.b16 %v1967
        %v3819 = vunpack.c.l.b16 %v1968
        %v3820 = vunpack.c.h.b16 %v1968
        %v3821 = vunpack.c.l.b16 %v1969
        %v3822 = vunpack.c.h.b16 %v1969
        %v3823 = vunpack.c.l.b16 %v1970
        %v3824 = vunpack.c.h.b16 %v1970
        %v3825 = vunpack.c.l.b16 %v1971
        %v3826 = vunpack.c.h.b16 %v1971
        %v3827 = vunpack.c.l.b16 %v1972
        %v3828 = vunpack.c.h.b16 %v1972
        %v3829 = vunpack.c.l.b16 %v1973
        %v3830 = vunpack.c.h.b16 %v1973
        %v3831 = vunpack.c.l.b16 %v1974
        %v3832 = vunpack.c.h.b16 %v1974
        %v3833 = vunpack.c.l.b16 %v1975
        %v3834 = vunpack.c.h.b16 %v1975
        %v3835 = vunpack.c.l.b16 %v1976
        %v3836 = vunpack.c.h.b16 %v1976
        %v3837 = vunpack.c.l.b16 %v1977
        %v3838 = vunpack.c.h.b16 %v1977
        %v3839 = vunpack.c.l.b16 %v1978
        %v3840 = vunpack.c.h.b16 %v1978
        %v3841 = vunpack.c.l.b16 %v1979
        %v3842 = vunpack.c.h.b16 %v1979
        %v3843 = vunpack.c.l.b16 %v1980
        %v3844 = vunpack.c.h.b16 %v1980
        %v3845 = vunpack.c.l.b16 %v1981
        %v3846 = vunpack.c.h.b16 %v1981
        %v3847 = vunpack.c.l.b16 %v1982
        %v3848 = vunpack.c.h.b16 %v1982
        %v3849 = vunpack.c.l.b16 %v1983
        %v3850 = vunpack.c.h.b16 %v1983
        %v3851 = vunpack.c.l.b16 %v1984
        %v3852 = vunpack.c.h.b16 %v1984
        %v3853 = vunpack.c.l.b16 %v1985
        %v3854 = vunpack.c.h.b16 %v1985
        %v3855 = vunpack.c.l.b16 %v1986
        %v3856 = vunpack.c.h.b16 %v1986
        %v3857 = vunpack.c.l.b16 %v1987
        %v3858 = vunpack.c.h.b16 %v1987
        %v3859 = vunpack.c.l.b16 %v1988
        %v3860 = vunpack.c.h.b16 %v1988
        %v3861 = vunpack.c.l.b16 %v1989
        %v3862 = vunpack.c.h.b16 %v1989
        %v3863 = vunpack.c.l.b16 %v1990
        %v3864 = vunpack.c.h.b16 %v1990
        %v3865 = vunpack.c.l.b16 %v1991
        %v3866 = vunpack.c.h.b16 %v1991
        %v3867 = vunpack.c.l.b16 %v1992
        %v3868 = vunpack.c.h.b16 %v1992
        %v3869 = vunpack.c.l.b16 %v1993
        %v3870 = vunpack.c.h.b16 %v1993
        %v3871 = vunpack.c.l.b16 %v1994
        %v3872 = vunpack.c.h.b16 %v1994
        %v3873 = vunpack.c.l.b16 %v1995
        %v3874 = vunpack.c.h.b16 %v1995
        %v3875 = vunpack.c.l.b16 %v1996
        %v3876 = vunpack.c.h.b16 %v1996
        %v3877 = vunpack.c.l.b16 %v1997
        %v3878 = vunpack.c.h.b16 %v1997
        %v3879 = vunpack.c.l.b16 %v1998
        %v3880 = vunpack.c.h.b16 %v1998
        %v3881 = vunpack.c.l.b16 %v1999
        %v3882 = vunpack.c.h.b16 %v1999
        %v3883 = vunpack.c.l.b16 %v2000
        %v3884 = vunpack.c.h.b16 %v2000
        %v3885 = vunpack.c.l.b16 %v2001
        %v3886 = vunpack.c.h.b16 %v2001
        %v3887 = vunpack.c.l.b16 %v2002
        %v3888 = vunpack.c.h.b16 %v2002
        %v3889 = vunpack.c.l.b16 %v2003
        %v3890 = vunpack.c.h.b16 %v2003
        %v3891 = vunpack.c.l.b16 %v2004
        %v3892 = vunpack.c.h.b16 %v2004
        %v3893 = vunpack.c.l.b16 %v2005
        %v3894 = vunpack.c.h.b16 %v2005
        %v3895 = vunpack.c.l.b16 %v2006
        %v3896 = vunpack.c.h.b16 %v2006
        %v3897 = vunpack.c.l.b16 %v2007
        %v3898 = vunpack.c.h.b16 %v2007
        %v3899 = vpack.c.b16 %v2751, %v2747
        %v3900 = vpack.c.b16 %v2752, %v2748
        %v3901 = vpack.c.b16 %v2753, %v2749
        %v3902 = vpack.c.b16 %v2754, %v2750
        %v3903 = vpack.c.b16 %v2759, %v2755
        %v3904 = vpack.c.b16 %v2760, %v2756
        %v3905 = vpack.c.b16 %v2761, %v2757
        %v3906 = vpack.c.b16 %v2762, %v2758
        %v3907 = vpack.c.b16 %v2767, %v2763
        %v3908 = vpack.c.b16 %v2768, %v2764
        %v3909 = vpack.c.b16 %v2769, %v2765
        %v3910 = vpack.c.b16 %v2770, %v2766
        %v3911 = vpack.c.b16 %v2775, %v2771
        %v3912 = vpack.c.b16 %v2776, %v2772
        %v3913 = vpack.c.b16 %v2777, %v2773
        %v3914 = vpack.c.b16 %v2778, %v2774
        %v3915 = vpack.c.b16 %v2783, %v2779
        %v3916 = vpack.c.b16 %v2784, %v2780
        %v3917 = vpack.c.b16 %v2785, %v2781
        %v3918 = vpack.c.b16 %v2786, %v2782
        %v3919 = vpack.c.b16 %v2791, %v2787
        %v3920 = vpack.c.b16 %v2792, %v2788
        %v3921 = vpack.c.b16 %v2793, %v2789
        %v3922 = vpack.c.b16 %v2794, %v2790
        %v3923 = vpack.c.b16 %v2799, %v2795
        %v3924 = vpack.c.b16 %v2800, %v2796
        %v3925 = vpack.c.b16 %v2801, %v2797
        %v3926 = vpack.c.b16 %v2802, %v2798
        %v3927 = vpack.c.b16 %v2807, %v2803
        %v3928 = vpack.c.b16 %v2808, %v2804
        %v3929 = vpack.c.b16 %v2809, %v2805
        %v3930 = vpack.c.b16 %v2810, %v2806
        %v3931 = vpack.c.b16 %v2815, %v2811
        %v3932 = vpack.c.b16 %v2816, %v2812
        %v3933 = vpack.c.b16 %v2817, %v2813
        %v3934 = vpack.c.b16 %v2818, %v2814
        %v3935 = vpack.c.b16 %v2823, %v2819
        %v3936 = vpack.c.b16 %v2824, %v2820
        %v3937 = vpack.c.b16 %v2825, %v2821
        %v3938 = vpack.c.b16 %v2826, %v2822
        %v3939 = vpack.c.b16 %v2831, %v2827
        %v3940 = vpack.c.b16 %v2832, %v2828
        %v3941 = vpack.c.b16 %v2833, %v2829
        %v3942 = vpack.c.b16 %v2834, %v2830
        %v3943 = vpack.c.b16 %v2839, %v2835
        %v3944 = vpack.c.b16 %v2840, %v2836
        %v3945 = vpack.c.b16 %v2841, %v2837
        %v3946 = vpack.c.b16 %v2842, %v2838
        %v3947 = vpack.c.b16 %v2847, %v2843
        %v3948 = vpack.c.b16 %v2848, %v2844
        %v3949 = vpack.c.b16 %v2849, %v2845
        %v3950 = vpack.c.b16 %v2850, %v2846
        %v3951 = vpack.c.b16 %v2855, %v2851
        %v3952 = vpack.c.b16 %v2856, %v2852
        %v3953 = vpack.c.b16 %v2857, %v2853
        %v3954 = vpack.c.b16 %v2858, %v2854
        %v3955 = vpack.c.b16 %v2863, %v2859
        %v3956 = vpack.c.b16 %v2864, %v2860
        %v3957 = vpack.c.b16 %v2865, %v2861
        %v3958 = vpack.c.b16 %v2866, %v2862
        %v3959 = vpack.c.b16 %v2871, %v2867
        %v3960 = vpack.c.b16 %v2872, %v2868
        %v3961 = vpack.c.b16 %v2873, %v2869
        %v3962 = vpack.c.b16 %v2874, %v2870
        %v3963 = vpack.c.b16 %v2879, %v2875
        %v3964 = vpack.c.b16 %v2880, %v2876
        %v3965 = vpack.c.b16 %v2881, %v2877
        %v3966 = vpack.c.b16 %v2882, %v2878
        %v3967 = vpack.c.b16 %v2887, %v2883
        %v3968 = vpack.c.b16 %v2888, %v2884
        %v3969 = vpack.c.b16 %v2889, %v2885
        %v3970 = vpack.c.b16 %v2890, %v2886
        %v3971 = vpack.c.b16 %v2895, %v2891
        %v3972 = vpack.c.b16 %v2896, %v2892
        %v3973 = vpack.c.b16 %v2897, %v2893
        %v3974 = vpack.c.b16 %v2898, %v2894
        %v3975 = vpack.c.b16 %v2903, %v2899
        %v3976 = vpack.c.b16 %v2904, %v2900
        %v3977 = vpack.c.b16 %v2905, %v2901
        %v3978 = vpack.c.b16 %v2906, %v2902
        %v3979 = vpack.c.b16 %v2911, %v2907
        %v3980 = vpack.c.b16 %v2912, %v2908
        %v3981 = vpack.c.b16 %v2913, %v2909
        %v3982 = vpack.c.b16 %v2914, %v2910
        %v3983 = vpack.c.b16 %v2919, %v2915
        %v3984 = vpack.c.b16 %v2920, %v2916
        %v3985 = vpack.c.b16 %v2921, %v2917
        %v3986 = vpack.c.b16 %v2922, %v2918
        %v3987 = vpack.c.b16 %v2927, %v2923
        %v3988 = vpack.c.b16 %v2928, %v2924
        %v3989 = vpack.c.b16 %v2929, %v2925
        %v3990 = vpack.c.b16 %v2930, %v2926
        %v3991 = vpack.c.b16 %v2935, %v2931
        %v3992 = vpack.c.b16 %v2936, %v2932
        %v3993 = vpack.c.b16 %v2937, %v2933
        %v3994 = vpack.c.b16 %v2938, %v2934
        %v3995 = vpack.c.b16 %v2943, %v2939
        %v3996 = vpack.c.b16 %v2944, %v2940
        %v3997 = vpack.c.b16 %v2945, %v2941
        %v3998 = vpack.c.b16 %v2946, %v2942
        %v3999 = vpack.c.b16 %v2951, %v2947
        %v4000 = vpack.c.b16 %v2952, %v2948
        %v4001 = vpack.c.b16 %v2953, %v2949
        %v4002 = vpack.c.b16 %v2954, %v2950
        %v4003 = vpack.c.b16 %v2959, %v2955
        %v4004 = vpack.c.b16 %v2960, %v2956
        %v4005 = vpack.c.b16 %v2961, %v2957
        %v4006 = vpack.c.b16 %v2962, %v2958
        %v4007 = vpack.c.b16 %v2967, %v2963
        %v4008 = vpack.c.b16 %v2968, %v2964
        %v4009 = vpack.c.b16 %v2969, %v2965
        %v4010 = vpack.c.b16 %v2970, %v2966
        %v4011 = vpack.c.b16 %v2975, %v2971
        %v4012 = vpack.c.b16 %v2976, %v2972
        %v4013 = vpack.c.b16 %v2977, %v2973
        %v4014 = vpack.c.b16 %v2978, %v2974
        %v4015 = vpack.c.b16 %v2983, %v2979
        %v4016 = vpack.c.b16 %v2984, %v2980
        %v4017 = vpack.c.b16 %v2985, %v2981
        %v4018 = vpack.c.b16 %v2986, %v2982
        %v4019 = vpack.c.b16 %v2991, %v2987
        %v4020 = vpack.c.b16 %v2992, %v2988
        %v4021 = vpack.c.b16 %v2993, %v2989
        %v4022 = vpack.c.b16 %v2994, %v2990
        %v4023 = vpack.c.b16 %v2999, %v2995
        %v4024 = vpack.c.b16 %v3000, %v2996
        %v4025 = vpack.c.b16 %v3001, %v2997
        %v4026 = vpack.c.b16 %v3002, %v2998
        %v4027 = vpack.c.b16 %v3007, %v3003
        %v4028 = vpack.c.b16 %v3008, %v3004
        %v4029 = vpack.c.b16 %v3009, %v3005
        %v4030 = vpack.c.b16 %v3010, %v3006
        %v4031 = vpack.c.b16 %v3015, %v3011
        %v4032 = vpack.c.b16 %v3016, %v3012
        %v4033 = vpack.c.b16 %v3017, %v3013
        %v4034 = vpack.c.b16 %v3018, %v3014
        %v4035 = vpack.c.b16 %v3023, %v3019
        %v4036 = vpack.c.b16 %v3024, %v3020
        %v4037 = vpack.c.b16 %v3025, %v3021
        %v4038 = vpack.c.b16 %v3026, %v3022
        %v4039 = vpack.c.b16 %v3031, %v3027
        %v4040 = vpack.c.b16 %v3032, %v3028
        %v4041 = vpack.c.b16 %v3033, %v3029
        %v4042 = vpack.c.b16 %v3034, %v3030
        %v4043 = vpack.c.b16 %v3039, %v3035
        %v4044 = vpack.c.b16 %v3040, %v3036
        %v4045 = vpack.c.b16 %v3041, %v3037
        %v4046 = vpack.c.b16 %v3042, %v3038
        %v4047 = vpack.c.b16 %v3047, %v3043
        %v4048 = vpack.c.b16 %v3048, %v3044
        %v4049 = vpack.c.b16 %v3049, %v3045
        %v4050 = vpack.c.b16 %v3050, %v3046
        %v4051 = vpack.c.b16 %v3055, %v3051
        %v4052 = vpack.c.b16 %v3056, %v3052
        %v4053 = vpack.c.b16 %v3057, %v3053
        %v4054 = vpack.c.b16 %v3058, %v3054
        %v4055 = vpack.c.b16 %v3063, %v3059
        %v4056 = vpack.c.b16 %v3064, %v3060
        %v4057 = vpack.c.b16 %v3065, %v3061
        %v4058 = vpack.c.b16 %v3066, %v3062
        %v4059 = vpack.c.b16 %v3071, %v3067
        %v4060 = vpack.c.b16 %v3072, %v3068
        %v4061 = vpack.c.b16 %v3073, %v3069
        %v4062 = vpack.c.b16 %v3074, %v3070
        %v4063 = vpack.c.b16 %v3079, %v3075
        %v4064 = vpack.c.b16 %v3080, %v3076
        %v4065 = vpack.c.b16 %v3081, %v3077
        %v4066 = vpack.c.b16 %v3082, %v3078
        %v4067 = vpack.c.b16 %v3087, %v3083
        %v4068 = vpack.c.b16 %v3088, %v3084
        %v4069 = vpack.c.b16 %v3089, %v3085
        %v4070 = vpack.c.b16 %v3090, %v3086
        %v4071 = vpack.c.b16 %v3095, %v3091
        %v4072 = vpack.c.b16 %v3096, %v3092
        %v4073 = vpack.c.b16 %v3097, %v3093
        %v4074 = vpack.c.b16 %v3098, %v3094
        %v4075 = vpack.c.b16 %v3103, %v3099
        %v4076 = vpack.c.b16 %v3104, %v3100
        %v4077 = vpack.c.b16 %v3105, %v3101
        %v4078 = vpack.c.b16 %v3106, %v3102
        %v4079 = vpack.c.b16 %v3111, %v3107
        %v4080 = vpack.c.b16 %v3112, %v3108
        %v4081 = vpack.c.b16 %v3113, %v3109
        %v4082 = vpack.c.b16 %v3114, %v3110
        %v4083 = vpack.c.b16 %v3119, %v3115
        %v4084 = vpack.c.b16 %v3120, %v3116
        %v4085 = vpack.c.b16 %v3121, %v3117
        %v4086 = vpack.c.b16 %v3122, %v3118
        %v4087 = vpack.c.b16 %v3127, %v3123
        %v4088 = vpack.c.b16 %v3128, %v3124
        %v4089 = vpack.c.b16 %v3129, %v3125
        %v4090 = vpack.c.b16 %v3130, %v3126
        %v4091 = vpack.c.b16 %v3135, %v3131
        %v4092 = vpack.c.b16 %v3136, %v3132
        %v4093 = vpack.c.b16 %v3137, %v3133
        %v4094 = vpack.c.b16 %v3138, %v3134
        %v4095 = vpack.c.b16 %v3143, %v3139
        %v4096 = vpack.c.b16 %v3144, %v3140
        %v4097 = vpack.c.b16 %v3145, %v3141
        %v4098 = vpack.c.b16 %v3146, %v3142
        %v4099 = vpack.c.b16 %v3151, %v3147
        %v4100 = vpack.c.b16 %v3152, %v3148
        %v4101 = vpack.c.b16 %v3153, %v3149
        %v4102 = vpack.c.b16 %v3154, %v3150
        %v4103 = vpack.c.b16 %v3159, %v3155
        %v4104 = vpack.c.b16 %v3160, %v3156
        %v4105 = vpack.c.b16 %v3161, %v3157
        %v4106 = vpack.c.b16 %v3162, %v3158
        %v4107 = vpack.c.b16 %v3167, %v3163
        %v4108 = vpack.c.b16 %v3168, %v3164
        %v4109 = vpack.c.b16 %v3169, %v3165
        %v4110 = vpack.c.b16 %v3170, %v3166
        %v4111 = vpack.c.b16 %v3175, %v3171
        %v4112 = vpack.c.b16 %v3176, %v3172
        %v4113 = vpack.c.b16 %v3177, %v3173
        %v4114 = vpack.c.b16 %v3178, %v3174
        %v4115 = vpack.c.b16 %v3183, %v3179
        %v4116 = vpack.c.b16 %v3184, %v3180
        %v4117 = vpack.c.b16 %v3185, %v3181
        %v4118 = vpack.c.b16 %v3186, %v3182
        %v4119 = vpack.c.b16 %v3191, %v3187
        %v4120 = vpack.c.b16 %v3192, %v3188
        %v4121 = vpack.c.b16 %v3193, %v3189
        %v4122 = vpack.c.b16 %v3194, %v3190
        %v4123 = vpack.c.b16 %v3199, %v3195
        %v4124 = vpack.c.b16 %v3200, %v3196
        %v4125 = vpack.c.b16 %v3201, %v3197
        %v4126 = vpack.c.b16 %v3202, %v3198
        %v4127 = vpack.c.b16 %v3207, %v3203
        %v4128 = vpack.c.b16 %v3208, %v3204
        %v4129 = vpack.c.b16 %v3209, %v3205
        %v4130 = vpack.c.b16 %v3210, %v3206
        %v4131 = vpack.c.b16 %v3215, %v3211
        %v4132 = vpack.c.b16 %v3216, %v3212
        %v4133 = vpack.c.b16 %v3217, %v3213
        %v4134 = vpack.c.b16 %v3218, %v3214
        %v4135 = vpack.c.b16 %v3223, %v3219
        %v4136 = vpack.c.b16 %v3224, %v3220
        %v4137 = vpack.c.b16 %v3225, %v3221
        %v4138 = vpack.c.b16 %v3226, %v3222
        %v4139 = vpack.c.b16 %v3231, %v3227
        %v4140 = vpack.c.b16 %v3232, %v3228
        %v4141 = vpack.c.b16 %v3233, %v3229
        %v4142 = vpack.c.b16 %v3234, %v3230
        %v4143 = vpack.c.b16 %v3239, %v3235
        %v4144 = vpack.c.b16 %v3240, %v3236
        %v4145 = vpack.c.b16 %v3241, %v3237
        %v4146 = vpack.c.b16 %v3242, %v3238
        %v4147 = vpack.c.b16 %v3247, %v3243
        %v4148 = vpack.c.b16 %v3248, %v3244
        %v4149 = vpack.c.b16 %v3249, %v3245
        %v4150 = vpack.c.b16 %v3250, %v3246
        %v4151 = vpack.c.b16 %v3255, %v3251
        %v4152 = vpack.c.b16 %v3256, %v3252
        %v4153 = vpack.c.b16 %v3257, %v3253
        %v4154 = vpack.c.b16 %v3258, %v3254
        %v4155 = vpack.c.b16 %v3263, %v3259
        %v4156 = vpack.c.b16 %v3264, %v3260
        %v4157 = vpack.c.b16 %v3265, %v3261
        %v4158 = vpack.c.b16 %v3266, %v3262
        %v4159 = vpack.c.b16 %v3271, %v3267
        %v4160 = vpack.c.b16 %v3272, %v3268
        %v4161 = vpack.c.b16 %v3273, %v3269
        %v4162 = vpack.c.b16 %v3274, %v3270
        %v4163 = vpack.c.b16 %v3279, %v3275
        %v4164 = vpack.c.b16 %v3280, %v3276
        %v4165 = vpack.c.b16 %v3281, %v3277
        %v4166 = vpack.c.b16 %v3282, %v3278
        %v4167 = vpack.c.b16 %v3287, %v3283
        %v4168 = vpack.c.b16 %v3288, %v3284
        %v4169 = vpack.c.b16 %v3289, %v3285
        %v4170 = vpack.c.b16 %v3290, %v3286
        %v4171 = vpack.c.b16 %v3295, %v3291
        %v4172 = vpack.c.b16 %v3296, %v3292
        %v4173 = vpack.c.b16 %v3297, %v3293
        %v4174 = vpack.c.b16 %v3298, %v3294
        %v4175 = vpack.c.b16 %v3303, %v3299
        %v4176 = vpack.c.b16 %v3304, %v3300
        %v4177 = vpack.c.b16 %v3305, %v3301
        %v4178 = vpack.c.b16 %v3306, %v3302
        %v4179 = vpack.c.b16 %v3311, %v3307
        %v4180 = vpack.c.b16 %v3312, %v3308
        %v4181 = vpack.c.b16 %v3313, %v3309
        %v4182 = vpack.c.b16 %v3314, %v3310
        %v4183 = vpack.c.b16 %v3319, %v3315
        %v4184 = vpack.c.b16 %v3320, %v3316
        %v4185 = vpack.c.b16 %v3321, %v3317
        %v4186 = vpack.c.b16 %v3322, %v3318
        %v4187 = vpack.c.b16 %v3327, %v3323
        %v4188 = vpack.c.b16 %v3328, %v3324
        %v4189 = vpack.c.b16 %v3329, %v3325
        %v4190 = vpack.c.b16 %v3330, %v3326
        %v4191 = vpack.c.b16 %v3335, %v3331
        %v4192 = vpack.c.b16 %v3336, %v3332
        %v4193 = vpack.c.b16 %v3337, %v3333
        %v4194 = vpack.c.b16 %v3338, %v3334
        %v4195 = vpack.c.b16 %v3343, %v3339
        %v4196 = vpack.c.b16 %v3344, %v3340
        %v4197 = vpack.c.b16 %v3345, %v3341
        %v4198 = vpack.c.b16 %v3346, %v3342
        %v4199 = vpack.c.b16 %v3351, %v3347
        %v4200 = vpack.c.b16 %v3352, %v3348
        %v4201 = vpack.c.b16 %v3353, %v3349
        %v4202 = vpack.c.b16 %v3354, %v3350
        %v4203 = vpack.c.b16 %v3359, %v3355
        %v4204 = vpack.c.b16 %v3360, %v3356
        %v4205 = vpack.c.b16 %v3361, %v3357
        %v4206 = vpack.c.b16 %v3362, %v3358
        %v4207 = vpack.c.b16 %v3367, %v3363
        %v4208 = vpack.c.b16 %v3368, %v3364
        %v4209 = vpack.c.b16 %v3369, %v3365
        %v4210 = vpack.c.b16 %v3370, %v3366
        %v4211 = vpack.c.b16 %v3375, %v3371
        %v4212 = vpack.c.b16 %v3376, %v3372
        %v4213 = vpack.c.b16 %v3377, %v3373
        %v4214 = vpack.c.b16 %v3378, %v3374
        %v4215 = vpack.c.b16 %v3383, %v3379
        %v4216 = vpack.c.b16 %v3384, %v3380
        %v4217 = vpack.c.b16 %v3385, %v3381
        %v4218 = vpack.c.b16 %v3386, %v3382
        %v4219 = vpack.c.b16 %v3391, %v3387
        %v4220 = vpack.c.b16 %v3392, %v3388
        %v4221 = vpack.c.b16 %v3393, %v3389
        %v4222 = vpack.c.b16 %v3394, %v3390
        %v4223 = vpack.c.b16 %v3399, %v3395
        %v4224 = vpack.c.b16 %v3400, %v3396
        %v4225 = vpack.c.b16 %v3401, %v3397
        %v4226 = vpack.c.b16 %v3402, %v3398
        %v4227 = vpack.c.b16 %v3407, %v3403
        %v4228 = vpack.c.b16 %v3408, %v3404
        %v4229 = vpack.c.b16 %v3409, %v3405
        %v4230 = vpack.c.b16 %v3410, %v3406
        %v4231 = vpack.c.b16 %v3415, %v3411
        %v4232 = vpack.c.b16 %v3416, %v3412
        %v4233 = vpack.c.b16 %v3417, %v3413
        %v4234 = vpack.c.b16 %v3418, %v3414
        %v4235 = vpack.c.b16 %v3423, %v3419
        %v4236 = vpack.c.b16 %v3424, %v3420
        %v4237 = vpack.c.b16 %v3425, %v3421
        %v4238 = vpack.c.b16 %v3426, %v3422
        %v4239 = vpack.c.b16 %v3431, %v3427
        %v4240 = vpack.c.b16 %v3432, %v3428
        %v4241 = vpack.c.b16 %v3433, %v3429
        %v4242 = vpack.c.b16 %v3434, %v3430
        %v4243 = vpack.c.b16 %v3439, %v3435
        %v4244 = vpack.c.b16 %v3440, %v3436
        %v4245 = vpack.c.b16 %v3441, %v3437
        %v4246 = vpack.c.b16 %v3442, %v3438
        %v4247 = vpack.c.b16 %v3447, %v3443
        %v4248 = vpack.c.b16 %v3448, %v3444
        %v4249 = vpack.c.b16 %v3449, %v3445
        %v4250 = vpack.c.b16 %v3450, %v3446
        %v4251 = vpack.c.b16 %v3455, %v3451
        %v4252 = vpack.c.b16 %v3456, %v3452
        %v4253 = vpack.c.b16 %v3457, %v3453
        %v4254 = vpack.c.b16 %v3458, %v3454
        %v4255 = vpack.c.b16 %v3463, %v3459
        %v4256 = vpack.c.b16 %v3464, %v3460
        %v4257 = vpack.c.b16 %v3465, %v3461
        %v4258 = vpack.c.b16 %v3466, %v3462
        %v4259 = vpack.c.b16 %v3471, %v3467
        %v4260 = vpack.c.b16 %v3472, %v3468
        %v4261 = vpack.c.b16 %v3473, %v3469
        %v4262 = vpack.c.b16 %v3474, %v3470
        %v4263 = vpack.c.b16 %v3479, %v3475
        %v4264 = vpack.c.b16 %v3480, %v3476
        %v4265 = vpack.c.b16 %v3481, %v3477
        %v4266 = vpack.c.b16 %v3482, %v3478
        %v4267 = vpack.c.b16 %v3487, %v3483
        %v4268 = vpack.c.b16 %v3488, %v3484
        %v4269 = vpack.c.b16 %v3489, %v3485
        %v4270 = vpack.c.b16 %v3490, %v3486
        %v4271 = vpack.c.b16 %v3495, %v3491
        %v4272 = vpack.c.b16 %v3496, %v3492
        %v4273 = vpack.c.b16 %v3497, %v3493
        %v4274 = vpack.c.b16 %v3498, %v3494
        %v4275 = vpack.c.b16 %v3503, %v3499
        %v4276 = vpack.c.b16 %v3504, %v3500
        %v4277 = vpack.c.b16 %v3505, %v3501
        %v4278 = vpack.c.b16 %v3506, %v3502
        %v4279 = vpack.c.b16 %v3511, %v3507
        %v4280 = vpack.c.b16 %v3512, %v3508
        %v4281 = vpack.c.b16 %v3513, %v3509
        %v4282 = vpack.c.b16 %v3514, %v3510
        %v4283 = vpack.c.b16 %v3519, %v3515
        %v4284 = vpack.c.b16 %v3520, %v3516
        %v4285 = vpack.c.b16 %v3521, %v3517
        %v4286 = vpack.c.b16 %v3522, %v3518
        %v4287 = vpack.c.b16 %v3527, %v3523
        %v4288 = vpack.c.b16 %v3528, %v3524
        %v4289 = vpack.c.b16 %v3529, %v3525
        %v4290 = vpack.c.b16 %v3530, %v3526
        %v4291 = vpack.c.b16 %v3535, %v3531
        %v4292 = vpack.c.b16 %v3536, %v3532
        %v4293 = vpack.c.b16 %v3537, %v3533
        %v4294 = vpack.c.b16 %v3538, %v3534
        %v4295 = vpack.c.b16 %v3543, %v3539
        %v4296 = vpack.c.b16 %v3544, %v3540
        %v4297 = vpack.c.b16 %v3545, %v3541
        %v4298 = vpack.c.b16 %v3546, %v3542
        %v4299 = vpack.c.b16 %v3551, %v3547
        %v4300 = vpack.c.b16 %v3552, %v3548
        %v4301 = vpack.c.b16 %v3553, %v3549
        %v4302 = vpack.c.b16 %v3554, %v3550
        %v4303 = vpack.c.b16 %v3559, %v3555
        %v4304 = vpack.c.b16 %v3560, %v3556
        %v4305 = vpack.c.b16 %v3561, %v3557
        %v4306 = vpack.c.b16 %v3562, %v3558
        %v4307 = vpack.c.b16 %v3567, %v3563
        %v4308 = vpack.c.b16 %v3568, %v3564
        %v4309 = vpack.c.b16 %v3569, %v3565
        %v4310 = vpack.c.b16 %v3570, %v3566
        %v4311 = vpack.c.b16 %v3575, %v3571
        %v4312 = vpack.c.b16 %v3576, %v3572
        %v4313 = vpack.c.b16 %v3577, %v3573
        %v4314 = vpack.c.b16 %v3578, %v3574
        %v4315 = vpack.c.b16 %v3583, %v3579
        %v4316 = vpack.c.b16 %v3584, %v3580
        %v4317 = vpack.c.b16 %v3585, %v3581
        %v4318 = vpack.c.b16 %v3586, %v3582
        %v4319 = vpack.c.b16 %v3591, %v3587
        %v4320 = vpack.c.b16 %v3592, %v3588
        %v4321 = vpack.c.b16 %v3593, %v3589
        %v4322 = vpack.c.b16 %v3594, %v3590
        %v4323 = vpack.c.b16 %v3599, %v3595
        %v4324 = vpack.c.b16 %v3600, %v3596
        %v4325 = vpack.c.b16 %v3601, %v3597
        %v4326 = vpack.c.b16 %v3602, %v3598
        %v4327 = vpack.c.b16 %v3607, %v3603
        %v4328 = vpack.c.b16 %v3608, %v3604
        %v4329 = vpack.c.b16 %v3609, %v3605
        %v4330 = vpack.c.b16 %v3610, %v3606
        %v4331 = vpack.c.b16 %v3615, %v3611
        %v4332 = vpack.c.b16 %v3616, %v3612
        %v4333 = vpack.c.b16 %v3617, %v3613
        %v4334 = vpack.c.b16 %v3618, %v3614
        %v4335 = vpack.c.b16 %v3623, %v3619
        %v4336 = vpack.c.b16 %v3624, %v3620
        %v4337 = vpack.c.b16 %v3625, %v3621
        %v4338 = vpack.c.b16 %v3626, %v3622
        %v4339 = vpack.c.b16 %v3631, %v3627
        %v4340 = vpack.c.b16 %v3632, %v3628
        %v4341 = vpack.c.b16 %v3633, %v3629
        %v4342 = vpack.c.b16 %v3634, %v3630
        %v4343 = vpack.c.b16 %v3639, %v3635
        %v4344 = vpack.c.b16 %v3640, %v3636
        %v4345 = vpack.c.b16 %v3641, %v3637
        %v4346 = vpack.c.b16 %v3642, %v3638
        %v4347 = vpack.c.b16 %v3647, %v3643
        %v4348 = vpack.c.b16 %v3648, %v3644
        %v4349 = vpack.c.b16 %v3649, %v3645
        %v4350 = vpack.c.b16 %v3650, %v3646
        %v4351 = vpack.c.b16 %v3655, %v3651
        %v4352 = vpack.c.b16 %v3656, %v3652
        %v4353 = vpack.c.b16 %v3657, %v3653
        %v4354 = vpack.c.b16 %v3658, %v3654
        %v4355 = vpack.c.b16 %v3663, %v3659
        %v4356 = vpack.c.b16 %v3664, %v3660
        %v4357 = vpack.c.b16 %v3665, %v3661
        %v4358 = vpack.c.b16 %v3666, %v3662
        %v4359 = vpack.c.b16 %v3671, %v3667
        %v4360 = vpack.c.b16 %v3672, %v3668
        %v4361 = vpack.c.b16 %v3673, %v3669
        %v4362 = vpack.c.b16 %v3674, %v3670
        %v4363 = vpack.c.b16 %v3679, %v3675
        %v4364 = vpack.c.b16 %v3680, %v3676
        %v4365 = vpack.c.b16 %v3681, %v3677
        %v4366 = vpack.c.b16 %v3682, %v3678
        %v4367 = vpack.c.b16 %v3687, %v3683
        %v4368 = vpack.c.b16 %v3688, %v3684
        %v4369 = vpack.c.b16 %v3689, %v3685
        %v4370 = vpack.c.b16 %v3690, %v3686
        %v4371 = vpack.c.b16 %v3695, %v3691
        %v4372 = vpack.c.b16 %v3696, %v3692
        %v4373 = vpack.c.b16 %v3697, %v3693
        %v4374 = vpack.c.b16 %v3698, %v3694
        %v4375 = vpack.c.b16 %v3703, %v3699
        %v4376 = vpack.c.b16 %v3704, %v3700
        %v4377 = vpack.c.b16 %v3705, %v3701
        %v4378 = vpack.c.b16 %v3706, %v3702
        %v4379 = vpack.c.b16 %v3711, %v3707
        %v4380 = vpack.c.b16 %v3712, %v3708
        %v4381 = vpack.c.b16 %v3713, %v3709
        %v4382 = vpack.c.b16 %v3714, %v3710
        %v4383 = vpack.c.b16 %v3719, %v3715
        %v4384 = vpack.c.b16 %v3720, %v3716
        %v4385 = vpack.c.b16 %v3721, %v3717
        %v4386 = vpack.c.b16 %v3722, %v3718
        %v4387 = vpack.c.b16 %v3727, %v3723
        %v4388 = vpack.c.b16 %v3728, %v3724
        %v4389 = vpack.c.b16 %v3729, %v3725
        %v4390 = vpack.c.b16 %v3730, %v3726
        %v4391 = vpack.c.b16 %v3735, %v3731
        %v4392 = vpack.c.b16 %v3736, %v3732
        %v4393 = vpack.c.b16 %v3737, %v3733
        %v4394 = vpack.c.b16 %v3738, %v3734
        %v4395 = vpack.c.b16 %v3743, %v3739
        %v4396 = vpack.c.b16 %v3744, %v3740
        %v4397 = vpack.c.b16 %v3745, %v3741
        %v4398 = vpack.c.b16 %v3746, %v3742
        %v4399 = vpack.c.b16 %v3751, %v3747
        %v4400 = vpack.c.b16 %v3752, %v3748
        %v4401 = vpack.c.b16 %v3753, %v3749
        %v4402 = vpack.c.b16 %v3754, %v3750
        %v4403 = vpack.c.b16 %v3759, %v3755
        %v4404 = vpack.c.b16 %v3760, %v3756
        %v4405 = vpack.c.b16 %v3761, %v3757
        %v4406 = vpack.c.b16 %v3762, %v3758
        %v4407 = vpack.c.b16 %v3767, %v3763
        %v4408 = vpack.c.b16 %v3768, %v3764
        %v4409 = vpack.c.b16 %v3769, %v3765
        %v4410 = vpack.c.b16 %v3770, %v3766
        %v4411 = vpack.c.b16 %v3775, %v3771
        %v4412 = vpack.c.b16 %v3776, %v3772
        %v4413 = vpack.c.b16 %v3777, %v3773
        %v4414 = vpack.c.b16 %v3778, %v3774
        %v4415 = vpack.c.b16 %v3783, %v3779
        %v4416 = vpack.c.b16 %v3784, %v3780
        %v4417 = vpack.c.b16 %v3785, %v3781
        %v4418 = vpack.c.b16 %v3786, %v3782
        %v4419 = vpack.c.b16 %v3791, %v3787
        %v4420 = vpack.c.b16 %v3792, %v3788
        %v4421 = vpack.c.b16 %v3793, %v3789
        %v4422 = vpack.c.b16 %v3794, %v3790
        %v4423 = vpack.c.b16 %v3799, %v3795
        %v4424 = vpack.c.b16 %v3800, %v3796
        %v4425 = vpack.c.b16 %v3801, %v3797
        %v4426 = vpack.c.b16 %v3802, %v3798
        %v4427 = vpack.c.b16 %v3807, %v3803
        %v4428 = vpack.c.b16 %v3808, %v3804
        %v4429 = vpack.c.b16 %v3809, %v3805
        %v4430 = vpack.c.b16 %v3810, %v3806
        %v4431 = vpack.c.b16 %v3815, %v3811
        %v4432 = vpack.c.b16 %v3816, %v3812
        %v4433 = vpack.c.b16 %v3817, %v3813
        %v4434 = vpack.c.b16 %v3818, %v3814
        %v4435 = vpack.c.b16 %v3823, %v3819
        %v4436 = vpack.c.b16 %v3824, %v3820
        %v4437 = vpack.c.b16 %v3825, %v3821
        %v4438 = vpack.c.b16 %v3826, %v3822
        %v4439 = vpack.c.b16 %v3831, %v3827
        %v4440 = vpack.c.b16 %v3832, %v3828
        %v4441 = vpack.c.b16 %v3833, %v3829
        %v4442 = vpack.c.b16 %v3834, %v3830
        %v4443 = vpack.c.b16 %v3839, %v3835
        %v4444 = vpack.c.b16 %v3840, %v3836
        %v4445 = vpack.c.b16 %v3841, %v3837
        %v4446 = vpack.c.b16 %v3842, %v3838
        %v4447 = vpack.c.b16 %v3847, %v3843
        %v4448 = vpack.c.b16 %v3848, %v3844
        %v4449 = vpack.c.b16 %v3849, %v3845
        %v4450 = vpack.c.b16 %v3850, %v3846
        %v4451 = vpack.c.b16 %v3855, %v3851
        %v4452 = vpack.c.b16 %v3856, %v3852
        %v4453 = vpack.c.b16 %v3857, %v3853
        %v4454 = vpack.c.b16 %v3858, %v3854
        %v4455 = vpack.c.b16 %v3863, %v3859
        %v4456 = vpack.c.b16 %v3864, %v3860
        %v4457 = vpack.c.b16 %v3865, %v3861
        %v4458 = vpack.c.b16 %v3866, %v3862
        %v4459 = vpack.c.b16 %v3871, %v3867
        %v4460 = vpack.c.b16 %v3872, %v3868
        %v4461 = vpack.c.b16 %v3873, %v3869
        %v4462 = vpack.c.b16 %v3874, %v3870
        %v4463 = vpack.c.b16 %v3879, %v3875
        %v4464 = vpack.c.b16 %v3880, %v3876
        %v4465 = vpack.c.b16 %v3881, %v3877
        %v4466 = vpack.c.b16 %v3882, %v3878
        %v4467 = vpack.c.b16 %v3887, %v3883
        %v4468 = vpack.c.b16 %v3888, %v3884
        %v4469 = vpack.c.b16 %v3889, %v3885
        %v4470 = vpack.c.b16 %v3890, %v3886
        %v4471 = vpack.c.b16 %v3895, %v3891
        %v4472 = vpack.c.b16 %v3896, %v3892
        %v4473 = vpack.c.b16 %v3897, %v3893
        %v4474 = vpack.c.b16 %v3898, %v3894
        %5051 = vmatprep.subr.bf16.mxu0 %v3900
        %5052 = vmatpush1.bf16.msra.mxu0 %v3899
        %5053 = vmatprep.subr.bf16.mxu0 %v3904
        %5054 = vmatpush1.bf16.msra.mxu0 %v3903
        %5055 = vmatprep.subr.bf16.mxu0 %v3908
        %5056 = vmatpush1.bf16.msra.mxu0 %v3907
        %5057 = vmatprep.subr.bf16.mxu0 %v3912
        %5058 = vmatpush1.bf16.msra.mxu0 %v3911
        %5059 = vmatprep.subr.bf16.mxu0 %v3916
        %5060 = vmatpush1.bf16.msra.mxu0 %v3915
        %5061 = vmatprep.subr.bf16.mxu0 %v3920
        %5062 = vmatpush1.bf16.msra.mxu0 %v3919
        %5063 = vmatprep.subr.bf16.mxu0 %v3924
        %5064 = vmatpush1.bf16.msra.mxu0 %v3923
        %5065 = vmatprep.subr.bf16.mxu0 %v3928
        %5066 = vmatpush1.bf16.msra.mxu0 %v3927
        %5067 = vmatprep.subr.bf16.mxu0 %v3932
        %5068 = vmatpush1.bf16.msra.mxu0 %v3931
        %5069 = vmatprep.subr.bf16.mxu0 %v3936
        %5070 = vmatpush1.bf16.msra.mxu0 %v3935
        %5071 = vmatprep.subr.bf16.mxu0 %v3940
        %5072 = vmatpush1.bf16.msra.mxu0 %v3939
        %5073 = vmatprep.subr.bf16.mxu0 %v3944
        %5074 = vmatpush1.bf16.msra.mxu0 %v3943
        %5075 = vmatprep.subr.bf16.mxu0 %v3948
        %5076 = vmatpush1.bf16.msra.mxu0 %v3947
        %5077 = vmatprep.subr.bf16.mxu0 %v3952
        %5078 = vmatpush1.bf16.msra.mxu0 %v3951
        %5079 = vmatprep.subr.bf16.mxu0 %v3956
        %5080 = vmatpush1.bf16.msra.mxu0 %v3955
        %5081 = vmatprep.subr.bf16.mxu0 %v3960
        %5082 = vmatpush1.bf16.msra.mxu0 %v3959
        %5083 = vmatprep.mubr.bf16.mxu0 %v2070
        %5084 = vmatmul.mubr.bf16.gmra.mrb[0].mxu0 %v2056
        %v5085 = vpop.f32.mrb[0].mxu0
        %v5086 = vadd.f32 %v2013, %v5085
        %v5087 = vpop.f32.mrb[0].mxu0
        %v5088 = vadd.f32 %v2017, %v5087
        %v5089 = vpop.f32.mrb[0].mxu0
        %v5090 = vpop.f32.mrb[0].mxu0
        %5091 = vdwg.mxu0
        %5092 = vmatprep.subr.bf16.mxu0 %v3964
        %5093 = vmatpush1.bf16.msra.mxu0 %v3963
        %5094 = vmatprep.subr.bf16.mxu0 %v3968
        %5095 = vmatpush1.bf16.msra.mxu0 %v3967
        %5096 = vmatprep.subr.bf16.mxu0 %v3972
        %5097 = vmatpush1.bf16.msra.mxu0 %v3971
        %5098 = vmatprep.subr.bf16.mxu0 %v3976
        %5099 = vmatpush1.bf16.msra.mxu0 %v3975
        %5100 = vmatprep.subr.bf16.mxu0 %v3980
        %5101 = vmatpush1.bf16.msra.mxu0 %v3979
        %5102 = vmatprep.subr.bf16.mxu0 %v3984
        %5103 = vmatpush1.bf16.msra.mxu0 %v3983
        %5104 = vmatprep.subr.bf16.mxu0 %v3988
        %5105 = vmatpush1.bf16.msra.mxu0 %v3987
        %5106 = vmatprep.subr.bf16.mxu0 %v3992
        %5107 = vmatpush1.bf16.msra.mxu0 %v3991
        %5108 = vmatprep.subr.bf16.mxu0 %v3996
        %5109 = vmatpush1.bf16.msra.mxu0 %v3995
        %5110 = vmatprep.subr.bf16.mxu0 %v4000
        %5111 = vmatpush1.bf16.msra.mxu0 %v3999
        %5112 = vmatprep.subr.bf16.mxu0 %v4004
        %5113 = vmatpush1.bf16.msra.mxu0 %v4003
        %5114 = vmatprep.subr.bf16.mxu0 %v4008
        %5115 = vmatpush1.bf16.msra.mxu0 %v4007
        %5116 = vmatprep.subr.bf16.mxu0 %v4012
        %5117 = vmatpush1.bf16.msra.mxu0 %v4011
        %5118 = vmatprep.subr.bf16.mxu0 %v4016
        %5119 = vmatpush1.bf16.msra.mxu0 %v4015
        %5120 = vmatprep.subr.bf16.mxu0 %v4020
        %5121 = vmatpush1.bf16.msra.mxu0 %v4019
        %5122 = vmatprep.subr.bf16.mxu0 %v4024
        %5123 = vmatpush1.bf16.msra.mxu0 %v4023
        %5124 = vmatprep.mubr.bf16.mxu0 %v2080
        %5125 = vmatmul.mubr.bf16.gmra.mrb[0].mxu0 %v2078
        %v5126 = vpop.f32.mrb[0].mxu0
        %v5127 = vadd.f32 %v5086, %v5126
        %v5128 = vpop.f32.mrb[0].mxu0
        %v5129 = vadd.f32 %v5088, %v5128
        %v5130 = vpop.f32.mrb[0].mxu0
        %v5131 = vpop.f32.mrb[0].mxu0
        %5132 = vdwg.mxu0
        %5133 = vmatprep.subr.bf16.mxu0 %v4028
        %5134 = vmatpush1.bf16.msra.mxu0 %v4027
        %5135 = vmatprep.subr.bf16.mxu0 %v4032
        %5136 = vmatpush1.bf16.msra.mxu0 %v4031
        %5137 = vmatprep.subr.bf16.mxu0 %v4036
        %5138 = vmatpush1.bf16.msra.mxu0 %v4035
        %5139 = vmatprep.subr.bf16.mxu0 %v4040
        %5140 = vmatpush1.bf16.msra.mxu0 %v4039
        %5141 = vmatprep.subr.bf16.mxu0 %v4044
        %5142 = vmatpush1.bf16.msra.mxu0 %v4043
        %5143 = vmatprep.subr.bf16.mxu0 %v4048
        %5144 = vmatpush1.bf16.msra.mxu0 %v4047
        %5145 = vmatprep.subr.bf16.mxu0 %v4052
        %5146 = vmatpush1.bf16.msra.mxu0 %v4051
        %5147 = vmatprep.subr.bf16.mxu0 %v4056
        %5148 = vmatpush1.bf16.msra.mxu0 %v4055
        %5149 = vmatprep.subr.bf16.mxu0 %v4060
        %5150 = vmatpush1.bf16.msra.mxu0 %v4059
        %5151 = vmatprep.subr.bf16.mxu0 %v4064
        %5152 = vmatpush1.bf16.msra.mxu0 %v4063
        %5153 = vmatprep.subr.bf16.mxu0 %v4068
        %5154 = vmatpush1.bf16.msra.mxu0 %v4067
        %5155 = vmatprep.subr.bf16.mxu0 %v4072
        %5156 = vmatpush1.bf16.msra.mxu0 %v4071
        %5157 = vmatprep.subr.bf16.mxu0 %v4076
        %5158 = vmatpush1.bf16.msra.mxu0 %v4075
        %5159 = vmatprep.subr.bf16.mxu0 %v4080
        %5160 = vmatpush1.bf16.msra.mxu0 %v4079
        %5161 = vmatprep.subr.bf16.mxu0 %v4084
        %5162 = vmatpush1.bf16.msra.mxu0 %v4083
        %5163 = vmatprep.subr.bf16.mxu0 %v4088
        %5164 = vmatpush1.bf16.msra.mxu0 %v4087
        %5165 = vmatprep.mubr.bf16.mxu0 %v2077
        %5166 = vmatmul.mubr.bf16.gmra.mrb[0].mxu0 %v2063
        %v5167 = vpop.f32.mrb[0].mxu0
        %v5168 = vadd.f32 %v5127, %v5167
        %v5169 = vpop.f32.mrb[0].mxu0
        %v5170 = vadd.f32 %v5129, %v5169
        %v5171 = vpop.f32.mrb[0].mxu0
        %v5172 = vpop.f32.mrb[0].mxu0
        %5173 = vdwg.mxu0
        %5174 = vmatprep.subr.bf16.mxu0 %v4092
        %5175 = vmatpush1.bf16.msra.mxu0 %v4091
        %5176 = vmatprep.subr.bf16.mxu0 %v4096
        %5177 = vmatpush1.bf16.msra.mxu0 %v4095
        %5178 = vmatprep.subr.bf16.mxu0 %v4100
        %5179 = vmatpush1.bf16.msra.mxu0 %v4099
        %5180 = vmatprep.subr.bf16.mxu0 %v4104
        %5181 = vmatpush1.bf16.msra.mxu0 %v4103
        %5182 = vmatprep.subr.bf16.mxu0 %v4108
        %5183 = vmatpush1.bf16.msra.mxu0 %v4107
        %5184 = vmatprep.subr.bf16.mxu0 %v4112
        %5185 = vmatpush1.bf16.msra.mxu0 %v4111
        %5186 = vmatprep.subr.bf16.mxu0 %v4116
        %5187 = vmatpush1.bf16.msra.mxu0 %v4115
        %5188 = vmatprep.subr.bf16.mxu0 %v4120
        %5189 = vmatpush1.bf16.msra.mxu0 %v4119
        %5190 = vmatprep.subr.bf16.mxu0 %v4124
        %5191 = vmatpush1.bf16.msra.mxu0 %v4123
        %5192 = vmatprep.subr.bf16.mxu0 %v4128
        %5193 = vmatpush1.bf16.msra.mxu0 %v4127
        %5194 = vmatprep.subr.bf16.mxu0 %v4132
        %5195 = vmatpush1.bf16.msra.mxu0 %v4131
        %5196 = vmatprep.subr.bf16.mxu0 %v4136
        %5197 = vmatpush1.bf16.msra.mxu0 %v4135
        %5198 = vmatprep.subr.bf16.mxu0 %v4140
        %5199 = vmatpush1.bf16.msra.mxu0 %v4139
        %5200 = vmatprep.subr.bf16.mxu0 %v4144
        %5201 = vmatpush1.bf16.msra.mxu0 %v4143
        %5202 = vmatprep.subr.bf16.mxu0 %v4148
        %5203 = vmatpush1.bf16.msra.mxu0 %v4147
        %5204 = vmatprep.subr.bf16.mxu0 %v4152
        %5205 = vmatpush1.bf16.msra.mxu0 %v4151
        %5206 = vmatprep.mubr.bf16.mxu0 %v2081
        %5207 = vmatmul.mubr.bf16.gmra.mrb[0].mxu0 %v2079
        %v5208 = vpop.f32.mrb[0].mxu0
        %v5209 = vadd.f32 %v5168, %v5208
        %v5210 = vpop.f32.mrb[0].mxu0
        %v5211 = vadd.f32 %v5170, %v5210
        %v5212 = vpop.f32.mrb[0].mxu0
        %v5213 = vpop.f32.mrb[0].mxu0
        %5214 = vdwg.mxu0
        %5215 = vmatprep.subr.bf16.mxu0 %v4156
        %5216 = vmatpush1.bf16.msra.mxu0 %v4155
        %5217 = vmatprep.subr.bf16.mxu0 %v4160
        %5218 = vmatpush1.bf16.msra.mxu0 %v4159
        %5219 = vmatprep.subr.bf16.mxu0 %v4164
        %5220 = vmatpush1.bf16.msra.mxu0 %v4163
        %5221 = vmatprep.subr.bf16.mxu0 %v4168
        %5222 = vmatpush1.bf16.msra.mxu0 %v4167
        %5223 = vmatprep.subr.bf16.mxu0 %v4172
        %5224 = vmatpush1.bf16.msra.mxu0 %v4171
        %5225 = vmatprep.subr.bf16.mxu0 %v4176
        %5226 = vmatpush1.bf16.msra.mxu0 %v4175
        %5227 = vmatprep.subr.bf16.mxu0 %v4180
        %5228 = vmatpush1.bf16.msra.mxu0 %v4179
        %5229 = vmatprep.subr.bf16.mxu0 %v4184
        %5230 = vmatpush1.bf16.msra.mxu0 %v4183
        %5231 = vmatprep.subr.bf16.mxu0 %v4188
        %5232 = vmatpush1.bf16.msra.mxu0 %v4187
        %5233 = vmatprep.subr.bf16.mxu0 %v4192
        %5234 = vmatpush1.bf16.msra.mxu0 %v4191
        %5235 = vmatprep.subr.bf16.mxu0 %v4196
        %5236 = vmatpush1.bf16.msra.mxu0 %v4195
        %5237 = vmatprep.subr.bf16.mxu0 %v4200
        %5238 = vmatpush1.bf16.msra.mxu0 %v4199
        %5239 = vmatprep.subr.bf16.mxu0 %v4204
        %5240 = vmatpush1.bf16.msra.mxu0 %v4203
        %5241 = vmatprep.subr.bf16.mxu0 %v4208
        %5242 = vmatpush1.bf16.msra.mxu0 %v4207
        %5243 = vmatprep.subr.bf16.mxu0 %v4212
        %5244 = vmatpush1.bf16.msra.mxu0 %v4211
        %5245 = vmatprep.subr.bf16.mxu0 %v4216
        %5246 = vmatpush1.bf16.msra.mxu0 %v4215
        %5247 = vmatprep.mubr.bf16.mxu0 %v2119
        %5248 = vmatmul.mubr.bf16.gmra.mrb[0].mxu0 %v2105
        %v5249 = vpop.f32.mrb[0].mxu0
        %v5250 = vadd.f32 %v5209, %v5249
        %v5251 = vpop.f32.mrb[0].mxu0
        %v5252 = vadd.f32 %v5211, %v5251
        %v5253 = vpop.f32.mrb[0].mxu0
        %v5254 = vpop.f32.mrb[0].mxu0
        %5255 = vdwg.mxu0
        %5256 = vmatprep.subr.bf16.mxu0 %v4220
        %5257 = vmatpush1.bf16.msra.mxu0 %v4219
        %5258 = vmatprep.subr.bf16.mxu0 %v4224
        %5259 = vmatpush1.bf16.msra.mxu0 %v4223
        %5260 = vmatprep.subr.bf16.mxu0 %v4228
        %5261 = vmatpush1.bf16.msra.mxu0 %v4227
        %5262 = vmatprep.subr.bf16.mxu0 %v4232
        %5263 = vmatpush1.bf16.msra.mxu0 %v4231
        %5264 = vmatprep.subr.bf16.mxu0 %v4236
        %5265 = vmatpush1.bf16.msra.mxu0 %v4235
        %5266 = vmatprep.subr.bf16.mxu0 %v4240
        %5267 = vmatpush1.bf16.msra.mxu0 %v4239
        %5268 = vmatprep.subr.bf16.mxu0 %v4244
        %5269 = vmatpush1.bf16.msra.mxu0 %v4243
        %5270 = vmatprep.subr.bf16.mxu0 %v4248
        %5271 = vmatpush1.bf16.msra.mxu0 %v4247
        %5272 = vmatprep.subr.bf16.mxu0 %v4252
        %5273 = vmatpush1.bf16.msra.mxu0 %v4251
        %5274 = vmatprep.subr.bf16.mxu0 %v4256
        %5275 = vmatpush1.bf16.msra.mxu0 %v4255
        %5276 = vmatprep.subr.bf16.mxu0 %v4260
        %5277 = vmatpush1.bf16.msra.mxu0 %v4259
        %5278 = vmatprep.subr.bf16.mxu0 %v4264
        %5279 = vmatpush1.bf16.msra.mxu0 %v4263
        %5280 = vmatprep.subr.bf16.mxu0 %v4268
        %5281 = vmatpush1.bf16.msra.mxu0 %v4267
        %5282 = vmatprep.subr.bf16.mxu0 %v4272
        %5283 = vmatpush1.bf16.msra.mxu0 %v4271
        %5284 = vmatprep.subr.bf16.mxu0 %v4276
        %5285 = vmatpush1.bf16.msra.mxu0 %v4275
        %5286 = vmatprep.subr.bf16.mxu0 %v4280
        %5287 = vmatpush1.bf16.msra.mxu0 %v4279
        %5288 = vmatprep.mubr.bf16.mxu0 %v2129
        %5289 = vmatmul.mubr.bf16.gmra.mrb[0].mxu0 %v2127
        %v5290 = vpop.f32.mrb[0].mxu0
        %v5291 = vadd.f32 %v5250, %v5290
        %v5292 = vpop.f32.mrb[0].mxu0
        %v5293 = vadd.f32 %v5252, %v5292
        %v5294 = vpop.f32.mrb[0].mxu0
        %v5295 = vpop.f32.mrb[0].mxu0
        %5296 = vdwg.mxu0
        %5297 = vmatprep.subr.bf16.mxu0 %v4284
        %5298 = vmatpush1.bf16.msra.mxu0 %v4283
        %5299 = vmatprep.subr.bf16.mxu0 %v4288
        %5300 = vmatpush1.bf16.msra.mxu0 %v4287
        %5301 = vmatprep.subr.bf16.mxu0 %v4292
        %5302 = vmatpush1.bf16.msra.mxu0 %v4291
        %5303 = vmatprep.subr.bf16.mxu0 %v4296
        %5304 = vmatpush1.bf16.msra.mxu0 %v4295
        %5305 = vmatprep.subr.bf16.mxu0 %v4300
        %5306 = vmatpush1.bf16.msra.mxu0 %v4299
        %5307 = vmatprep.subr.bf16.mxu0 %v4304
        %5308 = vmatpush1.bf16.msra.mxu0 %v4303
        %5309 = vmatprep.subr.bf16.mxu0 %v4308
        %5310 = vmatpush1.bf16.msra.mxu0 %v4307
        %5311 = vmatprep.subr.bf16.mxu0 %v4312
        %5312 = vmatpush1.bf16.msra.mxu0 %v4311
        %5313 = vmatprep.subr.bf16.mxu0 %v4316
        %5314 = vmatpush1.bf16.msra.mxu0 %v4315
        %5315 = vmatprep.subr.bf16.mxu0 %v4320
        %5316 = vmatpush1.bf16.msra.mxu0 %v4319
        %5317 = vmatprep.subr.bf16.mxu0 %v4324
        %5318 = vmatpush1.bf16.msra.mxu0 %v4323
        %5319 = vmatprep.subr.bf16.mxu0 %v4328
        %5320 = vmatpush1.bf16.msra.mxu0 %v4327
        %5321 = vmatprep.subr.bf16.mxu0 %v4332
        %5322 = vmatpush1.bf16.msra.mxu0 %v4331
        %5323 = vmatprep.subr.bf16.mxu0 %v4336
        %5324 = vmatpush1.bf16.msra.mxu0 %v4335
        %5325 = vmatprep.subr.bf16.mxu0 %v4340
        %5326 = vmatpush1.bf16.msra.mxu0 %v4339
        %5327 = vmatprep.subr.bf16.mxu0 %v4344
        %5328 = vmatpush1.bf16.msra.mxu0 %v4343
        %5329 = vmatprep.mubr.bf16.mxu0 %v2126
        %5330 = vmatmul.mubr.bf16.gmra.mrb[0].mxu0 %v2112
        %v5331 = vpop.f32.mrb[0].mxu0
        %v5332 = vadd.f32 %v5291, %v5331
        %v5333 = vpop.f32.mrb[0].mxu0
        %v5334 = vadd.f32 %v5293, %v5333
        %v5335 = vpop.f32.mrb[0].mxu0
        %v5336 = vpop.f32.mrb[0].mxu0
        %5337 = vdwg.mxu0
        %5338 = vmatprep.subr.bf16.mxu0 %v4348
        %5339 = vmatpush1.bf16.msra.mxu0 %v4347
        %5340 = vmatprep.subr.bf16.mxu0 %v4352
        %5341 = vmatpush1.bf16.msra.mxu0 %v4351
        %5342 = vmatprep.subr.bf16.mxu0 %v4356
        %5343 = vmatpush1.bf16.msra.mxu0 %v4355
        %5344 = vmatprep.subr.bf16.mxu0 %v4360
        %5345 = vmatpush1.bf16.msra.mxu0 %v4359
        %5346 = vmatprep.subr.bf16.mxu0 %v4364
        %5347 = vmatpush1.bf16.msra.mxu0 %v4363
        %5348 = vmatprep.subr.bf16.mxu0 %v4368
        %5349 = vmatpush1.bf16.msra.mxu0 %v4367
        %5350 = vmatprep.subr.bf16.mxu0 %v4372
        %5351 = vmatpush1.bf16.msra.mxu0 %v4371
        %5352 = vmatprep.subr.bf16.mxu0 %v4376
        %5353 = vmatpush1.bf16.msra.mxu0 %v4375
        %5354 = vmatprep.subr.bf16.mxu0 %v4380
        %5355 = vmatpush1.bf16.msra.mxu0 %v4379
        %5356 = vmatprep.subr.bf16.mxu0 %v4384
        %5357 = vmatpush1.bf16.msra.mxu0 %v4383
        %5358 = vmatprep.subr.bf16.mxu0 %v4388
        %5359 = vmatpush1.bf16.msra.mxu0 %v4387
        %5360 = vmatprep.subr.bf16.mxu0 %v4392
        %5361 = vmatpush1.bf16.msra.mxu0 %v4391
        %5362 = vmatprep.subr.bf16.mxu0 %v4396
        %5363 = vmatpush1.bf16.msra.mxu0 %v4395
        %5364 = vmatprep.subr.bf16.mxu0 %v4400
        %5365 = vmatpush1.bf16.msra.mxu0 %v4399
        %5366 = vmatprep.subr.bf16.mxu0 %v4404
        %5367 = vmatpush1.bf16.msra.mxu0 %v4403
        %5368 = vmatprep.subr.bf16.mxu0 %v4408
        %5369 = vmatpush1.bf16.msra.mxu0 %v4407
        %5370 = vmatprep.mubr.bf16.mxu0 %v2130
        %5371 = vmatmul.mubr.bf16.gmra.mrb[0].mxu0 %v2128
        %v5372 = vpop.f32.mrb[0].mxu0
        %v5373 = vadd.f32 %v5332, %v5372
        %v5374 = vpop.f32.mrb[0].mxu0
        %v5375 = vadd.f32 %v5334, %v5374
        %v5376 = vpop.f32.mrb[0].mxu0
        %v5377 = vpop.f32.mrb[0].mxu0
        %5378 = vdwg.mxu0
        %5379 = vmatprep.subr.bf16.mxu0 %v4412
        %5380 = vmatpush1.bf16.msra.mxu0 %v4411
        %5381 = vmatprep.subr.bf16.mxu0 %v4416
        %5382 = vmatpush1.bf16.msra.mxu0 %v4415
        %5383 = vmatprep.subr.bf16.mxu0 %v4420
        %5384 = vmatpush1.bf16.msra.mxu0 %v4419
        %5385 = vmatprep.subr.bf16.mxu0 %v4424
        %5386 = vmatpush1.bf16.msra.mxu0 %v4423
        %5387 = vmatprep.subr.bf16.mxu0 %v4428
        %5388 = vmatpush1.bf16.msra.mxu0 %v4427
        %5389 = vmatprep.subr.bf16.mxu0 %v4432
        %5390 = vmatpush1.bf16.msra.mxu0 %v4431
        %5391 = vmatprep.subr.bf16.mxu0 %v4436
        %5392 = vmatpush1.bf16.msra.mxu0 %v4435
        %5393 = vmatprep.subr.bf16.mxu0 %v4440
        %5394 = vmatpush1.bf16.msra.mxu0 %v4439
        %5395 = vmatprep.subr.bf16.mxu0 %v4444
        %5396 = vmatpush1.bf16.msra.mxu0 %v4443
        %5397 = vmatprep.subr.bf16.mxu0 %v4448
        %5398 = vmatpush1.bf16.msra.mxu0 %v4447
        %5399 = vmatprep.subr.bf16.mxu0 %v4452
        %5400 = vmatpush1.bf16.msra.mxu0 %v4451
        %5401 = vmatprep.subr.bf16.mxu0 %v4456
        %5402 = vmatpush1.bf16.msra.mxu0 %v4455
        %5403 = vmatprep.subr.bf16.mxu0 %v4460
        %5404 = vmatpush1.bf16.msra.mxu0 %v4459
        %5405 = vmatprep.subr.bf16.mxu0 %v4464
        %5406 = vmatpush1.bf16.msra.mxu0 %v4463
        %5407 = vmatprep.subr.bf16.mxu0 %v4468
        %5408 = vmatpush1.bf16.msra.mxu0 %v4467
        %5409 = vmatprep.subr.bf16.mxu0 %v4472
        %5410 = vmatpush1.bf16.msra.mxu0 %v4471
        %5411 = vmatprep.mubr.bf16.mxu0 %v2152
        %5412 = vmatmul.mubr.bf16.gmra.mrb[0].mxu0 %v2145
        %v5413 = vpop.f32.mrb[0].mxu0
        %v5414 = vadd.f32 %v5373, %v5413
        %v5415 = vpop.f32.mrb[0].mxu0
        %v5416 = vadd.f32 %v5375, %v5415
        %v5417 = vpop.f32.mrb[0].mxu0
        %v5418 = vpop.f32.mrb[0].mxu0
        %5419 = vdwg.mxu0
        %5420 = vmatprep.subr.bf16.mxu0 %v3902
        %5421 = vmatpush1.bf16.msra.mxu0 %v3901
        %5422 = vmatprep.subr.bf16.mxu0 %v3906
        %5423 = vmatpush1.bf16.msra.mxu0 %v3905
        %5424 = vmatprep.subr.bf16.mxu0 %v3910
        %5425 = vmatpush1.bf16.msra.mxu0 %v3909
        %5426 = vmatprep.subr.bf16.mxu0 %v3914
        %5427 = vmatpush1.bf16.msra.mxu0 %v3913
        %5428 = vmatprep.subr.bf16.mxu0 %v3918
        %5429 = vmatpush1.bf16.msra.mxu0 %v3917
        %5430 = vmatprep.subr.bf16.mxu0 %v3922
        %5431 = vmatpush1.bf16.msra.mxu0 %v3921
        %5432 = vmatprep.subr.bf16.mxu0 %v3926
        %5433 = vmatpush1.bf16.msra.mxu0 %v3925
        %5434 = vmatprep.subr.bf16.mxu0 %v3930
        %5435 = vmatpush1.bf16.msra.mxu0 %v3929
        %5436 = vmatprep.subr.bf16.mxu0 %v3934
        %5437 = vmatpush1.bf16.msra.mxu0 %v3933
        %5438 = vmatprep.subr.bf16.mxu0 %v3938
        %5439 = vmatpush1.bf16.msra.mxu0 %v3937
        %5440 = vmatprep.subr.bf16.mxu0 %v3942
        %5441 = vmatpush1.bf16.msra.mxu0 %v3941
        %5442 = vmatprep.subr.bf16.mxu0 %v3946
        %5443 = vmatpush1.bf16.msra.mxu0 %v3945
        %5444 = vmatprep.subr.bf16.mxu0 %v3950
        %5445 = vmatpush1.bf16.msra.mxu0 %v3949
        %5446 = vmatprep.subr.bf16.mxu0 %v3954
        %5447 = vmatpush1.bf16.msra.mxu0 %v3953
        %5448 = vmatprep.subr.bf16.mxu0 %v3958
        %5449 = vmatpush1.bf16.msra.mxu0 %v3957
        %5450 = vmatprep.subr.bf16.mxu0 %v3962
        %5451 = vmatpush1.bf16.msra.mxu0 %v3961
        %5452 = vmatprep.mubr.bf16.mxu0 %v2070
        %5453 = vmatmul.mubr.bf16.gmra.mrb[0].mxu0 %v2056
        %v5454 = vpop.f32.mrb[0].mxu0
        %v5455 = vadd.f32 %v2021, %v5454
        %v5456 = vpop.f32.mrb[0].mxu0
        %v5457 = vadd.f32 %v2025, %v5456
        %v5458 = vpop.f32.mrb[0].mxu0
        %v5459 = vpop.f32.mrb[0].mxu0
        %5460 = vdwg.mxu0
        %5461 = vmatprep.subr.bf16.mxu0 %v3966
        %5462 = vmatpush1.bf16.msra.mxu0 %v3965
        %5463 = vmatprep.subr.bf16.mxu0 %v3970
        %5464 = vmatpush1.bf16.msra.mxu0 %v3969
        %5465 = vmatprep.subr.bf16.mxu0 %v3974
        %5466 = vmatpush1.bf16.msra.mxu0 %v3973
        %5467 = vmatprep.subr.bf16.mxu0 %v3978
        %5468 = vmatpush1.bf16.msra.mxu0 %v3977
        %5469 = vmatprep.subr.bf16.mxu0 %v3982
        %5470 = vmatpush1.bf16.msra.mxu0 %v3981
        %5471 = vmatprep.subr.bf16.mxu0 %v3986
        %5472 = vmatpush1.bf16.msra.mxu0 %v3985
        %5473 = vmatprep.subr.bf16.mxu0 %v3990
        %5474 = vmatpush1.bf16.msra.mxu0 %v3989
        %5475 = vmatprep.subr.bf16.mxu0 %v3994
        %5476 = vmatpush1.bf16.msra.mxu0 %v3993
        %5477 = vmatprep.subr.bf16.mxu0 %v3998
        %5478 = vmatpush1.bf16.msra.mxu0 %v3997
        %5479 = vmatprep.subr.bf16.mxu0 %v4002
        %5480 = vmatpush1.bf16.msra.mxu0 %v4001
        %5481 = vmatprep.subr.bf16.mxu0 %v4006
        %5482 = vmatpush1.bf16.msra.mxu0 %v4005
        %5483 = vmatprep.subr.bf16.mxu0 %v4010
        %5484 = vmatpush1.bf16.msra.mxu0 %v4009
        %5485 = vmatprep.subr.bf16.mxu0 %v4014
        %5486 = vmatpush1.bf16.msra.mxu0 %v4013
        %5487 = vmatprep.subr.bf16.mxu0 %v4018
        %5488 = vmatpush1.bf16.msra.mxu0 %v4017
        %5489 = vmatprep.subr.bf16.mxu0 %v4022
        %5490 = vmatpush1.bf16.msra.mxu0 %v4021
        %5491 = vmatprep.subr.bf16.mxu0 %v4026
        %5492 = vmatpush1.bf16.msra.mxu0 %v4025
        %5493 = vmatprep.mubr.bf16.mxu0 %v2080
        %5494 = vmatmul.mubr.bf16.gmra.mrb[0].mxu0 %v2078
        %v5495 = vpop.f32.mrb[0].mxu0
        %v5496 = vadd.f32 %v5455, %v5495
        %v5497 = vpop.f32.mrb[0].mxu0
        %v5498 = vadd.f32 %v5457, %v5497
        %v5499 = vpop.f32.mrb[0].mxu0
        %v5500 = vpop.f32.mrb[0].mxu0
        %5501 = vdwg.mxu0
        %5502 = vmatprep.subr.bf16.mxu0 %v4030
        %5503 = vmatpush1.bf16.msra.mxu0 %v4029
        %5504 = vmatprep.subr.bf16.mxu0 %v4034
        %5505 = vmatpush1.bf16.msra.mxu0 %v4033
        %5506 = vmatprep.subr.bf16.mxu0 %v4038
        %5507 = vmatpush1.bf16.msra.mxu0 %v4037
        %5508 = vmatprep.subr.bf16.mxu0 %v4042
        %5509 = vmatpush1.bf16.msra.mxu0 %v4041
        %5510 = vmatprep.subr.bf16.mxu0 %v4046
        %5511 = vmatpush1.bf16.msra.mxu0 %v4045
        %5512 = vmatprep.subr.bf16.mxu0 %v4050
        %5513 = vmatpush1.bf16.msra.mxu0 %v4049
        %5514 = vmatprep.subr.bf16.mxu0 %v4054
        %5515 = vmatpush1.bf16.msra.mxu0 %v4053
        %5516 = vmatprep.subr.bf16.mxu0 %v4058
        %5517 = vmatpush1.bf16.msra.mxu0 %v4057
        %5518 = vmatprep.subr.bf16.mxu0 %v4062
        %5519 = vmatpush1.bf16.msra.mxu0 %v4061
        %5520 = vmatprep.subr.bf16.mxu0 %v4066
        %5521 = vmatpush1.bf16.msra.mxu0 %v4065
        %5522 = vmatprep.subr.bf16.mxu0 %v4070
        %5523 = vmatpush1.bf16.msra.mxu0 %v4069
        %5524 = vmatprep.subr.bf16.mxu0 %v4074
        %5525 = vmatpush1.bf16.msra.mxu0 %v4073
        %5526 = vmatprep.subr.bf16.mxu0 %v4078
        %5527 = vmatpush1.bf16.msra.mxu0 %v4077
        %5528 = vmatprep.subr.bf16.mxu0 %v4082
        %5529 = vmatpush1.bf16.msra.mxu0 %v4081
        %5530 = vmatprep.subr.bf16.mxu0 %v4086
        %5531 = vmatpush1.bf16.msra.mxu0 %v4085
        %5532 = vmatprep.subr.bf16.mxu0 %v4090
        %5533 = vmatpush1.bf16.msra.mxu0 %v4089
        %5534 = vmatprep.mubr.bf16.mxu0 %v2077
        %5535 = vmatmul.mubr.bf16.gmra.mrb[0].mxu0 %v2063
        %v5536 = vpop.f32.mrb[0].mxu0
        %v5537 = vadd.f32 %v5496, %v5536
        %v5538 = vpop.f32.mrb[0].mxu0
        %v5539 = vadd.f32 %v5498, %v5538
        %v5540 = vpop.f32.mrb[0].mxu0
        %v5541 = vpop.f32.mrb[0].mxu0
        %5542 = vdwg.mxu0
        %5543 = vmatprep.subr.bf16.mxu0 %v4094
        %5544 = vmatpush1.bf16.msra.mxu0 %v4093
        %5545 = vmatprep.subr.bf16.mxu0 %v4098
        %5546 = vmatpush1.bf16.msra.mxu0 %v4097
        %5547 = vmatprep.subr.bf16.mxu0 %v4102
        %5548 = vmatpush1.bf16.msra.mxu0 %v4101
        %5549 = vmatprep.subr.bf16.mxu0 %v4106
        %5550 = vmatpush1.bf16.msra.mxu0 %v4105
        %5551 = vmatprep.subr.bf16.mxu0 %v4110
        %5552 = vmatpush1.bf16.msra.mxu0 %v4109
        %5553 = vmatprep.subr.bf16.mxu0 %v4114
        %5554 = vmatpush1.bf16.msra.mxu0 %v4113
        %5555 = vmatprep.subr.bf16.mxu0 %v4118
        %5556 = vmatpush1.bf16.msra.mxu0 %v4117
        %5557 = vmatprep.subr.bf16.mxu0 %v4122
        %5558 = vmatpush1.bf16.msra.mxu0 %v4121
        %5559 = vmatprep.subr.bf16.mxu0 %v4126
        %5560 = vmatpush1.bf16.msra.mxu0 %v4125
        %5561 = vmatprep.subr.bf16.mxu0 %v4130
        %5562 = vmatpush1.bf16.msra.mxu0 %v4129
        %5563 = vmatprep.subr.bf16.mxu0 %v4134
        %5564 = vmatpush1.bf16.msra.mxu0 %v4133
        %5565 = vmatprep.subr.bf16.mxu0 %v4138
        %5566 = vmatpush1.bf16.msra.mxu0 %v4137
        %5567 = vmatprep.subr.bf16.mxu0 %v4142
        %5568 = vmatpush1.bf16.msra.mxu0 %v4141
        %5569 = vmatprep.subr.bf16.mxu0 %v4146
        %5570 = vmatpush1.bf16.msra.mxu0 %v4145
        %5571 = vmatprep.subr.bf16.mxu0 %v4150
        %5572 = vmatpush1.bf16.msra.mxu0 %v4149
        %5573 = vmatprep.subr.bf16.mxu0 %v4154
        %5574 = vmatpush1.bf16.msra.mxu0 %v4153
        %5575 = vmatprep.mubr.bf16.mxu0 %v2081
        %5576 = vmatmul.mubr.bf16.gmra.mrb[0].mxu0 %v2079
        %v5577 = vpop.f32.mrb[0].mxu0
        %v5578 = vadd.f32 %v5537, %v5577
        %v5579 = vpop.f32.mrb[0].mxu0
        %v5580 = vadd.f32 %v5539, %v5579
        %v5581 = vpop.f32.mrb[0].mxu0
        %v5582 = vpop.f32.mrb[0].mxu0
        %5583 = vdwg.mxu0
        %5584 = vmatprep.subr.bf16.mxu0 %v4158
        %5585 = vmatpush1.bf16.msra.mxu0 %v4157
        %5586 = vmatprep.subr.bf16.mxu0 %v4162
        %5587 = vmatpush1.bf16.msra.mxu0 %v4161
        %5588 = vmatprep.subr.bf16.mxu0 %v4166
        %5589 = vmatpush1.bf16.msra.mxu0 %v4165
        %5590 = vmatprep.subr.bf16.mxu0 %v4170
        %5591 = vmatpush1.bf16.msra.mxu0 %v4169
        %5592 = vmatprep.subr.bf16.mxu0 %v4174
        %5593 = vmatpush1.bf16.msra.mxu0 %v4173
        %5594 = vmatprep.subr.bf16.mxu0 %v4178
        %5595 = vmatpush1.bf16.msra.mxu0 %v4177
        %5596 = vmatprep.subr.bf16.mxu0 %v4182
        %5597 = vmatpush1.bf16.msra.mxu0 %v4181
        %5598 = vmatprep.subr.bf16.mxu0 %v4186
        %5599 = vmatpush1.bf16.msra.mxu0 %v4185
        %5600 = vmatprep.subr.bf16.mxu0 %v4190
        %5601 = vmatpush1.bf16.msra.mxu0 %v4189
        %5602 = vmatprep.subr.bf16.mxu0 %v4194
        %5603 = vmatpush1.bf16.msra.mxu0 %v4193
        %5604 = vmatprep.subr.bf16.mxu0 %v4198
        %5605 = vmatpush1.bf16.msra.mxu0 %v4197
        %5606 = vmatprep.subr.bf16.mxu0 %v4202
        %5607 = vmatpush1.bf16.msra.mxu0 %v4201
        %5608 = vmatprep.subr.bf16.mxu0 %v4206
        %5609 = vmatpush1.bf16.msra.mxu0 %v4205
        %5610 = vmatprep.subr.bf16.mxu0 %v4210
        %5611 = vmatpush1.bf16.msra.mxu0 %v4209
        %5612 = vmatprep.subr.bf16.mxu0 %v4214
        %5613 = vmatpush1.bf16.msra.mxu0 %v4213
        %5614 = vmatprep.subr.bf16.mxu0 %v4218
        %5615 = vmatpush1.bf16.msra.mxu0 %v4217
        %5616 = vmatprep.mubr.bf16.mxu0 %v2119
        %5617 = vmatmul.mubr.bf16.gmra.mrb[0].mxu0 %v2105
        %v5618 = vpop.f32.mrb[0].mxu0
        %v5619 = vadd.f32 %v5578, %v5618
        %v5620 = vpop.f32.mrb[0].mxu0
        %v5621 = vadd.f32 %v5580, %v5620
        %v5622 = vpop.f32.mrb[0].mxu0
        %v5623 = vpop.f32.mrb[0].mxu0
        %5624 = vdwg.mxu0
        %5625 = vmatprep.subr.bf16.mxu0 %v4222
        %5626 = vmatpush1.bf16.msra.mxu0 %v4221
        %5627 = vmatprep.subr.bf16.mxu0 %v4226
        %5628 = vmatpush1.bf16.msra.mxu0 %v4225
        %5629 = vmatprep.subr.bf16.mxu0 %v4230
        %5630 = vmatpush1.bf16.msra.mxu0 %v4229
        %5631 = vmatprep.subr.bf16.mxu0 %v4234
        %5632 = vmatpush1.bf16.msra.mxu0 %v4233
        %5633 = vmatprep.subr.bf16.mxu0 %v4238
        %5634 = vmatpush1.bf16.msra.mxu0 %v4237
        %5635 = vmatprep.subr.bf16.mxu0 %v4242
        %5636 = vmatpush1.bf16.msra.mxu0 %v4241
        %5637 = vmatprep.subr.bf16.mxu0 %v4246
        %5638 = vmatpush1.bf16.msra.mxu0 %v4245
        %5639 = vmatprep.subr.bf16.mxu0 %v4250
        %5640 = vmatpush1.bf16.msra.mxu0 %v4249
        %5641 = vmatprep.subr.bf16.mxu0 %v4254
        %5642 = vmatpush1.bf16.msra.mxu0 %v4253
        %5643 = vmatprep.subr.bf16.mxu0 %v4258
        %5644 = vmatpush1.bf16.msra.mxu0 %v4257
        %5645 = vmatprep.subr.bf16.mxu0 %v4262
        %5646 = vmatpush1.bf16.msra.mxu0 %v4261
        %5647 = vmatprep.subr.bf16.mxu0 %v4266
        %5648 = vmatpush1.bf16.msra.mxu0 %v4265
        %5649 = vmatprep.subr.bf16.mxu0 %v4270
        %5650 = vmatpush1.bf16.msra.mxu0 %v4269
        %5651 = vmatprep.subr.bf16.mxu0 %v4274
        %5652 = vmatpush1.bf16.msra.mxu0 %v4273
        %5653 = vmatprep.subr.bf16.mxu0 %v4278
        %5654 = vmatpush1.bf16.msra.mxu0 %v4277
        %5655 = vmatprep.subr.bf16.mxu0 %v4282
        %5656 = vmatpush1.bf16.msra.mxu0 %v4281
        %5657 = vmatprep.mubr.bf16.mxu0 %v2129
        %5658 = vmatmul.mubr.bf16.gmra.mrb[0].mxu0 %v2127
        %v5659 = vpop.f32.mrb[0].mxu0
        %v5660 = vadd.f32 %v5619, %v5659
        %v5661 = vpop.f32.mrb[0].mxu0
        %v5662 = vadd.f32 %v5621, %v5661
        %v5663 = vpop.f32.mrb[0].mxu0
        %v5664 = vpop.f32.mrb[0].mxu0
        %5665 = vdwg.mxu0
        %5666 = vmatprep.subr.bf16.mxu0 %v4286
        %5667 = vmatpush1.bf16.msra.mxu0 %v4285
        %5668 = vmatprep.subr.bf16.mxu0 %v4290
        %5669 = vmatpush1.bf16.msra.mxu0 %v4289
        %5670 = vmatprep.subr.bf16.mxu0 %v4294
        %5671 = vmatpush1.bf16.msra.mxu0 %v4293
        %5672 = vmatprep.subr.bf16.mxu0 %v4298
        %5673 = vmatpush1.bf16.msra.mxu0 %v4297
        %5674 = vmatprep.subr.bf16.mxu0 %v4302
        %5675 = vmatpush1.bf16.msra.mxu0 %v4301
        %5676 = vmatprep.subr.bf16.mxu0 %v4306
        %5677 = vmatpush1.bf16.msra.mxu0 %v4305
        %5678 = vmatprep.subr.bf16.mxu0 %v4310
        %5679 = vmatpush1.bf16.msra.mxu0 %v4309
        %5680 = vmatprep.subr.bf16.mxu0 %v4314
        %5681 = vmatpush1.bf16.msra.mxu0 %v4313
        %5682 = vmatprep.subr.bf16.mxu0 %v4318
        %5683 = vmatpush1.bf16.msra.mxu0 %v4317
        %5684 = vmatprep.subr.bf16.mxu0 %v4322
        %5685 = vmatpush1.bf16.msra.mxu0 %v4321
        %5686 = vmatprep.subr.bf16.mxu0 %v4326
        %5687 = vmatpush1.bf16.msra.mxu0 %v4325
        %5688 = vmatprep.subr.bf16.mxu0 %v4330
        %5689 = vmatpush1.bf16.msra.mxu0 %v4329
        %5690 = vmatprep.subr.bf16.mxu0 %v4334
        %5691 = vmatpush1.bf16.msra.mxu0 %v4333
        %5692 = vmatprep.subr.bf16.mxu0 %v4338
        %5693 = vmatpush1.bf16.msra.mxu0 %v4337
        %5694 = vmatprep.subr.bf16.mxu0 %v4342
        %5695 = vmatpush1.bf16.msra.mxu0 %v4341
        %5696 = vmatprep.subr.bf16.mxu0 %v4346
        %5697 = vmatpush1.bf16.msra.mxu0 %v4345
        %5698 = vmatprep.mubr.bf16.mxu0 %v2126
        %5699 = vmatmul.mubr.bf16.gmra.mrb[0].mxu0 %v2112
        %v5700 = vpop.f32.mrb[0].mxu0
        %v5701 = vadd.f32 %v5660, %v5700
        %v5702 = vpop.f32.mrb[0].mxu0
        %v5703 = vadd.f32 %v5662, %v5702
        %v5704 = vpop.f32.mrb[0].mxu0
        %v5705 = vpop.f32.mrb[0].mxu0
        %5706 = vdwg.mxu0
        %5707 = vmatprep.subr.bf16.mxu0 %v4350
        %5708 = vmatpush1.bf16.msra.mxu0 %v4349
        %5709 = vmatprep.subr.bf16.mxu0 %v4354
        %5710 = vmatpush1.bf16.msra.mxu0 %v4353
        %5711 = vmatprep.subr.bf16.mxu0 %v4358
        %5712 = vmatpush1.bf16.msra.mxu0 %v4357
        %5713 = vmatprep.subr.bf16.mxu0 %v4362
        %5714 = vmatpush1.bf16.msra.mxu0 %v4361
        %5715 = vmatprep.subr.bf16.mxu0 %v4366
        %5716 = vmatpush1.bf16.msra.mxu0 %v4365
        %5717 = vmatprep.subr.bf16.mxu0 %v4370
        %5718 = vmatpush1.bf16.msra.mxu0 %v4369
        %5719 = vmatprep.subr.bf16.mxu0 %v4374
        %5720 = vmatpush1.bf16.msra.mxu0 %v4373
        %5721 = vmatprep.subr.bf16.mxu0 %v4378
        %5722 = vmatpush1.bf16.msra.mxu0 %v4377
        %5723 = vmatprep.subr.bf16.mxu0 %v4382
        %5724 = vmatpush1.bf16.msra.mxu0 %v4381
        %5725 = vmatprep.subr.bf16.mxu0 %v4386
        %5726 = vmatpush1.bf16.msra.mxu0 %v4385
        %5727 = vmatprep.subr.bf16.mxu0 %v4390
        %5728 = vmatpush1.bf16.msra.mxu0 %v4389
        %5729 = vmatprep.subr.bf16.mxu0 %v4394
        %5730 = vmatpush1.bf16.msra.mxu0 %v4393
        %5731 = vmatprep.subr.bf16.mxu0 %v4398
        %5732 = vmatpush1.bf16.msra.mxu0 %v4397
        %5733 = vmatprep.subr.bf16.mxu0 %v4402
        %5734 = vmatpush1.bf16.msra.mxu0 %v4401
        %5735 = vmatprep.subr.bf16.mxu0 %v4406
        %5736 = vmatpush1.bf16.msra.mxu0 %v4405
        %5737 = vmatprep.subr.bf16.mxu0 %v4410
        %5738 = vmatpush1.bf16.msra.mxu0 %v4409
        %5739 = vmatprep.mubr.bf16.mxu0 %v2130
        %5740 = vmatmul.mubr.bf16.gmra.mrb[0].mxu0 %v2128
        %v5741 = vpop.f32.mrb[0].mxu0
        %v5742 = vadd.f32 %v5701, %v5741
        %v5743 = vpop.f32.mrb[0].mxu0
        %v5744 = vadd.f32 %v5703, %v5743
        %v5745 = vpop.f32.mrb[0].mxu0
        %v5746 = vpop.f32.mrb[0].mxu0
        %5747 = vdwg.mxu0
        %5748 = vmatprep.subr.bf16.mxu0 %v4414
        %5749 = vmatpush1.bf16.msra.mxu0 %v4413
        %5750 = vmatprep.subr.bf16.mxu0 %v4418
        %5751 = vmatpush1.bf16.msra.mxu0 %v4417
        %5752 = vmatprep.subr.bf16.mxu0 %v4422
        %5753 = vmatpush1.bf16.msra.mxu0 %v4421
        %5754 = vmatprep.subr.bf16.mxu0 %v4426
        %5755 = vmatpush1.bf16.msra.mxu0 %v4425
        %5756 = vmatprep.subr.bf16.mxu0 %v4430
        %5757 = vmatpush1.bf16.msra.mxu0 %v4429
        %5758 = vmatprep.subr.bf16.mxu0 %v4434
        %5759 = vmatpush1.bf16.msra.mxu0 %v4433
        %5760 = vmatprep.subr.bf16.mxu0 %v4438
        %5761 = vmatpush1.bf16.msra.mxu0 %v4437
        %5762 = vmatprep.subr.bf16.mxu0 %v4442
        %5763 = vmatpush1.bf16.msra.mxu0 %v4441
        %5764 = vmatprep.subr.bf16.mxu0 %v4446
        %5765 = vmatpush1.bf16.msra.mxu0 %v4445
        %5766 = vmatprep.subr.bf16.mxu0 %v4450
        %5767 = vmatpush1.bf16.msra.mxu0 %v4449
        %5768 = vmatprep.subr.bf16.mxu0 %v4454
        %5769 = vmatpush1.bf16.msra.mxu0 %v4453
        %5770 = vmatprep.subr.bf16.mxu0 %v4458
        %5771 = vmatpush1.bf16.msra.mxu0 %v4457
        %5772 = vmatprep.subr.bf16.mxu0 %v4462
        %5773 = vmatpush1.bf16.msra.mxu0 %v4461
        %5774 = vmatprep.subr.bf16.mxu0 %v4466
        %5775 = vmatpush1.bf16.msra.mxu0 %v4465
        %5776 = vmatprep.subr.bf16.mxu0 %v4470
        %5777 = vmatpush1.bf16.msra.mxu0 %v4469
        %5778 = vmatprep.subr.bf16.mxu0 %v4474
        %5779 = vmatpush1.bf16.msra.mxu0 %v4473
        %5780 = vmatprep.mubr.bf16.mxu0 %v2152
        %5781 = vmatmul.mubr.bf16.gmra.mrb[0].mxu0 %v2145
        %v5782 = vpop.f32.mrb[0].mxu0
        %v5783 = vadd.f32 %v5742, %v5782
        %v5784 = vpop.f32.mrb[0].mxu0
        %v5785 = vadd.f32 %v5744, %v5784
        %v5786 = vpop.f32.mrb[0].mxu0
        %v5787 = vpop.f32.mrb[0].mxu0
        %5788 = vdwg.mxu0
        %v5789 = vmax.f32 %v5414, 0.0
        %v5790 = vmax.f32 %v5416, 0.0
        %v5791 = vmax.f32 %v5783, 0.0
        %v5792 = vmax.f32 %v5785, 0.0
        %v5793 = vld [vmem:[#allocation2] sm:$0x3]
        %v5794 = vpack.c.bf16 %v5789, %v5789
        %v5795 = vpack.c.bf16 %v5790, %v5790
        %v5796 = vpack.c.bf16 %v5791, %v5791
        %v5797 = vpack.c.bf16 %v5792, %v5792
        %v5798 = vld [vmem:[%s1421] sm:$0xf]
        %v5799 = vld [vmem:[%s1421 + $0x4] sm:$0xf]
        %v5800 = vld [vmem:[%s1421 + $0x8] sm:$0xf]
        %v5801 = vld [vmem:[%s1421 + $0xc] sm:$0xf]
        %v5802 = vld [vmem:[%s1421 + $0x10] sm:$0xf]
        %v5803 = vld [vmem:[%s1421 + $0x14] sm:$0xf]
        %v5804 = vld [vmem:[%s1421 + $0x18] sm:$0xf]
        %v5805 = vld [vmem:[%s1421 + $0x1c] sm:$0xf]
        %v5806 = vld [vmem:[%s1421 + $0x20] sm:$0xf]
        %v5807 = vld [vmem:[%s1421 + $0x24] sm:$0xf]
        %v5808 = vld [vmem:[%s1421 + $0x28] sm:$0xf]
        %v5809 = vld [vmem:[%s1421 + $0x2c] sm:$0xf]
        %v5810 = vld [vmem:[%s1421 + $0x30] sm:$0xf]
        %v5811 = vld [vmem:[%s1421 + $0x34] sm:$0xf]
        %v5812 = vld [vmem:[%s1421 + $0x38] sm:$0xf]
        %v5813 = vld [vmem:[%s1421 + $0x3c] sm:$0xf]
        %v5814 = vld [vmem:[%s1421 + $0x40] sm:$0xf]
        %v5815 = vld [vmem:[%s1421 + $0x44] sm:$0xf]
        %v5816 = vld [vmem:[%s1421 + $0x48] sm:$0xf]
        %v5817 = vld [vmem:[%s1421 + $0x4c] sm:$0xf]
        %v5818 = vld [vmem:[%s1421 + $0x50] sm:$0xf]
        %v5819 = vld [vmem:[%s1421 + $0x54] sm:$0xf]
        %v5820 = vld [vmem:[%s1421 + $0x58] sm:$0xf]
        %v5821 = vld [vmem:[%s1421 + $0x5c] sm:$0xf]
        %v5822 = vld [vmem:[%s1421 + $0x60] sm:$0xf]
        %v5823 = vld [vmem:[%s1421 + $0x64] sm:$0xf]
        %v5824 = vld [vmem:[%s1421 + $0x68] sm:$0xf]
        %v5825 = vld [vmem:[%s1421 + $0x6c] sm:$0xf]
        %v5826 = vld [vmem:[%s1421 + $0x70] sm:$0xf]
        %v5827 = vld [vmem:[%s1421 + $0x74] sm:$0xf]
        %v5828 = vld [vmem:[%s1421 + $0x78] sm:$0xf]
        %v5829 = vld [vmem:[%s1421 + $0x7c] sm:$0xf]
        %v5830 = vld [vmem:[%s1421 + $0x80] sm:$0xf]
        %v5831 = vld [vmem:[%s1421 + $0x84] sm:$0xf]
        %v5832 = vld [vmem:[%s1421 + $0x88] sm:$0xf]
        %v5833 = vld [vmem:[%s1421 + $0x8c] sm:$0xf]
        %v5834 = vld [vmem:[%s1421 + $0x90] sm:$0xf]
        %v5835 = vld [vmem:[%s1421 + $0x94] sm:$0xf]
        %v5836 = vld [vmem:[%s1421 + $0x98] sm:$0xf]
        %v5837 = vld [vmem:[%s1421 + $0x9c] sm:$0xf]
        %v5838 = vld [vmem:[%s1421 + $0xa0] sm:$0xf]
        %v5839 = vld [vmem:[%s1421 + $0xa4] sm:$0xf]
        %v5840 = vld [vmem:[%s1421 + $0xa8] sm:$0xf]
        %v5841 = vld [vmem:[%s1421 + $0xac] sm:$0xf]
        %v5842 = vld [vmem:[%s1421 + $0xb0] sm:$0xf]
        %v5843 = vld [vmem:[%s1421 + $0xb4] sm:$0xf]
        %v5844 = vld [vmem:[%s1421 + $0xb8] sm:$0xf]
        %v5845 = vld [vmem:[%s1421 + $0xbc] sm:$0xf]
        %v5846 = vld [vmem:[%s1421 + $0xc0] sm:$0xf]
        %v5847 = vld [vmem:[%s1421 + $0xc4] sm:$0xf]
        %v5848 = vld [vmem:[%s1421 + $0xc8] sm:$0xf]
        %v5849 = vld [vmem:[%s1421 + $0xcc] sm:$0xf]
        %v5850 = vld [vmem:[%s1421 + $0xd0] sm:$0xf]
        %v5851 = vld [vmem:[%s1421 + $0xd4] sm:$0xf]
        %v5852 = vld [vmem:[%s1421 + $0xd8] sm:$0xf]
        %v5853 = vld [vmem:[%s1421 + $0xdc] sm:$0xf]
        %v5854 = vld [vmem:[%s1421 + $0xe0] sm:$0xf]
        %v5855 = vld [vmem:[%s1421 + $0xe4] sm:$0xf]
        %v5856 = vld [vmem:[%s1421 + $0xe8] sm:$0xf]
        %v5857 = vld [vmem:[%s1421 + $0xec] sm:$0xf]
        %v5858 = vld [vmem:[%s1421 + $0xf0] sm:$0xf]
        %v5859 = vld [vmem:[%s1421 + $0xf4] sm:$0xf]
        %v5860 = vld [vmem:[%s1421 + $0xf8] sm:$0xf]
        %v5861 = vld [vmem:[%s1421 + $0xfc] sm:$0xf]
        %v5926 = vunpack.c.l.b16 %v5798
        %v5927 = vunpack.c.l.b16 %v5799
        %v5928 = vunpack.c.l.b16 %v5800
        %v5929 = vunpack.c.l.b16 %v5801
        %v5930 = vunpack.c.l.b16 %v5802
        %v5931 = vunpack.c.l.b16 %v5803
        %v5932 = vunpack.c.l.b16 %v5804
        %v5933 = vunpack.c.l.b16 %v5805
        %v5934 = vunpack.c.l.b16 %v5806
        %v5935 = vunpack.c.l.b16 %v5807
        %v5936 = vunpack.c.l.b16 %v5808
        %v5937 = vunpack.c.l.b16 %v5809
        %v5938 = vunpack.c.l.b16 %v5810
        %v5939 = vunpack.c.l.b16 %v5811
        %v5940 = vunpack.c.l.b16 %v5812
        %v5941 = vunpack.c.l.b16 %v5813
        %v5942 = vunpack.c.l.b16 %v5814
        %v5943 = vunpack.c.l.b16 %v5815
        %v5944 = vunpack.c.l.b16 %v5816
        %v5945 = vunpack.c.l.b16 %v5817
        %v5946 = vunpack.c.l.b16 %v5818
        %v5947 = vunpack.c.l.b16 %v5819
        %v5948 = vunpack.c.l.b16 %v5820
        %v5949 = vunpack.c.l.b16 %v5821
        %v5950 = vunpack.c.l.b16 %v5822
        %v5951 = vunpack.c.l.b16 %v5823
        %v5952 = vunpack.c.l.b16 %v5824
        %v5953 = vunpack.c.l.b16 %v5825
        %v5954 = vunpack.c.l.b16 %v5826
        %v5955 = vunpack.c.l.b16 %v5827
        %v5956 = vunpack.c.l.b16 %v5828
        %v5957 = vunpack.c.l.b16 %v5829
        %v5958 = vunpack.c.l.b16 %v5830
        %v5959 = vunpack.c.l.b16 %v5831
        %v5960 = vunpack.c.l.b16 %v5832
        %v5961 = vunpack.c.l.b16 %v5833
        %v5962 = vunpack.c.l.b16 %v5834
        %v5963 = vunpack.c.l.b16 %v5835
        %v5964 = vunpack.c.l.b16 %v5836
        %v5965 = vunpack.c.l.b16 %v5837
        %v5966 = vunpack.c.l.b16 %v5838
        %v5967 = vunpack.c.l.b16 %v5839
        %v5968 = vunpack.c.l.b16 %v5840
        %v5969 = vunpack.c.l.b16 %v5841
        %v5970 = vunpack.c.l.b16 %v5842
        %v5971 = vunpack.c.l.b16 %v5843
        %v5972 = vunpack.c.l.b16 %v5844
        %v5973 = vunpack.c.l.b16 %v5845
        %v5974 = vunpack.c.l.b16 %v5846
        %v5975 = vunpack.c.l.b16 %v5847
        %v5976 = vunpack.c.l.b16 %v5848
        %v5977 = vunpack.c.l.b16 %v5849
        %v5978 = vunpack.c.l.b16 %v5850
        %v5979 = vunpack.c.l.b16 %v5851
        %v5980 = vunpack.c.l.b16 %v5852
        %v5981 = vunpack.c.l.b16 %v5853
        %v5982 = vunpack.c.l.b16 %v5854
        %v5983 = vunpack.c.l.b16 %v5855
        %v5984 = vunpack.c.l.b16 %v5856
        %v5985 = vunpack.c.l.b16 %v5857
        %v5986 = vunpack.c.l.b16 %v5858
        %v5987 = vunpack.c.l.b16 %v5859
        %v5988 = vunpack.c.l.b16 %v5860
        %v5989 = vunpack.c.l.b16 %v5861
        %v5990 = vpack.c.b16 %v5927, %v5926
        %v5991 = vpack.c.b16 %v5929, %v5928
        %v5992 = vpack.c.b16 %v5931, %v5930
        %v5993 = vpack.c.b16 %v5933, %v5932
        %v5994 = vpack.c.b16 %v5935, %v5934
        %v5995 = vpack.c.b16 %v5937, %v5936
        %v5996 = vpack.c.b16 %v5939, %v5938
        %v5997 = vpack.c.b16 %v5941, %v5940
        %v5998 = vpack.c.b16 %v5943, %v5942
        %v5999 = vpack.c.b16 %v5945, %v5944
        %v6000 = vpack.c.b16 %v5947, %v5946
        %v6001 = vpack.c.b16 %v5949, %v5948
        %v6002 = vpack.c.b16 %v5951, %v5950
        %v6003 = vpack.c.b16 %v5953, %v5952
        %v6004 = vpack.c.b16 %v5955, %v5954
        %v6005 = vpack.c.b16 %v5957, %v5956
        %v6006 = vpack.c.b16 %v5959, %v5958
        %v6007 = vpack.c.b16 %v5961, %v5960
        %v6008 = vpack.c.b16 %v5963, %v5962
        %v6009 = vpack.c.b16 %v5965, %v5964
        %v6010 = vpack.c.b16 %v5967, %v5966
        %v6011 = vpack.c.b16 %v5969, %v5968
        %v6012 = vpack.c.b16 %v5971, %v5970
        %v6013 = vpack.c.b16 %v5973, %v5972
        %v6014 = vpack.c.b16 %v5975, %v5974
        %v6015 = vpack.c.b16 %v5977, %v5976
        %v6016 = vpack.c.b16 %v5979, %v5978
        %v6017 = vpack.c.b16 %v5981, %v5980
        %v6018 = vpack.c.b16 %v5983, %v5982
        %v6019 = vpack.c.b16 %v5985, %v5984
        %v6020 = vpack.c.b16 %v5987, %v5986
        %v6021 = vpack.c.b16 %v5989, %v5988
        %6054 = vmatprep.subr.bf16.mxu0 0
        %6055 = vmatpush1.bf16.msra.mxu0 %v5990
        %6056 = vmatprep.subr.bf16.mxu0 0
        %6057 = vmatpush1.bf16.msra.mxu0 %v5991
        %6058 = vmatprep.subr.bf16.mxu0 0
        %6059 = vmatpush1.bf16.msra.mxu0 %v5992
        %6060 = vmatprep.subr.bf16.mxu0 0
        %6061 = vmatpush1.bf16.msra.mxu0 %v5993
        %6062 = vmatprep.subr.bf16.mxu0 0
        %6063 = vmatpush1.bf16.msra.mxu0 %v5994
        %6064 = vmatprep.subr.bf16.mxu0 0
        %6065 = vmatpush1.bf16.msra.mxu0 %v5995
        %6066 = vmatprep.subr.bf16.mxu0 0
        %6067 = vmatpush1.bf16.msra.mxu0 %v5996
        %6068 = vmatprep.subr.bf16.mxu0 0
        %6069 = vmatpush1.bf16.msra.mxu0 %v5997
        %6070 = vmatprep.subr.bf16.mxu0 0
        %6071 = vmatpush1.bf16.msra.mxu0 %v5998
        %6072 = vmatprep.subr.bf16.mxu0 0
        %6073 = vmatpush1.bf16.msra.mxu0 %v5999
        %6074 = vmatprep.subr.bf16.mxu0 0
        %6075 = vmatpush1.bf16.msra.mxu0 %v6000
        %6076 = vmatprep.subr.bf16.mxu0 0
        %6077 = vmatpush1.bf16.msra.mxu0 %v6001
        %6078 = vmatprep.subr.bf16.mxu0 0
        %6079 = vmatpush1.bf16.msra.mxu0 %v6002
        %6080 = vmatprep.subr.bf16.mxu0 0
        %6081 = vmatpush1.bf16.msra.mxu0 %v6003
        %6082 = vmatprep.subr.bf16.mxu0 0
        %6083 = vmatpush1.bf16.msra.mxu0 %v6004
        %6084 = vmatprep.subr.bf16.mxu0 0
        %6085 = vmatpush1.bf16.msra.mxu0 %v6005
        %6086 = vmatprep.mubr.bf16.mxu0 %v5795
        %6087 = vmatmul.mubr.bf16.gmra.mrb[0].mxu0 %v5794
        %v6088 = vpop.f32.mrb[0].mxu0
        %v6089 = vadd.f32 0.0, %v6088
        %v6090 = vpop.f32.mrb[0].mxu0
        %v6091 = vpop.f32.mrb[0].mxu0
        %v6092 = vpop.f32.mrb[0].mxu0
        %6093 = vdwg.mxu0
        %6094 = vmatprep.subr.bf16.mxu0 0
        %6095 = vmatpush1.bf16.msra.mxu0 %v6006
        %6096 = vmatprep.subr.bf16.mxu0 0
        %6097 = vmatpush1.bf16.msra.mxu0 %v6007
        %6098 = vmatprep.subr.bf16.mxu0 0
        %6099 = vmatpush1.bf16.msra.mxu0 %v6008
        %6100 = vmatprep.subr.bf16.mxu0 0
        %6101 = vmatpush1.bf16.msra.mxu0 %v6009
        %6102 = vmatprep.subr.bf16.mxu0 0
        %6103 = vmatpush1.bf16.msra.mxu0 %v6010
        %6104 = vmatprep.subr.bf16.mxu0 0
        %6105 = vmatpush1.bf16.msra.mxu0 %v6011
        %6106 = vmatprep.subr.bf16.mxu0 0
        %6107 = vmatpush1.bf16.msra.mxu0 %v6012
        %6108 = vmatprep.subr.bf16.mxu0 0
        %6109 = vmatpush1.bf16.msra.mxu0 %v6013
        %6110 = vmatprep.subr.bf16.mxu0 0
        %6111 = vmatpush1.bf16.msra.mxu0 %v6014
        %6112 = vmatprep.subr.bf16.mxu0 0
        %6113 = vmatpush1.bf16.msra.mxu0 %v6015
        %6114 = vmatprep.subr.bf16.mxu0 0
        %6115 = vmatpush1.bf16.msra.mxu0 %v6016
        %6116 = vmatprep.subr.bf16.mxu0 0
        %6117 = vmatpush1.bf16.msra.mxu0 %v6017
        %6118 = vmatprep.subr.bf16.mxu0 0
        %6119 = vmatpush1.bf16.msra.mxu0 %v6018
        %6120 = vmatprep.subr.bf16.mxu0 0
        %6121 = vmatpush1.bf16.msra.mxu0 %v6019
        %6122 = vmatprep.subr.bf16.mxu0 0
        %6123 = vmatpush1.bf16.msra.mxu0 %v6020
        %6124 = vmatprep.subr.bf16.mxu0 0
        %6125 = vmatpush1.bf16.msra.mxu0 %v6021
        %6126 = vmatprep.mubr.bf16.mxu0 %v5797
        %6127 = vmatmul.mubr.bf16.gmra.mrb[0].mxu0 %v5796
        %v6128 = vpop.f32.mrb[0].mxu0
        %v6129 = vadd.f32 %v6089, %v6128
        %v6130 = vpop.f32.mrb[0].mxu0
        %v6131 = vpop.f32.mrb[0].mxu0
        %v6132 = vpop.f32.mrb[0].mxu0
        %6133 = vdwg.mxu0
        %v6134 = vadd.f32 %v5793, %v6129
        %6135 = vst [vmem:[#allocation2] sm:$0x3] %v6134
        %p6136 = scmp.eq.s32.totalorder %s17, 3
        // Predicated region
        $region68: #{forward.11} parent=58 // pred_check
          %p6137 = pneg %p6136
        $region69: #{forward.11} parent=58 // pred_check_branch
          %6139 = sbr.rel (%p6137) target = $region71
        $region70: #{forward.11} parent=58 // pred_region
          %v6140 = vld [vmem:[#allocation2] sm:$0x3]
          %v6141 = vld [vmem:[%s4] sm:$0x1]
          %v6143 = vlaneseq
          %v6144 = vshrl.u32 %v6143, 7
          %v6145 = vsub.s32 0, %v6144
          %v6146 = vrot.slane %v6141, %v6145
          %v6148 = vadd.f32 %v6140, %v6146
          %6149 = vst [vmem:[#allocation4] sm:$0x3] %v6148
        $region71: #{forward.11} parent=58 // pred_fallthru
          _
        // Predicated region
        $region72: #{forward.11} parent=58 // pred_check
          %p6150 = pneg %p150
        $region73: #{forward.11} parent=58 // pred_check_branch
          %6152 = sbr.rel (%p6150) target = $region75
        $region74: #{forward.11} parent=58 // pred_region
          %s6154 = ssub.s32 32, 32
          %6155 = vsyncadd [#allocation5], %s6154
          %s6157 = sshll.u32 [#allocation4], 4
          %s6158 = int_to_ptr.vmem [resolvable:$true] %s6157
          %6160 = dma.vmem_to_hbm [thread:$0]  %s6158, 32, %s5, [#allocation5]
        $region75: #{forward.11} parent=58 // pred_fallthru
          _
        // Predicated region
        $region76: #{forward.11} parent=58 // pred_check
          %p6161 = pneg %p150
        $region77: #{forward.11} parent=58 // pred_check_branch
          %6163 = sbr.rel (%p6161) target = $region79
        $region78: #{forward.11} parent=58 // pred_region
          %6164 = dma.done [#allocation5], 32
        $region79: #{forward.11} parent=58 // pred_fallthru
          _
      $region59: #{forward.11} parent=5 // pred_fallthru
        _
      %p6165 = scmp.le.s32.totalorder 2, %s12
      // Predicated region
      $region80: #{forward.11} parent=5 // pred_check
        %p6166 = pneg %p6165
      $region81: #{forward.11} parent=5 // pred_check_branch
        %6168 = sbr.rel (%p6166) target = $region83
      $region82: #{forward.11} parent=5 // pred_region
        %s6169 = ssub.s32 %s12, 2
      $region83: #{forward.11} parent=5 // pred_fallthru
        _
    $region6: #{forward.11} parent=1 // loop_footer
      %s16 = sadd.s32 1, %s12
    $region7: #{forward.11} parent=1 // loop_footer_branch
      %11 = sbr.rel target = $region3
    $region8: #{forward.11} parent=1 // loop_exit
      _
    %6170 = vsyncpa [#allocation5], 1
    %s6171 = scalar_lea.sflag [#allocation5], 1
    %6172 = vsyncpa %s6171, 1

</llo_original>
